<compile_context>
chip_gen: v5e
topology: v5e:2x2
jax: 0.10.0
libtpu: 0.0.40
codegen_flags: <defaults>
</compile_context>

<pallas_src>
import functools

import numpy as np
import jax
import jax.numpy as jnp
from jax.experimental import pallas as pl
from jax.experimental.pallas import tpu as pltpu

_BF16 = jnp.bfloat16


# -----------------------------------------------------------------------------
# In-kernel helpers
# -----------------------------------------------------------------------------
def _dot(a, b):
    """MXU matmul, bf16 operands / f32 accumulation (operands are cast exactly
    once at each call site)."""
    return jnp.dot(a, b, preferred_element_type=jnp.float32)


def _silu(x):                      # f32 elementwise (v5e has no bf16 VPU/EUP)
    return x * jax.nn.sigmoid(x)


def _pool2x2(x):
    """2x2 average pool for rows in pool-friendly order: mean of 4 contiguous
    row blocks (exact f32 slice-adds; no MXU, no extra VMEM)."""
    m = x.shape[0] // 4
    return 0.25 * (x[0:m] + x[m:2 * m] + x[2 * m:3 * m] + x[3 * m:4 * m])


def _upsample2x2(x):
    """Nearest 2x upsample for pool-friendly row order: 4-way row replication."""
    return jnp.concatenate([x, x, x, x], axis=0)


def _vmem_limit_bytes():
    """~75% of physical VMEM: ~48 MiB on v7x (64 MiB), ~96 MiB on v5e/v6e."""
    try:
        cap = int(pltpu.get_tpu_info().vmem_capacity_bytes)
    except Exception:
        cap = 64 * 1024 * 1024
    return min((cap * 3) // 4, 110 * 1024 * 1024)


# -----------------------------------------------------------------------------
# Pool-friendly row permutation (host-side numpy, baked as constants)
# -----------------------------------------------------------------------------
def _pool_friendly_perm(H, W):
    """Per-batch permutation of the H*W raster rows such that a 2x2 average
    pool equals the mean of 4 contiguous row blocks, recursively for two
    pooling levels.  Returns numpy int32 index arrays:
      src[p] -> raster row stored at pool-friendly position p   (input gather)
      pos[r] -> pool-friendly position of raster row r          (output gather)
    """
    assert H % 4 == 0 and W % 4 == 0, "need two 2x pooling levels"

    def lift(pos_coarse, Hf, Wf):
        half = (Hf // 2) * (Wf // 2)
        pos = np.empty((Hf, Wf), dtype=np.int64)
        for qh in range(2):
            for qw in range(2):
                pos[qh::2, qw::2] = (qh * 2 + qw) * half + pos_coarse
        return pos

    pos2 = np.arange((H // 4) * (W // 4)).reshape(H // 4, W // 4)   # level 2: raster
    pos1 = lift(pos2, H // 2, W // 2)                               # level 1
    pos0 = lift(pos1, H, W)                                         # level 0
    pos = pos0.reshape(-1)
    src = np.argsort(pos)
    return src.astype(np.int32), pos.astype(np.int32)


def timestep_embedding(t, dim, batch):
    t = jnp.asarray(t, jnp.float32)
    if t.ndim == 0:
        t = jnp.broadcast_to(t, (batch,))
    half = dim // 2
    freqs = jnp.exp(-jnp.log(10000.0) * jnp.arange(half, dtype=jnp.float32) / half)
    args = t[:, None] * freqs[None, :]
    return jnp.concatenate([jnp.sin(args), jnp.cos(args)], axis=-1)   # (N, dim)


# -----------------------------------------------------------------------------
# Fused ControlNet kernel — grid = (batch, controlnet); outputs are resident
# accumulators over the ControlNet axis: out = sum_i scale_i * residual_i.
# -----------------------------------------------------------------------------
def _controlnet_kernel(
    scales_ref,                     # SMEM (num_cn,) f32 (scalar-prefetched)
    x_ref, cond_ref,                # (1,HW0,Cs) bf16, (1,1,HW0,Ccond) bf16
    temb_ref, ctx_ref,              # (1,1,T) bf16, (1,1,E) bf16
    w_in_ref, w_cond_ref, b_in_ref,
    w_t_ref, w_c_ref, b_emb_ref,
    w_d0_ref, b_d0_ref,
    w_h1_ref, b_h1_ref,
    w_d1_ref, b_d1_ref,
    w_h2_ref, b_h2_ref,
    w_dm_ref, b_dm_ref,             # pre-summed (w_d2 + w_mid), (b_d2 + b_mid)
    d0_ref, d1_ref, d2m_ref,        # resident accumulators (per batch block)
):
    i = pl.program_id(1)

    # Per-batch timestep/context embedding (1, C0); never hits HBM, added by a
    # plain sublane broadcast (no one-hot matmul).
    emb = (_dot(temb_ref[0], w_t_ref[0]) + _dot(ctx_ref[0], w_c_ref[0])
           + b_emb_ref[0])

    # level 0: split sample / cond matmuls, bias + emb broadcast + SiLU.
    h0 = _silu(_dot(x_ref[0], w_in_ref[0]) + _dot(cond_ref[0, 0], w_cond_ref[0])
               + b_in_ref[0] + emb)                              # (HW0, C0) f32
    d0 = _dot(h0.astype(_BF16), w_d0_ref[0]) + b_d0_ref[0]

    # level 1: exact f32 2x2 avg-pool (slice adds) + linear + SiLU.
    h1 = _silu(_dot(_pool2x2(h0).astype(_BF16), w_h1_ref[0]) + b_h1_ref[0])
    d1 = _dot(h1.astype(_BF16), w_d1_ref[0]) + b_d1_ref[0]

    # level 2 + mid: second pool; down2 & mid output heads pre-summed.
    h2 = _silu(_dot(_pool2x2(h1).astype(_BF16), w_h2_ref[0]) + b_h2_ref[0])
    d2m = _dot(h2.astype(_BF16), w_dm_ref[0]) + b_dm_ref[0]

    s = scales_ref[i]               # conditioning scale fused into the epilogue

    @pl.when(i == 0)
    def _():                        # first ControlNet writes directly
        d0_ref[0] = s * d0
        d1_ref[0] = s * d1
        d2m_ref[0] = s * d2m

    @pl.when(i > 0)
    def _():                        # later ControlNets accumulate
        d0_ref[0] = d0_ref[0] + s * d0
        d1_ref[0] = d1_ref[0] + s * d1
        d2m_ref[0] = d2m_ref[0] + s * d2m


# -----------------------------------------------------------------------------
# Fused UNet kernel — grid = (batch,); whole backbone + residual injection +
# skip connections in one launch per batch element.
# -----------------------------------------------------------------------------
def _unet_kernel(
    x_ref, temb_ref, ctx_ref,
    d0_ref, d1_ref, d2m_ref,
    w_in_ref, b_in_ref, w_t_ref, w_c_ref, b_emb_ref,
    w_1_ref, b_1_ref, w_2_ref, b_2_ref,
    w_u1_ref, b_u1_ref, w_u0_ref, b_u0_ref,
    w_out_ref, b_out_ref,
    o_ref,
):
    emb = (_dot(temb_ref[0], w_t_ref[...]) + _dot(ctx_ref[0], w_c_ref[...])
           + b_emb_ref[...])

    h0 = _silu(_dot(x_ref[0], w_in_ref[...]) + b_in_ref[...] + emb)
    h0 = h0 + d0_ref[0]                                   # down residual 0

    h1 = _silu(_dot(_pool2x2(h0).astype(_BF16), w_1_ref[...]) + b_1_ref[...])
    h1 = h1 + d1_ref[0]                                   # down residual 1

    h2 = _silu(_dot(_pool2x2(h1).astype(_BF16), w_2_ref[...]) + b_2_ref[...])
    h2 = h2 + d2m_ref[0]                                  # down residual 2 + mid

    # Nearest upsample commutes with the row-wise linear+SiLU: matmul on the
    # coarse rows first, then replicate (4x fewer MXU/EUP rows).
    u1 = _upsample2x2(_silu(_dot(h2.astype(_BF16), w_u1_ref[...]) + b_u1_ref[...]))
    u1 = u1 + h1                                          # skip connection

    u0 = _upsample2x2(_silu(_dot(u1.astype(_BF16), w_u0_ref[...]) + b_u0_ref[...]))
    u0 = u0 + h0                                          # skip connection

    o_ref[0] = _dot(u0.astype(_BF16), w_out_ref[...]) + b_out_ref[...]


# -----------------------------------------------------------------------------
# Top-level forward == UNet2DConditionControlNetModel.forward
# -----------------------------------------------------------------------------
_CN_PARAM_ORDER = ("w_in", "w_cond", "b_in", "w_t", "w_c", "b_emb",
                   "w_d0", "b_d0", "w_h1", "b_h1", "w_d1", "b_d1",
                   "w_h2", "b_h2", "w_dm", "b_dm")
_UNET_PARAM_ORDER = ("w_in", "b_in", "w_t", "w_c", "b_emb", "w_1", "b_1",
                     "w_2", "b_2", "w_u1", "b_u1", "w_u0", "b_u0",
                     "w_out", "b_out")


def unet_controlnet_forward(unet_p, cn_stacked, sample, timestep,
                            encoder_hidden_states, images, controlnet_scales,
                            temb_dim):
    N, Cs, H, W = sample.shape
    num_cn, _, Ccond, _, _ = images.shape
    HW0, HW1, HW2 = H * W, (H * W) // 4, (H * W) // 16
    C0 = unet_p["w_in"].shape[1]
    C1 = unet_p["w_1"].shape[1]
    C2 = unet_p["w_2"].shape[1]
    T = unet_p["w_t"].shape[0]
    E = unet_p["w_c"].shape[0]

    # Pool-friendly row permutation: numpy at trace time -> compile-time const.
    src_np, pos_np = _pool_friendly_perm(H, W)
    src, pos = jnp.asarray(src_np), jnp.asarray(pos_np)

    # Embedding inputs as (N, 1, dim) bf16 so per-batch (1,1,dim) blocks are valid.
    temb = timestep_embedding(timestep, temb_dim, N).astype(_BF16)[:, None, :]
    # TODO(synk): mean-pooled context stands in for real cross-attention.
    ctx = encoder_hidden_states.mean(axis=1).astype(_BF16)[:, None, :]

    # NCHW -> (N, HW, C), permuted to pool-friendly row order, bf16 matmul dtype.
    sample_pf = jnp.take(
        jnp.transpose(sample, (0, 2, 3, 1)).reshape(N, HW0, Cs),
        src, axis=1).astype(_BF16)
    conds_pf = jnp.take(
        jnp.transpose(images, (0, 1, 3, 4, 2)).reshape(num_cn, N, HW0, Ccond),
        src, axis=2).astype(_BF16)

    vmem = _vmem_limit_bytes()
    cn_args = [cn_stacked[k] for k in _CN_PARAM_ORDER]

    fix_b = lambda b, i, s: (b, 0, 0)           # per-batch block, fixed over CN
    per_cn = lambda b, i, s: (i, 0, 0)          # per-ControlNet stacked weights
    cond_map = lambda b, i, s: (i, b, 0, 0)

    cn_in_specs = (
        [pl.BlockSpec((1, HW0, Cs), fix_b),
         pl.BlockSpec((1, 1, HW0, Ccond), cond_map),
         pl.BlockSpec((1, 1, T), fix_b),
         pl.BlockSpec((1, 1, E), fix_b)]
        + [pl.BlockSpec((1,) + a.shape[1:], per_cn) for a in cn_args])
    cn_out_specs = (pl.BlockSpec((1, HW0, C0), fix_b),
                    pl.BlockSpec((1, HW1, C1), fix_b),
                    pl.BlockSpec((1, HW2, C2), fix_b))

    d0, d1, d2m = pl.pallas_call(
        _controlnet_kernel,
        grid_spec=pltpu.PrefetchScalarGridSpec(
            num_scalar_prefetch=1,
            grid=(N, num_cn),                    # batch parallel, CN accumulates
            in_specs=cn_in_specs,
            out_specs=cn_out_specs),
        out_shape=(jax.ShapeDtypeStruct((N, HW0, C0), jnp.float32),
                   jax.ShapeDtypeStruct((N, HW1, C1), jnp.float32),
                   jax.ShapeDtypeStruct((N, HW2, C2), jnp.float32)),
        compiler_params=pltpu.CompilerParams(
            dimension_semantics=("parallel", "arbitrary"),
            vmem_limit_bytes=vmem),
    )(controlnet_scales.astype(jnp.float32), sample_pf, conds_pf, temb, ctx,
      *cn_args)

    unet_args = [unet_p[k] for k in _UNET_PARAM_ORDER]
    b3 = lambda b: (b, 0, 0)
    full = lambda a: pl.BlockSpec(a.shape, lambda b, _nd=a.ndim: (0,) * _nd)

    out_pf = pl.pallas_call(
        _unet_kernel,
        grid=(N,),
        in_specs=([pl.BlockSpec((1, HW0, Cs), b3),
                   pl.BlockSpec((1, 1, T), b3),
                   pl.BlockSpec((1, 1, E), b3),
                   pl.BlockSpec((1, HW0, C0), b3),
                   pl.BlockSpec((1, HW1, C1), b3),
                   pl.BlockSpec((1, HW2, C2), b3)]
                  + [full(a) for a in unet_args]),
        out_specs=pl.BlockSpec((1, HW0, Cs), b3),
        out_shape=jax.ShapeDtypeStruct((N, HW0, Cs), jnp.float32),
        compiler_params=pltpu.CompilerParams(
            dimension_semantics=("parallel",),
            vmem_limit_bytes=vmem),
    )(sample_pf, temb, ctx, d0, d1, d2m, *unet_args)

    # Undo the pool-friendly row permutation and return NCHW f32.
    out = jnp.take(out_pf, pos, axis=1).reshape(N, H, W, Cs)
    return jnp.transpose(out, (0, 3, 1, 2))


# -----------------------------------------------------------------------------
# Deterministic parameter construction (weights bf16, biases f32)
# -----------------------------------------------------------------------------
def _linear(key, cin, cout, w_dtype=_BF16):
    kw, kb = jax.random.split(key)
    w = (jax.random.normal(kw, (cin, cout), jnp.float32) * 0.05).astype(w_dtype)
    b = jax.random.normal(kb, (1, cout), jnp.float32) * 0.01
    return w, b


def make_controlnet_params(key, Cs, Ccond, T, E, C0, C1, C2):
    ks = jax.random.split(key, 9)
    w_in, b_in = _linear(ks[0], Cs, C0)
    w_cond, _ = _linear(ks[1], Ccond, C0)
    w_t, _ = _linear(ks[2], T, C0)
    w_c, b_emb = _linear(ks[3], E, C0)
    w_d0, b_d0 = _linear(ks[4], C0, C0)
    w_h1, b_h1 = _linear(ks[5], C0, C1)
    w_d1, b_d1 = _linear(ks[6], C1, C1)
    w_h2, b_h2 = _linear(ks[7], C1, C2)
    kd2, kmid = jax.random.split(ks[8])
    w_d2, b_d2 = _linear(kd2, C2, C2)          # separate down-2 / mid heads
    w_mid, b_mid = _linear(kmid, C2, C2)
    return dict(w_in=w_in, w_cond=w_cond, b_in=b_in, w_t=w_t, w_c=w_c,
                b_emb=b_emb, w_d0=w_d0, b_d0=b_d0, w_h1=w_h1, b_h1=b_h1,
                w_d1=w_d1, b_d1=b_d1, w_h2=w_h2, b_h2=b_h2,
                w_d2=w_d2, b_d2=b_d2, w_mid=w_mid, b_mid=b_mid)


def stack_controlnet_params(cn_params):
    """Stack per-ControlNet weights ONCE (outside jit).  down2 and mid output
    heads are consumed only as a sum by this synthetic UNet, so they are
    pre-summed into one lane-dense head here."""
    stacked = {}
    for k in ("w_in", "w_cond", "b_in", "w_t", "w_c", "b_emb", "w_d0", "b_d0",
              "w_h1", "b_h1", "w_d1", "b_d1", "w_h2", "b_h2"):
        stacked[k] = jnp.stack([p[k] for p in cn_params])
    stacked["w_dm"] = jnp.stack(
        [(p["w_d2"].astype(jnp.float32)
          + p["w_mid"].astype(jnp.float32)).astype(_BF16) for p in cn_params])
    stacked["b_dm"] = jnp.stack([p["b_d2"] + p["b_mid"] for p in cn_params])
    return stacked


def make_unet_params(key, Cs, T, E, C0, C1, C2):
    ks = jax.random.split(key, 8)
    w_in, b_in = _linear(ks[0], Cs, C0)
    w_t, _ = _linear(ks[1], T, C0)
    w_c, b_emb = _linear(ks[2], E, C0)
    w_1, b_1 = _linear(ks[3], C0, C1)
    w_2, b_2 = _linear(ks[4], C1, C2)
    w_u1, b_u1 = _linear(ks[5], C2, C1)
    w_u0, b_u0 = _linear(ks[6], C1, C0)
    w_out, b_out = _linear(ks[7], C0, Cs)
    return dict(w_in=w_in, b_in=b_in, w_t=w_t, w_c=w_c, b_emb=b_emb,
                w_1=w_1, b_1=b_1, w_2=w_2, b_2=b_2, w_u1=w_u1, b_u1=b_u1,
                w_u0=w_u0, b_u0=b_u0, w_out=w_out, b_out=b_out)


# -----------------------------------------------------------------------------
if __name__ == "__main__":
    N, Cs, H, W = 2, 4, 16, 16          # sample: latent NCHW
    S, E = 8, 32                        # encoder_hidden_states: (N, S, E)
    Ccond = 3                           # controlnet_cond channels
    C0 = C1 = C2 = 128                  # lane-dense synthetic widths (real >=320)
    T = 128                             # timestep-embedding dim
    num_cn = 2                          # number of ControlNets

    key = jax.random.PRNGKey(0)
    k_in, k_enc, k_img, k_u, *k_cn = jax.random.split(key, 4 + num_cn)

    sample = jax.random.normal(k_in, (N, Cs, H, W), jnp.float32)
    timestep = jnp.float32(10.0)
    encoder_hidden_states = jax.random.normal(k_enc, (N, S, E), jnp.float32)
    images = jax.random.normal(k_img, (num_cn, N, Ccond, H, W), jnp.float32)
    controlnet_scales = jnp.array([1.0, 0.5], jnp.float32)

    unet_params = make_unet_params(k_u, Cs, T, E, C0, C1, C2)
    cn_stacked = stack_controlnet_params(
        [make_controlnet_params(k, Cs, Ccond, T, E, C0, C1, C2) for k in k_cn])

    fwd = jax.jit(functools.partial(unet_controlnet_forward, temb_dim=T))
    noise_pred = fwd(unet_params, cn_stacked, sample, timestep,
                     encoder_hidden_states, images, controlnet_scales)
    jax.block_until_ready(noise_pred)

    assert noise_pred.shape == (N, Cs, H, W)
    assert noise_pred.dtype == jnp.float32
    assert bool(jnp.all(jnp.isfinite(noise_pred)))
    print("KERNEL_OK")
</pallas_src>

<mosaic_0001>
module attributes {stable_mosaic.version = 11 : i64} {
  func.func @_controlnet_kernel(%arg0: i32, %arg1: i32, %arg2: memref<2xf32, #tpu.memory_space<smem>>, %arg3: memref<1x256x4xbf16, #tpu.memory_space<vmem>>, %arg4: memref<1x1x256x3xbf16, #tpu.memory_space<vmem>>, %arg5: memref<1x1x128xbf16, #tpu.memory_space<vmem>>, %arg6: memref<1x1x32xbf16, #tpu.memory_space<vmem>>, %arg7: memref<1x4x128xbf16, #tpu.memory_space<vmem>>, %arg8: memref<1x3x128xbf16, #tpu.memory_space<vmem>>, %arg9: memref<1x1x128xf32, #tpu.memory_space<vmem>>, %arg10: memref<1x128x128xbf16, #tpu.memory_space<vmem>>, %arg11: memref<1x32x128xbf16, #tpu.memory_space<vmem>>, %arg12: memref<1x1x128xf32, #tpu.memory_space<vmem>>, %arg13: memref<1x128x128xbf16, #tpu.memory_space<vmem>>, %arg14: memref<1x1x128xf32, #tpu.memory_space<vmem>>, %arg15: memref<1x128x128xbf16, #tpu.memory_space<vmem>>, %arg16: memref<1x1x128xf32, #tpu.memory_space<vmem>>, %arg17: memref<1x128x128xbf16, #tpu.memory_space<vmem>>, %arg18: memref<1x1x128xf32, #tpu.memory_space<vmem>>, %arg19: memref<1x128x128xbf16, #tpu.memory_space<vmem>>, %arg20: memref<1x1x128xf32, #tpu.memory_space<vmem>>, %arg21: memref<1x128x128xbf16, #tpu.memory_space<vmem>>, %arg22: memref<1x1x128xf32, #tpu.memory_space<vmem>>, %arg23: memref<1x256x128xf32, #tpu.memory_space<vmem>>, %arg24: memref<1x64x128xf32, #tpu.memory_space<vmem>>, %arg25: memref<1x16x128xf32, #tpu.memory_space<vmem>>) attributes {dimension_semantics = [#tpu.dimension_semantics<parallel>, #tpu.dimension_semantics<arbitrary>], iteration_bounds = array<i64: 2, 2>, scalar_prefetch = 1 : i64, scratch_operands = 0 : i64, tpu.core_type = #tpu.core_type<tc>, window_params = [{transform_indices = @transform_0, window_bounds = array<i64: 1, 256, 4>}, {transform_indices = @transform_1, window_bounds = array<i64: 1, 1, 256, 3>}, {transform_indices = @transform_2, window_bounds = array<i64: 1, 1, 128>}, {transform_indices = @transform_3, window_bounds = array<i64: 1, 1, 32>}, {transform_indices = @transform_4, window_bounds = array<i64: 1, 4, 128>}, {transform_indices = @transform_5, window_bounds = array<i64: 1, 3, 128>}, {transform_indices = @transform_6, window_bounds = array<i64: 1, 1, 128>}, {transform_indices = @transform_7, window_bounds = array<i64: 1, 128, 128>}, {transform_indices = @transform_8, window_bounds = array<i64: 1, 32, 128>}, {transform_indices = @transform_9, window_bounds = array<i64: 1, 1, 128>}, {transform_indices = @transform_10, window_bounds = array<i64: 1, 128, 128>}, {transform_indices = @transform_11, window_bounds = array<i64: 1, 1, 128>}, {transform_indices = @transform_12, window_bounds = array<i64: 1, 128, 128>}, {transform_indices = @transform_13, window_bounds = array<i64: 1, 1, 128>}, {transform_indices = @transform_14, window_bounds = array<i64: 1, 128, 128>}, {transform_indices = @transform_15, window_bounds = array<i64: 1, 1, 128>}, {transform_indices = @transform_16, window_bounds = array<i64: 1, 128, 128>}, {transform_indices = @transform_17, window_bounds = array<i64: 1, 1, 128>}, {transform_indices = @transform_18, window_bounds = array<i64: 1, 128, 128>}, {transform_indices = @transform_19, window_bounds = array<i64: 1, 1, 128>}, {transform_indices = @transform_20, window_bounds = array<i64: 1, 256, 128>}, {transform_indices = @transform_21, window_bounds = array<i64: 1, 64, 128>}, {transform_indices = @transform_22, window_bounds = array<i64: 1, 16, 128>}]} {
    %c0 = arith.constant 0 : index
    %c0_0 = arith.constant 0 : index
    %c0_1 = arith.constant 0 : index
    %0 = vector.load %arg5[%c0, %c0_0, %c0_1] : memref<1x1x128xbf16, #tpu.memory_space<vmem>>, vector<1x1x128xbf16>
    %1 = vector.shape_cast %0 : vector<1x1x128xbf16> to vector<1x128xbf16>
    %c0_2 = arith.constant 0 : index
    %c0_3 = arith.constant 0 : index
    %c0_4 = arith.constant 0 : index
    %2 = vector.load %arg10[%c0_2, %c0_3, %c0_4] : memref<1x128x128xbf16, #tpu.memory_space<vmem>>, vector<1x128x128xbf16>
    %3 = vector.shape_cast %2 : vector<1x128x128xbf16> to vector<128x128xbf16>
    %cst = arith.constant dense<0.000000e+00> : vector<1x128xf32>
    %4 = tpu.matmul %1, %3, %cst {dimension_numbers = #tpu.dot_dimension_numbers<[1], [0], [0], [1], [0, 0, 1, 1], [], []>} : vector<1x128xbf16>, vector<128x128xbf16>, vector<1x128xf32> -> vector<1x128xf32>
    %c0_5 = arith.constant 0 : index
    %c0_6 = arith.constant 0 : index
    %c0_7 = arith.constant 0 : index
    %5 = vector.load %arg6[%c0_5, %c0_6, %c0_7] : memref<1x1x32xbf16, #tpu.memory_space<vmem>>, vector<1x1x32xbf16>
    %6 = vector.shape_cast %5 : vector<1x1x32xbf16> to vector<1x32xbf16>
    %c0_8 = arith.constant 0 : index
    %c0_9 = arith.constant 0 : index
    %c0_10 = arith.constant 0 : index
    %7 = vector.load %arg11[%c0_8, %c0_9, %c0_10] : memref<1x32x128xbf16, #tpu.memory_space<vmem>>, vector<1x32x128xbf16>
    %8 = vector.shape_cast %7 : vector<1x32x128xbf16> to vector<32x128xbf16>
    %cst_11 = arith.constant dense<0.000000e+00> : vector<1x128xf32>
    %9 = tpu.matmul %6, %8, %cst_11 {dimension_numbers = #tpu.dot_dimension_numbers<[1], [0], [0], [1], [0, 0, 1, 1], [], []>} : vector<1x32xbf16>, vector<32x128xbf16>, vector<1x128xf32> -> vector<1x128xf32>
    %10 = arith.addf %4, %9 : vector<1x128xf32>
    %c0_12 = arith.constant 0 : index
    %c0_13 = arith.constant 0 : index
    %c0_14 = arith.constant 0 : index
    %11 = vector.load %arg12[%c0_12, %c0_13, %c0_14] : memref<1x1x128xf32, #tpu.memory_space<vmem>>, vector<1x1x128xf32>
    %12 = vector.shape_cast %11 : vector<1x1x128xf32> to vector<1x128xf32>
    %13 = arith.addf %10, %12 : vector<1x128xf32>
    %c0_15 = arith.constant 0 : index
    %c0_16 = arith.constant 0 : index
    %c0_17 = arith.constant 0 : index
    %14 = vector.load %arg3[%c0_15, %c0_16, %c0_17] : memref<1x256x4xbf16, #tpu.memory_space<vmem>>, vector<1x256x4xbf16>
    %15 = vector.shape_cast %14 : vector<1x256x4xbf16> to vector<256x4xbf16>
    %c0_18 = arith.constant 0 : index
    %c0_19 = arith.constant 0 : index
    %c0_20 = arith.constant 0 : index
    %16 = vector.load %arg7[%c0_18, %c0_19, %c0_20] : memref<1x4x128xbf16, #tpu.memory_space<vmem>>, vector<1x4x128xbf16>
    %17 = vector.shape_cast %16 : vector<1x4x128xbf16> to vector<4x128xbf16>
    %cst_21 = arith.constant dense<0.000000e+00> : vector<256x128xf32>
    %18 = tpu.matmul %15, %17, %cst_21 {dimension_numbers = #tpu.dot_dimension_numbers<[1], [0], [0], [1], [0, 0, 1, 1], [], []>} : vector<256x4xbf16>, vector<4x128xbf16>, vector<256x128xf32> -> vector<256x128xf32>
    %c0_22 = arith.constant 0 : index
    %c0_23 = arith.constant 0 : index
    %c0_24 = arith.constant 0 : index
    %c0_25 = arith.constant 0 : index
    %19 = vector.load %arg4[%c0_22, %c0_23, %c0_24, %c0_25] : memref<1x1x256x3xbf16, #tpu.memory_space<vmem>>, vector<1x1x256x3xbf16>
    %20 = vector.shape_cast %19 : vector<1x1x256x3xbf16> to vector<256x3xbf16>
    %c0_26 = arith.constant 0 : index
    %c0_27 = arith.constant 0 : index
    %c0_28 = arith.constant 0 : index
    %21 = vector.load %arg8[%c0_26, %c0_27, %c0_28] : memref<1x3x128xbf16, #tpu.memory_space<vmem>>, vector<1x3x128xbf16>
    %22 = vector.shape_cast %21 : vector<1x3x128xbf16> to vector<3x128xbf16>
    %cst_29 = arith.constant dense<0.000000e+00> : vector<256x128xf32>
    %23 = tpu.matmul %20, %22, %cst_29 {dimension_numbers = #tpu.dot_dimension_numbers<[1], [0], [0], [1], [0, 0, 1, 1], [], []>} : vector<256x3xbf16>, vector<3x128xbf16>, vector<256x128xf32> -> vector<256x128xf32>
    %24 = arith.addf %18, %23 : vector<256x128xf32>
    %c0_30 = arith.constant 0 : index
    %c0_31 = arith.constant 0 : index
    %c0_32 = arith.constant 0 : index
    %25 = vector.load %arg9[%c0_30, %c0_31, %c0_32] : memref<1x1x128xf32, #tpu.memory_space<vmem>>, vector<1x1x128xf32>
    %26 = vector.shape_cast %25 : vector<1x1x128xf32> to vector<1x128xf32>
    %27 = vector.broadcast %26 : vector<1x128xf32> to vector<256x128xf32>
    %28 = arith.addf %24, %27 : vector<256x128xf32>
    %29 = vector.broadcast %13 : vector<1x128xf32> to vector<256x128xf32>
    %30 = arith.addf %28, %29 : vector<256x128xf32>
    %31 = arith.negf %30 : vector<256x128xf32>
    %32 = math.exp %31 : vector<256x128xf32>
    %cst_33 = arith.constant 1.000000e+00 : f32
    %33 = vector.broadcast %cst_33 : f32 to vector<256x128xf32>
    %34 = arith.addf %33, %32 : vector<256x128xf32>
    %35 = arith.divf %33, %34 : vector<256x128xf32>
    %36 = arith.mulf %30, %35 : vector<256x128xf32>
    %37 = arith.truncf %36 : vector<256x128xf32> to vector<256x128xbf16>
    %c0_34 = arith.constant 0 : index
    %c0_35 = arith.constant 0 : index
    %c0_36 = arith.constant 0 : index
    %38 = vector.load %arg13[%c0_34, %c0_35, %c0_36] : memref<1x128x128xbf16, #tpu.memory_space<vmem>>, vector<1x128x128xbf16>
    %39 = vector.shape_cast %38 : vector<1x128x128xbf16> to vector<128x128xbf16>
    %cst_37 = arith.constant dense<0.000000e+00> : vector<256x128xf32>
    %40 = tpu.matmul %37, %39, %cst_37 {dimension_numbers = #tpu.dot_dimension_numbers<[1], [0], [0], [1], [0, 0, 1, 1], [], []>} : vector<256x128xbf16>, vector<128x128xbf16>, vector<256x128xf32> -> vector<256x128xf32>
    %c0_38 = arith.constant 0 : index
    %c0_39 = arith.constant 0 : index
    %c0_40 = arith.constant 0 : index
    %41 = vector.load %arg14[%c0_38, %c0_39, %c0_40] : memref<1x1x128xf32, #tpu.memory_space<vmem>>, vector<1x1x128xf32>
    %42 = vector.shape_cast %41 : vector<1x1x128xf32> to vector<1x128xf32>
    %43 = vector.broadcast %42 : vector<1x128xf32> to vector<256x128xf32>
    %44 = arith.addf %40, %43 : vector<256x128xf32>
    %45 = vector.extract_strided_slice %36 {offsets = [0, 0], sizes = [64, 128], strides = [1, 1]} : vector<256x128xf32> to vector<64x128xf32>
    %46 = vector.extract_strided_slice %36 {offsets = [64, 0], sizes = [64, 128], strides = [1, 1]} : vector<256x128xf32> to vector<64x128xf32>
    %47 = arith.addf %45, %46 : vector<64x128xf32>
    %48 = vector.extract_strided_slice %36 {offsets = [128, 0], sizes = [64, 128], strides = [1, 1]} : vector<256x128xf32> to vector<64x128xf32>
    %49 = arith.addf %47, %48 : vector<64x128xf32>
    %50 = vector.extract_strided_slice %36 {offsets = [192, 0], sizes = [64, 128], strides = [1, 1]} : vector<256x128xf32> to vector<64x128xf32>
    %51 = arith.addf %49, %50 : vector<64x128xf32>
    %cst_41 = arith.constant 2.500000e-01 : f32
    %52 = vector.broadcast %cst_41 : f32 to vector<64x128xf32>
    %53 = arith.mulf %52, %51 : vector<64x128xf32>
    %54 = arith.truncf %53 : vector<64x128xf32> to vector<64x128xbf16>
    %c0_42 = arith.constant 0 : index
    %c0_43 = arith.constant 0 : index
    %c0_44 = arith.constant 0 : index
    %55 = vector.load %arg15[%c0_42, %c0_43, %c0_44] : memref<1x128x128xbf16, #tpu.memory_space<vmem>>, vector<1x128x128xbf16>
    %56 = vector.shape_cast %55 : vector<1x128x128xbf16> to vector<128x128xbf16>
    %cst_45 = arith.constant dense<0.000000e+00> : vector<64x128xf32>
    %57 = tpu.matmul %54, %56, %cst_45 {dimension_numbers = #tpu.dot_dimension_numbers<[1], [0], [0], [1], [0, 0, 1, 1], [], []>} : vector<64x128xbf16>, vector<128x128xbf16>, vector<64x128xf32> -> vector<64x128xf32>
    %c0_46 = arith.constant 0 : index
    %c0_47 = arith.constant 0 : index
    %c0_48 = arith.constant 0 : index
    %58 = vector.load %arg16[%c0_46, %c0_47, %c0_48] : memref<1x1x128xf32, #tpu.memory_space<vmem>>, vector<1x1x128xf32>
    %59 = vector.shape_cast %58 : vector<1x1x128xf32> to vector<1x128xf32>
    %60 = vector.broadcast %59 : vector<1x128xf32> to vector<64x128xf32>
    %61 = arith.addf %57, %60 : vector<64x128xf32>
    %62 = arith.negf %61 : vector<64x128xf32>
    %63 = math.exp %62 : vector<64x128xf32>
    %cst_49 = arith.constant 1.000000e+00 : f32
    %64 = vector.broadcast %cst_49 : f32 to vector<64x128xf32>
    %65 = arith.addf %64, %63 : vector<64x128xf32>
    %66 = arith.divf %64, %65 : vector<64x128xf32>
    %67 = arith.mulf %61, %66 : vector<64x128xf32>
    %68 = arith.truncf %67 : vector<64x128xf32> to vector<64x128xbf16>
    %c0_50 = arith.constant 0 : index
    %c0_51 = arith.constant 0 : index
    %c0_52 = arith.constant 0 : index
    %69 = vector.load %arg17[%c0_50, %c0_51, %c0_52] : memref<1x128x128xbf16, #tpu.memory_space<vmem>>, vector<1x128x128xbf16>
    %70 = vector.shape_cast %69 : vector<1x128x128xbf16> to vector<128x128xbf16>
    %cst_53 = arith.constant dense<0.000000e+00> : vector<64x128xf32>
    %71 = tpu.matmul %68, %70, %cst_53 {dimension_numbers = #tpu.dot_dimension_numbers<[1], [0], [0], [1], [0, 0, 1, 1], [], []>} : vector<64x128xbf16>, vector<128x128xbf16>, vector<64x128xf32> -> vector<64x128xf32>
    %c0_54 = arith.constant 0 : index
    %c0_55 = arith.constant 0 : index
    %c0_56 = arith.constant 0 : index
    %72 = vector.load %arg18[%c0_54, %c0_55, %c0_56] : memref<1x1x128xf32, #tpu.memory_space<vmem>>, vector<1x1x128xf32>
    %73 = vector.shape_cast %72 : vector<1x1x128xf32> to vector<1x128xf32>
    %74 = vector.broadcast %73 : vector<1x128xf32> to vector<64x128xf32>
    %75 = arith.addf %71, %74 : vector<64x128xf32>
    %76 = vector.extract_strided_slice %67 {offsets = [0, 0], sizes = [16, 128], strides = [1, 1]} : vector<64x128xf32> to vector<16x128xf32>
    %77 = vector.extract_strided_slice %67 {offsets = [16, 0], sizes = [16, 128], strides = [1, 1]} : vector<64x128xf32> to vector<16x128xf32>
    %78 = arith.addf %76, %77 : vector<16x128xf32>
    %79 = vector.extract_strided_slice %67 {offsets = [32, 0], sizes = [16, 128], strides = [1, 1]} : vector<64x128xf32> to vector<16x128xf32>
    %80 = arith.addf %78, %79 : vector<16x128xf32>
    %81 = vector.extract_strided_slice %67 {offsets = [48, 0], sizes = [16, 128], strides = [1, 1]} : vector<64x128xf32> to vector<16x128xf32>
    %82 = arith.addf %80, %81 : vector<16x128xf32>
    %cst_57 = arith.constant 2.500000e-01 : f32
    %83 = vector.broadcast %cst_57 : f32 to vector<16x128xf32>
    %84 = arith.mulf %83, %82 : vector<16x128xf32>
    %85 = arith.truncf %84 : vector<16x128xf32> to vector<16x128xbf16>
    %c0_58 = arith.constant 0 : index
    %c0_59 = arith.constant 0 : index
    %c0_60 = arith.constant 0 : index
    %86 = vector.load %arg19[%c0_58, %c0_59, %c0_60] : memref<1x128x128xbf16, #tpu.memory_space<vmem>>, vector<1x128x128xbf16>
    %87 = vector.shape_cast %86 : vector<1x128x128xbf16> to vector<128x128xbf16>
    %cst_61 = arith.constant dense<0.000000e+00> : vector<16x128xf32>
    %88 = tpu.matmul %85, %87, %cst_61 {dimension_numbers = #tpu.dot_dimension_numbers<[1], [0], [0], [1], [0, 0, 1, 1], [], []>} : vector<16x128xbf16>, vector<128x128xbf16>, vector<16x128xf32> -> vector<16x128xf32>
    %c0_62 = arith.constant 0 : index
    %c0_63 = arith.constant 0 : index
    %c0_64 = arith.constant 0 : index
    %89 = vector.load %arg20[%c0_62, %c0_63, %c0_64] : memref<1x1x128xf32, #tpu.memory_space<vmem>>, vector<1x1x128xf32>
    %90 = vector.shape_cast %89 : vector<1x1x128xf32> to vector<1x128xf32>
    %91 = vector.broadcast %90 : vector<1x128xf32> to vector<16x128xf32>
    %92 = arith.addf %88, %91 : vector<16x128xf32>
    %93 = arith.negf %92 : vector<16x128xf32>
    %94 = math.exp %93 : vector<16x128xf32>
    %cst_65 = arith.constant 1.000000e+00 : f32
    %95 = vector.broadcast %cst_65 : f32 to vector<16x128xf32>
    %96 = arith.addf %95, %94 : vector<16x128xf32>
    %97 = arith.divf %95, %96 : vector<16x128xf32>
    %98 = arith.mulf %92, %97 : vector<16x128xf32>
    %99 = arith.truncf %98 : vector<16x128xf32> to vector<16x128xbf16>
    %c0_66 = arith.constant 0 : index
    %c0_67 = arith.constant 0 : index
    %c0_68 = arith.constant 0 : index
    %100 = vector.load %arg21[%c0_66, %c0_67, %c0_68] : memref<1x128x128xbf16, #tpu.memory_space<vmem>>, vector<1x128x128xbf16>
    %101 = vector.shape_cast %100 : vector<1x128x128xbf16> to vector<128x128xbf16>
    %cst_69 = arith.constant dense<0.000000e+00> : vector<16x128xf32>
    %102 = tpu.matmul %99, %101, %cst_69 {dimension_numbers = #tpu.dot_dimension_numbers<[1], [0], [0], [1], [0, 0, 1, 1], [], []>} : vector<16x128xbf16>, vector<128x128xbf16>, vector<16x128xf32> -> vector<16x128xf32>
    %c0_70 = arith.constant 0 : index
    %c0_71 = arith.constant 0 : index
    %c0_72 = arith.constant 0 : index
    %103 = vector.load %arg22[%c0_70, %c0_71, %c0_72] : memref<1x1x128xf32, #tpu.memory_space<vmem>>, vector<1x1x128xf32>
    %104 = vector.shape_cast %103 : vector<1x1x128xf32> to vector<1x128xf32>
    %105 = vector.broadcast %104 : vector<1x128xf32> to vector<16x128xf32>
    %106 = arith.addf %102, %105 : vector<16x128xf32>
    %107 = arith.index_cast %arg1 : i32 to index
    %108 = memref.load %arg2[%107] : memref<2xf32, #tpu.memory_space<smem>>
    %c0_i32 = arith.constant 0 : i32
    %109 = arith.cmpi eq, %arg1, %c0_i32 : i32
    %110 = arith.extui %109 : i1 to i32
    %c0_i32_73 = arith.constant 0 : i32
    %111 = arith.cmpi ne, %110, %c0_i32_73 : i32
    scf.if %111 {
      %115 = vector.broadcast %108 : f32 to vector<256x128xf32>
      %116 = arith.mulf %115, %44 : vector<256x128xf32>
      %c0_76 = arith.constant 0 : index
      %c0_77 = arith.constant 0 : index
      %c0_78 = arith.constant 0 : index
      %117 = vector.load %arg23[%c0_76, %c0_77, %c0_78] : memref<1x256x128xf32, #tpu.memory_space<vmem>>, vector<1x256x128xf32>
      %118 = vector.shape_cast %117 : vector<1x256x128xf32> to vector<256x128xf32>
      %119 = vector.shape_cast %116 : vector<256x128xf32> to vector<1x256x128xf32>
      tpu.vector_store %arg23[%c0_76, %c0_77, %c0_78], %119 {strides = array<i32>} : memref<1x256x128xf32, #tpu.memory_space<vmem>>, vector<1x256x128xf32>,
      %120 = vector.broadcast %108 : f32 to vector<64x128xf32>
      %121 = arith.mulf %120, %75 : vector<64x128xf32>
      %c0_79 = arith.constant 0 : index
      %c0_80 = arith.constant 0 : index
      %c0_81 = arith.constant 0 : index
      %122 = vector.load %arg24[%c0_79, %c0_80, %c0_81] : memref<1x64x128xf32, #tpu.memory_space<vmem>>, vector<1x64x128xf32>
      %123 = vector.shape_cast %122 : vector<1x64x128xf32> to vector<64x128xf32>
      %124 = vector.shape_cast %121 : vector<64x128xf32> to vector<1x64x128xf32>
      tpu.vector_store %arg24[%c0_79, %c0_80, %c0_81], %124 {strides = array<i32>} : memref<1x64x128xf32, #tpu.memory_space<vmem>>, vector<1x64x128xf32>,
      %125 = vector.broadcast %108 : f32 to vector<16x128xf32>
      %126 = arith.mulf %125, %106 : vector<16x128xf32>
      %c0_82 = arith.constant 0 : index
      %c0_83 = arith.constant 0 : index
      %c0_84 = arith.constant 0 : index
      %127 = vector.load %arg25[%c0_82, %c0_83, %c0_84] : memref<1x16x128xf32, #tpu.memory_space<vmem>>, vector<1x16x128xf32>
      %128 = vector.shape_cast %127 : vector<1x16x128xf32> to vector<16x128xf32>
      %129 = vector.shape_cast %126 : vector<16x128xf32> to vector<1x16x128xf32>
      tpu.vector_store %arg25[%c0_82, %c0_83, %c0_84], %129 {strides = array<i32>} : memref<1x16x128xf32, #tpu.memory_space<vmem>>, vector<1x16x128xf32>,
    } else {
    }
    %c0_i32_74 = arith.constant 0 : i32
    %112 = arith.cmpi sgt, %arg1, %c0_i32_74 : i32
    %113 = arith.extui %112 : i1 to i32
    %c0_i32_75 = arith.constant 0 : i32
    %114 = arith.cmpi ne, %113, %c0_i32_75 : i32
    scf.if %114 {
      %c0_76 = arith.constant 0 : index
      %c0_77 = arith.constant 0 : index
      %c0_78 = arith.constant 0 : index
      %115 = vector.load %arg23[%c0_76, %c0_77, %c0_78] : memref<1x256x128xf32, #tpu.memory_space<vmem>>, vector<1x256x128xf32>
      %116 = vector.shape_cast %115 : vector<1x256x128xf32> to vector<256x128xf32>
      %117 = vector.broadcast %108 : f32 to vector<256x128xf32>
      %118 = arith.mulf %117, %44 : vector<256x128xf32>
      %119 = arith.addf %116, %118 : vector<256x128xf32>
      %c0_79 = arith.constant 0 : index
      %c0_80 = arith.constant 0 : index
      %c0_81 = arith.constant 0 : index
      %120 = vector.load %arg23[%c0_79, %c0_80, %c0_81] : memref<1x256x128xf32, #tpu.memory_space<vmem>>, vector<1x256x128xf32>
      %121 = vector.shape_cast %120 : vector<1x256x128xf32> to vector<256x128xf32>
      %122 = vector.shape_cast %119 : vector<256x128xf32> to vector<1x256x128xf32>
      tpu.vector_store %arg23[%c0_79, %c0_80, %c0_81], %122 {strides = array<i32>} : memref<1x256x128xf32, #tpu.memory_space<vmem>>, vector<1x256x128xf32>,
      %c0_82 = arith.constant 0 : index
      %c0_83 = arith.constant 0 : index
      %c0_84 = arith.constant 0 : index
      %123 = vector.load %arg24[%c0_82, %c0_83, %c0_84] : memref<1x64x128xf32, #tpu.memory_space<vmem>>, vector<1x64x128xf32>
      %124 = vector.shape_cast %123 : vector<1x64x128xf32> to vector<64x128xf32>
      %125 = vector.broadcast %108 : f32 to vector<64x128xf32>
      %126 = arith.mulf %125, %75 : vector<64x128xf32>
      %127 = arith.addf %124, %126 : vector<64x128xf32>
      %c0_85 = arith.constant 0 : index
      %c0_86 = arith.constant 0 : index
      %c0_87 = arith.constant 0 : index
      %128 = vector.load %arg24[%c0_85, %c0_86, %c0_87] : memref<1x64x128xf32, #tpu.memory_space<vmem>>, vector<1x64x128xf32>
      %129 = vector.shape_cast %128 : vector<1x64x128xf32> to vector<64x128xf32>
      %130 = vector.shape_cast %127 : vector<64x128xf32> to vector<1x64x128xf32>
      tpu.vector_store %arg24[%c0_85, %c0_86, %c0_87], %130 {strides = array<i32>} : memref<1x64x128xf32, #tpu.memory_space<vmem>>, vector<1x64x128xf32>,
      %c0_88 = arith.constant 0 : index
      %c0_89 = arith.constant 0 : index
      %c0_90 = arith.constant 0 : index
      %131 = vector.load %arg25[%c0_88, %c0_89, %c0_90] : memref<1x16x128xf32, #tpu.memory_space<vmem>>, vector<1x16x128xf32>
      %132 = vector.shape_cast %131 : vector<1x16x128xf32> to vector<16x128xf32>
      %133 = vector.broadcast %108 : f32 to vector<16x128xf32>
      %134 = arith.mulf %133, %106 : vector<16x128xf32>
      %135 = arith.addf %132, %134 : vector<16x128xf32>
      %c0_91 = arith.constant 0 : index
      %c0_92 = arith.constant 0 : index
      %c0_93 = arith.constant 0 : index
      %136 = vector.load %arg25[%c0_91, %c0_92, %c0_93] : memref<1x16x128xf32, #tpu.memory_space<vmem>>, vector<1x16x128xf32>
      %137 = vector.shape_cast %136 : vector<1x16x128xf32> to vector<16x128xf32>
      %138 = vector.shape_cast %135 : vector<16x128xf32> to vector<1x16x128xf32>
      tpu.vector_store %arg25[%c0_91, %c0_92, %c0_93], %138 {strides = array<i32>} : memref<1x16x128xf32, #tpu.memory_space<vmem>>, vector<1x16x128xf32>,
    } else {
    }
    return
  }
  func.func @transform_0(%arg0: i32, %arg1: i32, %arg2: memref<2xf32, #tpu.memory_space<smem>>) -> (i32, i32, i32) {
    %c0_i32 = arith.constant 0 : i32
    %c0_i32_0 = arith.constant 0 : i32
    %c0_i32_1 = arith.constant 0 : i32
    return %arg0, %c0_i32, %c0_i32_0 : i32, i32, i32
  }
  func.func @transform_1(%arg0: i32, %arg1: i32, %arg2: memref<2xf32, #tpu.memory_space<smem>>) -> (i32, i32, i32, i32) {
    %c0_i32 = arith.constant 0 : i32
    %c0_i32_0 = arith.constant 0 : i32
    %c0_i32_1 = arith.constant 0 : i32
    return %arg1, %arg0, %c0_i32, %c0_i32_0 : i32, i32, i32, i32
  }
  func.func @transform_2(%arg0: i32, %arg1: i32, %arg2: memref<2xf32, #tpu.memory_space<smem>>) -> (i32, i32, i32) {
    %c0_i32 = arith.constant 0 : i32
    %c0_i32_0 = arith.constant 0 : i32
    %c0_i32_1 = arith.constant 0 : i32
    return %arg0, %c0_i32, %c0_i32_0 : i32, i32, i32
  }
  func.func @transform_3(%arg0: i32, %arg1: i32, %arg2: memref<2xf32, #tpu.memory_space<smem>>) -> (i32, i32, i32) {
    %c0_i32 = arith.constant 0 : i32
    %c0_i32_0 = arith.constant 0 : i32
    %c0_i32_1 = arith.constant 0 : i32
    return %arg0, %c0_i32, %c0_i32_0 : i32, i32, i32
  }
  func.func @transform_4(%arg0: i32, %arg1: i32, %arg2: memref<2xf32, #tpu.memory_space<smem>>) -> (i32, i32, i32) {
    %c0_i32 = arith.constant 0 : i32
    %c0_i32_0 = arith.constant 0 : i32
    %c0_i32_1 = arith.constant 0 : i32
    return %arg1, %c0_i32, %c0_i32_0 : i32, i32, i32
  }
  func.func @transform_5(%arg0: i32, %arg1: i32, %arg2: memref<2xf32, #tpu.memory_space<smem>>) -> (i32, i32, i32) {
    %c0_i32 = arith.constant 0 : i32
    %c0_i32_0 = arith.constant 0 : i32
    %c0_i32_1 = arith.constant 0 : i32
    return %arg1, %c0_i32, %c0_i32_0 : i32, i32, i32
  }
  func.func @transform_6(%arg0: i32, %arg1: i32, %arg2: memref<2xf32, #tpu.memory_space<smem>>) -> (i32, i32, i32) {
    %c0_i32 = arith.constant 0 : i32
    %c0_i32_0 = arith.constant 0 : i32
    %c0_i32_1 = arith.constant 0 : i32
    return %arg1, %c0_i32, %c0_i32_0 : i32, i32, i32
  }
  func.func @transform_7(%arg0: i32, %arg1: i32, %arg2: memref<2xf32, #tpu.memory_space<smem>>) -> (i32, i32, i32) {
    %c0_i32 = arith.constant 0 : i32
    %c0_i32_0 = arith.constant 0 : i32
    %c0_i32_1 = arith.constant 0 : i32
    return %arg1, %c0_i32, %c0_i32_0 : i32, i32, i32
  }
  func.func @transform_8(%arg0: i32, %arg1: i32, %arg2: memref<2xf32, #tpu.memory_space<smem>>) -> (i32, i32, i32) {
    %c0_i32 = arith.constant 0 : i32
    %c0_i32_0 = arith.constant 0 : i32
    %c0_i32_1 = arith.constant 0 : i32
    return %arg1, %c0_i32, %c0_i32_0 : i32, i32, i32
  }
  func.func @transform_9(%arg0: i32, %arg1: i32, %arg2: memref<2xf32, #tpu.memory_space<smem>>) -> (i32, i32, i32) {
    %c0_i32 = arith.constant 0 : i32
    %c0_i32_0 = arith.constant 0 : i32
    %c0_i32_1 = arith.constant 0 : i32
    return %arg1, %c0_i32, %c0_i32_0 : i32, i32, i32
  }
  func.func @transform_10(%arg0: i32, %arg1: i32, %arg2: memref<2xf32, #tpu.memory_space<smem>>) -> (i32, i32, i32) {
    %c0_i32 = arith.constant 0 : i32
    %c0_i32_0 = arith.constant 0 : i32
    %c0_i32_1 = arith.constant 0 : i32
    return %arg1, %c0_i32, %c0_i32_0 : i32, i32, i32
  }
  func.func @transform_11(%arg0: i32, %arg1: i32, %arg2: memref<2xf32, #tpu.memory_space<smem>>) -> (i32, i32, i32) {
    %c0_i32 = arith.constant 0 : i32
    %c0_i32_0 = arith.constant 0 : i32
    %c0_i32_1 = arith.constant 0 : i32
    return %arg1, %c0_i32, %c0_i32_0 : i32, i32, i32
  }
  func.func @transform_12(%arg0: i32, %arg1: i32, %arg2: memref<2xf32, #tpu.memory_space<smem>>) -> (i32, i32, i32) {
    %c0_i32 = arith.constant 0 : i32
    %c0_i32_0 = arith.constant 0 : i32
    %c0_i32_1 = arith.constant 0 : i32
    return %arg1, %c0_i32, %c0_i32_0 : i32, i32, i32
  }
  func.func @transform_13(%arg0: i32, %arg1: i32, %arg2: memref<2xf32, #tpu.memory_space<smem>>) -> (i32, i32, i32) {
    %c0_i32 = arith.constant 0 : i32
    %c0_i32_0 = arith.constant 0 : i32
    %c0_i32_1 = arith.constant 0 : i32
    return %arg1, %c0_i32, %c0_i32_0 : i32, i32, i32
  }
  func.func @transform_14(%arg0: i32, %arg1: i32, %arg2: memref<2xf32, #tpu.memory_space<smem>>) -> (i32, i32, i32) {
    %c0_i32 = arith.constant 0 : i32
    %c0_i32_0 = arith.constant 0 : i32
    %c0_i32_1 = arith.constant 0 : i32
    return %arg1, %c0_i32, %c0_i32_0 : i32, i32, i32
  }
  func.func @transform_15(%arg0: i32, %arg1: i32, %arg2: memref<2xf32, #tpu.memory_space<smem>>) -> (i32, i32, i32) {
    %c0_i32 = arith.constant 0 : i32
    %c0_i32_0 = arith.constant 0 : i32
    %c0_i32_1 = arith.constant 0 : i32
    return %arg1, %c0_i32, %c0_i32_0 : i32, i32, i32
  }
  func.func @transform_16(%arg0: i32, %arg1: i32, %arg2: memref<2xf32, #tpu.memory_space<smem>>) -> (i32, i32, i32) {
    %c0_i32 = arith.constant 0 : i32
    %c0_i32_0 = arith.constant 0 : i32
    %c0_i32_1 = arith.constant 0 : i32
    return %arg1, %c0_i32, %c0_i32_0 : i32, i32, i32
  }
  func.func @transform_17(%arg0: i32, %arg1: i32, %arg2: memref<2xf32, #tpu.memory_space<smem>>) -> (i32, i32, i32) {
    %c0_i32 = arith.constant 0 : i32
    %c0_i32_0 = arith.constant 0 : i32
    %c0_i32_1 = arith.constant 0 : i32
    return %arg1, %c0_i32, %c0_i32_0 : i32, i32, i32
  }
  func.func @transform_18(%arg0: i32, %arg1: i32, %arg2: memref<2xf32, #tpu.memory_space<smem>>) -> (i32, i32, i32) {
    %c0_i32 = arith.constant 0 : i32
    %c0_i32_0 = arith.constant 0 : i32
    %c0_i32_1 = arith.constant 0 : i32
    return %arg1, %c0_i32, %c0_i32_0 : i32, i32, i32
  }
  func.func @transform_19(%arg0: i32, %arg1: i32, %arg2: memref<2xf32, #tpu.memory_space<smem>>) -> (i32, i32, i32) {
    %c0_i32 = arith.constant 0 : i32
    %c0_i32_0 = arith.constant 0 : i32
    %c0_i32_1 = arith.constant 0 : i32
    return %arg1, %c0_i32, %c0_i32_0 : i32, i32, i32
  }
  func.func @transform_20(%arg0: i32, %arg1: i32, %arg2: memref<2xf32, #tpu.memory_space<smem>>) -> (i32, i32, i32) {
    %c0_i32 = arith.constant 0 : i32
    %c0_i32_0 = arith.constant 0 : i32
    %c0_i32_1 = arith.constant 0 : i32
    return %arg0, %c0_i32, %c0_i32_0 : i32, i32, i32
  }
  func.func @transform_21(%arg0: i32, %arg1: i32, %arg2: memref<2xf32, #tpu.memory_space<smem>>) -> (i32, i32, i32) {
    %c0_i32 = arith.constant 0 : i32
    %c0_i32_0 = arith.constant 0 : i32
    %c0_i32_1 = arith.constant 0 : i32
    return %arg0, %c0_i32, %c0_i32_0 : i32, i32, i32
  }
  func.func @transform_22(%arg0: i32, %arg1: i32, %arg2: memref<2xf32, #tpu.memory_space<smem>>) -> (i32, i32, i32) {
    %c0_i32 = arith.constant 0 : i32
    %c0_i32_0 = arith.constant 0 : i32
    %c0_i32_1 = arith.constant 0 : i32
    return %arg0, %c0_i32, %c0_i32_0 : i32, i32, i32
  }
}

module attributes {stable_mosaic.version = 11 : i64} {
  func.func @_unet_kernel(%arg0: i32, %arg1: memref<1x256x4xbf16, #tpu.memory_space<vmem>>, %arg2: memref<1x1x128xbf16, #tpu.memory_space<vmem>>, %arg3: memref<1x1x32xbf16, #tpu.memory_space<vmem>>, %arg4: memref<1x256x128xf32, #tpu.memory_space<vmem>>, %arg5: memref<1x64x128xf32, #tpu.memory_space<vmem>>, %arg6: memref<1x16x128xf32, #tpu.memory_space<vmem>>, %arg7: memref<4x128xbf16, #tpu.memory_space<vmem>>, %arg8: memref<1x128xf32, #tpu.memory_space<vmem>>, %arg9: memref<128x128xbf16, #tpu.memory_space<vmem>>, %arg10: memref<32x128xbf16, #tpu.memory_space<vmem>>, %arg11: memref<1x128xf32, #tpu.memory_space<vmem>>, %arg12: memref<128x128xbf16, #tpu.memory_space<vmem>>, %arg13: memref<1x128xf32, #tpu.memory_space<vmem>>, %arg14: memref<128x128xbf16, #tpu.memory_space<vmem>>, %arg15: memref<1x128xf32, #tpu.memory_space<vmem>>, %arg16: memref<128x128xbf16, #tpu.memory_space<vmem>>, %arg17: memref<1x128xf32, #tpu.memory_space<vmem>>, %arg18: memref<128x128xbf16, #tpu.memory_space<vmem>>, %arg19: memref<1x128xf32, #tpu.memory_space<vmem>>, %arg20: memref<128x4xbf16, #tpu.memory_space<vmem>>, %arg21: memref<1x4xf32, #tpu.memory_space<vmem>>, %arg22: memref<1x256x4xf32, #tpu.memory_space<vmem>>) attributes {dimension_semantics = [#tpu.dimension_semantics<parallel>], iteration_bounds = array<i64: 2>, scalar_prefetch = 0 : i64, scratch_operands = 0 : i64, tpu.core_type = #tpu.core_type<tc>, window_params = [{transform_indices = @transform_0, window_bounds = array<i64: 1, 256, 4>}, {transform_indices = @transform_1, window_bounds = array<i64: 1, 1, 128>}, {transform_indices = @transform_2, window_bounds = array<i64: 1, 1, 32>}, {transform_indices = @transform_3, window_bounds = array<i64: 1, 256, 128>}, {transform_indices = @transform_4, window_bounds = array<i64: 1, 64, 128>}, {transform_indices = @transform_5, window_bounds = array<i64: 1, 16, 128>}, {pipeline_mode = #tpu.pipeline_mode<synchronous>, transform_indices = @transform_6, window_bounds = array<i64: 4, 128>}, {pipeline_mode = #tpu.pipeline_mode<synchronous>, transform_indices = @transform_7, window_bounds = array<i64: 1, 128>}, {pipeline_mode = #tpu.pipeline_mode<synchronous>, transform_indices = @transform_8, window_bounds = array<i64: 128, 128>}, {pipeline_mode = #tpu.pipeline_mode<synchronous>, transform_indices = @transform_9, window_bounds = array<i64: 32, 128>}, {pipeline_mode = #tpu.pipeline_mode<synchronous>, transform_indices = @transform_10, window_bounds = array<i64: 1, 128>}, {pipeline_mode = #tpu.pipeline_mode<synchronous>, transform_indices = @transform_11, window_bounds = array<i64: 128, 128>}, {pipeline_mode = #tpu.pipeline_mode<synchronous>, transform_indices = @transform_12, window_bounds = array<i64: 1, 128>}, {pipeline_mode = #tpu.pipeline_mode<synchronous>, transform_indices = @transform_13, window_bounds = array<i64: 128, 128>}, {pipeline_mode = #tpu.pipeline_mode<synchronous>, transform_indices = @transform_14, window_bounds = array<i64: 1, 128>}, {pipeline_mode = #tpu.pipeline_mode<synchronous>, transform_indices = @transform_15, window_bounds = array<i64: 128, 128>}, {pipeline_mode = #tpu.pipeline_mode<synchronous>, transform_indices = @transform_16, window_bounds = array<i64: 1, 128>}, {pipeline_mode = #tpu.pipeline_mode<synchronous>, transform_indices = @transform_17, window_bounds = array<i64: 128, 128>}, {pipeline_mode = #tpu.pipeline_mode<synchronous>, transform_indices = @transform_18, window_bounds = array<i64: 1, 128>}, {pipeline_mode = #tpu.pipeline_mode<synchronous>, transform_indices = @transform_19, window_bounds = array<i64: 128, 4>}, {pipeline_mode = #tpu.pipeline_mode<synchronous>, transform_indices = @transform_20, window_bounds = array<i64: 1, 4>}, {transform_indices = @transform_21, window_bounds = array<i64: 1, 256, 4>}]} {
    %c0 = arith.constant 0 : index
    %c0_0 = arith.constant 0 : index
    %c0_1 = arith.constant 0 : index
    %0 = vector.load %arg2[%c0, %c0_0, %c0_1] : memref<1x1x128xbf16, #tpu.memory_space<vmem>>, vector<1x1x128xbf16>
    %1 = vector.shape_cast %0 : vector<1x1x128xbf16> to vector<1x128xbf16>
    %c0_2 = arith.constant 0 : index
    %c0_3 = arith.constant 0 : index
    %2 = vector.load %arg9[%c0_2, %c0_3] : memref<128x128xbf16, #tpu.memory_space<vmem>>, vector<128x128xbf16>
    %cst = arith.constant dense<0.000000e+00> : vector<1x128xf32>
    %3 = tpu.matmul %1, %2, %cst {dimension_numbers = #tpu.dot_dimension_numbers<[1], [0], [0], [1], [0, 0, 1, 1], [], []>} : vector<1x128xbf16>, vector<128x128xbf16>, vector<1x128xf32> -> vector<1x128xf32>
    %c0_4 = arith.constant 0 : index
    %c0_5 = arith.constant 0 : index
    %c0_6 = arith.constant 0 : index
    %4 = vector.load %arg3[%c0_4, %c0_5, %c0_6] : memref<1x1x32xbf16, #tpu.memory_space<vmem>>, vector<1x1x32xbf16>
    %5 = vector.shape_cast %4 : vector<1x1x32xbf16> to vector<1x32xbf16>
    %c0_7 = arith.constant 0 : index
    %c0_8 = arith.constant 0 : index
    %6 = vector.load %arg10[%c0_7, %c0_8] : memref<32x128xbf16, #tpu.memory_space<vmem>>, vector<32x128xbf16>
    %cst_9 = arith.constant dense<0.000000e+00> : vector<1x128xf32>
    %7 = tpu.matmul %5, %6, %cst_9 {dimension_numbers = #tpu.dot_dimension_numbers<[1], [0], [0], [1], [0, 0, 1, 1], [], []>} : vector<1x32xbf16>, vector<32x128xbf16>, vector<1x128xf32> -> vector<1x128xf32>
    %8 = arith.addf %3, %7 : vector<1x128xf32>
    %c0_10 = arith.constant 0 : index
    %c0_11 = arith.constant 0 : index
    %9 = vector.load %arg11[%c0_10, %c0_11] : memref<1x128xf32, #tpu.memory_space<vmem>>, vector<1x128xf32>
    %10 = arith.addf %8, %9 : vector<1x128xf32>
    %c0_12 = arith.constant 0 : index
    %c0_13 = arith.constant 0 : index
    %c0_14 = arith.constant 0 : index
    %11 = vector.load %arg1[%c0_12, %c0_13, %c0_14] : memref<1x256x4xbf16, #tpu.memory_space<vmem>>, vector<1x256x4xbf16>
    %12 = vector.shape_cast %11 : vector<1x256x4xbf16> to vector<256x4xbf16>
    %c0_15 = arith.constant 0 : index
    %c0_16 = arith.constant 0 : index
    %13 = vector.load %arg7[%c0_15, %c0_16] : memref<4x128xbf16, #tpu.memory_space<vmem>>, vector<4x128xbf16>
    %cst_17 = arith.constant dense<0.000000e+00> : vector<256x128xf32>
    %14 = tpu.matmul %12, %13, %cst_17 {dimension_numbers = #tpu.dot_dimension_numbers<[1], [0], [0], [1], [0, 0, 1, 1], [], []>} : vector<256x4xbf16>, vector<4x128xbf16>, vector<256x128xf32> -> vector<256x128xf32>
    %c0_18 = arith.constant 0 : index
    %c0_19 = arith.constant 0 : index
    %15 = vector.load %arg8[%c0_18, %c0_19] : memref<1x128xf32, #tpu.memory_space<vmem>>, vector<1x128xf32>
    %16 = vector.broadcast %15 : vector<1x128xf32> to vector<256x128xf32>
    %17 = arith.addf %14, %16 : vector<256x128xf32>
    %18 = vector.broadcast %10 : vector<1x128xf32> to vector<256x128xf32>
    %19 = arith.addf %17, %18 : vector<256x128xf32>
    %20 = arith.negf %19 : vector<256x128xf32>
    %21 = math.exp %20 : vector<256x128xf32>
    %cst_20 = arith.constant 1.000000e+00 : f32
    %22 = vector.broadcast %cst_20 : f32 to vector<256x128xf32>
    %23 = arith.addf %22, %21 : vector<256x128xf32>
    %24 = arith.divf %22, %23 : vector<256x128xf32>
    %25 = arith.mulf %19, %24 : vector<256x128xf32>
    %c0_21 = arith.constant 0 : index
    %c0_22 = arith.constant 0 : index
    %c0_23 = arith.constant 0 : index
    %26 = vector.load %arg4[%c0_21, %c0_22, %c0_23] : memref<1x256x128xf32, #tpu.memory_space<vmem>>, vector<1x256x128xf32>
    %27 = vector.shape_cast %26 : vector<1x256x128xf32> to vector<256x128xf32>
    %28 = arith.addf %25, %27 : vector<256x128xf32>
    %29 = vector.extract_strided_slice %28 {offsets = [0, 0], sizes = [64, 128], strides = [1, 1]} : vector<256x128xf32> to vector<64x128xf32>
    %30 = vector.extract_strided_slice %28 {offsets = [64, 0], sizes = [64, 128], strides = [1, 1]} : vector<256x128xf32> to vector<64x128xf32>
    %31 = arith.addf %29, %30 : vector<64x128xf32>
    %32 = vector.extract_strided_slice %28 {offsets = [128, 0], sizes = [64, 128], strides = [1, 1]} : vector<256x128xf32> to vector<64x128xf32>
    %33 = arith.addf %31, %32 : vector<64x128xf32>
    %34 = vector.extract_strided_slice %28 {offsets = [192, 0], sizes = [64, 128], strides = [1, 1]} : vector<256x128xf32> to vector<64x128xf32>
    %35 = arith.addf %33, %34 : vector<64x128xf32>
    %cst_24 = arith.constant 2.500000e-01 : f32
    %36 = vector.broadcast %cst_24 : f32 to vector<64x128xf32>
    %37 = arith.mulf %36, %35 : vector<64x128xf32>
    %38 = arith.truncf %37 : vector<64x128xf32> to vector<64x128xbf16>
    %c0_25 = arith.constant 0 : index
    %c0_26 = arith.constant 0 : index
    %39 = vector.load %arg12[%c0_25, %c0_26] : memref<128x128xbf16, #tpu.memory_space<vmem>>, vector<128x128xbf16>
    %cst_27 = arith.constant dense<0.000000e+00> : vector<64x128xf32>
    %40 = tpu.matmul %38, %39, %cst_27 {dimension_numbers = #tpu.dot_dimension_numbers<[1], [0], [0], [1], [0, 0, 1, 1], [], []>} : vector<64x128xbf16>, vector<128x128xbf16>, vector<64x128xf32> -> vector<64x128xf32>
    %c0_28 = arith.constant 0 : index
    %c0_29 = arith.constant 0 : index
    %41 = vector.load %arg13[%c0_28, %c0_29] : memref<1x128xf32, #tpu.memory_space<vmem>>, vector<1x128xf32>
    %42 = vector.broadcast %41 : vector<1x128xf32> to vector<64x128xf32>
    %43 = arith.addf %40, %42 : vector<64x128xf32>
    %44 = arith.negf %43 : vector<64x128xf32>
    %45 = math.exp %44 : vector<64x128xf32>
    %cst_30 = arith.constant 1.000000e+00 : f32
    %46 = vector.broadcast %cst_30 : f32 to vector<64x128xf32>
    %47 = arith.addf %46, %45 : vector<64x128xf32>
    %48 = arith.divf %46, %47 : vector<64x128xf32>
    %49 = arith.mulf %43, %48 : vector<64x128xf32>
    %c0_31 = arith.constant 0 : index
    %c0_32 = arith.constant 0 : index
    %c0_33 = arith.constant 0 : index
    %50 = vector.load %arg5[%c0_31, %c0_32, %c0_33] : memref<1x64x128xf32, #tpu.memory_space<vmem>>, vector<1x64x128xf32>
    %51 = vector.shape_cast %50 : vector<1x64x128xf32> to vector<64x128xf32>
    %52 = arith.addf %49, %51 : vector<64x128xf32>
    %53 = vector.extract_strided_slice %52 {offsets = [0, 0], sizes = [16, 128], strides = [1, 1]} : vector<64x128xf32> to vector<16x128xf32>
    %54 = vector.extract_strided_slice %52 {offsets = [16, 0], sizes = [16, 128], strides = [1, 1]} : vector<64x128xf32> to vector<16x128xf32>
    %55 = arith.addf %53, %54 : vector<16x128xf32>
    %56 = vector.extract_strided_slice %52 {offsets = [32, 0], sizes = [16, 128], strides = [1, 1]} : vector<64x128xf32> to vector<16x128xf32>
    %57 = arith.addf %55, %56 : vector<16x128xf32>
    %58 = vector.extract_strided_slice %52 {offsets = [48, 0], sizes = [16, 128], strides = [1, 1]} : vector<64x128xf32> to vector<16x128xf32>
    %59 = arith.addf %57, %58 : vector<16x128xf32>
    %cst_34 = arith.constant 2.500000e-01 : f32
    %60 = vector.broadcast %cst_34 : f32 to vector<16x128xf32>
    %61 = arith.mulf %60, %59 : vector<16x128xf32>
    %62 = arith.truncf %61 : vector<16x128xf32> to vector<16x128xbf16>
    %c0_35 = arith.constant 0 : index
    %c0_36 = arith.constant 0 : index
    %63 = vector.load %arg14[%c0_35, %c0_36] : memref<128x128xbf16, #tpu.memory_space<vmem>>, vector<128x128xbf16>
    %cst_37 = arith.constant dense<0.000000e+00> : vector<16x128xf32>
    %64 = tpu.matmul %62, %63, %cst_37 {dimension_numbers = #tpu.dot_dimension_numbers<[1], [0], [0], [1], [0, 0, 1, 1], [], []>} : vector<16x128xbf16>, vector<128x128xbf16>, vector<16x128xf32> -> vector<16x128xf32>
    %c0_38 = arith.constant 0 : index
    %c0_39 = arith.constant 0 : index
    %65 = vector.load %arg15[%c0_38, %c0_39] : memref<1x128xf32, #tpu.memory_space<vmem>>, vector<1x128xf32>
    %66 = vector.broadcast %65 : vector<1x128xf32> to vector<16x128xf32>
    %67 = arith.addf %64, %66 : vector<16x128xf32>
    %68 = arith.negf %67 : vector<16x128xf32>
    %69 = math.exp %68 : vector<16x128xf32>
    %cst_40 = arith.constant 1.000000e+00 : f32
    %70 = vector.broadcast %cst_40 : f32 to vector<16x128xf32>
    %71 = arith.addf %70, %69 : vector<16x128xf32>
    %72 = arith.divf %70, %71 : vector<16x128xf32>
    %73 = arith.mulf %67, %72 : vector<16x128xf32>
    %c0_41 = arith.constant 0 : index
    %c0_42 = arith.constant 0 : index
    %c0_43 = arith.constant 0 : index
    %74 = vector.load %arg6[%c0_41, %c0_42, %c0_43] : memref<1x16x128xf32, #tpu.memory_space<vmem>>, vector<1x16x128xf32>
    %75 = vector.shape_cast %74 : vector<1x16x128xf32> to vector<16x128xf32>
    %76 = arith.addf %73, %75 : vector<16x128xf32>
    %77 = arith.truncf %76 : vector<16x128xf32> to vector<16x128xbf16>
    %c0_44 = arith.constant 0 : index
    %c0_45 = arith.constant 0 : index
    %78 = vector.load %arg16[%c0_44, %c0_45] : memref<128x128xbf16, #tpu.memory_space<vmem>>, vector<128x128xbf16>
    %cst_46 = arith.constant dense<0.000000e+00> : vector<16x128xf32>
    %79 = tpu.matmul %77, %78, %cst_46 {dimension_numbers = #tpu.dot_dimension_numbers<[1], [0], [0], [1], [0, 0, 1, 1], [], []>} : vector<16x128xbf16>, vector<128x128xbf16>, vector<16x128xf32> -> vector<16x128xf32>
    %c0_47 = arith.constant 0 : index
    %c0_48 = arith.constant 0 : index
    %80 = vector.load %arg17[%c0_47, %c0_48] : memref<1x128xf32, #tpu.memory_space<vmem>>, vector<1x128xf32>
    %81 = vector.broadcast %80 : vector<1x128xf32> to vector<16x128xf32>
    %82 = arith.addf %79, %81 : vector<16x128xf32>
    %83 = arith.negf %82 : vector<16x128xf32>
    %84 = math.exp %83 : vector<16x128xf32>
    %cst_49 = arith.constant 1.000000e+00 : f32
    %85 = vector.broadcast %cst_49 : f32 to vector<16x128xf32>
    %86 = arith.addf %85, %84 : vector<16x128xf32>
    %87 = arith.divf %85, %86 : vector<16x128xf32>
    %88 = arith.mulf %82, %87 : vector<16x128xf32>
    %89 = tpu.concatenate %88, %88, %88, %88 in 0 : vector<16x128xf32>, vector<16x128xf32>, vector<16x128xf32>, vector<16x128xf32> -> vector<64x128xf32>
    %90 = arith.addf %89, %52 : vector<64x128xf32>
    %91 = arith.truncf %90 : vector<64x128xf32> to vector<64x128xbf16>
    %c0_50 = arith.constant 0 : index
    %c0_51 = arith.constant 0 : index
    %92 = vector.load %arg18[%c0_50, %c0_51] : memref<128x128xbf16, #tpu.memory_space<vmem>>, vector<128x128xbf16>
    %cst_52 = arith.constant dense<0.000000e+00> : vector<64x128xf32>
    %93 = tpu.matmul %91, %92, %cst_52 {dimension_numbers = #tpu.dot_dimension_numbers<[1], [0], [0], [1], [0, 0, 1, 1], [], []>} : vector<64x128xbf16>, vector<128x128xbf16>, vector<64x128xf32> -> vector<64x128xf32>
    %c0_53 = arith.constant 0 : index
    %c0_54 = arith.constant 0 : index
    %94 = vector.load %arg19[%c0_53, %c0_54] : memref<1x128xf32, #tpu.memory_space<vmem>>, vector<1x128xf32>
    %95 = vector.broadcast %94 : vector<1x128xf32> to vector<64x128xf32>
    %96 = arith.addf %93, %95 : vector<64x128xf32>
    %97 = arith.negf %96 : vector<64x128xf32>
    %98 = math.exp %97 : vector<64x128xf32>
    %cst_55 = arith.constant 1.000000e+00 : f32
    %99 = vector.broadcast %cst_55 : f32 to vector<64x128xf32>
    %100 = arith.addf %99, %98 : vector<64x128xf32>
    %101 = arith.divf %99, %100 : vector<64x128xf32>
    %102 = arith.mulf %96, %101 : vector<64x128xf32>
    %103 = tpu.concatenate %102, %102, %102, %102 in 0 : vector<64x128xf32>, vector<64x128xf32>, vector<64x128xf32>, vector<64x128xf32> -> vector<256x128xf32>
    %104 = arith.addf %103, %28 : vector<256x128xf32>
    %105 = arith.truncf %104 : vector<256x128xf32> to vector<256x128xbf16>
    %c0_56 = arith.constant 0 : index
    %c0_57 = arith.constant 0 : index
    %106 = vector.load %arg20[%c0_56, %c0_57] : memref<128x4xbf16, #tpu.memory_space<vmem>>, vector<128x4xbf16>
    %cst_58 = arith.constant dense<0.000000e+00> : vector<256x4xf32>
    %107 = tpu.matmul %105, %106, %cst_58 {dimension_numbers = #tpu.dot_dimension_numbers<[1], [0], [0], [1], [0, 0, 1, 1], [], []>} : vector<256x128xbf16>, vector<128x4xbf16>, vector<256x4xf32> -> vector<256x4xf32>
    %c0_59 = arith.constant 0 : index
    %c0_60 = arith.constant 0 : index
    %108 = vector.load %arg21[%c0_59, %c0_60] : memref<1x4xf32, #tpu.memory_space<vmem>>, vector<1x4xf32>
    %109 = vector.broadcast %108 : vector<1x4xf32> to vector<256x4xf32>
    %110 = arith.addf %107, %109 : vector<256x4xf32>
    %c0_61 = arith.constant 0 : index
    %c0_62 = arith.constant 0 : index
    %c0_63 = arith.constant 0 : index
    %111 = vector.load %arg22[%c0_61, %c0_62, %c0_63] : memref<1x256x4xf32, #tpu.memory_space<vmem>>, vector<1x256x4xf32>
    %112 = vector.shape_cast %111 : vector<1x256x4xf32> to vector<256x4xf32>
    %113 = vector.shape_cast %110 : vector<256x4xf32> to vector<1x256x4xf32>
    tpu.vector_store %arg22[%c0_61, %c0_62, %c0_63], %113 {strides = array<i32>} : memref<1x256x4xf32, #tpu.memory_space<vmem>>, vector<1x256x4xf32>,
    return
  }
  func.func @transform_0(%arg0: i32) -> (i32, i32, i32) {
    %c0_i32 = arith.constant 0 : i32
    %c0_i32_0 = arith.constant 0 : i32
    %c0_i32_1 = arith.constant 0 : i32
    return %arg0, %c0_i32, %c0_i32_0 : i32, i32, i32
  }
  func.func @transform_1(%arg0: i32) -> (i32, i32, i32) {
    %c0_i32 = arith.constant 0 : i32
    %c0_i32_0 = arith.constant 0 : i32
    %c0_i32_1 = arith.constant 0 : i32
    return %arg0, %c0_i32, %c0_i32_0 : i32, i32, i32
  }
  func.func @transform_2(%arg0: i32) -> (i32, i32, i32) {
    %c0_i32 = arith.constant 0 : i32
    %c0_i32_0 = arith.constant 0 : i32
    %c0_i32_1 = arith.constant 0 : i32
    return %arg0, %c0_i32, %c0_i32_0 : i32, i32, i32
  }
  func.func @transform_3(%arg0: i32) -> (i32, i32, i32) {
    %c0_i32 = arith.constant 0 : i32
    %c0_i32_0 = arith.constant 0 : i32
    %c0_i32_1 = arith.constant 0 : i32
    return %arg0, %c0_i32, %c0_i32_0 : i32, i32, i32
  }
  func.func @transform_4(%arg0: i32) -> (i32, i32, i32) {
    %c0_i32 = arith.constant 0 : i32
    %c0_i32_0 = arith.constant 0 : i32
    %c0_i32_1 = arith.constant 0 : i32
    return %arg0, %c0_i32, %c0_i32_0 : i32, i32, i32
  }
  func.func @transform_5(%arg0: i32) -> (i32, i32, i32) {
    %c0_i32 = arith.constant 0 : i32
    %c0_i32_0 = arith.constant 0 : i32
    %c0_i32_1 = arith.constant 0 : i32
    return %arg0, %c0_i32, %c0_i32_0 : i32, i32, i32
  }
  func.func @transform_6(%arg0: i32) -> (i32, i32) {
    %c0_i32 = arith.constant 0 : i32
    %c0_i32_0 = arith.constant 0 : i32
    %c0_i32_1 = arith.constant 0 : i32
    return %c0_i32, %c0_i32_0 : i32, i32
  }
  func.func @transform_7(%arg0: i32) -> (i32, i32) {
    %c0_i32 = arith.constant 0 : i32
    %c0_i32_0 = arith.constant 0 : i32
    %c0_i32_1 = arith.constant 0 : i32
    return %c0_i32, %c0_i32_0 : i32, i32
  }
  func.func @transform_8(%arg0: i32) -> (i32, i32) {
    %c0_i32 = arith.constant 0 : i32
    %c0_i32_0 = arith.constant 0 : i32
    %c0_i32_1 = arith.constant 0 : i32
    return %c0_i32, %c0_i32_0 : i32, i32
  }
  func.func @transform_9(%arg0: i32) -> (i32, i32) {
    %c0_i32 = arith.constant 0 : i32
    %c0_i32_0 = arith.constant 0 : i32
    %c0_i32_1 = arith.constant 0 : i32
    return %c0_i32, %c0_i32_0 : i32, i32
  }
  func.func @transform_10(%arg0: i32) -> (i32, i32) {
    %c0_i32 = arith.constant 0 : i32
    %c0_i32_0 = arith.constant 0 : i32
    %c0_i32_1 = arith.constant 0 : i32
    return %c0_i32, %c0_i32_0 : i32, i32
  }
  func.func @transform_11(%arg0: i32) -> (i32, i32) {
    %c0_i32 = arith.constant 0 : i32
    %c0_i32_0 = arith.constant 0 : i32
    %c0_i32_1 = arith.constant 0 : i32
    return %c0_i32, %c0_i32_0 : i32, i32
  }
  func.func @transform_12(%arg0: i32) -> (i32, i32) {
    %c0_i32 = arith.constant 0 : i32
    %c0_i32_0 = arith.constant 0 : i32
    %c0_i32_1 = arith.constant 0 : i32
    return %c0_i32, %c0_i32_0 : i32, i32
  }
  func.func @transform_13(%arg0: i32) -> (i32, i32) {
    %c0_i32 = arith.constant 0 : i32
    %c0_i32_0 = arith.constant 0 : i32
    %c0_i32_1 = arith.constant 0 : i32
    return %c0_i32, %c0_i32_0 : i32, i32
  }
  func.func @transform_14(%arg0: i32) -> (i32, i32) {
    %c0_i32 = arith.constant 0 : i32
    %c0_i32_0 = arith.constant 0 : i32
    %c0_i32_1 = arith.constant 0 : i32
    return %c0_i32, %c0_i32_0 : i32, i32
  }
  func.func @transform_15(%arg0: i32) -> (i32, i32) {
    %c0_i32 = arith.constant 0 : i32
    %c0_i32_0 = arith.constant 0 : i32
    %c0_i32_1 = arith.constant 0 : i32
    return %c0_i32, %c0_i32_0 : i32, i32
  }
  func.func @transform_16(%arg0: i32) -> (i32, i32) {
    %c0_i32 = arith.constant 0 : i32
    %c0_i32_0 = arith.constant 0 : i32
    %c0_i32_1 = arith.constant 0 : i32
    return %c0_i32, %c0_i32_0 : i32, i32
  }
  func.func @transform_17(%arg0: i32) -> (i32, i32) {
    %c0_i32 = arith.constant 0 : i32
    %c0_i32_0 = arith.constant 0 : i32
    %c0_i32_1 = arith.constant 0 : i32
    return %c0_i32, %c0_i32_0 : i32, i32
  }
  func.func @transform_18(%arg0: i32) -> (i32, i32) {
    %c0_i32 = arith.constant 0 : i32
    %c0_i32_0 = arith.constant 0 : i32
    %c0_i32_1 = arith.constant 0 : i32
    return %c0_i32, %c0_i32_0 : i32, i32
  }
  func.func @transform_19(%arg0: i32) -> (i32, i32) {
    %c0_i32 = arith.constant 0 : i32
    %c0_i32_0 = arith.constant 0 : i32
    %c0_i32_1 = arith.constant 0 : i32
    return %c0_i32, %c0_i32_0 : i32, i32
  }
  func.func @transform_20(%arg0: i32) -> (i32, i32) {
    %c0_i32 = arith.constant 0 : i32
    %c0_i32_0 = arith.constant 0 : i32
    %c0_i32_1 = arith.constant 0 : i32
    return %c0_i32, %c0_i32_0 : i32, i32
  }
  func.func @transform_21(%arg0: i32) -> (i32, i32, i32) {
    %c0_i32 = arith.constant 0 : i32
    %c0_i32_0 = arith.constant 0 : i32
    %c0_i32_1 = arith.constant 0 : i32
    return %arg0, %c0_i32, %c0_i32_0 : i32, i32, i32
  }
}

</mosaic_0001>

<llo_original>
// kernel: unet_controlnet_forward.3
$region0: #{unet_controlnet_forward.3}
  #allocation0 [shape = 'u32[]', space=smem, size = 0x4, offset = 0x4, fixed_abs, tag = 'smem constant byte address 0x4 - core index']
  #allocation1 [shape = 'u32[72,128]{1,0:T(1,128)}', space=vmem, size = 0x9000, scoped, tag = 'internal scratch']
  %s0 = inlined_call_operand.vmem [shape: bf16[2,256,4], index: 0, kind: input, shape index: {}]
  %s1 = inlined_call_operand.vmem [shape: bf16[2,1,128], index: 1, kind: input, shape index: {}]
  %s2 = inlined_call_operand.vmem [shape: bf16[2,1,32], index: 2, kind: input, shape index: {}]
  %s3 = inlined_call_operand.vmem [shape: f32[2,256,128], index: 3, kind: input, shape index: {}]
  %s4 = inlined_call_operand.vmem [shape: f32[2,64,128], index: 4, kind: input, shape index: {}]
  %s5 = inlined_call_operand.vmem [shape: f32[2,16,128], index: 5, kind: input, shape index: {}]
  %s6 = inlined_call_operand.vmem [shape: bf16[4,128], index: 6, kind: input, shape index: {}]
  %s7 = inlined_call_operand.vmem [shape: f32[1,128], index: 7, kind: input, shape index: {}]
  %s8 = inlined_call_operand.vmem [shape: bf16[128,128], index: 8, kind: input, shape index: {}]
  %s9 = inlined_call_operand.vmem [shape: bf16[32,128], index: 9, kind: input, shape index: {}]
  %s10 = inlined_call_operand.vmem [shape: f32[1,128], index: 10, kind: input, shape index: {}]
  %s11 = inlined_call_operand.vmem [shape: bf16[128,128], index: 11, kind: input, shape index: {}]
  %s12 = inlined_call_operand.vmem [shape: f32[1,128], index: 12, kind: input, shape index: {}]
  %s13 = inlined_call_operand.vmem [shape: bf16[128,128], index: 13, kind: input, shape index: {}]
  %s14 = inlined_call_operand.vmem [shape: f32[1,128], index: 14, kind: input, shape index: {}]
  %s15 = inlined_call_operand.vmem [shape: bf16[128,128], index: 15, kind: input, shape index: {}]
  %s16 = inlined_call_operand.vmem [shape: f32[1,128], index: 16, kind: input, shape index: {}]
  %s17 = inlined_call_operand.vmem [shape: bf16[128,128], index: 17, kind: input, shape index: {}]
  %s18 = inlined_call_operand.vmem [shape: f32[1,128], index: 18, kind: input, shape index: {}]
  %s19 = inlined_call_operand.vmem [shape: bf16[128,4], index: 19, kind: input, shape index: {}]
  %s20 = inlined_call_operand.vmem [shape: f32[1,4], index: 20, kind: input, shape index: {}]
  %s21 = inlined_call_operand.vmem [shape: f32[2,256,4], index: 21, kind: output, shape index: {}]
  %s22 = sld [smem:[#allocation0]]
  $region117: #{unet_controlnet_forward.3} parent=0
    _
  %s24 = ssub.s32 1, %s22
  %s25 = scalar_select 0, %s24, %s22
  loop: start=0, step=1, limit=4
  $region2: #{unet_controlnet_forward.3} parent=0 // loop_pre_header
    _
  $region3: #{unet_controlnet_forward.3} parent=0 // loop_header
    %s27 = sphi 0, %s31
    %p28 = scmp.ge.s32.totalorder %s27, 4
    %s37 = sphi 0, %s39
    %s40 = sphi 0, %s37
    %s41 = sphi 0, %s40
    %s57 = sphi 0, %s41
    %s63 = sphi 0, %s65
    %s66 = sphi 0, %s63
    %s67 = sphi 0, %s66
    %s83 = sphi 0, %s67
    %s89 = sphi 0, %s91
    %s92 = sphi 0, %s89
    %s93 = sphi 0, %s92
    %s109 = sphi 0, %s93
    %s115 = sphi 0, %s117
    %s118 = sphi 0, %s115
    %s119 = sphi 0, %s118
    %s135 = sphi 0, %s119
    %s141 = sphi 0, %s143
    %s144 = sphi 0, %s141
    %s145 = sphi 0, %s144
    %s161 = sphi 0, %s145
    %s167 = sphi 0, %s169
    %s170 = sphi 0, %s167
    %s171 = sphi 0, %s170
    %s187 = sphi 0, %s171
    %s191 = sphi 0, %s191
    %s193 = sphi 0, %s191
    %s194 = sphi 0, %s193
    %s208 = sphi 0, %s194
    %s212 = sphi 0, %s212
    %s214 = sphi 0, %s212
    %s215 = sphi 0, %s214
    %s229 = sphi 0, %s215
    %s233 = sphi 0, %s233
    %s235 = sphi 0, %s233
    %s236 = sphi 0, %s235
    %s250 = sphi 0, %s236
    %s254 = sphi 0, %s254
    %s256 = sphi 0, %s254
    %s257 = sphi 0, %s256
    %s271 = sphi 0, %s257
    %s275 = sphi 0, %s275
    %s277 = sphi 0, %s275
    %s278 = sphi 0, %s277
    %s292 = sphi 0, %s278
    %s296 = sphi 0, %s296
    %s298 = sphi 0, %s296
    %s299 = sphi 0, %s298
    %s313 = sphi 0, %s299
    %s317 = sphi 0, %s317
    %s319 = sphi 0, %s317
    %s320 = sphi 0, %s319
    %s334 = sphi 0, %s320
    %s338 = sphi 0, %s338
    %s340 = sphi 0, %s338
    %s341 = sphi 0, %s340
    %s355 = sphi 0, %s341
    %s359 = sphi 0, %s359
    %s361 = sphi 0, %s359
    %s362 = sphi 0, %s361
    %s376 = sphi 0, %s362
    %s380 = sphi 0, %s380
    %s382 = sphi 0, %s380
    %s383 = sphi 0, %s382
    %s397 = sphi 0, %s383
    %s401 = sphi 0, %s401
    %s403 = sphi 0, %s401
    %s404 = sphi 0, %s403
    %s418 = sphi 0, %s404
    %s422 = sphi 0, %s422
    %s424 = sphi 0, %s422
    %s425 = sphi 0, %s424
    %s439 = sphi 0, %s425
    %s443 = sphi 0, %s443
    %s445 = sphi 0, %s443
    %s446 = sphi 0, %s445
    %s460 = sphi 0, %s446
    %s464 = sphi 0, %s464
    %s466 = sphi 0, %s464
    %s467 = sphi 0, %s466
    %s481 = sphi 0, %s467
    %s485 = sphi 0, %s485
    %s487 = sphi 0, %s485
    %s488 = sphi 0, %s487
    %s502 = sphi 0, %s488
    %s508 = sphi 0, %s510
    %s511 = sphi 0, %s508
    %s512 = sphi 0, %s511
    %s528 = sphi 0, %s512
  $region4: #{unet_controlnet_forward.3} parent=0 // loop_header_branch
    %30 = sbr.rel (%p28) target = $region8
  $region5: #{unet_controlnet_forward.3} parent=0 // loop_body
    %s32 = ssub.s32 %s27, 1
    %s33 = ssub.s32 %s27, 2
    %s34 = sadd.s32 %s27, 1
    %s35 = ssub.s32 %s27, %s34
    %p36 = scmp.eq.s32.totalorder %s35, 0
    %s38 = sadd.s32 %s37, 1
    %s39 = scalar_select %p36, %s37, %s38
    %p42 = pneg %p36
    %p43 = scmp.eq.s32.totalorder %s27, 1
    %p44 = por %p42, %p43
    %p45 = scmp.ne.s32.totalorder %s37, %s40
    %p46 = scmp.eq.s32.totalorder %s27, 0
    %p47 = por %p45, %p46
    %p48 = scmp.ne.s32.totalorder %s37, %s40
    %p49 = scmp.eq.s32.totalorder %s32, 1
    %p50 = por %p48, %p49
    %p51 = scmp.ne.s32.totalorder %s40, %s41
    %p52 = scmp.eq.s32.totalorder %s32, 0
    %p53 = por %p51, %p52
    %p54 = scmp.ne.s32.totalorder %s40, %s41
    %p55 = scmp.eq.s32.totalorder %s33, 1
    %p56 = por %p54, %p55
    %p58 = scmp.ne.s32.totalorder %s41, %s57
    %p59 = scmp.eq.s32.totalorder %s33, 0
    %p60 = por %p58, %p59
    %s61 = ssub.s32 %s27, %s34
    %p62 = scmp.eq.s32.totalorder %s61, 0
    %s64 = sadd.s32 %s63, 1
    %s65 = scalar_select %p62, %s63, %s64
    %p68 = pneg %p62
    %p69 = scmp.eq.s32.totalorder %s27, 1
    %p70 = por %p68, %p69
    %p71 = scmp.ne.s32.totalorder %s63, %s66
    %p72 = scmp.eq.s32.totalorder %s27, 0
    %p73 = por %p71, %p72
    %p74 = scmp.ne.s32.totalorder %s63, %s66
    %p75 = scmp.eq.s32.totalorder %s32, 1
    %p76 = por %p74, %p75
    %p77 = scmp.ne.s32.totalorder %s66, %s67
    %p78 = scmp.eq.s32.totalorder %s32, 0
    %p79 = por %p77, %p78
    %p80 = scmp.ne.s32.totalorder %s66, %s67
    %p81 = scmp.eq.s32.totalorder %s33, 1
    %p82 = por %p80, %p81
    %p84 = scmp.ne.s32.totalorder %s67, %s83
    %p85 = scmp.eq.s32.totalorder %s33, 0
    %p86 = por %p84, %p85
    %s87 = ssub.s32 %s27, %s34
    %p88 = scmp.eq.s32.totalorder %s87, 0
    %s90 = sadd.s32 %s89, 1
    %s91 = scalar_select %p88, %s89, %s90
    %p94 = pneg %p88
    %p95 = scmp.eq.s32.totalorder %s27, 1
    %p96 = por %p94, %p95
    %p97 = scmp.ne.s32.totalorder %s89, %s92
    %p98 = scmp.eq.s32.totalorder %s27, 0
    %p99 = por %p97, %p98
    %p100 = scmp.ne.s32.totalorder %s89, %s92
    %p101 = scmp.eq.s32.totalorder %s32, 1
    %p102 = por %p100, %p101
    %p103 = scmp.ne.s32.totalorder %s92, %s93
    %p104 = scmp.eq.s32.totalorder %s32, 0
    %p105 = por %p103, %p104
    %p106 = scmp.ne.s32.totalorder %s92, %s93
    %p107 = scmp.eq.s32.totalorder %s33, 1
    %p108 = por %p106, %p107
    %p110 = scmp.ne.s32.totalorder %s93, %s109
    %p111 = scmp.eq.s32.totalorder %s33, 0
    %p112 = por %p110, %p111
    %s113 = ssub.s32 %s27, %s34
    %p114 = scmp.eq.s32.totalorder %s113, 0
    %s116 = sadd.s32 %s115, 1
    %s117 = scalar_select %p114, %s115, %s116
    %p120 = pneg %p114
    %p121 = scmp.eq.s32.totalorder %s27, 1
    %p122 = por %p120, %p121
    %p123 = scmp.ne.s32.totalorder %s115, %s118
    %p124 = scmp.eq.s32.totalorder %s27, 0
    %p125 = por %p123, %p124
    %p126 = scmp.ne.s32.totalorder %s115, %s118
    %p127 = scmp.eq.s32.totalorder %s32, 1
    %p128 = por %p126, %p127
    %p129 = scmp.ne.s32.totalorder %s118, %s119
    %p130 = scmp.eq.s32.totalorder %s32, 0
    %p131 = por %p129, %p130
    %p132 = scmp.ne.s32.totalorder %s118, %s119
    %p133 = scmp.eq.s32.totalorder %s33, 1
    %p134 = por %p132, %p133
    %p136 = scmp.ne.s32.totalorder %s119, %s135
    %p137 = scmp.eq.s32.totalorder %s33, 0
    %p138 = por %p136, %p137
    %s139 = ssub.s32 %s27, %s34
    %p140 = scmp.eq.s32.totalorder %s139, 0
    %s142 = sadd.s32 %s141, 1
    %s143 = scalar_select %p140, %s141, %s142
    %p146 = pneg %p140
    %p147 = scmp.eq.s32.totalorder %s27, 1
    %p148 = por %p146, %p147
    %p149 = scmp.ne.s32.totalorder %s141, %s144
    %p150 = scmp.eq.s32.totalorder %s27, 0
    %p151 = por %p149, %p150
    %p152 = scmp.ne.s32.totalorder %s141, %s144
    %p153 = scmp.eq.s32.totalorder %s32, 1
    %p154 = por %p152, %p153
    %p155 = scmp.ne.s32.totalorder %s144, %s145
    %p156 = scmp.eq.s32.totalorder %s32, 0
    %p157 = por %p155, %p156
    %p158 = scmp.ne.s32.totalorder %s144, %s145
    %p159 = scmp.eq.s32.totalorder %s33, 1
    %p160 = por %p158, %p159
    %p162 = scmp.ne.s32.totalorder %s145, %s161
    %p163 = scmp.eq.s32.totalorder %s33, 0
    %p164 = por %p162, %p163
    %s165 = ssub.s32 %s27, %s34
    %p166 = scmp.eq.s32.totalorder %s165, 0
    %s168 = sadd.s32 %s167, 1
    %s169 = scalar_select %p166, %s167, %s168
    %p172 = pneg %p166
    %p173 = scmp.eq.s32.totalorder %s27, 1
    %p174 = por %p172, %p173
    %p175 = scmp.ne.s32.totalorder %s167, %s170
    %p176 = scmp.eq.s32.totalorder %s27, 0
    %p177 = por %p175, %p176
    %p178 = scmp.ne.s32.totalorder %s167, %s170
    %p179 = scmp.eq.s32.totalorder %s32, 1
    %p180 = por %p178, %p179
    %p181 = scmp.ne.s32.totalorder %s170, %s171
    %p182 = scmp.eq.s32.totalorder %s32, 0
    %p183 = por %p181, %p182
    %p184 = scmp.ne.s32.totalorder %s170, %s171
    %p185 = scmp.eq.s32.totalorder %s33, 1
    %p186 = por %p184, %p185
    %p188 = scmp.ne.s32.totalorder %s171, %s187
    %p189 = scmp.eq.s32.totalorder %s33, 0
    %p190 = por %p188, %p189
    %s192 = sadd.s32 %s191, 1
    %p195 = scmp.eq.s32.totalorder %s27, 1
    %p196 = scmp.ne.s32.totalorder %s191, %s193
    %p197 = scmp.eq.s32.totalorder %s27, 0
    %p198 = por %p196, %p197
    %p199 = scmp.ne.s32.totalorder %s191, %s193
    %p200 = scmp.eq.s32.totalorder %s32, 1
    %p201 = por %p199, %p200
    %p202 = scmp.ne.s32.totalorder %s193, %s194
    %p203 = scmp.eq.s32.totalorder %s32, 0
    %p204 = por %p202, %p203
    %p205 = scmp.ne.s32.totalorder %s193, %s194
    %p206 = scmp.eq.s32.totalorder %s33, 1
    %p207 = por %p205, %p206
    %p209 = scmp.ne.s32.totalorder %s194, %s208
    %p210 = scmp.eq.s32.totalorder %s33, 0
    %p211 = por %p209, %p210
    %s213 = sadd.s32 %s212, 1
    %p216 = scmp.eq.s32.totalorder %s27, 1
    %p217 = scmp.ne.s32.totalorder %s212, %s214
    %p218 = scmp.eq.s32.totalorder %s27, 0
    %p219 = por %p217, %p218
    %p220 = scmp.ne.s32.totalorder %s212, %s214
    %p221 = scmp.eq.s32.totalorder %s32, 1
    %p222 = por %p220, %p221
    %p223 = scmp.ne.s32.totalorder %s214, %s215
    %p224 = scmp.eq.s32.totalorder %s32, 0
    %p225 = por %p223, %p224
    %p226 = scmp.ne.s32.totalorder %s214, %s215
    %p227 = scmp.eq.s32.totalorder %s33, 1
    %p228 = por %p226, %p227
    %p230 = scmp.ne.s32.totalorder %s215, %s229
    %p231 = scmp.eq.s32.totalorder %s33, 0
    %p232 = por %p230, %p231
    %s234 = sadd.s32 %s233, 1
    %p237 = scmp.eq.s32.totalorder %s27, 1
    %p238 = scmp.ne.s32.totalorder %s233, %s235
    %p239 = scmp.eq.s32.totalorder %s27, 0
    %p240 = por %p238, %p239
    %p241 = scmp.ne.s32.totalorder %s233, %s235
    %p242 = scmp.eq.s32.totalorder %s32, 1
    %p243 = por %p241, %p242
    %p244 = scmp.ne.s32.totalorder %s235, %s236
    %p245 = scmp.eq.s32.totalorder %s32, 0
    %p246 = por %p244, %p245
    %p247 = scmp.ne.s32.totalorder %s235, %s236
    %p248 = scmp.eq.s32.totalorder %s33, 1
    %p249 = por %p247, %p248
    %p251 = scmp.ne.s32.totalorder %s236, %s250
    %p252 = scmp.eq.s32.totalorder %s33, 0
    %p253 = por %p251, %p252
    %s255 = sadd.s32 %s254, 1
    %p258 = scmp.eq.s32.totalorder %s27, 1
    %p259 = scmp.ne.s32.totalorder %s254, %s256
    %p260 = scmp.eq.s32.totalorder %s27, 0
    %p261 = por %p259, %p260
    %p262 = scmp.ne.s32.totalorder %s254, %s256
    %p263 = scmp.eq.s32.totalorder %s32, 1
    %p264 = por %p262, %p263
    %p265 = scmp.ne.s32.totalorder %s256, %s257
    %p266 = scmp.eq.s32.totalorder %s32, 0
    %p267 = por %p265, %p266
    %p268 = scmp.ne.s32.totalorder %s256, %s257
    %p269 = scmp.eq.s32.totalorder %s33, 1
    %p270 = por %p268, %p269
    %p272 = scmp.ne.s32.totalorder %s257, %s271
    %p273 = scmp.eq.s32.totalorder %s33, 0
    %p274 = por %p272, %p273
    %s276 = sadd.s32 %s275, 1
    %p279 = scmp.eq.s32.totalorder %s27, 1
    %p280 = scmp.ne.s32.totalorder %s275, %s277
    %p281 = scmp.eq.s32.totalorder %s27, 0
    %p282 = por %p280, %p281
    %p283 = scmp.ne.s32.totalorder %s275, %s277
    %p284 = scmp.eq.s32.totalorder %s32, 1
    %p285 = por %p283, %p284
    %p286 = scmp.ne.s32.totalorder %s277, %s278
    %p287 = scmp.eq.s32.totalorder %s32, 0
    %p288 = por %p286, %p287
    %p289 = scmp.ne.s32.totalorder %s277, %s278
    %p290 = scmp.eq.s32.totalorder %s33, 1
    %p291 = por %p289, %p290
    %p293 = scmp.ne.s32.totalorder %s278, %s292
    %p294 = scmp.eq.s32.totalorder %s33, 0
    %p295 = por %p293, %p294
    %s297 = sadd.s32 %s296, 1
    %p300 = scmp.eq.s32.totalorder %s27, 1
    %p301 = scmp.ne.s32.totalorder %s296, %s298
    %p302 = scmp.eq.s32.totalorder %s27, 0
    %p303 = por %p301, %p302
    %p304 = scmp.ne.s32.totalorder %s296, %s298
    %p305 = scmp.eq.s32.totalorder %s32, 1
    %p306 = por %p304, %p305
    %p307 = scmp.ne.s32.totalorder %s298, %s299
    %p308 = scmp.eq.s32.totalorder %s32, 0
    %p309 = por %p307, %p308
    %p310 = scmp.ne.s32.totalorder %s298, %s299
    %p311 = scmp.eq.s32.totalorder %s33, 1
    %p312 = por %p310, %p311
    %p314 = scmp.ne.s32.totalorder %s299, %s313
    %p315 = scmp.eq.s32.totalorder %s33, 0
    %p316 = por %p314, %p315
    %s318 = sadd.s32 %s317, 1
    %p321 = scmp.eq.s32.totalorder %s27, 1
    %p322 = scmp.ne.s32.totalorder %s317, %s319
    %p323 = scmp.eq.s32.totalorder %s27, 0
    %p324 = por %p322, %p323
    %p325 = scmp.ne.s32.totalorder %s317, %s319
    %p326 = scmp.eq.s32.totalorder %s32, 1
    %p327 = por %p325, %p326
    %p328 = scmp.ne.s32.totalorder %s319, %s320
    %p329 = scmp.eq.s32.totalorder %s32, 0
    %p330 = por %p328, %p329
    %p331 = scmp.ne.s32.totalorder %s319, %s320
    %p332 = scmp.eq.s32.totalorder %s33, 1
    %p333 = por %p331, %p332
    %p335 = scmp.ne.s32.totalorder %s320, %s334
    %p336 = scmp.eq.s32.totalorder %s33, 0
    %p337 = por %p335, %p336
    %s339 = sadd.s32 %s338, 1
    %p342 = scmp.eq.s32.totalorder %s27, 1
    %p343 = scmp.ne.s32.totalorder %s338, %s340
    %p344 = scmp.eq.s32.totalorder %s27, 0
    %p345 = por %p343, %p344
    %p346 = scmp.ne.s32.totalorder %s338, %s340
    %p347 = scmp.eq.s32.totalorder %s32, 1
    %p348 = por %p346, %p347
    %p349 = scmp.ne.s32.totalorder %s340, %s341
    %p350 = scmp.eq.s32.totalorder %s32, 0
    %p351 = por %p349, %p350
    %p352 = scmp.ne.s32.totalorder %s340, %s341
    %p353 = scmp.eq.s32.totalorder %s33, 1
    %p354 = por %p352, %p353
    %p356 = scmp.ne.s32.totalorder %s341, %s355
    %p357 = scmp.eq.s32.totalorder %s33, 0
    %p358 = por %p356, %p357
    %s360 = sadd.s32 %s359, 1
    %p363 = scmp.eq.s32.totalorder %s27, 1
    %p364 = scmp.ne.s32.totalorder %s359, %s361
    %p365 = scmp.eq.s32.totalorder %s27, 0
    %p366 = por %p364, %p365
    %p367 = scmp.ne.s32.totalorder %s359, %s361
    %p368 = scmp.eq.s32.totalorder %s32, 1
    %p369 = por %p367, %p368
    %p370 = scmp.ne.s32.totalorder %s361, %s362
    %p371 = scmp.eq.s32.totalorder %s32, 0
    %p372 = por %p370, %p371
    %p373 = scmp.ne.s32.totalorder %s361, %s362
    %p374 = scmp.eq.s32.totalorder %s33, 1
    %p375 = por %p373, %p374
    %p377 = scmp.ne.s32.totalorder %s362, %s376
    %p378 = scmp.eq.s32.totalorder %s33, 0
    %p379 = por %p377, %p378
    %s381 = sadd.s32 %s380, 1
    %p384 = scmp.eq.s32.totalorder %s27, 1
    %p385 = scmp.ne.s32.totalorder %s380, %s382
    %p386 = scmp.eq.s32.totalorder %s27, 0
    %p387 = por %p385, %p386
    %p388 = scmp.ne.s32.totalorder %s380, %s382
    %p389 = scmp.eq.s32.totalorder %s32, 1
    %p390 = por %p388, %p389
    %p391 = scmp.ne.s32.totalorder %s382, %s383
    %p392 = scmp.eq.s32.totalorder %s32, 0
    %p393 = por %p391, %p392
    %p394 = scmp.ne.s32.totalorder %s382, %s383
    %p395 = scmp.eq.s32.totalorder %s33, 1
    %p396 = por %p394, %p395
    %p398 = scmp.ne.s32.totalorder %s383, %s397
    %p399 = scmp.eq.s32.totalorder %s33, 0
    %p400 = por %p398, %p399
    %s402 = sadd.s32 %s401, 1
    %p405 = scmp.eq.s32.totalorder %s27, 1
    %p406 = scmp.ne.s32.totalorder %s401, %s403
    %p407 = scmp.eq.s32.totalorder %s27, 0
    %p408 = por %p406, %p407
    %p409 = scmp.ne.s32.totalorder %s401, %s403
    %p410 = scmp.eq.s32.totalorder %s32, 1
    %p411 = por %p409, %p410
    %p412 = scmp.ne.s32.totalorder %s403, %s404
    %p413 = scmp.eq.s32.totalorder %s32, 0
    %p414 = por %p412, %p413
    %p415 = scmp.ne.s32.totalorder %s403, %s404
    %p416 = scmp.eq.s32.totalorder %s33, 1
    %p417 = por %p415, %p416
    %p419 = scmp.ne.s32.totalorder %s404, %s418
    %p420 = scmp.eq.s32.totalorder %s33, 0
    %p421 = por %p419, %p420
    %s423 = sadd.s32 %s422, 1
    %p426 = scmp.eq.s32.totalorder %s27, 1
    %p427 = scmp.ne.s32.totalorder %s422, %s424
    %p428 = scmp.eq.s32.totalorder %s27, 0
    %p429 = por %p427, %p428
    %p430 = scmp.ne.s32.totalorder %s422, %s424
    %p431 = scmp.eq.s32.totalorder %s32, 1
    %p432 = por %p430, %p431
    %p433 = scmp.ne.s32.totalorder %s424, %s425
    %p434 = scmp.eq.s32.totalorder %s32, 0
    %p435 = por %p433, %p434
    %p436 = scmp.ne.s32.totalorder %s424, %s425
    %p437 = scmp.eq.s32.totalorder %s33, 1
    %p438 = por %p436, %p437
    %p440 = scmp.ne.s32.totalorder %s425, %s439
    %p441 = scmp.eq.s32.totalorder %s33, 0
    %p442 = por %p440, %p441
    %s444 = sadd.s32 %s443, 1
    %p447 = scmp.eq.s32.totalorder %s27, 1
    %p448 = scmp.ne.s32.totalorder %s443, %s445
    %p449 = scmp.eq.s32.totalorder %s27, 0
    %p450 = por %p448, %p449
    %p451 = scmp.ne.s32.totalorder %s443, %s445
    %p452 = scmp.eq.s32.totalorder %s32, 1
    %p453 = por %p451, %p452
    %p454 = scmp.ne.s32.totalorder %s445, %s446
    %p455 = scmp.eq.s32.totalorder %s32, 0
    %p456 = por %p454, %p455
    %p457 = scmp.ne.s32.totalorder %s445, %s446
    %p458 = scmp.eq.s32.totalorder %s33, 1
    %p459 = por %p457, %p458
    %p461 = scmp.ne.s32.totalorder %s446, %s460
    %p462 = scmp.eq.s32.totalorder %s33, 0
    %p463 = por %p461, %p462
    %s465 = sadd.s32 %s464, 1
    %p468 = scmp.eq.s32.totalorder %s27, 1
    %p469 = scmp.ne.s32.totalorder %s464, %s466
    %p470 = scmp.eq.s32.totalorder %s27, 0
    %p471 = por %p469, %p470
    %p472 = scmp.ne.s32.totalorder %s464, %s466
    %p473 = scmp.eq.s32.totalorder %s32, 1
    %p474 = por %p472, %p473
    %p475 = scmp.ne.s32.totalorder %s466, %s467
    %p476 = scmp.eq.s32.totalorder %s32, 0
    %p477 = por %p475, %p476
    %p478 = scmp.ne.s32.totalorder %s466, %s467
    %p479 = scmp.eq.s32.totalorder %s33, 1
    %p480 = por %p478, %p479
    %p482 = scmp.ne.s32.totalorder %s467, %s481
    %p483 = scmp.eq.s32.totalorder %s33, 0
    %p484 = por %p482, %p483
    %s486 = sadd.s32 %s485, 1
    %p489 = scmp.eq.s32.totalorder %s27, 1
    %p490 = scmp.ne.s32.totalorder %s485, %s487
    %p491 = scmp.eq.s32.totalorder %s27, 0
    %p492 = por %p490, %p491
    %p493 = scmp.ne.s32.totalorder %s485, %s487
    %p494 = scmp.eq.s32.totalorder %s32, 1
    %p495 = por %p493, %p494
    %p496 = scmp.ne.s32.totalorder %s487, %s488
    %p497 = scmp.eq.s32.totalorder %s32, 0
    %p498 = por %p496, %p497
    %p499 = scmp.ne.s32.totalorder %s487, %s488
    %p500 = scmp.eq.s32.totalorder %s33, 1
    %p501 = por %p499, %p500
    %p503 = scmp.ne.s32.totalorder %s488, %s502
    %p504 = scmp.eq.s32.totalorder %s33, 0
    %p505 = por %p503, %p504
    %s506 = ssub.s32 %s27, %s34
    %p507 = scmp.eq.s32.totalorder %s506, 0
    %s509 = sadd.s32 %s508, 1
    %s510 = scalar_select %p507, %s508, %s509
    %p513 = pneg %p507
    %p514 = scmp.eq.s32.totalorder %s27, 1
    %p515 = por %p513, %p514
    %p516 = scmp.ne.s32.totalorder %s508, %s511
    %p517 = scmp.eq.s32.totalorder %s27, 0
    %p518 = por %p516, %p517
    %p519 = scmp.ne.s32.totalorder %s508, %s511
    %p520 = scmp.eq.s32.totalorder %s32, 1
    %p521 = por %p519, %p520
    %p522 = scmp.ne.s32.totalorder %s511, %s512
    %p523 = scmp.eq.s32.totalorder %s32, 0
    %p524 = por %p522, %p523
    %p525 = scmp.ne.s32.totalorder %s511, %s512
    %p526 = scmp.eq.s32.totalorder %s33, 1
    %p527 = por %p525, %p526
    %p529 = scmp.ne.s32.totalorder %s512, %s528
    %p530 = scmp.eq.s32.totalorder %s33, 0
    %p531 = por %p529, %p530
    %p532 = scmp.le.s32.totalorder 1, %s27
    %p533 = scmp.lt.s32.totalorder %s27, 3
    %p534 = pnand %p532, %p533
    %p535 = pneg %p534
    // Predicated region
    $region9: #{unet_controlnet_forward.3} parent=5 // pred_check
      _
    $region10: #{unet_controlnet_forward.3} parent=5 // pred_check_branch
      %537 = sbr.rel (%p534) target = $region12
    $region11: #{unet_controlnet_forward.3} parent=5 // pred_region
      %s538 = ssub.s32 %s27, 1
      // Predicated region
      $region13: #{unet_controlnet_forward.3} parent=11 // pred_check
        %p539 = pneg %p204
      $region14: #{unet_controlnet_forward.3} parent=11 // pred_check_branch
        %541 = sbr.rel (%p539) target = $region16
      $region15: #{unet_controlnet_forward.3} parent=11 // pred_region
        _
      $region16: #{unet_controlnet_forward.3} parent=11 // pred_fallthru
        _
      // Predicated region
      $region17: #{unet_controlnet_forward.3} parent=11 // pred_check
        %p542 = pneg %p225
      $region18: #{unet_controlnet_forward.3} parent=11 // pred_check_branch
        %544 = sbr.rel (%p542) target = $region20
      $region19: #{unet_controlnet_forward.3} parent=11 // pred_region
        _
      $region20: #{unet_controlnet_forward.3} parent=11 // pred_fallthru
        _
      // Predicated region
      $region21: #{unet_controlnet_forward.3} parent=11 // pred_check
        %p545 = pneg %p246
      $region22: #{unet_controlnet_forward.3} parent=11 // pred_check_branch
        %547 = sbr.rel (%p545) target = $region24
      $region23: #{unet_controlnet_forward.3} parent=11 // pred_region
        _
      $region24: #{unet_controlnet_forward.3} parent=11 // pred_fallthru
        _
      // Predicated region
      $region25: #{unet_controlnet_forward.3} parent=11 // pred_check
        %p548 = pneg %p267
      $region26: #{unet_controlnet_forward.3} parent=11 // pred_check_branch
        %550 = sbr.rel (%p548) target = $region28
      $region27: #{unet_controlnet_forward.3} parent=11 // pred_region
        _
      $region28: #{unet_controlnet_forward.3} parent=11 // pred_fallthru
        _
      // Predicated region
      $region29: #{unet_controlnet_forward.3} parent=11 // pred_check
        %p551 = pneg %p288
      $region30: #{unet_controlnet_forward.3} parent=11 // pred_check_branch
        %553 = sbr.rel (%p551) target = $region32
      $region31: #{unet_controlnet_forward.3} parent=11 // pred_region
        _
      $region32: #{unet_controlnet_forward.3} parent=11 // pred_fallthru
        _
      // Predicated region
      $region33: #{unet_controlnet_forward.3} parent=11 // pred_check
        %p554 = pneg %p309
      $region34: #{unet_controlnet_forward.3} parent=11 // pred_check_branch
        %556 = sbr.rel (%p554) target = $region36
      $region35: #{unet_controlnet_forward.3} parent=11 // pred_region
        _
      $region36: #{unet_controlnet_forward.3} parent=11 // pred_fallthru
        _
      // Predicated region
      $region37: #{unet_controlnet_forward.3} parent=11 // pred_check
        %p557 = pneg %p330
      $region38: #{unet_controlnet_forward.3} parent=11 // pred_check_branch
        %559 = sbr.rel (%p557) target = $region40
      $region39: #{unet_controlnet_forward.3} parent=11 // pred_region
        _
      $region40: #{unet_controlnet_forward.3} parent=11 // pred_fallthru
        _
      // Predicated region
      $region41: #{unet_controlnet_forward.3} parent=11 // pred_check
        %p560 = pneg %p351
      $region42: #{unet_controlnet_forward.3} parent=11 // pred_check_branch
        %562 = sbr.rel (%p560) target = $region44
      $region43: #{unet_controlnet_forward.3} parent=11 // pred_region
        _
      $region44: #{unet_controlnet_forward.3} parent=11 // pred_fallthru
        _
      // Predicated region
      $region45: #{unet_controlnet_forward.3} parent=11 // pred_check
        %p563 = pneg %p372
      $region46: #{unet_controlnet_forward.3} parent=11 // pred_check_branch
        %565 = sbr.rel (%p563) target = $region48
      $region47: #{unet_controlnet_forward.3} parent=11 // pred_region
        _
      $region48: #{unet_controlnet_forward.3} parent=11 // pred_fallthru
        _
      // Predicated region
      $region49: #{unet_controlnet_forward.3} parent=11 // pred_check
        %p566 = pneg %p393
      $region50: #{unet_controlnet_forward.3} parent=11 // pred_check_branch
        %568 = sbr.rel (%p566) target = $region52
      $region51: #{unet_controlnet_forward.3} parent=11 // pred_region
        _
      $region52: #{unet_controlnet_forward.3} parent=11 // pred_fallthru
        _
      // Predicated region
      $region53: #{unet_controlnet_forward.3} parent=11 // pred_check
        %p569 = pneg %p414
      $region54: #{unet_controlnet_forward.3} parent=11 // pred_check_branch
        %571 = sbr.rel (%p569) target = $region56
      $region55: #{unet_controlnet_forward.3} parent=11 // pred_region
        _
      $region56: #{unet_controlnet_forward.3} parent=11 // pred_fallthru
        _
      // Predicated region
      $region57: #{unet_controlnet_forward.3} parent=11 // pred_check
        %p572 = pneg %p435
      $region58: #{unet_controlnet_forward.3} parent=11 // pred_check_branch
        %574 = sbr.rel (%p572) target = $region60
      $region59: #{unet_controlnet_forward.3} parent=11 // pred_region
        _
      $region60: #{unet_controlnet_forward.3} parent=11 // pred_fallthru
        _
      // Predicated region
      $region61: #{unet_controlnet_forward.3} parent=11 // pred_check
        %p575 = pneg %p456
      $region62: #{unet_controlnet_forward.3} parent=11 // pred_check_branch
        %577 = sbr.rel (%p575) target = $region64
      $region63: #{unet_controlnet_forward.3} parent=11 // pred_region
        _
      $region64: #{unet_controlnet_forward.3} parent=11 // pred_fallthru
        _
      // Predicated region
      $region65: #{unet_controlnet_forward.3} parent=11 // pred_check
        %p578 = pneg %p477
      $region66: #{unet_controlnet_forward.3} parent=11 // pred_check_branch
        %580 = sbr.rel (%p578) target = $region68
      $region67: #{unet_controlnet_forward.3} parent=11 // pred_region
        _
      $region68: #{unet_controlnet_forward.3} parent=11 // pred_fallthru
        _
      // Predicated region
      $region69: #{unet_controlnet_forward.3} parent=11 // pred_check
        %p581 = pneg %p498
      $region70: #{unet_controlnet_forward.3} parent=11 // pred_check_branch
        %583 = sbr.rel (%p581) target = $region72
      $region71: #{unet_controlnet_forward.3} parent=11 // pred_region
        _
      $region72: #{unet_controlnet_forward.3} parent=11 // pred_fallthru
        _
    $region12: #{unet_controlnet_forward.3} parent=5 // pred_fallthru
      _
    %p584 = scmp.lt.s32.totalorder %s27, 2
    // Predicated region
    $region73: #{unet_controlnet_forward.3} parent=5 // pred_check
      %p585 = pneg %p584
    $region74: #{unet_controlnet_forward.3} parent=5 // pred_check_branch
      %587 = sbr.rel (%p585) target = $region76
    $region75: #{unet_controlnet_forward.3} parent=5 // pred_region
      // Predicated region
      $region77: #{unet_controlnet_forward.3} parent=75 // pred_check
        %p588 = pneg %p47
      $region78: #{unet_controlnet_forward.3} parent=75 // pred_check_branch
        %590 = sbr.rel (%p588) target = $region80
      $region79: #{unet_controlnet_forward.3} parent=75 // pred_region
        %p591 = scmp.lt.s32.totalorder %s27, 1
        %s592 = scalar_select %p591, %s27, 1
        %s593 = smul.addr %s592, 32
        %s594 = smul.addr %s593, 4
        %s595 = scalar_lea.vmem %s0, %s594
      $region80: #{unet_controlnet_forward.3} parent=75 // pred_fallthru
        _
      // Predicated region
      $region81: #{unet_controlnet_forward.3} parent=75 // pred_check
        %p596 = pneg %p73
      $region82: #{unet_controlnet_forward.3} parent=75 // pred_check_branch
        %598 = sbr.rel (%p596) target = $region84
      $region83: #{unet_controlnet_forward.3} parent=75 // pred_region
        %p599 = scmp.lt.s32.totalorder %s27, 1
        %s600 = scalar_select %p599, %s27, 1
        %s601 = scalar_lea.vmem %s1, %s600
      $region84: #{unet_controlnet_forward.3} parent=75 // pred_fallthru
        _
      // Predicated region
      $region85: #{unet_controlnet_forward.3} parent=75 // pred_check
        %p602 = pneg %p99
      $region86: #{unet_controlnet_forward.3} parent=75 // pred_check_branch
        %604 = sbr.rel (%p602) target = $region88
      $region87: #{unet_controlnet_forward.3} parent=75 // pred_region
        %p605 = scmp.lt.s32.totalorder %s27, 1
        %s606 = scalar_select %p605, %s27, 1
        %s607 = scalar_lea.vmem %s2, %s606
      $region88: #{unet_controlnet_forward.3} parent=75 // pred_fallthru
        _
      // Predicated region
      $region89: #{unet_controlnet_forward.3} parent=75 // pred_check
        %p608 = pneg %p125
      $region90: #{unet_controlnet_forward.3} parent=75 // pred_check_branch
        %610 = sbr.rel (%p608) target = $region92
      $region91: #{unet_controlnet_forward.3} parent=75 // pred_region
        %p611 = scmp.lt.s32.totalorder %s27, 1
        %s612 = scalar_select %p611, %s27, 1
        %s613 = smul.addr %s612, 32
        %s614 = smul.addr %s613, 8
        %s615 = scalar_lea.vmem %s3, %s614
      $region92: #{unet_controlnet_forward.3} parent=75 // pred_fallthru
        _
      // Predicated region
      $region93: #{unet_controlnet_forward.3} parent=75 // pred_check
        %p616 = pneg %p151
      $region94: #{unet_controlnet_forward.3} parent=75 // pred_check_branch
        %618 = sbr.rel (%p616) target = $region96
      $region95: #{unet_controlnet_forward.3} parent=75 // pred_region
        %p619 = scmp.lt.s32.totalorder %s27, 1
        %s620 = scalar_select %p619, %s27, 1
        %s621 = smul.addr %s620, 8
        %s622 = smul.addr %s621, 8
        %s623 = scalar_lea.vmem %s4, %s622
      $region96: #{unet_controlnet_forward.3} parent=75 // pred_fallthru
        _
      // Predicated region
      $region97: #{unet_controlnet_forward.3} parent=75 // pred_check
        %p624 = pneg %p177
      $region98: #{unet_controlnet_forward.3} parent=75 // pred_check_branch
        %626 = sbr.rel (%p624) target = $region100
      $region99: #{unet_controlnet_forward.3} parent=75 // pred_region
        %p627 = scmp.lt.s32.totalorder %s27, 1
        %s628 = scalar_select %p627, %s27, 1
        %s629 = smul.addr %s628, 2
        %s630 = smul.addr %s629, 8
        %s631 = scalar_lea.vmem %s5, %s630
      $region100: #{unet_controlnet_forward.3} parent=75 // pred_fallthru
        _
    $region76: #{unet_controlnet_forward.3} parent=5 // pred_fallthru
      _
    %p632 = scmp.le.s32.totalorder 1, %s27
    %p633 = scmp.lt.s32.totalorder %s27, 3
    %p634 = pnand %p632, %p633
    %p635 = pneg %p634
    // Predicated region
    $region101: #{unet_controlnet_forward.3} parent=5 // pred_check
      _
    $region102: #{unet_controlnet_forward.3} parent=5 // pred_check_branch
      %637 = sbr.rel (%p634) target = $region104
    $region103: #{unet_controlnet_forward.3} parent=5 // pred_region
      %s638 = ssub.s32 %s27, 1
      %p639 = scmp.lt.s32.totalorder %s32, 1
      %s640 = scalar_select %p639, %s32, 1
      %s641 = smul.addr %s640, 32
      %s642 = smul.addr %s641, 4
      %s643 = scalar_lea.vmem %s0, %s642
      %p644 = pneg %p53
      %p645 = pneg %p50
      %p646 = scmp.lt.s32.totalorder %s32, 1
      %s647 = scalar_select %p646, %s32, 1
      %s648 = scalar_lea.vmem %s1, %s647
      %p649 = pneg %p79
      %p650 = pneg %p76
      %p651 = scmp.lt.s32.totalorder %s32, 1
      %s652 = scalar_select %p651, %s32, 1
      %s653 = scalar_lea.vmem %s2, %s652
      %p654 = pneg %p105
      %p655 = pneg %p102
      %p656 = scmp.lt.s32.totalorder %s32, 1
      %s657 = scalar_select %p656, %s32, 1
      %s658 = smul.addr %s657, 32
      %s659 = smul.addr %s658, 8
      %s660 = scalar_lea.vmem %s3, %s659
      %p661 = pneg %p131
      %p662 = pneg %p128
      %p663 = scmp.lt.s32.totalorder %s32, 1
      %s664 = scalar_select %p663, %s32, 1
      %s665 = smul.addr %s664, 8
      %s666 = smul.addr %s665, 8
      %s667 = scalar_lea.vmem %s4, %s666
      %p668 = pneg %p157
      %p669 = pneg %p154
      %p670 = scmp.lt.s32.totalorder %s32, 1
      %s671 = scalar_select %p670, %s32, 1
      %s672 = smul.addr %s671, 2
      %s673 = smul.addr %s672, 8
      %s674 = scalar_lea.vmem %s5, %s673
      %p675 = pneg %p183
      %p676 = pneg %p180
      %p677 = pneg %p204
      %p678 = pneg %p201
      %p679 = pneg %p225
      %p680 = pneg %p222
      %p681 = pneg %p246
      %p682 = pneg %p243
      %p683 = pneg %p267
      %p684 = pneg %p264
      %p685 = pneg %p288
      %p686 = pneg %p285
      %p687 = pneg %p309
      %p688 = pneg %p306
      %p689 = pneg %p330
      %p690 = pneg %p327
      %p691 = pneg %p351
      %p692 = pneg %p348
      %p693 = pneg %p372
      %p694 = pneg %p369
      %p695 = pneg %p393
      %p696 = pneg %p390
      %p697 = pneg %p414
      %p698 = pneg %p411
      %p699 = pneg %p435
      %p700 = pneg %p432
      %p701 = pneg %p456
      %p702 = pneg %p453
      %p703 = pneg %p477
      %p704 = pneg %p474
      %p705 = pneg %p498
      %p706 = pneg %p495
      %p707 = pneg %p524
      %p708 = pneg %p521
      %p709 = scmp.lt.s32.totalorder %s32, 1
      %s710 = scalar_select %p709, %s32, 1
      %s711 = smul.addr %s710, 32
      %s712 = smul.addr %s711, 8
      %s713 = scalar_lea.vmem %s21, %s712
      %p714 = scmp.lt.s32.totalorder %s32, 1
      %s715 = scalar_select %p714, %s32, 1
      %s716 = smul.addr %s715, 32
      %s717 = smul.addr %s716, 4
      %s718 = scalar_lea.vmem %s0, %s717
      %p719 = scmp.lt.s32.totalorder %s32, 1
      %s720 = scalar_select %p719, %s32, 1
      %s721 = scalar_lea.vmem %s1, %s720
      %p722 = scmp.lt.s32.totalorder %s32, 1
      %s723 = scalar_select %p722, %s32, 1
      %s724 = scalar_lea.vmem %s2, %s723
      %p725 = scmp.lt.s32.totalorder %s32, 1
      %s726 = scalar_select %p725, %s32, 1
      %s727 = smul.addr %s726, 32
      %s728 = smul.addr %s727, 8
      %s729 = scalar_lea.vmem %s3, %s728
      %p730 = scmp.lt.s32.totalorder %s32, 1
      %s731 = scalar_select %p730, %s32, 1
      %s732 = smul.addr %s731, 8
      %s733 = smul.addr %s732, 8
      %s734 = scalar_lea.vmem %s4, %s733
      %p735 = scmp.lt.s32.totalorder %s32, 1
      %s736 = scalar_select %p735, %s32, 1
      %s737 = smul.addr %s736, 2
      %s738 = smul.addr %s737, 8
      %s739 = scalar_lea.vmem %s5, %s738
      %p740 = scmp.lt.s32.totalorder %s32, 1
      %s741 = scalar_select %p740, %s32, 1
      %s742 = smul.addr %s741, 32
      %s743 = smul.addr %s742, 8
      %s744 = scalar_lea.vmem %s21, %s743
      %v746 = vld [vmem:[%s721] sm:$0x1]
      %v747 = vld [vmem:[%s8] sm:$0xf]
      %v748 = vld [vmem:[%s8 + $0x4] sm:$0xf]
      %v749 = vld [vmem:[%s8 + $0x8] sm:$0xf]
      %v750 = vld [vmem:[%s8 + $0xc] sm:$0xf]
      %v751 = vld [vmem:[%s8 + $0x10] sm:$0xf]
      %v752 = vld [vmem:[%s8 + $0x14] sm:$0xf]
      %v753 = vld [vmem:[%s8 + $0x18] sm:$0xf]
      %v754 = vld [vmem:[%s8 + $0x1c] sm:$0xf]
      %v755 = vld [vmem:[%s8 + $0x20] sm:$0xf]
      %v756 = vld [vmem:[%s8 + $0x24] sm:$0xf]
      %v757 = vld [vmem:[%s8 + $0x28] sm:$0xf]
      %v758 = vld [vmem:[%s8 + $0x2c] sm:$0xf]
      %v759 = vld [vmem:[%s8 + $0x30] sm:$0xf]
      %v760 = vld [vmem:[%s8 + $0x34] sm:$0xf]
      %v761 = vld [vmem:[%s8 + $0x38] sm:$0xf]
      %v762 = vld [vmem:[%s8 + $0x3c] sm:$0xf]
      %v763 = vld [vmem:[%s724] sm:$0x1]
      %v764 = vld [vmem:[%s9] sm:$0xf]
      %v765 = vld [vmem:[%s9 + $0x4] sm:$0xf]
      %v766 = vld [vmem:[%s9 + $0x8] sm:$0xf]
      %v767 = vld [vmem:[%s9 + $0xc] sm:$0xf]
      %v772 = vunpack.c.l.b16 %v764
      %v773 = vunpack.c.l.b16 %v765
      %v774 = vunpack.c.l.b16 %v766
      %v775 = vunpack.c.l.b16 %v767
      %v776 = vpack.c.b16 %v773, %v772
      %v777 = vpack.c.b16 %v775, %v774
      %vm780 = vcmask 261120
      %v782 = vsel %vm780, %v763, 0
      %784 = vmatpush.bf16.msra.mxu0 0
      %785 = vmatpush.bf16.msra.mxu0 0
      %786 = vmatpush.bf16.msra.mxu0 0
      %787 = vmatpush.bf16.msra.mxu0 0
      %788 = vmatpush.bf16.msra.mxu0 0
      %789 = vmatpush.bf16.msra.mxu0 0
      %790 = vmatpush.bf16.msra.mxu0 %v777
      %791 = vmatpush.bf16.msra.mxu0 %v776
      %792 = vmatmul.bf16.gmra.mxu0 %v782
      %v793 = vpop.f32.mrf.mxu0
      %v794 = vadd.f32 0.0, %v793
      %v795 = vpop.f32.mrf.mxu0
      %796 = vdwg.mxu0
      %v813 = vunpack.c.l.b16 %v747
      %v814 = vunpack.c.l.b16 %v748
      %v815 = vunpack.c.l.b16 %v749
      %v816 = vunpack.c.l.b16 %v750
      %v817 = vunpack.c.l.b16 %v751
      %v818 = vunpack.c.l.b16 %v752
      %v819 = vunpack.c.l.b16 %v753
      %v820 = vunpack.c.l.b16 %v754
      %v821 = vunpack.c.l.b16 %v755
      %v822 = vunpack.c.l.b16 %v756
      %v823 = vunpack.c.l.b16 %v757
      %v824 = vunpack.c.l.b16 %v758
      %v825 = vunpack.c.l.b16 %v759
      %v826 = vunpack.c.l.b16 %v760
      %v827 = vunpack.c.l.b16 %v761
      %v828 = vunpack.c.l.b16 %v762
      %v829 = vpack.c.b16 %v814, %v813
      %v830 = vpack.c.b16 %v816, %v815
      %v831 = vpack.c.b16 %v818, %v817
      %v832 = vpack.c.b16 %v820, %v819
      %v833 = vpack.c.b16 %v822, %v821
      %v834 = vpack.c.b16 %v824, %v823
      %v835 = vpack.c.b16 %v826, %v825
      %v836 = vpack.c.b16 %v828, %v827
      %845 = vmatpush.bf16.msra.mxu0 %v836
      %846 = vmatpush.bf16.msra.mxu0 %v835
      %847 = vmatpush.bf16.msra.mxu0 %v834
      %848 = vmatpush.bf16.msra.mxu0 %v833
      %849 = vmatpush.bf16.msra.mxu0 %v832
      %850 = vmatpush.bf16.msra.mxu0 %v831
      %851 = vmatpush.bf16.msra.mxu0 %v830
      %852 = vmatpush.bf16.msra.mxu0 %v829
      %853 = vmatmul.bf16.gmra.mxu0 %v746
      %v854 = vpop.f32.mrf.mxu0
      %v855 = vadd.f32 %v794, %v854
      %v856 = vpop.f32.mrf.mxu0
      %857 = vdwg.mxu0
      %v858 = vld [vmem:[%s10] sm:$0x1]
      %v859 = vadd.f32 %v855, %v858
      %v860 = vld [vmem:[%s718] sm:$0xf]
      %v861 = vld [vmem:[%s718 + $0x4] sm:$0xf]
      %v862 = vld [vmem:[%s718 + $0x8] sm:$0xf]
      %v863 = vld [vmem:[%s718 + $0xc] sm:$0xf]
      %v864 = vld [vmem:[%s718 + $0x10] sm:$0xf]
      %v865 = vld [vmem:[%s718 + $0x14] sm:$0xf]
      %v866 = vld [vmem:[%s718 + $0x18] sm:$0xf]
      %v867 = vld [vmem:[%s718 + $0x1c] sm:$0xf]
      %v868 = vld [vmem:[%s718 + $0x20] sm:$0xf]
      %v869 = vld [vmem:[%s718 + $0x24] sm:$0xf]
      %v870 = vld [vmem:[%s718 + $0x28] sm:$0xf]
      %v871 = vld [vmem:[%s718 + $0x2c] sm:$0xf]
      %v872 = vld [vmem:[%s718 + $0x30] sm:$0xf]
      %v873 = vld [vmem:[%s718 + $0x34] sm:$0xf]
      %v874 = vld [vmem:[%s718 + $0x38] sm:$0xf]
      %v875 = vld [vmem:[%s718 + $0x3c] sm:$0xf]
      %v876 = vld [vmem:[%s718 + $0x40] sm:$0xf]
      %v877 = vld [vmem:[%s718 + $0x44] sm:$0xf]
      %v878 = vld [vmem:[%s718 + $0x48] sm:$0xf]
      %v879 = vld [vmem:[%s718 + $0x4c] sm:$0xf]
      %v880 = vld [vmem:[%s718 + $0x50] sm:$0xf]
      %v881 = vld [vmem:[%s718 + $0x54] sm:$0xf]
      %v882 = vld [vmem:[%s718 + $0x58] sm:$0xf]
      %v883 = vld [vmem:[%s718 + $0x5c] sm:$0xf]
      %v884 = vld [vmem:[%s718 + $0x60] sm:$0xf]
      %v885 = vld [vmem:[%s718 + $0x64] sm:$0xf]
      %v886 = vld [vmem:[%s718 + $0x68] sm:$0xf]
      %v887 = vld [vmem:[%s718 + $0x6c] sm:$0xf]
      %v888 = vld [vmem:[%s718 + $0x70] sm:$0xf]
      %v889 = vld [vmem:[%s718 + $0x74] sm:$0xf]
      %v890 = vld [vmem:[%s718 + $0x78] sm:$0xf]
      %v891 = vld [vmem:[%s718 + $0x7c] sm:$0xf]
      %v892 = vld [vmem:[%s6] sm:$0x3]
      %v893 = vld [vmem:[%s7] sm:$0x1]
      %v895 = vperm.slane %v893, 0
      %v929 = vunpack.c.l.b16 %v860
      %v930 = vunpack.c.l.b16 %v861
      %v931 = vunpack.c.l.b16 %v862
      %v932 = vunpack.c.l.b16 %v863
      %v933 = vunpack.c.l.b16 %v864
      %v934 = vunpack.c.l.b16 %v865
      %v935 = vunpack.c.l.b16 %v866
      %v936 = vunpack.c.l.b16 %v867
      %v937 = vunpack.c.l.b16 %v868
      %v938 = vunpack.c.l.b16 %v869
      %v939 = vunpack.c.l.b16 %v870
      %v940 = vunpack.c.l.b16 %v871
      %v941 = vunpack.c.l.b16 %v872
      %v942 = vunpack.c.l.b16 %v873
      %v943 = vunpack.c.l.b16 %v874
      %v944 = vunpack.c.l.b16 %v875
      %v945 = vunpack.c.l.b16 %v876
      %v946 = vunpack.c.l.b16 %v877
      %v947 = vunpack.c.l.b16 %v878
      %v948 = vunpack.c.l.b16 %v879
      %v949 = vunpack.c.l.b16 %v880
      %v950 = vunpack.c.l.b16 %v881
      %v951 = vunpack.c.l.b16 %v882
      %v952 = vunpack.c.l.b16 %v883
      %v953 = vunpack.c.l.b16 %v884
      %v954 = vunpack.c.l.b16 %v885
      %v955 = vunpack.c.l.b16 %v886
      %v956 = vunpack.c.l.b16 %v887
      %v957 = vunpack.c.l.b16 %v888
      %v958 = vunpack.c.l.b16 %v889
      %v959 = vunpack.c.l.b16 %v890
      %v960 = vunpack.c.l.b16 %v891
      %v961 = vpack.c.b16 %v930, %v929
      %v962 = vpack.c.b16 %v932, %v931
      %v963 = vpack.c.b16 %v934, %v933
      %v964 = vpack.c.b16 %v936, %v935
      %v965 = vpack.c.b16 %v938, %v937
      %v966 = vpack.c.b16 %v940, %v939
      %v967 = vpack.c.b16 %v942, %v941
      %v968 = vpack.c.b16 %v944, %v943
      %v969 = vpack.c.b16 %v946, %v945
      %v970 = vpack.c.b16 %v948, %v947
      %v971 = vpack.c.b16 %v950, %v949
      %v972 = vpack.c.b16 %v952, %v951
      %v973 = vpack.c.b16 %v954, %v953
      %v974 = vpack.c.b16 %v956, %v955
      %v975 = vpack.c.b16 %v958, %v957
      %v976 = vpack.c.b16 %v960, %v959
      %vm977 = vcmask 31744
      %v979 = vsel %vm977, %v961, 0
      %v982 = vsel %vm977, %v962, 0
      %v985 = vsel %vm977, %v963, 0
      %v988 = vsel %vm977, %v964, 0
      %v991 = vsel %vm977, %v965, 0
      %v994 = vsel %vm977, %v966, 0
      %v997 = vsel %vm977, %v967, 0
      %v1000 = vsel %vm977, %v968, 0
      %v1003 = vsel %vm977, %v969, 0
      %v1006 = vsel %vm977, %v970, 0
      %v1009 = vsel %vm977, %v971, 0
      %v1012 = vsel %vm977, %v972, 0
      %v1015 = vsel %vm977, %v973, 0
      %v1018 = vsel %vm977, %v974, 0
      %v1021 = vsel %vm977, %v975, 0
      %v1024 = vsel %vm977, %v976, 0
      %vm1026 = vcmask 1041408
      %v1028 = vsel %vm1026, %v892, 0
      %1030 = vmatpush.bf16.msra.mxu0 0
      %1031 = vmatpush.bf16.msra.mxu0 0
      %1032 = vmatpush.bf16.msra.mxu0 0
      %1033 = vmatpush.bf16.msra.mxu0 0
      %1034 = vmatpush.bf16.msra.mxu0 0
      %1035 = vmatpush.bf16.msra.mxu0 0
      %1036 = vmatpush.bf16.msra.mxu0 0
      %1037 = vmatpush.bf16.msra.mxu0 %v1028
      %1038 = vmatmul.bf16.gmra.mxu0 %v979
      %v1039 = vpop.f32.mrf.mxu0
      %v1040 = vadd.f32 %v895, %v1039
      %v1041 = vpop.f32.mrf.mxu0
      %v1042 = vadd.f32 %v895, %v1041
      %1043 = vmatmul.bf16.gmra.mxu0 %v982
      %v1044 = vpop.f32.mrf.mxu0
      %v1045 = vadd.f32 %v895, %v1044
      %v1046 = vpop.f32.mrf.mxu0
      %v1047 = vadd.f32 %v895, %v1046
      %1048 = vmatmul.bf16.gmra.mxu0 %v985
      %v1049 = vpop.f32.mrf.mxu0
      %v1050 = vadd.f32 %v895, %v1049
      %v1051 = vpop.f32.mrf.mxu0
      %v1052 = vadd.f32 %v895, %v1051
      %1053 = vmatmul.bf16.gmra.mxu0 %v988
      %v1054 = vpop.f32.mrf.mxu0
      %v1055 = vadd.f32 %v895, %v1054
      %v1056 = vpop.f32.mrf.mxu0
      %v1057 = vadd.f32 %v895, %v1056
      %1058 = vmatmul.bf16.gmra.mxu0 %v991
      %v1059 = vpop.f32.mrf.mxu0
      %v1060 = vadd.f32 %v895, %v1059
      %v1061 = vpop.f32.mrf.mxu0
      %v1062 = vadd.f32 %v895, %v1061
      %1063 = vmatmul.bf16.gmra.mxu0 %v994
      %v1064 = vpop.f32.mrf.mxu0
      %v1065 = vadd.f32 %v895, %v1064
      %v1066 = vpop.f32.mrf.mxu0
      %v1067 = vadd.f32 %v895, %v1066
      %1068 = vmatmul.bf16.gmra.mxu0 %v997
      %v1069 = vpop.f32.mrf.mxu0
      %v1070 = vadd.f32 %v895, %v1069
      %v1071 = vpop.f32.mrf.mxu0
      %v1072 = vadd.f32 %v895, %v1071
      %1073 = vmatmul.bf16.gmra.mxu0 %v1000
      %v1074 = vpop.f32.mrf.mxu0
      %v1075 = vadd.f32 %v895, %v1074
      %v1076 = vpop.f32.mrf.mxu0
      %v1077 = vadd.f32 %v895, %v1076
      %1078 = vmatmul.bf16.gmra.mxu0 %v1003
      %v1079 = vpop.f32.mrf.mxu0
      %v1080 = vadd.f32 %v895, %v1079
      %v1081 = vpop.f32.mrf.mxu0
      %v1082 = vadd.f32 %v895, %v1081
      %1083 = vmatmul.bf16.gmra.mxu0 %v1006
      %v1084 = vpop.f32.mrf.mxu0
      %v1085 = vadd.f32 %v895, %v1084
      %v1086 = vpop.f32.mrf.mxu0
      %v1087 = vadd.f32 %v895, %v1086
      %1088 = vmatmul.bf16.gmra.mxu0 %v1009
      %v1089 = vpop.f32.mrf.mxu0
      %v1090 = vadd.f32 %v895, %v1089
      %v1091 = vpop.f32.mrf.mxu0
      %v1092 = vadd.f32 %v895, %v1091
      %1093 = vmatmul.bf16.gmra.mxu0 %v1012
      %v1094 = vpop.f32.mrf.mxu0
      %v1095 = vadd.f32 %v895, %v1094
      %v1096 = vpop.f32.mrf.mxu0
      %v1097 = vadd.f32 %v895, %v1096
      %1098 = vmatmul.bf16.gmra.mxu0 %v1015
      %v1099 = vpop.f32.mrf.mxu0
      %v1100 = vadd.f32 %v895, %v1099
      %v1101 = vpop.f32.mrf.mxu0
      %v1102 = vadd.f32 %v895, %v1101
      %1103 = vmatmul.bf16.gmra.mxu0 %v1018
      %v1104 = vpop.f32.mrf.mxu0
      %v1105 = vadd.f32 %v895, %v1104
      %v1106 = vpop.f32.mrf.mxu0
      %v1107 = vadd.f32 %v895, %v1106
      %1108 = vmatmul.bf16.gmra.mxu0 %v1021
      %v1109 = vpop.f32.mrf.mxu0
      %v1110 = vadd.f32 %v895, %v1109
      %v1111 = vpop.f32.mrf.mxu0
      %v1112 = vadd.f32 %v895, %v1111
      %1113 = vmatmul.bf16.gmra.mxu0 %v1024
      %v1114 = vpop.f32.mrf.mxu0
      %v1115 = vadd.f32 %v895, %v1114
      %v1116 = vpop.f32.mrf.mxu0
      %v1117 = vadd.f32 %v895, %v1116
      %1118 = vdwg.mxu0
      %v1119 = vperm.slane %v859, 0
      %v1120 = vadd.f32 %v1040, %v1119
      %v1121 = vadd.f32 %v1042, %v1119
      %v1122 = vadd.f32 %v1045, %v1119
      %v1123 = vadd.f32 %v1047, %v1119
      %v1124 = vadd.f32 %v1050, %v1119
      %v1125 = vadd.f32 %v1052, %v1119
      %v1126 = vadd.f32 %v1055, %v1119
      %v1127 = vadd.f32 %v1057, %v1119
      %v1128 = vadd.f32 %v1060, %v1119
      %v1129 = vadd.f32 %v1062, %v1119
      %v1130 = vadd.f32 %v1065, %v1119
      %v1131 = vadd.f32 %v1067, %v1119
      %v1132 = vadd.f32 %v1070, %v1119
      %v1133 = vadd.f32 %v1072, %v1119
      %v1134 = vadd.f32 %v1075, %v1119
      %v1135 = vadd.f32 %v1077, %v1119
      %v1136 = vadd.f32 %v1080, %v1119
      %v1137 = vadd.f32 %v1082, %v1119
      %v1138 = vadd.f32 %v1085, %v1119
      %v1139 = vadd.f32 %v1087, %v1119
      %v1140 = vadd.f32 %v1090, %v1119
      %v1141 = vadd.f32 %v1092, %v1119
      %v1142 = vadd.f32 %v1095, %v1119
      %v1143 = vadd.f32 %v1097, %v1119
      %v1144 = vadd.f32 %v1100, %v1119
      %v1145 = vadd.f32 %v1102, %v1119
      %v1146 = vadd.f32 %v1105, %v1119
      %v1147 = vadd.f32 %v1107, %v1119
      %v1148 = vadd.f32 %v1110, %v1119
      %v1149 = vadd.f32 %v1112, %v1119
      %v1150 = vadd.f32 %v1115, %v1119
      %v1151 = vadd.f32 %v1117, %v1119
      %v1152 = vxor.u32 %v1120, 2147483648
      %v1153 = vxor.u32 %v1121, 2147483648
      %v1154 = vxor.u32 %v1122, 2147483648
      %v1155 = vxor.u32 %v1123, 2147483648
      %v1156 = vxor.u32 %v1124, 2147483648
      %v1157 = vxor.u32 %v1125, 2147483648
      %v1158 = vxor.u32 %v1126, 2147483648
      %v1159 = vxor.u32 %v1127, 2147483648
      %v1160 = vxor.u32 %v1128, 2147483648
      %v1161 = vxor.u32 %v1129, 2147483648
      %v1162 = vxor.u32 %v1130, 2147483648
      %v1163 = vxor.u32 %v1131, 2147483648
      %v1164 = vxor.u32 %v1132, 2147483648
      %v1165 = vxor.u32 %v1133, 2147483648
      %v1166 = vxor.u32 %v1134, 2147483648
      %v1167 = vxor.u32 %v1135, 2147483648
      %v1168 = vxor.u32 %v1136, 2147483648
      %v1169 = vxor.u32 %v1137, 2147483648
      %v1170 = vxor.u32 %v1138, 2147483648
      %v1171 = vxor.u32 %v1139, 2147483648
      %v1172 = vxor.u32 %v1140, 2147483648
      %v1173 = vxor.u32 %v1141, 2147483648
      %v1174 = vxor.u32 %v1142, 2147483648
      %v1175 = vxor.u32 %v1143, 2147483648
      %v1176 = vxor.u32 %v1144, 2147483648
      %v1177 = vxor.u32 %v1145, 2147483648
      %v1178 = vxor.u32 %v1146, 2147483648
      %v1179 = vxor.u32 %v1147, 2147483648
      %v1180 = vxor.u32 %v1148, 2147483648
      %v1181 = vxor.u32 %v1149, 2147483648
      %v1182 = vxor.u32 %v1150, 2147483648
      %v1183 = vxor.u32 %v1151, 2147483648
      %v1184 = vmul.f32 %v1152, 1.442695
      %v1185 = vpow.pop %v1184
      %v1186 = vmul.f32 %v1153, 1.442695
      %v1187 = vpow.pop %v1186
      %v1188 = vmul.f32 %v1154, 1.442695
      %v1189 = vpow.pop %v1188
      %v1190 = vmul.f32 %v1155, 1.442695
      %v1191 = vpow.pop %v1190
      %v1192 = vmul.f32 %v1156, 1.442695
      %v1193 = vpow.pop %v1192
      %v1194 = vmul.f32 %v1157, 1.442695
      %v1195 = vpow.pop %v1194
      %v1196 = vmul.f32 %v1158, 1.442695
      %v1197 = vpow.pop %v1196
      %v1198 = vmul.f32 %v1159, 1.442695
      %v1199 = vpow.pop %v1198
      %v1200 = vmul.f32 %v1160, 1.442695
      %v1201 = vpow.pop %v1200
      %v1202 = vmul.f32 %v1161, 1.442695
      %v1203 = vpow.pop %v1202
      %v1204 = vmul.f32 %v1162, 1.442695
      %v1205 = vpow.pop %v1204
      %v1206 = vmul.f32 %v1163, 1.442695
      %v1207 = vpow.pop %v1206
      %v1208 = vmul.f32 %v1164, 1.442695
      %v1209 = vpow.pop %v1208
      %v1210 = vmul.f32 %v1165, 1.442695
      %v1211 = vpow.pop %v1210
      %v1212 = vmul.f32 %v1166, 1.442695
      %v1213 = vpow.pop %v1212
      %v1214 = vmul.f32 %v1167, 1.442695
      %v1215 = vpow.pop %v1214
      %v1216 = vmul.f32 %v1168, 1.442695
      %v1217 = vpow.pop %v1216
      %v1218 = vmul.f32 %v1169, 1.442695
      %v1219 = vpow.pop %v1218
      %v1220 = vmul.f32 %v1170, 1.442695
      %v1221 = vpow.pop %v1220
      %v1222 = vmul.f32 %v1171, 1.442695
      %v1223 = vpow.pop %v1222
      %v1224 = vmul.f32 %v1172, 1.442695
      %v1225 = vpow.pop %v1224
      %v1226 = vmul.f32 %v1173, 1.442695
      %v1227 = vpow.pop %v1226
      %v1228 = vmul.f32 %v1174, 1.442695
      %v1229 = vpow.pop %v1228
      %v1230 = vmul.f32 %v1175, 1.442695
      %v1231 = vpow.pop %v1230
      %v1232 = vmul.f32 %v1176, 1.442695
      %v1233 = vpow.pop %v1232
      %v1234 = vmul.f32 %v1177, 1.442695
      %v1235 = vpow.pop %v1234
      %v1236 = vmul.f32 %v1178, 1.442695
      %v1237 = vpow.pop %v1236
      %v1238 = vmul.f32 %v1179, 1.442695
      %v1239 = vpow.pop %v1238
      %v1240 = vmul.f32 %v1180, 1.442695
      %v1241 = vpow.pop %v1240
      %v1242 = vmul.f32 %v1181, 1.442695
      %v1243 = vpow.pop %v1242
      %v1244 = vmul.f32 %v1182, 1.442695
      %v1245 = vpow.pop %v1244
      %v1246 = vmul.f32 %v1183, 1.442695
      %v1247 = vpow.pop %v1246
      %v1248 = vadd.f32 %v1185, 1.0
      %v1249 = vadd.f32 %v1187, 1.0
      %v1250 = vadd.f32 %v1189, 1.0
      %v1251 = vadd.f32 %v1191, 1.0
      %v1252 = vadd.f32 %v1193, 1.0
      %v1253 = vadd.f32 %v1195, 1.0
      %v1254 = vadd.f32 %v1197, 1.0
      %v1255 = vadd.f32 %v1199, 1.0
      %v1256 = vadd.f32 %v1201, 1.0
      %v1257 = vadd.f32 %v1203, 1.0
      %v1258 = vadd.f32 %v1205, 1.0
      %v1259 = vadd.f32 %v1207, 1.0
      %v1260 = vadd.f32 %v1209, 1.0
      %v1261 = vadd.f32 %v1211, 1.0
      %v1262 = vadd.f32 %v1213, 1.0
      %v1263 = vadd.f32 %v1215, 1.0
      %v1264 = vadd.f32 %v1217, 1.0
      %v1265 = vadd.f32 %v1219, 1.0
      %v1266 = vadd.f32 %v1221, 1.0
      %v1267 = vadd.f32 %v1223, 1.0
      %v1268 = vadd.f32 %v1225, 1.0
      %v1269 = vadd.f32 %v1227, 1.0
      %v1270 = vadd.f32 %v1229, 1.0
      %v1271 = vadd.f32 %v1231, 1.0
      %v1272 = vadd.f32 %v1233, 1.0
      %v1273 = vadd.f32 %v1235, 1.0
      %v1274 = vadd.f32 %v1237, 1.0
      %v1275 = vadd.f32 %v1239, 1.0
      %v1276 = vadd.f32 %v1241, 1.0
      %v1277 = vadd.f32 %v1243, 1.0
      %v1278 = vadd.f32 %v1245, 1.0
      %v1279 = vadd.f32 %v1247, 1.0
      %v1280 = vrcp.pop %v1248
      %v1281 = vmul.f32 %v1248, %v1280
      %v1282 = vsub.f32 1.0, %v1281
      %v1283 = vmul.f32 %v1280, %v1282
      %v1284 = vadd.f32 %v1280, %v1283
      %vm1285 = vweird.f32 %v1248
      %vm1286 = vweird.f32 %v1280
      %vm1287 = vmor %vm1285, %vm1286
      %v1288 = vsel %vm1287, %v1280, %v1284
      %v1289 = vand.u32 2147483647, %v1248
      %vm1290 = vcmp.eq.f32.partialorder %v1289, 8.507059e+37
      %v1291 = vand.u32 %v1248, 2147483648
      %v1292 = vor.u32 1.1754944e-38, %v1291
      %v1293 = vsel %vm1290, %v1292, %v1288
      %v1294 = vmul.f32 1.0, %v1293
      %v1295 = vrcp.pop %v1249
      %v1296 = vmul.f32 %v1249, %v1295
      %v1297 = vsub.f32 1.0, %v1296
      %v1298 = vmul.f32 %v1295, %v1297
      %v1299 = vadd.f32 %v1295, %v1298
      %vm1300 = vweird.f32 %v1249
      %vm1301 = vweird.f32 %v1295
      %vm1302 = vmor %vm1300, %vm1301
      %v1303 = vsel %vm1302, %v1295, %v1299
      %v1304 = vand.u32 2147483647, %v1249
      %vm1305 = vcmp.eq.f32.partialorder %v1304, 8.507059e+37
      %v1306 = vand.u32 %v1249, 2147483648
      %v1307 = vor.u32 1.1754944e-38, %v1306
      %v1308 = vsel %vm1305, %v1307, %v1303
      %v1309 = vmul.f32 1.0, %v1308
      %v1310 = vrcp.pop %v1250
      %v1311 = vmul.f32 %v1250, %v1310
      %v1312 = vsub.f32 1.0, %v1311
      %v1313 = vmul.f32 %v1310, %v1312
      %v1314 = vadd.f32 %v1310, %v1313
      %vm1315 = vweird.f32 %v1250
      %vm1316 = vweird.f32 %v1310
      %vm1317 = vmor %vm1315, %vm1316
      %v1318 = vsel %vm1317, %v1310, %v1314
      %v1319 = vand.u32 2147483647, %v1250
      %vm1320 = vcmp.eq.f32.partialorder %v1319, 8.507059e+37
      %v1321 = vand.u32 %v1250, 2147483648
      %v1322 = vor.u32 1.1754944e-38, %v1321
      %v1323 = vsel %vm1320, %v1322, %v1318
      %v1324 = vmul.f32 1.0, %v1323
      %v1325 = vrcp.pop %v1251
      %v1326 = vmul.f32 %v1251, %v1325
      %v1327 = vsub.f32 1.0, %v1326
      %v1328 = vmul.f32 %v1325, %v1327
      %v1329 = vadd.f32 %v1325, %v1328
      %vm1330 = vweird.f32 %v1251
      %vm1331 = vweird.f32 %v1325
      %vm1332 = vmor %vm1330, %vm1331
      %v1333 = vsel %vm1332, %v1325, %v1329
      %v1334 = vand.u32 2147483647, %v1251
      %vm1335 = vcmp.eq.f32.partialorder %v1334, 8.507059e+37
      %v1336 = vand.u32 %v1251, 2147483648
      %v1337 = vor.u32 1.1754944e-38, %v1336
      %v1338 = vsel %vm1335, %v1337, %v1333
      %v1339 = vmul.f32 1.0, %v1338
      %v1340 = vrcp.pop %v1252
      %v1341 = vmul.f32 %v1252, %v1340
      %v1342 = vsub.f32 1.0, %v1341
      %v1343 = vmul.f32 %v1340, %v1342
      %v1344 = vadd.f32 %v1340, %v1343
      %vm1345 = vweird.f32 %v1252
      %vm1346 = vweird.f32 %v1340
      %vm1347 = vmor %vm1345, %vm1346
      %v1348 = vsel %vm1347, %v1340, %v1344
      %v1349 = vand.u32 2147483647, %v1252
      %vm1350 = vcmp.eq.f32.partialorder %v1349, 8.507059e+37
      %v1351 = vand.u32 %v1252, 2147483648
      %v1352 = vor.u32 1.1754944e-38, %v1351
      %v1353 = vsel %vm1350, %v1352, %v1348
      %v1354 = vmul.f32 1.0, %v1353
      %v1355 = vrcp.pop %v1253
      %v1356 = vmul.f32 %v1253, %v1355
      %v1357 = vsub.f32 1.0, %v1356
      %v1358 = vmul.f32 %v1355, %v1357
      %v1359 = vadd.f32 %v1355, %v1358
      %vm1360 = vweird.f32 %v1253
      %vm1361 = vweird.f32 %v1355
      %vm1362 = vmor %vm1360, %vm1361
      %v1363 = vsel %vm1362, %v1355, %v1359
      %v1364 = vand.u32 2147483647, %v1253
      %vm1365 = vcmp.eq.f32.partialorder %v1364, 8.507059e+37
      %v1366 = vand.u32 %v1253, 2147483648
      %v1367 = vor.u32 1.1754944e-38, %v1366
      %v1368 = vsel %vm1365, %v1367, %v1363
      %v1369 = vmul.f32 1.0, %v1368
      %v1370 = vrcp.pop %v1254
      %v1371 = vmul.f32 %v1254, %v1370
      %v1372 = vsub.f32 1.0, %v1371
      %v1373 = vmul.f32 %v1370, %v1372
      %v1374 = vadd.f32 %v1370, %v1373
      %vm1375 = vweird.f32 %v1254
      %vm1376 = vweird.f32 %v1370
      %vm1377 = vmor %vm1375, %vm1376
      %v1378 = vsel %vm1377, %v1370, %v1374
      %v1379 = vand.u32 2147483647, %v1254
      %vm1380 = vcmp.eq.f32.partialorder %v1379, 8.507059e+37
      %v1381 = vand.u32 %v1254, 2147483648
      %v1382 = vor.u32 1.1754944e-38, %v1381
      %v1383 = vsel %vm1380, %v1382, %v1378
      %v1384 = vmul.f32 1.0, %v1383
      %v1385 = vrcp.pop %v1255
      %v1386 = vmul.f32 %v1255, %v1385
      %v1387 = vsub.f32 1.0, %v1386
      %v1388 = vmul.f32 %v1385, %v1387
      %v1389 = vadd.f32 %v1385, %v1388
      %vm1390 = vweird.f32 %v1255
      %vm1391 = vweird.f32 %v1385
      %vm1392 = vmor %vm1390, %vm1391
      %v1393 = vsel %vm1392, %v1385, %v1389
      %v1394 = vand.u32 2147483647, %v1255
      %vm1395 = vcmp.eq.f32.partialorder %v1394, 8.507059e+37
      %v1396 = vand.u32 %v1255, 2147483648
      %v1397 = vor.u32 1.1754944e-38, %v1396
      %v1398 = vsel %vm1395, %v1397, %v1393
      %v1399 = vmul.f32 1.0, %v1398
      %v1400 = vrcp.pop %v1256
      %v1401 = vmul.f32 %v1256, %v1400
      %v1402 = vsub.f32 1.0, %v1401
      %v1403 = vmul.f32 %v1400, %v1402
      %v1404 = vadd.f32 %v1400, %v1403
      %vm1405 = vweird.f32 %v1256
      %vm1406 = vweird.f32 %v1400
      %vm1407 = vmor %vm1405, %vm1406
      %v1408 = vsel %vm1407, %v1400, %v1404
      %v1409 = vand.u32 2147483647, %v1256
      %vm1410 = vcmp.eq.f32.partialorder %v1409, 8.507059e+37
      %v1411 = vand.u32 %v1256, 2147483648
      %v1412 = vor.u32 1.1754944e-38, %v1411
      %v1413 = vsel %vm1410, %v1412, %v1408
      %v1414 = vmul.f32 1.0, %v1413
      %v1415 = vrcp.pop %v1257
      %v1416 = vmul.f32 %v1257, %v1415
      %v1417 = vsub.f32 1.0, %v1416
      %v1418 = vmul.f32 %v1415, %v1417
      %v1419 = vadd.f32 %v1415, %v1418
      %vm1420 = vweird.f32 %v1257
      %vm1421 = vweird.f32 %v1415
      %vm1422 = vmor %vm1420, %vm1421
      %v1423 = vsel %vm1422, %v1415, %v1419
      %v1424 = vand.u32 2147483647, %v1257
      %vm1425 = vcmp.eq.f32.partialorder %v1424, 8.507059e+37
      %v1426 = vand.u32 %v1257, 2147483648
      %v1427 = vor.u32 1.1754944e-38, %v1426
      %v1428 = vsel %vm1425, %v1427, %v1423
      %v1429 = vmul.f32 1.0, %v1428
      %v1430 = vrcp.pop %v1258
      %v1431 = vmul.f32 %v1258, %v1430
      %v1432 = vsub.f32 1.0, %v1431
      %v1433 = vmul.f32 %v1430, %v1432
      %v1434 = vadd.f32 %v1430, %v1433
      %vm1435 = vweird.f32 %v1258
      %vm1436 = vweird.f32 %v1430
      %vm1437 = vmor %vm1435, %vm1436
      %v1438 = vsel %vm1437, %v1430, %v1434
      %v1439 = vand.u32 2147483647, %v1258
      %vm1440 = vcmp.eq.f32.partialorder %v1439, 8.507059e+37
      %v1441 = vand.u32 %v1258, 2147483648
      %v1442 = vor.u32 1.1754944e-38, %v1441
      %v1443 = vsel %vm1440, %v1442, %v1438
      %v1444 = vmul.f32 1.0, %v1443
      %v1445 = vrcp.pop %v1259
      %v1446 = vmul.f32 %v1259, %v1445
      %v1447 = vsub.f32 1.0, %v1446
      %v1448 = vmul.f32 %v1445, %v1447
      %v1449 = vadd.f32 %v1445, %v1448
      %vm1450 = vweird.f32 %v1259
      %vm1451 = vweird.f32 %v1445
      %vm1452 = vmor %vm1450, %vm1451
      %v1453 = vsel %vm1452, %v1445, %v1449
      %v1454 = vand.u32 2147483647, %v1259
      %vm1455 = vcmp.eq.f32.partialorder %v1454, 8.507059e+37
      %v1456 = vand.u32 %v1259, 2147483648
      %v1457 = vor.u32 1.1754944e-38, %v1456
      %v1458 = vsel %vm1455, %v1457, %v1453
      %v1459 = vmul.f32 1.0, %v1458
      %v1460 = vrcp.pop %v1260
      %v1461 = vmul.f32 %v1260, %v1460
      %v1462 = vsub.f32 1.0, %v1461
      %v1463 = vmul.f32 %v1460, %v1462
      %v1464 = vadd.f32 %v1460, %v1463
      %vm1465 = vweird.f32 %v1260
      %vm1466 = vweird.f32 %v1460
      %vm1467 = vmor %vm1465, %vm1466
      %v1468 = vsel %vm1467, %v1460, %v1464
      %v1469 = vand.u32 2147483647, %v1260
      %vm1470 = vcmp.eq.f32.partialorder %v1469, 8.507059e+37
      %v1471 = vand.u32 %v1260, 2147483648
      %v1472 = vor.u32 1.1754944e-38, %v1471
      %v1473 = vsel %vm1470, %v1472, %v1468
      %v1474 = vmul.f32 1.0, %v1473
      %v1475 = vrcp.pop %v1261
      %v1476 = vmul.f32 %v1261, %v1475
      %v1477 = vsub.f32 1.0, %v1476
      %v1478 = vmul.f32 %v1475, %v1477
      %v1479 = vadd.f32 %v1475, %v1478
      %vm1480 = vweird.f32 %v1261
      %vm1481 = vweird.f32 %v1475
      %vm1482 = vmor %vm1480, %vm1481
      %v1483 = vsel %vm1482, %v1475, %v1479
      %v1484 = vand.u32 2147483647, %v1261
      %vm1485 = vcmp.eq.f32.partialorder %v1484, 8.507059e+37
      %v1486 = vand.u32 %v1261, 2147483648
      %v1487 = vor.u32 1.1754944e-38, %v1486
      %v1488 = vsel %vm1485, %v1487, %v1483
      %v1489 = vmul.f32 1.0, %v1488
      %v1490 = vrcp.pop %v1262
      %v1491 = vmul.f32 %v1262, %v1490
      %v1492 = vsub.f32 1.0, %v1491
      %v1493 = vmul.f32 %v1490, %v1492
      %v1494 = vadd.f32 %v1490, %v1493
      %vm1495 = vweird.f32 %v1262
      %vm1496 = vweird.f32 %v1490
      %vm1497 = vmor %vm1495, %vm1496
      %v1498 = vsel %vm1497, %v1490, %v1494
      %v1499 = vand.u32 2147483647, %v1262
      %vm1500 = vcmp.eq.f32.partialorder %v1499, 8.507059e+37
      %v1501 = vand.u32 %v1262, 2147483648
      %v1502 = vor.u32 1.1754944e-38, %v1501
      %v1503 = vsel %vm1500, %v1502, %v1498
      %v1504 = vmul.f32 1.0, %v1503
      %v1505 = vrcp.pop %v1263
      %v1506 = vmul.f32 %v1263, %v1505
      %v1507 = vsub.f32 1.0, %v1506
      %v1508 = vmul.f32 %v1505, %v1507
      %v1509 = vadd.f32 %v1505, %v1508
      %vm1510 = vweird.f32 %v1263
      %vm1511 = vweird.f32 %v1505
      %vm1512 = vmor %vm1510, %vm1511
      %v1513 = vsel %vm1512, %v1505, %v1509
      %v1514 = vand.u32 2147483647, %v1263
      %vm1515 = vcmp.eq.f32.partialorder %v1514, 8.507059e+37
      %v1516 = vand.u32 %v1263, 2147483648
      %v1517 = vor.u32 1.1754944e-38, %v1516
      %v1518 = vsel %vm1515, %v1517, %v1513
      %v1519 = vmul.f32 1.0, %v1518
      %v1520 = vrcp.pop %v1264
      %v1521 = vmul.f32 %v1264, %v1520
      %v1522 = vsub.f32 1.0, %v1521
      %v1523 = vmul.f32 %v1520, %v1522
      %v1524 = vadd.f32 %v1520, %v1523
      %vm1525 = vweird.f32 %v1264
      %vm1526 = vweird.f32 %v1520
      %vm1527 = vmor %vm1525, %vm1526
      %v1528 = vsel %vm1527, %v1520, %v1524
      %v1529 = vand.u32 2147483647, %v1264
      %vm1530 = vcmp.eq.f32.partialorder %v1529, 8.507059e+37
      %v1531 = vand.u32 %v1264, 2147483648
      %v1532 = vor.u32 1.1754944e-38, %v1531
      %v1533 = vsel %vm1530, %v1532, %v1528
      %v1534 = vmul.f32 1.0, %v1533
      %v1535 = vrcp.pop %v1265
      %v1536 = vmul.f32 %v1265, %v1535
      %v1537 = vsub.f32 1.0, %v1536
      %v1538 = vmul.f32 %v1535, %v1537
      %v1539 = vadd.f32 %v1535, %v1538
      %vm1540 = vweird.f32 %v1265
      %vm1541 = vweird.f32 %v1535
      %vm1542 = vmor %vm1540, %vm1541
      %v1543 = vsel %vm1542, %v1535, %v1539
      %v1544 = vand.u32 2147483647, %v1265
      %vm1545 = vcmp.eq.f32.partialorder %v1544, 8.507059e+37
      %v1546 = vand.u32 %v1265, 2147483648
      %v1547 = vor.u32 1.1754944e-38, %v1546
      %v1548 = vsel %vm1545, %v1547, %v1543
      %v1549 = vmul.f32 1.0, %v1548
      %v1550 = vrcp.pop %v1266
      %v1551 = vmul.f32 %v1266, %v1550
      %v1552 = vsub.f32 1.0, %v1551
      %v1553 = vmul.f32 %v1550, %v1552
      %v1554 = vadd.f32 %v1550, %v1553
      %vm1555 = vweird.f32 %v1266
      %vm1556 = vweird.f32 %v1550
      %vm1557 = vmor %vm1555, %vm1556
      %v1558 = vsel %vm1557, %v1550, %v1554
      %v1559 = vand.u32 2147483647, %v1266
      %vm1560 = vcmp.eq.f32.partialorder %v1559, 8.507059e+37
      %v1561 = vand.u32 %v1266, 2147483648
      %v1562 = vor.u32 1.1754944e-38, %v1561
      %v1563 = vsel %vm1560, %v1562, %v1558
      %v1564 = vmul.f32 1.0, %v1563
      %v1565 = vrcp.pop %v1267
      %v1566 = vmul.f32 %v1267, %v1565
      %v1567 = vsub.f32 1.0, %v1566
      %v1568 = vmul.f32 %v1565, %v1567
      %v1569 = vadd.f32 %v1565, %v1568
      %vm1570 = vweird.f32 %v1267
      %vm1571 = vweird.f32 %v1565
      %vm1572 = vmor %vm1570, %vm1571
      %v1573 = vsel %vm1572, %v1565, %v1569
      %v1574 = vand.u32 2147483647, %v1267
      %vm1575 = vcmp.eq.f32.partialorder %v1574, 8.507059e+37
      %v1576 = vand.u32 %v1267, 2147483648
      %v1577 = vor.u32 1.1754944e-38, %v1576
      %v1578 = vsel %vm1575, %v1577, %v1573
      %v1579 = vmul.f32 1.0, %v1578
      %v1580 = vrcp.pop %v1268
      %v1581 = vmul.f32 %v1268, %v1580
      %v1582 = vsub.f32 1.0, %v1581
      %v1583 = vmul.f32 %v1580, %v1582
      %v1584 = vadd.f32 %v1580, %v1583
      %vm1585 = vweird.f32 %v1268
      %vm1586 = vweird.f32 %v1580
      %vm1587 = vmor %vm1585, %vm1586
      %v1588 = vsel %vm1587, %v1580, %v1584
      %v1589 = vand.u32 2147483647, %v1268
      %vm1590 = vcmp.eq.f32.partialorder %v1589, 8.507059e+37
      %v1591 = vand.u32 %v1268, 2147483648
      %v1592 = vor.u32 1.1754944e-38, %v1591
      %v1593 = vsel %vm1590, %v1592, %v1588
      %v1594 = vmul.f32 1.0, %v1593
      %v1595 = vrcp.pop %v1269
      %v1596 = vmul.f32 %v1269, %v1595
      %v1597 = vsub.f32 1.0, %v1596
      %v1598 = vmul.f32 %v1595, %v1597
      %v1599 = vadd.f32 %v1595, %v1598
      %vm1600 = vweird.f32 %v1269
      %vm1601 = vweird.f32 %v1595
      %vm1602 = vmor %vm1600, %vm1601
      %v1603 = vsel %vm1602, %v1595, %v1599
      %v1604 = vand.u32 2147483647, %v1269
      %vm1605 = vcmp.eq.f32.partialorder %v1604, 8.507059e+37
      %v1606 = vand.u32 %v1269, 2147483648
      %v1607 = vor.u32 1.1754944e-38, %v1606
      %v1608 = vsel %vm1605, %v1607, %v1603
      %v1609 = vmul.f32 1.0, %v1608
      %v1610 = vrcp.pop %v1270
      %v1611 = vmul.f32 %v1270, %v1610
      %v1612 = vsub.f32 1.0, %v1611
      %v1613 = vmul.f32 %v1610, %v1612
      %v1614 = vadd.f32 %v1610, %v1613
      %vm1615 = vweird.f32 %v1270
      %vm1616 = vweird.f32 %v1610
      %vm1617 = vmor %vm1615, %vm1616
      %v1618 = vsel %vm1617, %v1610, %v1614
      %v1619 = vand.u32 2147483647, %v1270
      %vm1620 = vcmp.eq.f32.partialorder %v1619, 8.507059e+37
      %v1621 = vand.u32 %v1270, 2147483648
      %v1622 = vor.u32 1.1754944e-38, %v1621
      %v1623 = vsel %vm1620, %v1622, %v1618
      %v1624 = vmul.f32 1.0, %v1623
      %v1625 = vrcp.pop %v1271
      %v1626 = vmul.f32 %v1271, %v1625
      %v1627 = vsub.f32 1.0, %v1626
      %v1628 = vmul.f32 %v1625, %v1627
      %v1629 = vadd.f32 %v1625, %v1628
      %vm1630 = vweird.f32 %v1271
      %vm1631 = vweird.f32 %v1625
      %vm1632 = vmor %vm1630, %vm1631
      %v1633 = vsel %vm1632, %v1625, %v1629
      %v1634 = vand.u32 2147483647, %v1271
      %vm1635 = vcmp.eq.f32.partialorder %v1634, 8.507059e+37
      %v1636 = vand.u32 %v1271, 2147483648
      %v1637 = vor.u32 1.1754944e-38, %v1636
      %v1638 = vsel %vm1635, %v1637, %v1633
      %v1639 = vmul.f32 1.0, %v1638
      %v1640 = vrcp.pop %v1272
      %v1641 = vmul.f32 %v1272, %v1640
      %v1642 = vsub.f32 1.0, %v1641
      %v1643 = vmul.f32 %v1640, %v1642
      %v1644 = vadd.f32 %v1640, %v1643
      %vm1645 = vweird.f32 %v1272
      %vm1646 = vweird.f32 %v1640
      %vm1647 = vmor %vm1645, %vm1646
      %v1648 = vsel %vm1647, %v1640, %v1644
      %v1649 = vand.u32 2147483647, %v1272
      %vm1650 = vcmp.eq.f32.partialorder %v1649, 8.507059e+37
      %v1651 = vand.u32 %v1272, 2147483648
      %v1652 = vor.u32 1.1754944e-38, %v1651
      %v1653 = vsel %vm1650, %v1652, %v1648
      %v1654 = vmul.f32 1.0, %v1653
      %v1655 = vrcp.pop %v1273
      %v1656 = vmul.f32 %v1273, %v1655
      %v1657 = vsub.f32 1.0, %v1656
      %v1658 = vmul.f32 %v1655, %v1657
      %v1659 = vadd.f32 %v1655, %v1658
      %vm1660 = vweird.f32 %v1273
      %vm1661 = vweird.f32 %v1655
      %vm1662 = vmor %vm1660, %vm1661
      %v1663 = vsel %vm1662, %v1655, %v1659
      %v1664 = vand.u32 2147483647, %v1273
      %vm1665 = vcmp.eq.f32.partialorder %v1664, 8.507059e+37
      %v1666 = vand.u32 %v1273, 2147483648
      %v1667 = vor.u32 1.1754944e-38, %v1666
      %v1668 = vsel %vm1665, %v1667, %v1663
      %v1669 = vmul.f32 1.0, %v1668
      %v1670 = vrcp.pop %v1274
      %v1671 = vmul.f32 %v1274, %v1670
      %v1672 = vsub.f32 1.0, %v1671
      %v1673 = vmul.f32 %v1670, %v1672
      %v1674 = vadd.f32 %v1670, %v1673
      %vm1675 = vweird.f32 %v1274
      %vm1676 = vweird.f32 %v1670
      %vm1677 = vmor %vm1675, %vm1676
      %v1678 = vsel %vm1677, %v1670, %v1674
      %v1679 = vand.u32 2147483647, %v1274
      %vm1680 = vcmp.eq.f32.partialorder %v1679, 8.507059e+37
      %v1681 = vand.u32 %v1274, 2147483648
      %v1682 = vor.u32 1.1754944e-38, %v1681
      %v1683 = vsel %vm1680, %v1682, %v1678
      %v1684 = vmul.f32 1.0, %v1683
      %v1685 = vrcp.pop %v1275
      %v1686 = vmul.f32 %v1275, %v1685
      %v1687 = vsub.f32 1.0, %v1686
      %v1688 = vmul.f32 %v1685, %v1687
      %v1689 = vadd.f32 %v1685, %v1688
      %vm1690 = vweird.f32 %v1275
      %vm1691 = vweird.f32 %v1685
      %vm1692 = vmor %vm1690, %vm1691
      %v1693 = vsel %vm1692, %v1685, %v1689
      %v1694 = vand.u32 2147483647, %v1275
      %vm1695 = vcmp.eq.f32.partialorder %v1694, 8.507059e+37
      %v1696 = vand.u32 %v1275, 2147483648
      %v1697 = vor.u32 1.1754944e-38, %v1696
      %v1698 = vsel %vm1695, %v1697, %v1693
      %v1699 = vmul.f32 1.0, %v1698
      %v1700 = vrcp.pop %v1276
      %v1701 = vmul.f32 %v1276, %v1700
      %v1702 = vsub.f32 1.0, %v1701
      %v1703 = vmul.f32 %v1700, %v1702
      %v1704 = vadd.f32 %v1700, %v1703
      %vm1705 = vweird.f32 %v1276
      %vm1706 = vweird.f32 %v1700
      %vm1707 = vmor %vm1705, %vm1706
      %v1708 = vsel %vm1707, %v1700, %v1704
      %v1709 = vand.u32 2147483647, %v1276
      %vm1710 = vcmp.eq.f32.partialorder %v1709, 8.507059e+37
      %v1711 = vand.u32 %v1276, 2147483648
      %v1712 = vor.u32 1.1754944e-38, %v1711
      %v1713 = vsel %vm1710, %v1712, %v1708
      %v1714 = vmul.f32 1.0, %v1713
      %v1715 = vrcp.pop %v1277
      %v1716 = vmul.f32 %v1277, %v1715
      %v1717 = vsub.f32 1.0, %v1716
      %v1718 = vmul.f32 %v1715, %v1717
      %v1719 = vadd.f32 %v1715, %v1718
      %vm1720 = vweird.f32 %v1277
      %vm1721 = vweird.f32 %v1715
      %vm1722 = vmor %vm1720, %vm1721
      %v1723 = vsel %vm1722, %v1715, %v1719
      %v1724 = vand.u32 2147483647, %v1277
      %vm1725 = vcmp.eq.f32.partialorder %v1724, 8.507059e+37
      %v1726 = vand.u32 %v1277, 2147483648
      %v1727 = vor.u32 1.1754944e-38, %v1726
      %v1728 = vsel %vm1725, %v1727, %v1723
      %v1729 = vmul.f32 1.0, %v1728
      %v1730 = vrcp.pop %v1278
      %v1731 = vmul.f32 %v1278, %v1730
      %v1732 = vsub.f32 1.0, %v1731
      %v1733 = vmul.f32 %v1730, %v1732
      %v1734 = vadd.f32 %v1730, %v1733
      %vm1735 = vweird.f32 %v1278
      %vm1736 = vweird.f32 %v1730
      %vm1737 = vmor %vm1735, %vm1736
      %v1738 = vsel %vm1737, %v1730, %v1734
      %v1739 = vand.u32 2147483647, %v1278
      %vm1740 = vcmp.eq.f32.partialorder %v1739, 8.507059e+37
      %v1741 = vand.u32 %v1278, 2147483648
      %v1742 = vor.u32 1.1754944e-38, %v1741
      %v1743 = vsel %vm1740, %v1742, %v1738
      %v1744 = vmul.f32 1.0, %v1743
      %v1745 = vrcp.pop %v1279
      %v1746 = vmul.f32 %v1279, %v1745
      %v1747 = vsub.f32 1.0, %v1746
      %v1748 = vmul.f32 %v1745, %v1747
      %v1749 = vadd.f32 %v1745, %v1748
      %vm1750 = vweird.f32 %v1279
      %vm1751 = vweird.f32 %v1745
      %vm1752 = vmor %vm1750, %vm1751
      %v1753 = vsel %vm1752, %v1745, %v1749
      %v1754 = vand.u32 2147483647, %v1279
      %vm1755 = vcmp.eq.f32.partialorder %v1754, 8.507059e+37
      %v1756 = vand.u32 %v1279, 2147483648
      %v1757 = vor.u32 1.1754944e-38, %v1756
      %v1758 = vsel %vm1755, %v1757, %v1753
      %v1759 = vmul.f32 1.0, %v1758
      %v1760 = vmul.f32 %v1120, %v1294
      %v1761 = vmul.f32 %v1121, %v1309
      %v1762 = vmul.f32 %v1122, %v1324
      %v1763 = vmul.f32 %v1123, %v1339
      %v1764 = vmul.f32 %v1124, %v1354
      %v1765 = vmul.f32 %v1125, %v1369
      %v1766 = vmul.f32 %v1126, %v1384
      %v1767 = vmul.f32 %v1127, %v1399
      %v1768 = vmul.f32 %v1128, %v1414
      %v1769 = vmul.f32 %v1129, %v1429
      %v1770 = vmul.f32 %v1130, %v1444
      %v1771 = vmul.f32 %v1131, %v1459
      %v1772 = vmul.f32 %v1132, %v1474
      %v1773 = vmul.f32 %v1133, %v1489
      %v1774 = vmul.f32 %v1134, %v1504
      %v1775 = vmul.f32 %v1135, %v1519
      %v1776 = vmul.f32 %v1136, %v1534
      %v1777 = vmul.f32 %v1137, %v1549
      %v1778 = vmul.f32 %v1138, %v1564
      %v1779 = vmul.f32 %v1139, %v1579
      %v1780 = vmul.f32 %v1140, %v1594
      %v1781 = vmul.f32 %v1141, %v1609
      %v1782 = vmul.f32 %v1142, %v1624
      %v1783 = vmul.f32 %v1143, %v1639
      %v1784 = vmul.f32 %v1144, %v1654
      %v1785 = vmul.f32 %v1145, %v1669
      %v1786 = vmul.f32 %v1146, %v1684
      %v1787 = vmul.f32 %v1147, %v1699
      %v1788 = vmul.f32 %v1148, %v1714
      %v1789 = vmul.f32 %v1149, %v1729
      %v1790 = vmul.f32 %v1150, %v1744
      %v1791 = vmul.f32 %v1151, %v1759
      %v1792 = vld [vmem:[%s729] sm:$0xff]
      %v1793 = vld [vmem:[%s729 + $0x8] sm:$0xff]
      %v1794 = vld [vmem:[%s729 + $0x10] sm:$0xff]
      %v1795 = vld [vmem:[%s729 + $0x18] sm:$0xff]
      %v1796 = vld [vmem:[%s729 + $0x20] sm:$0xff]
      %v1797 = vld [vmem:[%s729 + $0x28] sm:$0xff]
      %v1798 = vld [vmem:[%s729 + $0x30] sm:$0xff]
      %v1799 = vld [vmem:[%s729 + $0x38] sm:$0xff]
      %v1800 = vld [vmem:[%s729 + $0x40] sm:$0xff]
      %v1801 = vld [vmem:[%s729 + $0x48] sm:$0xff]
      %v1802 = vld [vmem:[%s729 + $0x50] sm:$0xff]
      %v1803 = vld [vmem:[%s729 + $0x58] sm:$0xff]
      %v1804 = vld [vmem:[%s729 + $0x60] sm:$0xff]
      %v1805 = vld [vmem:[%s729 + $0x68] sm:$0xff]
      %v1806 = vld [vmem:[%s729 + $0x70] sm:$0xff]
      %v1807 = vld [vmem:[%s729 + $0x78] sm:$0xff]
      %v1808 = vld [vmem:[%s729 + $0x80] sm:$0xff]
      %v1809 = vld [vmem:[%s729 + $0x88] sm:$0xff]
      %v1810 = vld [vmem:[%s729 + $0x90] sm:$0xff]
      %v1811 = vld [vmem:[%s729 + $0x98] sm:$0xff]
      %v1812 = vld [vmem:[%s729 + $0xa0] sm:$0xff]
      %v1813 = vld [vmem:[%s729 + $0xa8] sm:$0xff]
      %v1814 = vld [vmem:[%s729 + $0xb0] sm:$0xff]
      %v1815 = vld [vmem:[%s729 + $0xb8] sm:$0xff]
      %v1816 = vld [vmem:[%s729 + $0xc0] sm:$0xff]
      %v1817 = vld [vmem:[%s729 + $0xc8] sm:$0xff]
      %v1818 = vld [vmem:[%s729 + $0xd0] sm:$0xff]
      %v1819 = vld [vmem:[%s729 + $0xd8] sm:$0xff]
      %v1820 = vld [vmem:[%s729 + $0xe0] sm:$0xff]
      %v1821 = vld [vmem:[%s729 + $0xe8] sm:$0xff]
      %v1822 = vld [vmem:[%s729 + $0xf0] sm:$0xff]
      %v1823 = vld [vmem:[%s729 + $0xf8] sm:$0xff]
      %v1824 = vadd.f32 %v1760, %v1792
      %v1825 = vadd.f32 %v1761, %v1793
      %v1826 = vadd.f32 %v1762, %v1794
      %v1827 = vadd.f32 %v1763, %v1795
      %v1828 = vadd.f32 %v1764, %v1796
      %v1829 = vadd.f32 %v1765, %v1797
      %v1830 = vadd.f32 %v1766, %v1798
      %v1831 = vadd.f32 %v1767, %v1799
      %v1832 = vadd.f32 %v1768, %v1800
      %v1833 = vadd.f32 %v1769, %v1801
      %v1834 = vadd.f32 %v1770, %v1802
      %v1835 = vadd.f32 %v1771, %v1803
      %v1836 = vadd.f32 %v1772, %v1804
      %v1837 = vadd.f32 %v1773, %v1805
      %v1838 = vadd.f32 %v1774, %v1806
      %v1839 = vadd.f32 %v1775, %v1807
      %v1840 = vadd.f32 %v1776, %v1808
      %v1841 = vadd.f32 %v1777, %v1809
      %v1842 = vadd.f32 %v1778, %v1810
      %v1843 = vadd.f32 %v1779, %v1811
      %v1844 = vadd.f32 %v1780, %v1812
      %v1845 = vadd.f32 %v1781, %v1813
      %v1846 = vadd.f32 %v1782, %v1814
      %v1847 = vadd.f32 %v1783, %v1815
      %v1848 = vadd.f32 %v1784, %v1816
      %v1849 = vadd.f32 %v1785, %v1817
      %v1850 = vadd.f32 %v1786, %v1818
      %v1851 = vadd.f32 %v1787, %v1819
      %v1852 = vadd.f32 %v1788, %v1820
      %v1853 = vadd.f32 %v1789, %v1821
      %v1854 = vadd.f32 %v1790, %v1822
      %v1855 = vadd.f32 %v1791, %v1823
      %v1856 = vadd.f32 %v1824, %v1832
      %v1857 = vadd.f32 %v1825, %v1833
      %v1858 = vadd.f32 %v1826, %v1834
      %v1859 = vadd.f32 %v1827, %v1835
      %v1860 = vadd.f32 %v1828, %v1836
      %v1861 = vadd.f32 %v1829, %v1837
      %v1862 = vadd.f32 %v1830, %v1838
      %v1863 = vadd.f32 %v1831, %v1839
      %v1864 = vadd.f32 %v1856, %v1840
      %v1865 = vadd.f32 %v1857, %v1841
      %v1866 = vadd.f32 %v1858, %v1842
      %v1867 = vadd.f32 %v1859, %v1843
      %v1868 = vadd.f32 %v1860, %v1844
      %v1869 = vadd.f32 %v1861, %v1845
      %v1870 = vadd.f32 %v1862, %v1846
      %v1871 = vadd.f32 %v1863, %v1847
      %v1872 = vadd.f32 %v1864, %v1848
      %v1873 = vadd.f32 %v1865, %v1849
      %v1874 = vadd.f32 %v1866, %v1850
      %v1875 = vadd.f32 %v1867, %v1851
      %v1876 = vadd.f32 %v1868, %v1852
      %v1877 = vadd.f32 %v1869, %v1853
      %v1878 = vadd.f32 %v1870, %v1854
      %v1879 = vadd.f32 %v1871, %v1855
      %v1880 = vmul.f32 %v1872, 0.25
      %v1881 = vmul.f32 %v1873, 0.25
      %v1882 = vmul.f32 %v1874, 0.25
      %v1883 = vmul.f32 %v1875, 0.25
      %v1884 = vmul.f32 %v1876, 0.25
      %v1885 = vmul.f32 %v1877, 0.25
      %v1886 = vmul.f32 %v1878, 0.25
      %v1887 = vmul.f32 %v1879, 0.25
      %v1888 = vpack.c.bf16 %v1881, %v1880
      %v1889 = vpack.c.bf16 %v1883, %v1882
      %v1890 = vpack.c.bf16 %v1885, %v1884
      %v1891 = vpack.c.bf16 %v1887, %v1886
      %v1892 = vld [vmem:[%s11] sm:$0xf]
      %v1893 = vld [vmem:[%s11 + $0x4] sm:$0xf]
      %v1894 = vld [vmem:[%s11 + $0x8] sm:$0xf]
      %v1895 = vld [vmem:[%s11 + $0xc] sm:$0xf]
      %v1896 = vld [vmem:[%s11 + $0x10] sm:$0xf]
      %v1897 = vld [vmem:[%s11 + $0x14] sm:$0xf]
      %v1898 = vld [vmem:[%s11 + $0x18] sm:$0xf]
      %v1899 = vld [vmem:[%s11 + $0x1c] sm:$0xf]
      %v1900 = vld [vmem:[%s11 + $0x20] sm:$0xf]
      %v1901 = vld [vmem:[%s11 + $0x24] sm:$0xf]
      %v1902 = vld [vmem:[%s11 + $0x28] sm:$0xf]
      %v1903 = vld [vmem:[%s11 + $0x2c] sm:$0xf]
      %v1904 = vld [vmem:[%s11 + $0x30] sm:$0xf]
      %v1905 = vld [vmem:[%s11 + $0x34] sm:$0xf]
      %v1906 = vld [vmem:[%s11 + $0x38] sm:$0xf]
      %v1907 = vld [vmem:[%s11 + $0x3c] sm:$0xf]
      %v1908 = vld [vmem:[%s12] sm:$0x1]
      %v1910 = vperm.slane %v1908, 0
      %v1928 = vunpack.c.l.b16 %v1892
      %v1929 = vunpack.c.l.b16 %v1893
      %v1930 = vunpack.c.l.b16 %v1894
      %v1931 = vunpack.c.l.b16 %v1895
      %v1932 = vunpack.c.l.b16 %v1896
      %v1933 = vunpack.c.l.b16 %v1897
      %v1934 = vunpack.c.l.b16 %v1898
      %v1935 = vunpack.c.l.b16 %v1899
      %v1936 = vunpack.c.l.b16 %v1900
      %v1937 = vunpack.c.l.b16 %v1901
      %v1938 = vunpack.c.l.b16 %v1902
      %v1939 = vunpack.c.l.b16 %v1903
      %v1940 = vunpack.c.l.b16 %v1904
      %v1941 = vunpack.c.l.b16 %v1905
      %v1942 = vunpack.c.l.b16 %v1906
      %v1943 = vunpack.c.l.b16 %v1907
      %v1944 = vpack.c.b16 %v1929, %v1928
      %v1945 = vpack.c.b16 %v1931, %v1930
      %v1946 = vpack.c.b16 %v1933, %v1932
      %v1947 = vpack.c.b16 %v1935, %v1934
      %v1948 = vpack.c.b16 %v1937, %v1936
      %v1949 = vpack.c.b16 %v1939, %v1938
      %v1950 = vpack.c.b16 %v1941, %v1940
      %v1951 = vpack.c.b16 %v1943, %v1942
      %1960 = vmatpush.bf16.msra.mxu0 %v1951
      %1961 = vmatpush.bf16.msra.mxu0 %v1950
      %1962 = vmatpush.bf16.msra.mxu0 %v1949
      %1963 = vmatpush.bf16.msra.mxu0 %v1948
      %1964 = vmatpush.bf16.msra.mxu0 %v1947
      %1965 = vmatpush.bf16.msra.mxu0 %v1946
      %1966 = vmatpush.bf16.msra.mxu0 %v1945
      %1967 = vmatpush.bf16.msra.mxu0 %v1944
      %1968 = vmatmul.bf16.gmra.mxu0 %v1888
      %v1969 = vpop.f32.mrf.mxu0
      %v1970 = vadd.f32 %v1910, %v1969
      %v1971 = vpop.f32.mrf.mxu0
      %v1972 = vadd.f32 %v1910, %v1971
      %1973 = vmatmul.bf16.gmra.mxu0 %v1889
      %v1974 = vpop.f32.mrf.mxu0
      %v1975 = vadd.f32 %v1910, %v1974
      %v1976 = vpop.f32.mrf.mxu0
      %v1977 = vadd.f32 %v1910, %v1976
      %1978 = vmatmul.bf16.gmra.mxu0 %v1890
      %v1979 = vpop.f32.mrf.mxu0
      %v1980 = vadd.f32 %v1910, %v1979
      %v1981 = vpop.f32.mrf.mxu0
      %v1982 = vadd.f32 %v1910, %v1981
      %1983 = vmatmul.bf16.gmra.mxu0 %v1891
      %v1984 = vpop.f32.mrf.mxu0
      %v1985 = vadd.f32 %v1910, %v1984
      %v1986 = vpop.f32.mrf.mxu0
      %v1987 = vadd.f32 %v1910, %v1986
      %1988 = vdwg.mxu0
      %v1989 = vxor.u32 %v1970, 2147483648
      %v1990 = vxor.u32 %v1972, 2147483648
      %v1991 = vxor.u32 %v1975, 2147483648
      %v1992 = vxor.u32 %v1977, 2147483648
      %v1993 = vxor.u32 %v1980, 2147483648
      %v1994 = vxor.u32 %v1982, 2147483648
      %v1995 = vxor.u32 %v1985, 2147483648
      %v1996 = vxor.u32 %v1987, 2147483648
      %v1997 = vmul.f32 %v1989, 1.442695
      %v1998 = vpow.pop %v1997
      %v1999 = vmul.f32 %v1990, 1.442695
      %v2000 = vpow.pop %v1999
      %v2001 = vmul.f32 %v1991, 1.442695
      %v2002 = vpow.pop %v2001
      %v2003 = vmul.f32 %v1992, 1.442695
      %v2004 = vpow.pop %v2003
      %v2005 = vmul.f32 %v1993, 1.442695
      %v2006 = vpow.pop %v2005
      %v2007 = vmul.f32 %v1994, 1.442695
      %v2008 = vpow.pop %v2007
      %v2009 = vmul.f32 %v1995, 1.442695
      %v2010 = vpow.pop %v2009
      %v2011 = vmul.f32 %v1996, 1.442695
      %v2012 = vpow.pop %v2011
      %v2013 = vadd.f32 %v1998, 1.0
      %v2014 = vadd.f32 %v2000, 1.0
      %v2015 = vadd.f32 %v2002, 1.0
      %v2016 = vadd.f32 %v2004, 1.0
      %v2017 = vadd.f32 %v2006, 1.0
      %v2018 = vadd.f32 %v2008, 1.0
      %v2019 = vadd.f32 %v2010, 1.0
      %v2020 = vadd.f32 %v2012, 1.0
      %v2021 = vrcp.pop %v2013
      %v2022 = vmul.f32 %v2013, %v2021
      %v2023 = vsub.f32 1.0, %v2022
      %v2024 = vmul.f32 %v2021, %v2023
      %v2025 = vadd.f32 %v2021, %v2024
      %vm2026 = vweird.f32 %v2013
      %vm2027 = vweird.f32 %v2021
      %vm2028 = vmor %vm2026, %vm2027
      %v2029 = vsel %vm2028, %v2021, %v2025
      %v2030 = vand.u32 2147483647, %v2013
      %vm2031 = vcmp.eq.f32.partialorder %v2030, 8.507059e+37
      %v2032 = vand.u32 %v2013, 2147483648
      %v2033 = vor.u32 1.1754944e-38, %v2032
      %v2034 = vsel %vm2031, %v2033, %v2029
      %v2035 = vmul.f32 1.0, %v2034
      %v2036 = vrcp.pop %v2014
      %v2037 = vmul.f32 %v2014, %v2036
      %v2038 = vsub.f32 1.0, %v2037
      %v2039 = vmul.f32 %v2036, %v2038
      %v2040 = vadd.f32 %v2036, %v2039
      %vm2041 = vweird.f32 %v2014
      %vm2042 = vweird.f32 %v2036
      %vm2043 = vmor %vm2041, %vm2042
      %v2044 = vsel %vm2043, %v2036, %v2040
      %v2045 = vand.u32 2147483647, %v2014
      %vm2046 = vcmp.eq.f32.partialorder %v2045, 8.507059e+37
      %v2047 = vand.u32 %v2014, 2147483648
      %v2048 = vor.u32 1.1754944e-38, %v2047
      %v2049 = vsel %vm2046, %v2048, %v2044
      %v2050 = vmul.f32 1.0, %v2049
      %v2051 = vrcp.pop %v2015
      %v2052 = vmul.f32 %v2015, %v2051
      %v2053 = vsub.f32 1.0, %v2052
      %v2054 = vmul.f32 %v2051, %v2053
      %v2055 = vadd.f32 %v2051, %v2054
      %vm2056 = vweird.f32 %v2015
      %vm2057 = vweird.f32 %v2051
      %vm2058 = vmor %vm2056, %vm2057
      %v2059 = vsel %vm2058, %v2051, %v2055
      %v2060 = vand.u32 2147483647, %v2015
      %vm2061 = vcmp.eq.f32.partialorder %v2060, 8.507059e+37
      %v2062 = vand.u32 %v2015, 2147483648
      %v2063 = vor.u32 1.1754944e-38, %v2062
      %v2064 = vsel %vm2061, %v2063, %v2059
      %v2065 = vmul.f32 1.0, %v2064
      %v2066 = vrcp.pop %v2016
      %v2067 = vmul.f32 %v2016, %v2066
      %v2068 = vsub.f32 1.0, %v2067
      %v2069 = vmul.f32 %v2066, %v2068
      %v2070 = vadd.f32 %v2066, %v2069
      %vm2071 = vweird.f32 %v2016
      %vm2072 = vweird.f32 %v2066
      %vm2073 = vmor %vm2071, %vm2072
      %v2074 = vsel %vm2073, %v2066, %v2070
      %v2075 = vand.u32 2147483647, %v2016
      %vm2076 = vcmp.eq.f32.partialorder %v2075, 8.507059e+37
      %v2077 = vand.u32 %v2016, 2147483648
      %v2078 = vor.u32 1.1754944e-38, %v2077
      %v2079 = vsel %vm2076, %v2078, %v2074
      %v2080 = vmul.f32 1.0, %v2079
      %v2081 = vrcp.pop %v2017
      %v2082 = vmul.f32 %v2017, %v2081
      %v2083 = vsub.f32 1.0, %v2082
      %v2084 = vmul.f32 %v2081, %v2083
      %v2085 = vadd.f32 %v2081, %v2084
      %vm2086 = vweird.f32 %v2017
      %vm2087 = vweird.f32 %v2081
      %vm2088 = vmor %vm2086, %vm2087
      %v2089 = vsel %vm2088, %v2081, %v2085
      %v2090 = vand.u32 2147483647, %v2017
      %vm2091 = vcmp.eq.f32.partialorder %v2090, 8.507059e+37
      %v2092 = vand.u32 %v2017, 2147483648
      %v2093 = vor.u32 1.1754944e-38, %v2092
      %v2094 = vsel %vm2091, %v2093, %v2089
      %v2095 = vmul.f32 1.0, %v2094
      %v2096 = vrcp.pop %v2018
      %v2097 = vmul.f32 %v2018, %v2096
      %v2098 = vsub.f32 1.0, %v2097
      %v2099 = vmul.f32 %v2096, %v2098
      %v2100 = vadd.f32 %v2096, %v2099
      %vm2101 = vweird.f32 %v2018
      %vm2102 = vweird.f32 %v2096
      %vm2103 = vmor %vm2101, %vm2102
      %v2104 = vsel %vm2103, %v2096, %v2100
      %v2105 = vand.u32 2147483647, %v2018
      %vm2106 = vcmp.eq.f32.partialorder %v2105, 8.507059e+37
      %v2107 = vand.u32 %v2018, 2147483648
      %v2108 = vor.u32 1.1754944e-38, %v2107
      %v2109 = vsel %vm2106, %v2108, %v2104
      %v2110 = vmul.f32 1.0, %v2109
      %v2111 = vrcp.pop %v2019
      %v2112 = vmul.f32 %v2019, %v2111
      %v2113 = vsub.f32 1.0, %v2112
      %v2114 = vmul.f32 %v2111, %v2113
      %v2115 = vadd.f32 %v2111, %v2114
      %vm2116 = vweird.f32 %v2019
      %vm2117 = vweird.f32 %v2111
      %vm2118 = vmor %vm2116, %vm2117
      %v2119 = vsel %vm2118, %v2111, %v2115
      %v2120 = vand.u32 2147483647, %v2019
      %vm2121 = vcmp.eq.f32.partialorder %v2120, 8.507059e+37
      %v2122 = vand.u32 %v2019, 2147483648
      %v2123 = vor.u32 1.1754944e-38, %v2122
      %v2124 = vsel %vm2121, %v2123, %v2119
      %v2125 = vmul.f32 1.0, %v2124
      %v2126 = vrcp.pop %v2020
      %v2127 = vmul.f32 %v2020, %v2126
      %v2128 = vsub.f32 1.0, %v2127
      %v2129 = vmul.f32 %v2126, %v2128
      %v2130 = vadd.f32 %v2126, %v2129
      %vm2131 = vweird.f32 %v2020
      %vm2132 = vweird.f32 %v2126
      %vm2133 = vmor %vm2131, %vm2132
      %v2134 = vsel %vm2133, %v2126, %v2130
      %v2135 = vand.u32 2147483647, %v2020
      %vm2136 = vcmp.eq.f32.partialorder %v2135, 8.507059e+37
      %v2137 = vand.u32 %v2020, 2147483648
      %v2138 = vor.u32 1.1754944e-38, %v2137
      %v2139 = vsel %vm2136, %v2138, %v2134
      %v2140 = vmul.f32 1.0, %v2139
      %v2141 = vmul.f32 %v1970, %v2035
      %v2142 = vmul.f32 %v1972, %v2050
      %v2143 = vmul.f32 %v1975, %v2065
      %v2144 = vmul.f32 %v1977, %v2080
      %v2145 = vmul.f32 %v1980, %v2095
      %v2146 = vmul.f32 %v1982, %v2110
      %v2147 = vmul.f32 %v1985, %v2125
      %v2148 = vmul.f32 %v1987, %v2140
      %v2149 = vld [vmem:[%s734] sm:$0xff]
      %v2150 = vld [vmem:[%s734 + $0x8] sm:$0xff]
      %v2151 = vld [vmem:[%s734 + $0x10] sm:$0xff]
      %v2152 = vld [vmem:[%s734 + $0x18] sm:$0xff]
      %v2153 = vld [vmem:[%s734 + $0x20] sm:$0xff]
      %v2154 = vld [vmem:[%s734 + $0x28] sm:$0xff]
      %v2155 = vld [vmem:[%s734 + $0x30] sm:$0xff]
      %v2156 = vld [vmem:[%s734 + $0x38] sm:$0xff]
      %v2157 = vadd.f32 %v2141, %v2149
      %v2158 = vadd.f32 %v2142, %v2150
      %v2159 = vadd.f32 %v2143, %v2151
      %v2160 = vadd.f32 %v2144, %v2152
      %v2161 = vadd.f32 %v2145, %v2153
      %v2162 = vadd.f32 %v2146, %v2154
      %v2163 = vadd.f32 %v2147, %v2155
      %v2164 = vadd.f32 %v2148, %v2156
      %v2165 = vadd.f32 %v2157, %v2159
      %v2166 = vadd.f32 %v2158, %v2160
      %v2167 = vadd.f32 %v2165, %v2161
      %v2168 = vadd.f32 %v2166, %v2162
      %v2169 = vadd.f32 %v2167, %v2163
      %v2170 = vadd.f32 %v2168, %v2164
      %v2171 = vmul.f32 %v2169, 0.25
      %v2172 = vmul.f32 %v2170, 0.25
      %v2173 = vpack.c.bf16 %v2172, %v2171
      %v2174 = vld [vmem:[%s13] sm:$0xf]
      %v2175 = vld [vmem:[%s13 + $0x4] sm:$0xf]
      %v2176 = vld [vmem:[%s13 + $0x8] sm:$0xf]
      %v2177 = vld [vmem:[%s13 + $0xc] sm:$0xf]
      %v2178 = vld [vmem:[%s13 + $0x10] sm:$0xf]
      %v2179 = vld [vmem:[%s13 + $0x14] sm:$0xf]
      %v2180 = vld [vmem:[%s13 + $0x18] sm:$0xf]
      %v2181 = vld [vmem:[%s13 + $0x1c] sm:$0xf]
      %v2182 = vld [vmem:[%s13 + $0x20] sm:$0xf]
      %v2183 = vld [vmem:[%s13 + $0x24] sm:$0xf]
      %v2184 = vld [vmem:[%s13 + $0x28] sm:$0xf]
      %v2185 = vld [vmem:[%s13 + $0x2c] sm:$0xf]
      %v2186 = vld [vmem:[%s13 + $0x30] sm:$0xf]
      %v2187 = vld [vmem:[%s13 + $0x34] sm:$0xf]
      %v2188 = vld [vmem:[%s13 + $0x38] sm:$0xf]
      %v2189 = vld [vmem:[%s13 + $0x3c] sm:$0xf]
      %v2190 = vld [vmem:[%s14] sm:$0x1]
      %v2192 = vperm.slane %v2190, 0
      %v2210 = vunpack.c.l.b16 %v2174
      %v2211 = vunpack.c.l.b16 %v2175
      %v2212 = vunpack.c.l.b16 %v2176
      %v2213 = vunpack.c.l.b16 %v2177
      %v2214 = vunpack.c.l.b16 %v2178
      %v2215 = vunpack.c.l.b16 %v2179
      %v2216 = vunpack.c.l.b16 %v2180
      %v2217 = vunpack.c.l.b16 %v2181
      %v2218 = vunpack.c.l.b16 %v2182
      %v2219 = vunpack.c.l.b16 %v2183
      %v2220 = vunpack.c.l.b16 %v2184
      %v2221 = vunpack.c.l.b16 %v2185
      %v2222 = vunpack.c.l.b16 %v2186
      %v2223 = vunpack.c.l.b16 %v2187
      %v2224 = vunpack.c.l.b16 %v2188
      %v2225 = vunpack.c.l.b16 %v2189
      %v2226 = vpack.c.b16 %v2211, %v2210
      %v2227 = vpack.c.b16 %v2213, %v2212
      %v2228 = vpack.c.b16 %v2215, %v2214
      %v2229 = vpack.c.b16 %v2217, %v2216
      %v2230 = vpack.c.b16 %v2219, %v2218
      %v2231 = vpack.c.b16 %v2221, %v2220
      %v2232 = vpack.c.b16 %v2223, %v2222
      %v2233 = vpack.c.b16 %v2225, %v2224
      %2242 = vmatpush.bf16.msra.mxu0 %v2233
      %2243 = vmatpush.bf16.msra.mxu0 %v2232
      %2244 = vmatpush.bf16.msra.mxu0 %v2231
      %2245 = vmatpush.bf16.msra.mxu0 %v2230
      %2246 = vmatpush.bf16.msra.mxu0 %v2229
      %2247 = vmatpush.bf16.msra.mxu0 %v2228
      %2248 = vmatpush.bf16.msra.mxu0 %v2227
      %2249 = vmatpush.bf16.msra.mxu0 %v2226
      %2250 = vmatmul.bf16.gmra.mxu0 %v2173
      %v2251 = vpop.f32.mrf.mxu0
      %v2252 = vadd.f32 %v2192, %v2251
      %v2253 = vpop.f32.mrf.mxu0
      %v2254 = vadd.f32 %v2192, %v2253
      %2255 = vdwg.mxu0
      %v2256 = vxor.u32 %v2252, 2147483648
      %v2257 = vxor.u32 %v2254, 2147483648
      %v2258 = vmul.f32 %v2256, 1.442695
      %v2259 = vpow.pop %v2258
      %v2260 = vmul.f32 %v2257, 1.442695
      %v2261 = vpow.pop %v2260
      %v2262 = vadd.f32 %v2259, 1.0
      %v2263 = vadd.f32 %v2261, 1.0
      %v2264 = vrcp.pop %v2262
      %v2265 = vmul.f32 %v2262, %v2264
      %v2266 = vsub.f32 1.0, %v2265
      %v2267 = vmul.f32 %v2264, %v2266
      %v2268 = vadd.f32 %v2264, %v2267
      %vm2269 = vweird.f32 %v2262
      %vm2270 = vweird.f32 %v2264
      %vm2271 = vmor %vm2269, %vm2270
      %v2272 = vsel %vm2271, %v2264, %v2268
      %v2273 = vand.u32 2147483647, %v2262
      %vm2274 = vcmp.eq.f32.partialorder %v2273, 8.507059e+37
      %v2275 = vand.u32 %v2262, 2147483648
      %v2276 = vor.u32 1.1754944e-38, %v2275
      %v2277 = vsel %vm2274, %v2276, %v2272
      %v2278 = vmul.f32 1.0, %v2277
      %v2279 = vrcp.pop %v2263
      %v2280 = vmul.f32 %v2263, %v2279
      %v2281 = vsub.f32 1.0, %v2280
      %v2282 = vmul.f32 %v2279, %v2281
      %v2283 = vadd.f32 %v2279, %v2282
      %vm2284 = vweird.f32 %v2263
      %vm2285 = vweird.f32 %v2279
      %vm2286 = vmor %vm2284, %vm2285
      %v2287 = vsel %vm2286, %v2279, %v2283
      %v2288 = vand.u32 2147483647, %v2263
      %vm2289 = vcmp.eq.f32.partialorder %v2288, 8.507059e+37
      %v2290 = vand.u32 %v2263, 2147483648
      %v2291 = vor.u32 1.1754944e-38, %v2290
      %v2292 = vsel %vm2289, %v2291, %v2287
      %v2293 = vmul.f32 1.0, %v2292
      %v2294 = vmul.f32 %v2252, %v2278
      %v2295 = vmul.f32 %v2254, %v2293
      %v2296 = vld [vmem:[%s739] sm:$0xff]
      %v2297 = vld [vmem:[%s739 + $0x8] sm:$0xff]
      %v2298 = vadd.f32 %v2294, %v2296
      %v2299 = vadd.f32 %v2295, %v2297
      %v2300 = vpack.c.bf16 %v2299, %v2298
      %v2301 = vld [vmem:[%s15] sm:$0xf]
      %v2302 = vld [vmem:[%s15 + $0x4] sm:$0xf]
      %v2303 = vld [vmem:[%s15 + $0x8] sm:$0xf]
      %v2304 = vld [vmem:[%s15 + $0xc] sm:$0xf]
      %v2305 = vld [vmem:[%s15 + $0x10] sm:$0xf]
      %v2306 = vld [vmem:[%s15 + $0x14] sm:$0xf]
      %v2307 = vld [vmem:[%s15 + $0x18] sm:$0xf]
      %v2308 = vld [vmem:[%s15 + $0x1c] sm:$0xf]
      %v2309 = vld [vmem:[%s15 + $0x20] sm:$0xf]
      %v2310 = vld [vmem:[%s15 + $0x24] sm:$0xf]
      %v2311 = vld [vmem:[%s15 + $0x28] sm:$0xf]
      %v2312 = vld [vmem:[%s15 + $0x2c] sm:$0xf]
      %v2313 = vld [vmem:[%s15 + $0x30] sm:$0xf]
      %v2314 = vld [vmem:[%s15 + $0x34] sm:$0xf]
      %v2315 = vld [vmem:[%s15 + $0x38] sm:$0xf]
      %v2316 = vld [vmem:[%s15 + $0x3c] sm:$0xf]
      %v2317 = vld [vmem:[%s16] sm:$0x1]
      %v2319 = vperm.slane %v2317, 0
      %v2337 = vunpack.c.l.b16 %v2301
      %v2338 = vunpack.c.l.b16 %v2302
      %v2339 = vunpack.c.l.b16 %v2303
      %v2340 = vunpack.c.l.b16 %v2304
      %v2341 = vunpack.c.l.b16 %v2305
      %v2342 = vunpack.c.l.b16 %v2306
      %v2343 = vunpack.c.l.b16 %v2307
      %v2344 = vunpack.c.l.b16 %v2308
      %v2345 = vunpack.c.l.b16 %v2309
      %v2346 = vunpack.c.l.b16 %v2310
      %v2347 = vunpack.c.l.b16 %v2311
      %v2348 = vunpack.c.l.b16 %v2312
      %v2349 = vunpack.c.l.b16 %v2313
      %v2350 = vunpack.c.l.b16 %v2314
      %v2351 = vunpack.c.l.b16 %v2315
      %v2352 = vunpack.c.l.b16 %v2316
      %v2353 = vpack.c.b16 %v2338, %v2337
      %v2354 = vpack.c.b16 %v2340, %v2339
      %v2355 = vpack.c.b16 %v2342, %v2341
      %v2356 = vpack.c.b16 %v2344, %v2343
      %v2357 = vpack.c.b16 %v2346, %v2345
      %v2358 = vpack.c.b16 %v2348, %v2347
      %v2359 = vpack.c.b16 %v2350, %v2349
      %v2360 = vpack.c.b16 %v2352, %v2351
      %2369 = vmatpush.bf16.msra.mxu0 %v2360
      %2370 = vmatpush.bf16.msra.mxu0 %v2359
      %2371 = vmatpush.bf16.msra.mxu0 %v2358
      %2372 = vmatpush.bf16.msra.mxu0 %v2357
      %2373 = vmatpush.bf16.msra.mxu0 %v2356
      %2374 = vmatpush.bf16.msra.mxu0 %v2355
      %2375 = vmatpush.bf16.msra.mxu0 %v2354
      %2376 = vmatpush.bf16.msra.mxu0 %v2353
      %2377 = vmatmul.bf16.gmra.mxu0 %v2300
      %v2378 = vpop.f32.mrf.mxu0
      %v2379 = vadd.f32 %v2319, %v2378
      %v2380 = vpop.f32.mrf.mxu0
      %v2381 = vadd.f32 %v2319, %v2380
      %2382 = vdwg.mxu0
      %v2383 = vxor.u32 %v2379, 2147483648
      %v2384 = vxor.u32 %v2381, 2147483648
      %v2385 = vmul.f32 %v2383, 1.442695
      %v2386 = vpow.pop %v2385
      %v2387 = vmul.f32 %v2384, 1.442695
      %v2388 = vpow.pop %v2387
      %v2389 = vadd.f32 %v2386, 1.0
      %v2390 = vadd.f32 %v2388, 1.0
      %v2391 = vrcp.pop %v2389
      %v2392 = vmul.f32 %v2389, %v2391
      %v2393 = vsub.f32 1.0, %v2392
      %v2394 = vmul.f32 %v2391, %v2393
      %v2395 = vadd.f32 %v2391, %v2394
      %vm2396 = vweird.f32 %v2389
      %vm2397 = vweird.f32 %v2391
      %vm2398 = vmor %vm2396, %vm2397
      %v2399 = vsel %vm2398, %v2391, %v2395
      %v2400 = vand.u32 2147483647, %v2389
      %vm2401 = vcmp.eq.f32.partialorder %v2400, 8.507059e+37
      %v2402 = vand.u32 %v2389, 2147483648
      %v2403 = vor.u32 1.1754944e-38, %v2402
      %v2404 = vsel %vm2401, %v2403, %v2399
      %v2405 = vmul.f32 1.0, %v2404
      %v2406 = vrcp.pop %v2390
      %v2407 = vmul.f32 %v2390, %v2406
      %v2408 = vsub.f32 1.0, %v2407
      %v2409 = vmul.f32 %v2406, %v2408
      %v2410 = vadd.f32 %v2406, %v2409
      %vm2411 = vweird.f32 %v2390
      %vm2412 = vweird.f32 %v2406
      %vm2413 = vmor %vm2411, %vm2412
      %v2414 = vsel %vm2413, %v2406, %v2410
      %v2415 = vand.u32 2147483647, %v2390
      %vm2416 = vcmp.eq.f32.partialorder %v2415, 8.507059e+37
      %v2417 = vand.u32 %v2390, 2147483648
      %v2418 = vor.u32 1.1754944e-38, %v2417
      %v2419 = vsel %vm2416, %v2418, %v2414
      %v2420 = vmul.f32 1.0, %v2419
      %v2421 = vmul.f32 %v2379, %v2405
      %v2422 = vmul.f32 %v2381, %v2420
      %v2423 = vadd.f32 %v2421, %v2157
      %v2424 = vadd.f32 %v2422, %v2158
      %v2425 = vadd.f32 %v2421, %v2159
      %v2426 = vadd.f32 %v2422, %v2160
      %v2427 = vadd.f32 %v2421, %v2161
      %v2428 = vadd.f32 %v2422, %v2162
      %v2429 = vadd.f32 %v2421, %v2163
      %v2430 = vadd.f32 %v2422, %v2164
      %v2431 = vpack.c.bf16 %v2424, %v2423
      %v2432 = vpack.c.bf16 %v2426, %v2425
      %v2433 = vpack.c.bf16 %v2428, %v2427
      %v2434 = vpack.c.bf16 %v2430, %v2429
      %v2435 = vld [vmem:[%s17] sm:$0xf]
      %v2436 = vld [vmem:[%s17 + $0x4] sm:$0xf]
      %v2437 = vld [vmem:[%s17 + $0x8] sm:$0xf]
      %v2438 = vld [vmem:[%s17 + $0xc] sm:$0xf]
      %v2439 = vld [vmem:[%s17 + $0x10] sm:$0xf]
      %v2440 = vld [vmem:[%s17 + $0x14] sm:$0xf]
      %v2441 = vld [vmem:[%s17 + $0x18] sm:$0xf]
      %v2442 = vld [vmem:[%s17 + $0x1c] sm:$0xf]
      %v2443 = vld [vmem:[%s17 + $0x20] sm:$0xf]
      %v2444 = vld [vmem:[%s17 + $0x24] sm:$0xf]
      %v2445 = vld [vmem:[%s17 + $0x28] sm:$0xf]
      %v2446 = vld [vmem:[%s17 + $0x2c] sm:$0xf]
      %v2447 = vld [vmem:[%s17 + $0x30] sm:$0xf]
      %v2448 = vld [vmem:[%s17 + $0x34] sm:$0xf]
      %v2449 = vld [vmem:[%s17 + $0x38] sm:$0xf]
      %v2450 = vld [vmem:[%s17 + $0x3c] sm:$0xf]
      %v2451 = vld [vmem:[%s18] sm:$0x1]
      %v2453 = vperm.slane %v2451, 0
      %v2471 = vunpack.c.l.b16 %v2435
      %v2472 = vunpack.c.l.b16 %v2436
      %v2473 = vunpack.c.l.b16 %v2437
      %v2474 = vunpack.c.l.b16 %v2438
      %v2475 = vunpack.c.l.b16 %v2439
      %v2476 = vunpack.c.l.b16 %v2440
      %v2477 = vunpack.c.l.b16 %v2441
      %v2478 = vunpack.c.l.b16 %v2442
      %v2479 = vunpack.c.l.b16 %v2443
      %v2480 = vunpack.c.l.b16 %v2444
      %v2481 = vunpack.c.l.b16 %v2445
      %v2482 = vunpack.c.l.b16 %v2446
      %v2483 = vunpack.c.l.b16 %v2447
      %v2484 = vunpack.c.l.b16 %v2448
      %v2485 = vunpack.c.l.b16 %v2449
      %v2486 = vunpack.c.l.b16 %v2450
      %v2487 = vpack.c.b16 %v2472, %v2471
      %v2488 = vpack.c.b16 %v2474, %v2473
      %v2489 = vpack.c.b16 %v2476, %v2475
      %v2490 = vpack.c.b16 %v2478, %v2477
      %v2491 = vpack.c.b16 %v2480, %v2479
      %v2492 = vpack.c.b16 %v2482, %v2481
      %v2493 = vpack.c.b16 %v2484, %v2483
      %v2494 = vpack.c.b16 %v2486, %v2485
      %2503 = vmatpush.bf16.msra.mxu0 %v2494
      %2504 = vmatpush.bf16.msra.mxu0 %v2493
      %2505 = vmatpush.bf16.msra.mxu0 %v2492
      %2506 = vmatpush.bf16.msra.mxu0 %v2491
      %2507 = vmatpush.bf16.msra.mxu0 %v2490
      %2508 = vmatpush.bf16.msra.mxu0 %v2489
      %2509 = vmatpush.bf16.msra.mxu0 %v2488
      %2510 = vmatpush.bf16.msra.mxu0 %v2487
      %2511 = vmatmul.bf16.gmra.mxu0 %v2431
      %v2512 = vpop.f32.mrf.mxu0
      %v2513 = vadd.f32 %v2453, %v2512
      %v2514 = vpop.f32.mrf.mxu0
      %v2515 = vadd.f32 %v2453, %v2514
      %2516 = vmatmul.bf16.gmra.mxu0 %v2432
      %v2517 = vpop.f32.mrf.mxu0
      %v2518 = vadd.f32 %v2453, %v2517
      %v2519 = vpop.f32.mrf.mxu0
      %v2520 = vadd.f32 %v2453, %v2519
      %2521 = vmatmul.bf16.gmra.mxu0 %v2433
      %v2522 = vpop.f32.mrf.mxu0
      %v2523 = vadd.f32 %v2453, %v2522
      %v2524 = vpop.f32.mrf.mxu0
      %v2525 = vadd.f32 %v2453, %v2524
      %2526 = vmatmul.bf16.gmra.mxu0 %v2434
      %v2527 = vpop.f32.mrf.mxu0
      %v2528 = vadd.f32 %v2453, %v2527
      %v2529 = vpop.f32.mrf.mxu0
      %v2530 = vadd.f32 %v2453, %v2529
      %2531 = vdwg.mxu0
      %v2532 = vxor.u32 %v2513, 2147483648
      %v2533 = vxor.u32 %v2515, 2147483648
      %v2534 = vxor.u32 %v2518, 2147483648
      %v2535 = vxor.u32 %v2520, 2147483648
      %v2536 = vxor.u32 %v2523, 2147483648
      %v2537 = vxor.u32 %v2525, 2147483648
      %v2538 = vxor.u32 %v2528, 2147483648
      %v2539 = vxor.u32 %v2530, 2147483648
      %v2540 = vmul.f32 %v2532, 1.442695
      %v2541 = vpow.pop %v2540
      %v2542 = vmul.f32 %v2533, 1.442695
      %v2543 = vpow.pop %v2542
      %v2544 = vmul.f32 %v2534, 1.442695
      %v2545 = vpow.pop %v2544
      %v2546 = vmul.f32 %v2535, 1.442695
      %v2547 = vpow.pop %v2546
      %v2548 = vmul.f32 %v2536, 1.442695
      %v2549 = vpow.pop %v2548
      %v2550 = vmul.f32 %v2537, 1.442695
      %v2551 = vpow.pop %v2550
      %v2552 = vmul.f32 %v2538, 1.442695
      %v2553 = vpow.pop %v2552
      %v2554 = vmul.f32 %v2539, 1.442695
      %v2555 = vpow.pop %v2554
      %v2556 = vadd.f32 %v2541, 1.0
      %v2557 = vadd.f32 %v2543, 1.0
      %v2558 = vadd.f32 %v2545, 1.0
      %v2559 = vadd.f32 %v2547, 1.0
      %v2560 = vadd.f32 %v2549, 1.0
      %v2561 = vadd.f32 %v2551, 1.0
      %v2562 = vadd.f32 %v2553, 1.0
      %v2563 = vadd.f32 %v2555, 1.0
      %v2564 = vrcp.pop %v2556
      %v2565 = vmul.f32 %v2556, %v2564
      %v2566 = vsub.f32 1.0, %v2565
      %v2567 = vmul.f32 %v2564, %v2566
      %v2568 = vadd.f32 %v2564, %v2567
      %vm2569 = vweird.f32 %v2556
      %vm2570 = vweird.f32 %v2564
      %vm2571 = vmor %vm2569, %vm2570
      %v2572 = vsel %vm2571, %v2564, %v2568
      %v2573 = vand.u32 2147483647, %v2556
      %vm2574 = vcmp.eq.f32.partialorder %v2573, 8.507059e+37
      %v2575 = vand.u32 %v2556, 2147483648
      %v2576 = vor.u32 1.1754944e-38, %v2575
      %v2577 = vsel %vm2574, %v2576, %v2572
      %v2578 = vmul.f32 1.0, %v2577
      %v2579 = vrcp.pop %v2557
      %v2580 = vmul.f32 %v2557, %v2579
      %v2581 = vsub.f32 1.0, %v2580
      %v2582 = vmul.f32 %v2579, %v2581
      %v2583 = vadd.f32 %v2579, %v2582
      %vm2584 = vweird.f32 %v2557
      %vm2585 = vweird.f32 %v2579
      %vm2586 = vmor %vm2584, %vm2585
      %v2587 = vsel %vm2586, %v2579, %v2583
      %v2588 = vand.u32 2147483647, %v2557
      %vm2589 = vcmp.eq.f32.partialorder %v2588, 8.507059e+37
      %v2590 = vand.u32 %v2557, 2147483648
      %v2591 = vor.u32 1.1754944e-38, %v2590
      %v2592 = vsel %vm2589, %v2591, %v2587
      %v2593 = vmul.f32 1.0, %v2592
      %v2594 = vrcp.pop %v2558
      %v2595 = vmul.f32 %v2558, %v2594
      %v2596 = vsub.f32 1.0, %v2595
      %v2597 = vmul.f32 %v2594, %v2596
      %v2598 = vadd.f32 %v2594, %v2597
      %vm2599 = vweird.f32 %v2558
      %vm2600 = vweird.f32 %v2594
      %vm2601 = vmor %vm2599, %vm2600
      %v2602 = vsel %vm2601, %v2594, %v2598
      %v2603 = vand.u32 2147483647, %v2558
      %vm2604 = vcmp.eq.f32.partialorder %v2603, 8.507059e+37
      %v2605 = vand.u32 %v2558, 2147483648
      %v2606 = vor.u32 1.1754944e-38, %v2605
      %v2607 = vsel %vm2604, %v2606, %v2602
      %v2608 = vmul.f32 1.0, %v2607
      %v2609 = vrcp.pop %v2559
      %v2610 = vmul.f32 %v2559, %v2609
      %v2611 = vsub.f32 1.0, %v2610
      %v2612 = vmul.f32 %v2609, %v2611
      %v2613 = vadd.f32 %v2609, %v2612
      %vm2614 = vweird.f32 %v2559
      %vm2615 = vweird.f32 %v2609
      %vm2616 = vmor %vm2614, %vm2615
      %v2617 = vsel %vm2616, %v2609, %v2613
      %v2618 = vand.u32 2147483647, %v2559
      %vm2619 = vcmp.eq.f32.partialorder %v2618, 8.507059e+37
      %v2620 = vand.u32 %v2559, 2147483648
      %v2621 = vor.u32 1.1754944e-38, %v2620
      %v2622 = vsel %vm2619, %v2621, %v2617
      %v2623 = vmul.f32 1.0, %v2622
      %v2624 = vrcp.pop %v2560
      %v2625 = vmul.f32 %v2560, %v2624
      %v2626 = vsub.f32 1.0, %v2625
      %v2627 = vmul.f32 %v2624, %v2626
      %v2628 = vadd.f32 %v2624, %v2627
      %vm2629 = vweird.f32 %v2560
      %vm2630 = vweird.f32 %v2624
      %vm2631 = vmor %vm2629, %vm2630
      %v2632 = vsel %vm2631, %v2624, %v2628
      %v2633 = vand.u32 2147483647, %v2560
      %vm2634 = vcmp.eq.f32.partialorder %v2633, 8.507059e+37
      %v2635 = vand.u32 %v2560, 2147483648
      %v2636 = vor.u32 1.1754944e-38, %v2635
      %v2637 = vsel %vm2634, %v2636, %v2632
      %v2638 = vmul.f32 1.0, %v2637
      %v2639 = vrcp.pop %v2561
      %v2640 = vmul.f32 %v2561, %v2639
      %v2641 = vsub.f32 1.0, %v2640
      %v2642 = vmul.f32 %v2639, %v2641
      %v2643 = vadd.f32 %v2639, %v2642
      %vm2644 = vweird.f32 %v2561
      %vm2645 = vweird.f32 %v2639
      %vm2646 = vmor %vm2644, %vm2645
      %v2647 = vsel %vm2646, %v2639, %v2643
      %v2648 = vand.u32 2147483647, %v2561
      %vm2649 = vcmp.eq.f32.partialorder %v2648, 8.507059e+37
      %v2650 = vand.u32 %v2561, 2147483648
      %v2651 = vor.u32 1.1754944e-38, %v2650
      %v2652 = vsel %vm2649, %v2651, %v2647
      %v2653 = vmul.f32 1.0, %v2652
      %v2654 = vrcp.pop %v2562
      %v2655 = vmul.f32 %v2562, %v2654
      %v2656 = vsub.f32 1.0, %v2655
      %v2657 = vmul.f32 %v2654, %v2656
      %v2658 = vadd.f32 %v2654, %v2657
      %vm2659 = vweird.f32 %v2562
      %vm2660 = vweird.f32 %v2654
      %vm2661 = vmor %vm2659, %vm2660
      %v2662 = vsel %vm2661, %v2654, %v2658
      %v2663 = vand.u32 2147483647, %v2562
      %vm2664 = vcmp.eq.f32.partialorder %v2663, 8.507059e+37
      %v2665 = vand.u32 %v2562, 2147483648
      %v2666 = vor.u32 1.1754944e-38, %v2665
      %v2667 = vsel %vm2664, %v2666, %v2662
      %v2668 = vmul.f32 1.0, %v2667
      %v2669 = vrcp.pop %v2563
      %v2670 = vmul.f32 %v2563, %v2669
      %v2671 = vsub.f32 1.0, %v2670
      %v2672 = vmul.f32 %v2669, %v2671
      %v2673 = vadd.f32 %v2669, %v2672
      %vm2674 = vweird.f32 %v2563
      %vm2675 = vweird.f32 %v2669
      %vm2676 = vmor %vm2674, %vm2675
      %v2677 = vsel %vm2676, %v2669, %v2673
      %v2678 = vand.u32 2147483647, %v2563
      %vm2679 = vcmp.eq.f32.partialorder %v2678, 8.507059e+37
      %v2680 = vand.u32 %v2563, 2147483648
      %v2681 = vor.u32 1.1754944e-38, %v2680
      %v2682 = vsel %vm2679, %v2681, %v2677
      %v2683 = vmul.f32 1.0, %v2682
      %v2684 = vmul.f32 %v2513, %v2578
      %v2685 = vmul.f32 %v2515, %v2593
      %v2686 = vmul.f32 %v2518, %v2608
      %v2687 = vmul.f32 %v2520, %v2623
      %v2688 = vmul.f32 %v2523, %v2638
      %v2689 = vmul.f32 %v2525, %v2653
      %v2690 = vmul.f32 %v2528, %v2668
      %v2691 = vmul.f32 %v2530, %v2683
      %v2692 = vadd.f32 %v2684, %v1824
      %v2693 = vadd.f32 %v2685, %v1825
      %v2694 = vadd.f32 %v2686, %v1826
      %v2695 = vadd.f32 %v2687, %v1827
      %v2696 = vadd.f32 %v2688, %v1828
      %v2697 = vadd.f32 %v2689, %v1829
      %v2698 = vadd.f32 %v2690, %v1830
      %v2699 = vadd.f32 %v2691, %v1831
      %v2700 = vadd.f32 %v2684, %v1832
      %v2701 = vadd.f32 %v2685, %v1833
      %v2702 = vadd.f32 %v2686, %v1834
      %v2703 = vadd.f32 %v2687, %v1835
      %v2704 = vadd.f32 %v2688, %v1836
      %v2705 = vadd.f32 %v2689, %v1837
      %v2706 = vadd.f32 %v2690, %v1838
      %v2707 = vadd.f32 %v2691, %v1839
      %v2708 = vadd.f32 %v2684, %v1840
      %v2709 = vadd.f32 %v2685, %v1841
      %v2710 = vadd.f32 %v2686, %v1842
      %v2711 = vadd.f32 %v2687, %v1843
      %v2712 = vadd.f32 %v2688, %v1844
      %v2713 = vadd.f32 %v2689, %v1845
      %v2714 = vadd.f32 %v2690, %v1846
      %v2715 = vadd.f32 %v2691, %v1847
      %v2716 = vadd.f32 %v2684, %v1848
      %v2717 = vadd.f32 %v2685, %v1849
      %v2718 = vadd.f32 %v2686, %v1850
      %v2719 = vadd.f32 %v2687, %v1851
      %v2720 = vadd.f32 %v2688, %v1852
      %v2721 = vadd.f32 %v2689, %v1853
      %v2722 = vadd.f32 %v2690, %v1854
      %v2723 = vadd.f32 %v2691, %v1855
      %v2724 = vpack.c.bf16 %v2693, %v2692
      %v2725 = vpack.c.bf16 %v2695, %v2694
      %v2726 = vpack.c.bf16 %v2697, %v2696
      %v2727 = vpack.c.bf16 %v2699, %v2698
      %v2728 = vpack.c.bf16 %v2701, %v2700
      %v2729 = vpack.c.bf16 %v2703, %v2702
      %v2730 = vpack.c.bf16 %v2705, %v2704
      %v2731 = vpack.c.bf16 %v2707, %v2706
      %v2732 = vpack.c.bf16 %v2709, %v2708
      %v2733 = vpack.c.bf16 %v2711, %v2710
      %v2734 = vpack.c.bf16 %v2713, %v2712
      %v2735 = vpack.c.bf16 %v2715, %v2714
      %v2736 = vpack.c.bf16 %v2717, %v2716
      %v2737 = vpack.c.bf16 %v2719, %v2718
      %v2738 = vpack.c.bf16 %v2721, %v2720
      %v2739 = vpack.c.bf16 %v2723, %v2722
      %v2740 = vld [vmem:[%s19] sm:$0xf]
      %v2741 = vld [vmem:[%s19 + $0x4] sm:$0xf]
      %v2742 = vld [vmem:[%s19 + $0x8] sm:$0xf]
      %v2743 = vld [vmem:[%s19 + $0xc] sm:$0xf]
      %v2744 = vld [vmem:[%s19 + $0x10] sm:$0xf]
      %v2745 = vld [vmem:[%s19 + $0x14] sm:$0xf]
      %v2746 = vld [vmem:[%s19 + $0x18] sm:$0xf]
      %v2747 = vld [vmem:[%s19 + $0x1c] sm:$0xf]
      %v2748 = vld [vmem:[%s19 + $0x20] sm:$0xf]
      %v2749 = vld [vmem:[%s19 + $0x24] sm:$0xf]
      %v2750 = vld [vmem:[%s19 + $0x28] sm:$0xf]
      %v2751 = vld [vmem:[%s19 + $0x2c] sm:$0xf]
      %v2752 = vld [vmem:[%s19 + $0x30] sm:$0xf]
      %v2753 = vld [vmem:[%s19 + $0x34] sm:$0xf]
      %v2754 = vld [vmem:[%s19 + $0x38] sm:$0xf]
      %v2755 = vld [vmem:[%s19 + $0x3c] sm:$0xf]
      %v2756 = vld [vmem:[%s20] sm:$0x1]
      %v2758 = vperm.slane %v2756, 0
      %v2776 = vunpack.c.l.b16 %v2740
      %v2777 = vunpack.c.l.b16 %v2741
      %v2778 = vunpack.c.l.b16 %v2742
      %v2779 = vunpack.c.l.b16 %v2743
      %v2780 = vunpack.c.l.b16 %v2744
      %v2781 = vunpack.c.l.b16 %v2745
      %v2782 = vunpack.c.l.b16 %v2746
      %v2783 = vunpack.c.l.b16 %v2747
      %v2784 = vunpack.c.l.b16 %v2748
      %v2785 = vunpack.c.l.b16 %v2749
      %v2786 = vunpack.c.l.b16 %v2750
      %v2787 = vunpack.c.l.b16 %v2751
      %v2788 = vunpack.c.l.b16 %v2752
      %v2789 = vunpack.c.l.b16 %v2753
      %v2790 = vunpack.c.l.b16 %v2754
      %v2791 = vunpack.c.l.b16 %v2755
      %v2792 = vpack.c.b16 %v2777, %v2776
      %v2793 = vpack.c.b16 %v2779, %v2778
      %v2794 = vpack.c.b16 %v2781, %v2780
      %v2795 = vpack.c.b16 %v2783, %v2782
      %v2796 = vpack.c.b16 %v2785, %v2784
      %v2797 = vpack.c.b16 %v2787, %v2786
      %v2798 = vpack.c.b16 %v2789, %v2788
      %v2799 = vpack.c.b16 %v2791, %v2790
      %2808 = vmatpush.bf16.msra.mxu0 %v2799
      %2809 = vmatpush.bf16.msra.mxu0 %v2798
      %2810 = vmatpush.bf16.msra.mxu0 %v2797
      %2811 = vmatpush.bf16.msra.mxu0 %v2796
      %2812 = vmatpush.bf16.msra.mxu0 %v2795
      %2813 = vmatpush.bf16.msra.mxu0 %v2794
      %2814 = vmatpush.bf16.msra.mxu0 %v2793
      %2815 = vmatpush.bf16.msra.mxu0 %v2792
      %2816 = vmatmul.bf16.gmra.mxu0 %v2724
      %v2817 = vpop.f32.mrf.mxu0
      %v2818 = vadd.f32 %v2758, %v2817
      %v2819 = vpop.f32.mrf.mxu0
      %v2820 = vadd.f32 %v2758, %v2819
      %2821 = vmatmul.bf16.gmra.mxu0 %v2725
      %v2822 = vpop.f32.mrf.mxu0
      %v2823 = vadd.f32 %v2758, %v2822
      %v2824 = vpop.f32.mrf.mxu0
      %v2825 = vadd.f32 %v2758, %v2824
      %2826 = vmatmul.bf16.gmra.mxu0 %v2726
      %v2827 = vpop.f32.mrf.mxu0
      %v2828 = vadd.f32 %v2758, %v2827
      %v2829 = vpop.f32.mrf.mxu0
      %v2830 = vadd.f32 %v2758, %v2829
      %2831 = vmatmul.bf16.gmra.mxu0 %v2727
      %v2832 = vpop.f32.mrf.mxu0
      %v2833 = vadd.f32 %v2758, %v2832
      %v2834 = vpop.f32.mrf.mxu0
      %v2835 = vadd.f32 %v2758, %v2834
      %2836 = vmatmul.bf16.gmra.mxu0 %v2728
      %v2837 = vpop.f32.mrf.mxu0
      %v2838 = vadd.f32 %v2758, %v2837
      %v2839 = vpop.f32.mrf.mxu0
      %v2840 = vadd.f32 %v2758, %v2839
      %2841 = vmatmul.bf16.gmra.mxu0 %v2729
      %v2842 = vpop.f32.mrf.mxu0
      %v2843 = vadd.f32 %v2758, %v2842
      %v2844 = vpop.f32.mrf.mxu0
      %v2845 = vadd.f32 %v2758, %v2844
      %2846 = vmatmul.bf16.gmra.mxu0 %v2730
      %v2847 = vpop.f32.mrf.mxu0
      %v2848 = vadd.f32 %v2758, %v2847
      %v2849 = vpop.f32.mrf.mxu0
      %v2850 = vadd.f32 %v2758, %v2849
      %2851 = vmatmul.bf16.gmra.mxu0 %v2731
      %v2852 = vpop.f32.mrf.mxu0
      %v2853 = vadd.f32 %v2758, %v2852
      %v2854 = vpop.f32.mrf.mxu0
      %v2855 = vadd.f32 %v2758, %v2854
      %2856 = vmatmul.bf16.gmra.mxu0 %v2732
      %v2857 = vpop.f32.mrf.mxu0
      %v2858 = vadd.f32 %v2758, %v2857
      %v2859 = vpop.f32.mrf.mxu0
      %v2860 = vadd.f32 %v2758, %v2859
      %2861 = vmatmul.bf16.gmra.mxu0 %v2733
      %v2862 = vpop.f32.mrf.mxu0
      %v2863 = vadd.f32 %v2758, %v2862
      %v2864 = vpop.f32.mrf.mxu0
      %v2865 = vadd.f32 %v2758, %v2864
      %2866 = vmatmul.bf16.gmra.mxu0 %v2734
      %v2867 = vpop.f32.mrf.mxu0
      %v2868 = vadd.f32 %v2758, %v2867
      %v2869 = vpop.f32.mrf.mxu0
      %v2870 = vadd.f32 %v2758, %v2869
      %2871 = vmatmul.bf16.gmra.mxu0 %v2735
      %v2872 = vpop.f32.mrf.mxu0
      %v2873 = vadd.f32 %v2758, %v2872
      %v2874 = vpop.f32.mrf.mxu0
      %v2875 = vadd.f32 %v2758, %v2874
      %2876 = vmatmul.bf16.gmra.mxu0 %v2736
      %v2877 = vpop.f32.mrf.mxu0
      %v2878 = vadd.f32 %v2758, %v2877
      %v2879 = vpop.f32.mrf.mxu0
      %v2880 = vadd.f32 %v2758, %v2879
      %2881 = vmatmul.bf16.gmra.mxu0 %v2737
      %v2882 = vpop.f32.mrf.mxu0
      %v2883 = vadd.f32 %v2758, %v2882
      %v2884 = vpop.f32.mrf.mxu0
      %v2885 = vadd.f32 %v2758, %v2884
      %2886 = vmatmul.bf16.gmra.mxu0 %v2738
      %v2887 = vpop.f32.mrf.mxu0
      %v2888 = vadd.f32 %v2758, %v2887
      %v2889 = vpop.f32.mrf.mxu0
      %v2890 = vadd.f32 %v2758, %v2889
      %2891 = vmatmul.bf16.gmra.mxu0 %v2739
      %v2892 = vpop.f32.mrf.mxu0
      %v2893 = vadd.f32 %v2758, %v2892
      %v2894 = vpop.f32.mrf.mxu0
      %v2895 = vadd.f32 %v2758, %v2894
      %2896 = vdwg.mxu0
      %2897 = vst.msk [vmem:[%s744] sm:$0xff] %vm977, %v2818
      %2898 = vst.msk [vmem:[%s744 + $0x8] sm:$0xff] %vm977, %v2820
      %2899 = vst.msk [vmem:[%s744 + $0x10] sm:$0xff] %vm977, %v2823
      %2900 = vst.msk [vmem:[%s744 + $0x18] sm:$0xff] %vm977, %v2825
      %2901 = vst.msk [vmem:[%s744 + $0x20] sm:$0xff] %vm977, %v2828
      %2902 = vst.msk [vmem:[%s744 + $0x28] sm:$0xff] %vm977, %v2830
      %2903 = vst.msk [vmem:[%s744 + $0x30] sm:$0xff] %vm977, %v2833
      %2904 = vst.msk [vmem:[%s744 + $0x38] sm:$0xff] %vm977, %v2835
      %2905 = vst.msk [vmem:[%s744 + $0x40] sm:$0xff] %vm977, %v2838
      %2906 = vst.msk [vmem:[%s744 + $0x48] sm:$0xff] %vm977, %v2840
      %2907 = vst.msk [vmem:[%s744 + $0x50] sm:$0xff] %vm977, %v2843
      %2908 = vst.msk [vmem:[%s744 + $0x58] sm:$0xff] %vm977, %v2845
      %2909 = vst.msk [vmem:[%s744 + $0x60] sm:$0xff] %vm977, %v2848
      %2910 = vst.msk [vmem:[%s744 + $0x68] sm:$0xff] %vm977, %v2850
      %2911 = vst.msk [vmem:[%s744 + $0x70] sm:$0xff] %vm977, %v2853
      %2912 = vst.msk [vmem:[%s744 + $0x78] sm:$0xff] %vm977, %v2855
      %2913 = vst.msk [vmem:[%s744 + $0x80] sm:$0xff] %vm977, %v2858
      %2914 = vst.msk [vmem:[%s744 + $0x88] sm:$0xff] %vm977, %v2860
      %2915 = vst.msk [vmem:[%s744 + $0x90] sm:$0xff] %vm977, %v2863
      %2916 = vst.msk [vmem:[%s744 + $0x98] sm:$0xff] %vm977, %v2865
      %2917 = vst.msk [vmem:[%s744 + $0xa0] sm:$0xff] %vm977, %v2868
      %2918 = vst.msk [vmem:[%s744 + $0xa8] sm:$0xff] %vm977, %v2870
      %2919 = vst.msk [vmem:[%s744 + $0xb0] sm:$0xff] %vm977, %v2873
      %2920 = vst.msk [vmem:[%s744 + $0xb8] sm:$0xff] %vm977, %v2875
      %2921 = vst.msk [vmem:[%s744 + $0xc0] sm:$0xff] %vm977, %v2878
      %2922 = vst.msk [vmem:[%s744 + $0xc8] sm:$0xff] %vm977, %v2880
      %2923 = vst.msk [vmem:[%s744 + $0xd0] sm:$0xff] %vm977, %v2883
      %2924 = vst.msk [vmem:[%s744 + $0xd8] sm:$0xff] %vm977, %v2885
      %2925 = vst.msk [vmem:[%s744 + $0xe0] sm:$0xff] %vm977, %v2888
      %2926 = vst.msk [vmem:[%s744 + $0xe8] sm:$0xff] %vm977, %v2890
      %2927 = vst.msk [vmem:[%s744 + $0xf0] sm:$0xff] %vm977, %v2893
      %2928 = vst.msk [vmem:[%s744 + $0xf8] sm:$0xff] %vm977, %v2895
      %p2929 = scmp.lt.s32.totalorder %s32, 1
      %s2930 = scalar_select %p2929, %s32, 1
      %s2931 = smul.addr %s2930, 32
      %s2932 = smul.addr %s2931, 8
      %s2933 = scalar_lea.vmem %s21, %s2932
      // Predicated region
      $region105: #{unet_controlnet_forward.3} parent=103 // pred_check
        %p2934 = pneg %p521
      $region106: #{unet_controlnet_forward.3} parent=103 // pred_check_branch
        %2936 = sbr.rel (%p2934) target = $region108
      $region107: #{unet_controlnet_forward.3} parent=103 // pred_region
        _
      $region108: #{unet_controlnet_forward.3} parent=103 // pred_fallthru
        _
    $region104: #{unet_controlnet_forward.3} parent=5 // pred_fallthru
      _
    %p2937 = scmp.le.s32.totalorder 2, %s27
    // Predicated region
    $region109: #{unet_controlnet_forward.3} parent=5 // pred_check
      %p2938 = pneg %p2937
    $region110: #{unet_controlnet_forward.3} parent=5 // pred_check_branch
      %2940 = sbr.rel (%p2938) target = $region112
    $region111: #{unet_controlnet_forward.3} parent=5 // pred_region
      %s2941 = ssub.s32 %s27, 2
      // Predicated region
      $region113: #{unet_controlnet_forward.3} parent=111 // pred_check
        %p2942 = pneg %p527
      $region114: #{unet_controlnet_forward.3} parent=111 // pred_check_branch
        %2944 = sbr.rel (%p2942) target = $region116
      $region115: #{unet_controlnet_forward.3} parent=111 // pred_region
        %p2945 = scmp.lt.s32.totalorder %s33, 1
        %s2946 = scalar_select %p2945, %s33, 1
        %s2947 = smul.addr %s2946, 32
        %s2948 = smul.addr %s2947, 8
        %s2949 = scalar_lea.vmem %s21, %s2948
      $region116: #{unet_controlnet_forward.3} parent=111 // pred_fallthru
        _
    $region112: #{unet_controlnet_forward.3} parent=5 // pred_fallthru
      _
  $region6: #{unet_controlnet_forward.3} parent=0 // loop_footer
    %s31 = sadd.s32 1, %s27
  $region7: #{unet_controlnet_forward.3} parent=0 // loop_footer_branch
    %26 = sbr.rel target = $region3
  $region8: #{unet_controlnet_forward.3} parent=0 // loop_exit
    _

// kernel: unet_controlnet_forward.2
$region0: #{unet_controlnet_forward.2}
  #allocation0 [shape = 'u32[]', space=smem, size = 0x4, offset = 0x4, fixed_abs, tag = 'smem constant byte address 0x4 - core index']
  #allocation1 [shape = 'u32[72,128]{1,0:T(1,128)}', space=vmem, size = 0x9000, scoped, tag = 'internal scratch']
  #allocation2 [shape = 's32[1]{0}', space=sflag, size = 0x4, scoped, tag = 'scoped memory for unet_controlnet_forward.2']
  #allocation3 [shape = 'u8[512]{0}', space=smem, size = 0x200, scoped, tag = 'prefetched SMEM operand 0']
  %s0 = inlined_call_operand.vmem [shape: f32[2], index: 0, kind: input, shape index: {}]
  %s1 = inlined_call_operand.vmem [shape: bf16[2,256,4], index: 1, kind: input, shape index: {}]
  %s2 = inlined_call_operand.vmem [shape: bf16[2,2,256,3], index: 2, kind: input, shape index: {}]
  %s3 = inlined_call_operand.vmem [shape: bf16[2,1,128], index: 3, kind: input, shape index: {}]
  %s4 = inlined_call_operand.vmem [shape: bf16[2,1,32], index: 4, kind: input, shape index: {}]
  %s5 = inlined_call_operand.vmem [shape: bf16[2,4,128], index: 5, kind: input, shape index: {}]
  %s6 = inlined_call_operand.vmem [shape: bf16[2,3,128], index: 6, kind: input, shape index: {}]
  %s7 = inlined_call_operand.vmem [shape: f32[2,1,128], index: 7, kind: input, shape index: {}]
  %s8 = inlined_call_operand.vmem [shape: bf16[2,128,128], index: 8, kind: input, shape index: {}]
  %s9 = inlined_call_operand.vmem [shape: bf16[2,32,128], index: 9, kind: input, shape index: {}]
  %s10 = inlined_call_operand.vmem [shape: f32[2,1,128], index: 10, kind: input, shape index: {}]
  %s11 = inlined_call_operand.vmem [shape: bf16[2,128,128], index: 11, kind: input, shape index: {}]
  %s12 = inlined_call_operand.vmem [shape: f32[2,1,128], index: 12, kind: input, shape index: {}]
  %s13 = inlined_call_operand.vmem [shape: bf16[2,128,128], index: 13, kind: input, shape index: {}]
  %s14 = inlined_call_operand.vmem [shape: f32[2,1,128], index: 14, kind: input, shape index: {}]
  %s15 = inlined_call_operand.vmem [shape: bf16[2,128,128], index: 15, kind: input, shape index: {}]
  %s16 = inlined_call_operand.vmem [shape: f32[2,1,128], index: 16, kind: input, shape index: {}]
  %s17 = inlined_call_operand.vmem [shape: bf16[2,128,128], index: 17, kind: input, shape index: {}]
  %s18 = inlined_call_operand.vmem [shape: f32[2,1,128], index: 18, kind: input, shape index: {}]
  %s19 = inlined_call_operand.vmem [shape: bf16[2,128,128], index: 19, kind: input, shape index: {}]
  %s20 = inlined_call_operand.vmem [shape: f32[2,1,128], index: 20, kind: input, shape index: {}]
  %s21 = inlined_call_operand.vmem [shape: f32[2,256,128], index: 21, kind: output, shape index: {0}]
  %s22 = inlined_call_operand.vmem [shape: f32[2,64,128], index: 22, kind: output, shape index: {1}]
  %s23 = inlined_call_operand.vmem [shape: f32[2,16,128], index: 23, kind: output, shape index: {2}]
  %24 = xla_tuple %s21, %s22, %s23
  %s25 = sld [smem:[#allocation0]]
  $region137: #{unet_controlnet_forward.2} parent=0
    _
  %s27 = ssub.s32 1, %s25
  %s28 = scalar_select 0, %s27, %s25
  %s30 = sshll.u32 %s0, 4
  %s31 = int_to_ptr.vmem [resolvable:$true] %s30
  %33 = dma.vmem_to_smem %s31, 16, [#allocation3], [#allocation2]
  %35 = dma.done [#allocation2], 16
  %36 = sfence
  loop: start=0, step=1, limit=6
  $region2: #{unet_controlnet_forward.2} parent=0 // loop_pre_header
    _
  $region3: #{unet_controlnet_forward.2} parent=0 // loop_header
    %s38 = sphi 0, %s42
    %p39 = scmp.ge.s32.totalorder %s38, 6
    %s45 = sphi 0, %s57
    %s46 = sphi 0, %s53
    %s47 = sphi 0, %s45
    %s48 = sphi 0, %s46
    %s49 = sphi 0, %s47
    %s50 = sphi 0, %s48
    %s60 = sphi 0, %s62
    %s63 = sphi 0, %s60
    %s64 = sphi 0, %s63
    %s80 = sphi 0, %s64
    %s88 = sphi 0, %s90
    %s91 = sphi 0, %s88
    %s92 = sphi 0, %s91
    %s108 = sphi 0, %s92
    %s114 = sphi 0, %s116
    %s117 = sphi 0, %s114
    %s118 = sphi 0, %s117
    %s134 = sphi 0, %s118
    %s140 = sphi 0, %s142
    %s143 = sphi 0, %s140
    %s144 = sphi 0, %s143
    %s160 = sphi 0, %s144
    %s166 = sphi 0, %s168
    %s169 = sphi 0, %s166
    %s170 = sphi 0, %s169
    %s186 = sphi 0, %s170
    %s192 = sphi 0, %s194
    %s195 = sphi 0, %s192
    %s196 = sphi 0, %s195
    %s212 = sphi 0, %s196
    %s218 = sphi 0, %s220
    %s221 = sphi 0, %s218
    %s222 = sphi 0, %s221
    %s238 = sphi 0, %s222
    %s244 = sphi 0, %s246
    %s247 = sphi 0, %s244
    %s248 = sphi 0, %s247
    %s264 = sphi 0, %s248
    %s270 = sphi 0, %s272
    %s273 = sphi 0, %s270
    %s274 = sphi 0, %s273
    %s290 = sphi 0, %s274
    %s296 = sphi 0, %s298
    %s299 = sphi 0, %s296
    %s300 = sphi 0, %s299
    %s316 = sphi 0, %s300
    %s322 = sphi 0, %s324
    %s325 = sphi 0, %s322
    %s326 = sphi 0, %s325
    %s342 = sphi 0, %s326
    %s348 = sphi 0, %s350
    %s351 = sphi 0, %s348
    %s352 = sphi 0, %s351
    %s368 = sphi 0, %s352
    %s374 = sphi 0, %s376
    %s377 = sphi 0, %s374
    %s378 = sphi 0, %s377
    %s394 = sphi 0, %s378
    %s400 = sphi 0, %s402
    %s403 = sphi 0, %s400
    %s404 = sphi 0, %s403
    %s420 = sphi 0, %s404
    %s426 = sphi 0, %s428
    %s429 = sphi 0, %s426
    %s430 = sphi 0, %s429
    %s446 = sphi 0, %s430
    %s452 = sphi 0, %s454
    %s455 = sphi 0, %s452
    %s456 = sphi 0, %s455
    %s472 = sphi 0, %s456
    %s478 = sphi 0, %s480
    %s481 = sphi 0, %s478
    %s482 = sphi 0, %s481
    %s498 = sphi 0, %s482
    %s504 = sphi 0, %s506
    %s507 = sphi 0, %s504
    %s508 = sphi 0, %s507
    %s524 = sphi 0, %s508
    %s530 = sphi 0, %s532
    %s533 = sphi 0, %s530
    %s534 = sphi 0, %s533
    %s550 = sphi 0, %s534
    %s556 = sphi 0, %s558
    %s559 = sphi 0, %s556
    %s560 = sphi 0, %s559
    %s576 = sphi 0, %s560
    %s582 = sphi 0, %s584
    %s585 = sphi 0, %s582
    %s586 = sphi 0, %s585
    %s602 = sphi 0, %s586
    %s608 = sphi 0, %s610
    %s611 = sphi 0, %s608
    %s612 = sphi 0, %s611
    %s628 = sphi 0, %s612
    %s634 = sphi 0, %s636
    %s637 = sphi 0, %s634
    %s638 = sphi 0, %s637
    %s654 = sphi 0, %s638
  $region4: #{unet_controlnet_forward.2} parent=0 // loop_header_branch
    %41 = sbr.rel (%p39) target = $region8
  $region5: #{unet_controlnet_forward.2} parent=0 // loop_body
    %s43 = ssub.s32 %s38, 1
    %s44 = ssub.s32 %s38, 2
    %s51 = sadd.s32 1, %s46
    %p52 = scmp.ge.s32.totalorder %s51, 2
    %s53 = scalar_select %p52, 0, %s51
    %s54 = sadd.s32 1, %s45
    %s55 = scalar_select %p52, %s54, %s45
    %p56 = scmp.ge.s32.totalorder %s55, 2
    %s57 = scalar_select %p56, 0, %s55
    %s58 = ssub.s32 %s45, %s57
    %p59 = scmp.eq.s32.totalorder %s58, 0
    %s61 = sadd.s32 %s60, 1
    %s62 = scalar_select %p59, %s60, %s61
    %p65 = pneg %p59
    %p66 = scmp.eq.s32.totalorder %s38, 3
    %p67 = por %p65, %p66
    %p68 = scmp.ne.s32.totalorder %s60, %s63
    %p69 = scmp.eq.s32.totalorder %s38, 0
    %p70 = por %p68, %p69
    %p71 = scmp.ne.s32.totalorder %s60, %s63
    %p72 = scmp.eq.s32.totalorder %s43, 3
    %p73 = por %p71, %p72
    %p74 = scmp.ne.s32.totalorder %s63, %s64
    %p75 = scmp.eq.s32.totalorder %s43, 0
    %p76 = por %p74, %p75
    %p77 = scmp.ne.s32.totalorder %s63, %s64
    %p78 = scmp.eq.s32.totalorder %s44, 3
    %p79 = por %p77, %p78
    %p81 = scmp.ne.s32.totalorder %s64, %s80
    %p82 = scmp.eq.s32.totalorder %s44, 0
    %p83 = por %p81, %p82
    %s84 = ssub.s32 %s46, %s53
    %s85 = ssub.s32 %s45, %s57
    %s86 = sor.u32 %s84, %s85
    %p87 = scmp.eq.s32.totalorder %s86, 0
    %s89 = sadd.s32 %s88, 1
    %s90 = scalar_select %p87, %s88, %s89
    %p93 = pneg %p87
    %p94 = scmp.eq.s32.totalorder %s38, 3
    %p95 = por %p93, %p94
    %p96 = scmp.ne.s32.totalorder %s88, %s91
    %p97 = scmp.eq.s32.totalorder %s38, 0
    %p98 = por %p96, %p97
    %p99 = scmp.ne.s32.totalorder %s88, %s91
    %p100 = scmp.eq.s32.totalorder %s43, 3
    %p101 = por %p99, %p100
    %p102 = scmp.ne.s32.totalorder %s91, %s92
    %p103 = scmp.eq.s32.totalorder %s43, 0
    %p104 = por %p102, %p103
    %p105 = scmp.ne.s32.totalorder %s91, %s92
    %p106 = scmp.eq.s32.totalorder %s44, 3
    %p107 = por %p105, %p106
    %p109 = scmp.ne.s32.totalorder %s92, %s108
    %p110 = scmp.eq.s32.totalorder %s44, 0
    %p111 = por %p109, %p110
    %s112 = ssub.s32 %s45, %s57
    %p113 = scmp.eq.s32.totalorder %s112, 0
    %s115 = sadd.s32 %s114, 1
    %s116 = scalar_select %p113, %s114, %s115
    %p119 = pneg %p113
    %p120 = scmp.eq.s32.totalorder %s38, 3
    %p121 = por %p119, %p120
    %p122 = scmp.ne.s32.totalorder %s114, %s117
    %p123 = scmp.eq.s32.totalorder %s38, 0
    %p124 = por %p122, %p123
    %p125 = scmp.ne.s32.totalorder %s114, %s117
    %p126 = scmp.eq.s32.totalorder %s43, 3
    %p127 = por %p125, %p126
    %p128 = scmp.ne.s32.totalorder %s117, %s118
    %p129 = scmp.eq.s32.totalorder %s43, 0
    %p130 = por %p128, %p129
    %p131 = scmp.ne.s32.totalorder %s117, %s118
    %p132 = scmp.eq.s32.totalorder %s44, 3
    %p133 = por %p131, %p132
    %p135 = scmp.ne.s32.totalorder %s118, %s134
    %p136 = scmp.eq.s32.totalorder %s44, 0
    %p137 = por %p135, %p136
    %s138 = ssub.s32 %s45, %s57
    %p139 = scmp.eq.s32.totalorder %s138, 0
    %s141 = sadd.s32 %s140, 1
    %s142 = scalar_select %p139, %s140, %s141
    %p145 = pneg %p139
    %p146 = scmp.eq.s32.totalorder %s38, 3
    %p147 = por %p145, %p146
    %p148 = scmp.ne.s32.totalorder %s140, %s143
    %p149 = scmp.eq.s32.totalorder %s38, 0
    %p150 = por %p148, %p149
    %p151 = scmp.ne.s32.totalorder %s140, %s143
    %p152 = scmp.eq.s32.totalorder %s43, 3
    %p153 = por %p151, %p152
    %p154 = scmp.ne.s32.totalorder %s143, %s144
    %p155 = scmp.eq.s32.totalorder %s43, 0
    %p156 = por %p154, %p155
    %p157 = scmp.ne.s32.totalorder %s143, %s144
    %p158 = scmp.eq.s32.totalorder %s44, 3
    %p159 = por %p157, %p158
    %p161 = scmp.ne.s32.totalorder %s144, %s160
    %p162 = scmp.eq.s32.totalorder %s44, 0
    %p163 = por %p161, %p162
    %s164 = ssub.s32 %s46, %s53
    %p165 = scmp.eq.s32.totalorder %s164, 0
    %s167 = sadd.s32 %s166, 1
    %s168 = scalar_select %p165, %s166, %s167
    %p171 = pneg %p165
    %p172 = scmp.eq.s32.totalorder %s38, 3
    %p173 = por %p171, %p172
    %p174 = scmp.ne.s32.totalorder %s166, %s169
    %p175 = scmp.eq.s32.totalorder %s38, 0
    %p176 = por %p174, %p175
    %p177 = scmp.ne.s32.totalorder %s166, %s169
    %p178 = scmp.eq.s32.totalorder %s43, 3
    %p179 = por %p177, %p178
    %p180 = scmp.ne.s32.totalorder %s169, %s170
    %p181 = scmp.eq.s32.totalorder %s43, 0
    %p182 = por %p180, %p181
    %p183 = scmp.ne.s32.totalorder %s169, %s170
    %p184 = scmp.eq.s32.totalorder %s44, 3
    %p185 = por %p183, %p184
    %p187 = scmp.ne.s32.totalorder %s170, %s186
    %p188 = scmp.eq.s32.totalorder %s44, 0
    %p189 = por %p187, %p188
    %s190 = ssub.s32 %s46, %s53
    %p191 = scmp.eq.s32.totalorder %s190, 0
    %s193 = sadd.s32 %s192, 1
    %s194 = scalar_select %p191, %s192, %s193
    %p197 = pneg %p191
    %p198 = scmp.eq.s32.totalorder %s38, 3
    %p199 = por %p197, %p198
    %p200 = scmp.ne.s32.totalorder %s192, %s195
    %p201 = scmp.eq.s32.totalorder %s38, 0
    %p202 = por %p200, %p201
    %p203 = scmp.ne.s32.totalorder %s192, %s195
    %p204 = scmp.eq.s32.totalorder %s43, 3
    %p205 = por %p203, %p204
    %p206 = scmp.ne.s32.totalorder %s195, %s196
    %p207 = scmp.eq.s32.totalorder %s43, 0
    %p208 = por %p206, %p207
    %p209 = scmp.ne.s32.totalorder %s195, %s196
    %p210 = scmp.eq.s32.totalorder %s44, 3
    %p211 = por %p209, %p210
    %p213 = scmp.ne.s32.totalorder %s196, %s212
    %p214 = scmp.eq.s32.totalorder %s44, 0
    %p215 = por %p213, %p214
    %s216 = ssub.s32 %s46, %s53
    %p217 = scmp.eq.s32.totalorder %s216, 0
    %s219 = sadd.s32 %s218, 1
    %s220 = scalar_select %p217, %s218, %s219
    %p223 = pneg %p217
    %p224 = scmp.eq.s32.totalorder %s38, 3
    %p225 = por %p223, %p224
    %p226 = scmp.ne.s32.totalorder %s218, %s221
    %p227 = scmp.eq.s32.totalorder %s38, 0
    %p228 = por %p226, %p227
    %p229 = scmp.ne.s32.totalorder %s218, %s221
    %p230 = scmp.eq.s32.totalorder %s43, 3
    %p231 = por %p229, %p230
    %p232 = scmp.ne.s32.totalorder %s221, %s222
    %p233 = scmp.eq.s32.totalorder %s43, 0
    %p234 = por %p232, %p233
    %p235 = scmp.ne.s32.totalorder %s221, %s222
    %p236 = scmp.eq.s32.totalorder %s44, 3
    %p237 = por %p235, %p236
    %p239 = scmp.ne.s32.totalorder %s222, %s238
    %p240 = scmp.eq.s32.totalorder %s44, 0
    %p241 = por %p239, %p240
    %s242 = ssub.s32 %s46, %s53
    %p243 = scmp.eq.s32.totalorder %s242, 0
    %s245 = sadd.s32 %s244, 1
    %s246 = scalar_select %p243, %s244, %s245
    %p249 = pneg %p243
    %p250 = scmp.eq.s32.totalorder %s38, 3
    %p251 = por %p249, %p250
    %p252 = scmp.ne.s32.totalorder %s244, %s247
    %p253 = scmp.eq.s32.totalorder %s38, 0
    %p254 = por %p252, %p253
    %p255 = scmp.ne.s32.totalorder %s244, %s247
    %p256 = scmp.eq.s32.totalorder %s43, 3
    %p257 = por %p255, %p256
    %p258 = scmp.ne.s32.totalorder %s247, %s248
    %p259 = scmp.eq.s32.totalorder %s43, 0
    %p260 = por %p258, %p259
    %p261 = scmp.ne.s32.totalorder %s247, %s248
    %p262 = scmp.eq.s32.totalorder %s44, 3
    %p263 = por %p261, %p262
    %p265 = scmp.ne.s32.totalorder %s248, %s264
    %p266 = scmp.eq.s32.totalorder %s44, 0
    %p267 = por %p265, %p266
    %s268 = ssub.s32 %s46, %s53
    %p269 = scmp.eq.s32.totalorder %s268, 0
    %s271 = sadd.s32 %s270, 1
    %s272 = scalar_select %p269, %s270, %s271
    %p275 = pneg %p269
    %p276 = scmp.eq.s32.totalorder %s38, 3
    %p277 = por %p275, %p276
    %p278 = scmp.ne.s32.totalorder %s270, %s273
    %p279 = scmp.eq.s32.totalorder %s38, 0
    %p280 = por %p278, %p279
    %p281 = scmp.ne.s32.totalorder %s270, %s273
    %p282 = scmp.eq.s32.totalorder %s43, 3
    %p283 = por %p281, %p282
    %p284 = scmp.ne.s32.totalorder %s273, %s274
    %p285 = scmp.eq.s32.totalorder %s43, 0
    %p286 = por %p284, %p285
    %p287 = scmp.ne.s32.totalorder %s273, %s274
    %p288 = scmp.eq.s32.totalorder %s44, 3
    %p289 = por %p287, %p288
    %p291 = scmp.ne.s32.totalorder %s274, %s290
    %p292 = scmp.eq.s32.totalorder %s44, 0
    %p293 = por %p291, %p292
    %s294 = ssub.s32 %s46, %s53
    %p295 = scmp.eq.s32.totalorder %s294, 0
    %s297 = sadd.s32 %s296, 1
    %s298 = scalar_select %p295, %s296, %s297
    %p301 = pneg %p295
    %p302 = scmp.eq.s32.totalorder %s38, 3
    %p303 = por %p301, %p302
    %p304 = scmp.ne.s32.totalorder %s296, %s299
    %p305 = scmp.eq.s32.totalorder %s38, 0
    %p306 = por %p304, %p305
    %p307 = scmp.ne.s32.totalorder %s296, %s299
    %p308 = scmp.eq.s32.totalorder %s43, 3
    %p309 = por %p307, %p308
    %p310 = scmp.ne.s32.totalorder %s299, %s300
    %p311 = scmp.eq.s32.totalorder %s43, 0
    %p312 = por %p310, %p311
    %p313 = scmp.ne.s32.totalorder %s299, %s300
    %p314 = scmp.eq.s32.totalorder %s44, 3
    %p315 = por %p313, %p314
    %p317 = scmp.ne.s32.totalorder %s300, %s316
    %p318 = scmp.eq.s32.totalorder %s44, 0
    %p319 = por %p317, %p318
    %s320 = ssub.s32 %s46, %s53
    %p321 = scmp.eq.s32.totalorder %s320, 0
    %s323 = sadd.s32 %s322, 1
    %s324 = scalar_select %p321, %s322, %s323
    %p327 = pneg %p321
    %p328 = scmp.eq.s32.totalorder %s38, 3
    %p329 = por %p327, %p328
    %p330 = scmp.ne.s32.totalorder %s322, %s325
    %p331 = scmp.eq.s32.totalorder %s38, 0
    %p332 = por %p330, %p331
    %p333 = scmp.ne.s32.totalorder %s322, %s325
    %p334 = scmp.eq.s32.totalorder %s43, 3
    %p335 = por %p333, %p334
    %p336 = scmp.ne.s32.totalorder %s325, %s326
    %p337 = scmp.eq.s32.totalorder %s43, 0
    %p338 = por %p336, %p337
    %p339 = scmp.ne.s32.totalorder %s325, %s326
    %p340 = scmp.eq.s32.totalorder %s44, 3
    %p341 = por %p339, %p340
    %p343 = scmp.ne.s32.totalorder %s326, %s342
    %p344 = scmp.eq.s32.totalorder %s44, 0
    %p345 = por %p343, %p344
    %s346 = ssub.s32 %s46, %s53
    %p347 = scmp.eq.s32.totalorder %s346, 0
    %s349 = sadd.s32 %s348, 1
    %s350 = scalar_select %p347, %s348, %s349
    %p353 = pneg %p347
    %p354 = scmp.eq.s32.totalorder %s38, 3
    %p355 = por %p353, %p354
    %p356 = scmp.ne.s32.totalorder %s348, %s351
    %p357 = scmp.eq.s32.totalorder %s38, 0
    %p358 = por %p356, %p357
    %p359 = scmp.ne.s32.totalorder %s348, %s351
    %p360 = scmp.eq.s32.totalorder %s43, 3
    %p361 = por %p359, %p360
    %p362 = scmp.ne.s32.totalorder %s351, %s352
    %p363 = scmp.eq.s32.totalorder %s43, 0
    %p364 = por %p362, %p363
    %p365 = scmp.ne.s32.totalorder %s351, %s352
    %p366 = scmp.eq.s32.totalorder %s44, 3
    %p367 = por %p365, %p366
    %p369 = scmp.ne.s32.totalorder %s352, %s368
    %p370 = scmp.eq.s32.totalorder %s44, 0
    %p371 = por %p369, %p370
    %s372 = ssub.s32 %s46, %s53
    %p373 = scmp.eq.s32.totalorder %s372, 0
    %s375 = sadd.s32 %s374, 1
    %s376 = scalar_select %p373, %s374, %s375
    %p379 = pneg %p373
    %p380 = scmp.eq.s32.totalorder %s38, 3
    %p381 = por %p379, %p380
    %p382 = scmp.ne.s32.totalorder %s374, %s377
    %p383 = scmp.eq.s32.totalorder %s38, 0
    %p384 = por %p382, %p383
    %p385 = scmp.ne.s32.totalorder %s374, %s377
    %p386 = scmp.eq.s32.totalorder %s43, 3
    %p387 = por %p385, %p386
    %p388 = scmp.ne.s32.totalorder %s377, %s378
    %p389 = scmp.eq.s32.totalorder %s43, 0
    %p390 = por %p388, %p389
    %p391 = scmp.ne.s32.totalorder %s377, %s378
    %p392 = scmp.eq.s32.totalorder %s44, 3
    %p393 = por %p391, %p392
    %p395 = scmp.ne.s32.totalorder %s378, %s394
    %p396 = scmp.eq.s32.totalorder %s44, 0
    %p397 = por %p395, %p396
    %s398 = ssub.s32 %s46, %s53
    %p399 = scmp.eq.s32.totalorder %s398, 0
    %s401 = sadd.s32 %s400, 1
    %s402 = scalar_select %p399, %s400, %s401
    %p405 = pneg %p399
    %p406 = scmp.eq.s32.totalorder %s38, 3
    %p407 = por %p405, %p406
    %p408 = scmp.ne.s32.totalorder %s400, %s403
    %p409 = scmp.eq.s32.totalorder %s38, 0
    %p410 = por %p408, %p409
    %p411 = scmp.ne.s32.totalorder %s400, %s403
    %p412 = scmp.eq.s32.totalorder %s43, 3
    %p413 = por %p411, %p412
    %p414 = scmp.ne.s32.totalorder %s403, %s404
    %p415 = scmp.eq.s32.totalorder %s43, 0
    %p416 = por %p414, %p415
    %p417 = scmp.ne.s32.totalorder %s403, %s404
    %p418 = scmp.eq.s32.totalorder %s44, 3
    %p419 = por %p417, %p418
    %p421 = scmp.ne.s32.totalorder %s404, %s420
    %p422 = scmp.eq.s32.totalorder %s44, 0
    %p423 = por %p421, %p422
    %s424 = ssub.s32 %s46, %s53
    %p425 = scmp.eq.s32.totalorder %s424, 0
    %s427 = sadd.s32 %s426, 1
    %s428 = scalar_select %p425, %s426, %s427
    %p431 = pneg %p425
    %p432 = scmp.eq.s32.totalorder %s38, 3
    %p433 = por %p431, %p432
    %p434 = scmp.ne.s32.totalorder %s426, %s429
    %p435 = scmp.eq.s32.totalorder %s38, 0
    %p436 = por %p434, %p435
    %p437 = scmp.ne.s32.totalorder %s426, %s429
    %p438 = scmp.eq.s32.totalorder %s43, 3
    %p439 = por %p437, %p438
    %p440 = scmp.ne.s32.totalorder %s429, %s430
    %p441 = scmp.eq.s32.totalorder %s43, 0
    %p442 = por %p440, %p441
    %p443 = scmp.ne.s32.totalorder %s429, %s430
    %p444 = scmp.eq.s32.totalorder %s44, 3
    %p445 = por %p443, %p444
    %p447 = scmp.ne.s32.totalorder %s430, %s446
    %p448 = scmp.eq.s32.totalorder %s44, 0
    %p449 = por %p447, %p448
    %s450 = ssub.s32 %s46, %s53
    %p451 = scmp.eq.s32.totalorder %s450, 0
    %s453 = sadd.s32 %s452, 1
    %s454 = scalar_select %p451, %s452, %s453
    %p457 = pneg %p451
    %p458 = scmp.eq.s32.totalorder %s38, 3
    %p459 = por %p457, %p458
    %p460 = scmp.ne.s32.totalorder %s452, %s455
    %p461 = scmp.eq.s32.totalorder %s38, 0
    %p462 = por %p460, %p461
    %p463 = scmp.ne.s32.totalorder %s452, %s455
    %p464 = scmp.eq.s32.totalorder %s43, 3
    %p465 = por %p463, %p464
    %p466 = scmp.ne.s32.totalorder %s455, %s456
    %p467 = scmp.eq.s32.totalorder %s43, 0
    %p468 = por %p466, %p467
    %p469 = scmp.ne.s32.totalorder %s455, %s456
    %p470 = scmp.eq.s32.totalorder %s44, 3
    %p471 = por %p469, %p470
    %p473 = scmp.ne.s32.totalorder %s456, %s472
    %p474 = scmp.eq.s32.totalorder %s44, 0
    %p475 = por %p473, %p474
    %s476 = ssub.s32 %s46, %s53
    %p477 = scmp.eq.s32.totalorder %s476, 0
    %s479 = sadd.s32 %s478, 1
    %s480 = scalar_select %p477, %s478, %s479
    %p483 = pneg %p477
    %p484 = scmp.eq.s32.totalorder %s38, 3
    %p485 = por %p483, %p484
    %p486 = scmp.ne.s32.totalorder %s478, %s481
    %p487 = scmp.eq.s32.totalorder %s38, 0
    %p488 = por %p486, %p487
    %p489 = scmp.ne.s32.totalorder %s478, %s481
    %p490 = scmp.eq.s32.totalorder %s43, 3
    %p491 = por %p489, %p490
    %p492 = scmp.ne.s32.totalorder %s481, %s482
    %p493 = scmp.eq.s32.totalorder %s43, 0
    %p494 = por %p492, %p493
    %p495 = scmp.ne.s32.totalorder %s481, %s482
    %p496 = scmp.eq.s32.totalorder %s44, 3
    %p497 = por %p495, %p496
    %p499 = scmp.ne.s32.totalorder %s482, %s498
    %p500 = scmp.eq.s32.totalorder %s44, 0
    %p501 = por %p499, %p500
    %s502 = ssub.s32 %s46, %s53
    %p503 = scmp.eq.s32.totalorder %s502, 0
    %s505 = sadd.s32 %s504, 1
    %s506 = scalar_select %p503, %s504, %s505
    %p509 = pneg %p503
    %p510 = scmp.eq.s32.totalorder %s38, 3
    %p511 = por %p509, %p510
    %p512 = scmp.ne.s32.totalorder %s504, %s507
    %p513 = scmp.eq.s32.totalorder %s38, 0
    %p514 = por %p512, %p513
    %p515 = scmp.ne.s32.totalorder %s504, %s507
    %p516 = scmp.eq.s32.totalorder %s43, 3
    %p517 = por %p515, %p516
    %p518 = scmp.ne.s32.totalorder %s507, %s508
    %p519 = scmp.eq.s32.totalorder %s43, 0
    %p520 = por %p518, %p519
    %p521 = scmp.ne.s32.totalorder %s507, %s508
    %p522 = scmp.eq.s32.totalorder %s44, 3
    %p523 = por %p521, %p522
    %p525 = scmp.ne.s32.totalorder %s508, %s524
    %p526 = scmp.eq.s32.totalorder %s44, 0
    %p527 = por %p525, %p526
    %s528 = ssub.s32 %s46, %s53
    %p529 = scmp.eq.s32.totalorder %s528, 0
    %s531 = sadd.s32 %s530, 1
    %s532 = scalar_select %p529, %s530, %s531
    %p535 = pneg %p529
    %p536 = scmp.eq.s32.totalorder %s38, 3
    %p537 = por %p535, %p536
    %p538 = scmp.ne.s32.totalorder %s530, %s533
    %p539 = scmp.eq.s32.totalorder %s38, 0
    %p540 = por %p538, %p539
    %p541 = scmp.ne.s32.totalorder %s530, %s533
    %p542 = scmp.eq.s32.totalorder %s43, 3
    %p543 = por %p541, %p542
    %p544 = scmp.ne.s32.totalorder %s533, %s534
    %p545 = scmp.eq.s32.totalorder %s43, 0
    %p546 = por %p544, %p545
    %p547 = scmp.ne.s32.totalorder %s533, %s534
    %p548 = scmp.eq.s32.totalorder %s44, 3
    %p549 = por %p547, %p548
    %p551 = scmp.ne.s32.totalorder %s534, %s550
    %p552 = scmp.eq.s32.totalorder %s44, 0
    %p553 = por %p551, %p552
    %s554 = ssub.s32 %s46, %s53
    %p555 = scmp.eq.s32.totalorder %s554, 0
    %s557 = sadd.s32 %s556, 1
    %s558 = scalar_select %p555, %s556, %s557
    %p561 = pneg %p555
    %p562 = scmp.eq.s32.totalorder %s38, 3
    %p563 = por %p561, %p562
    %p564 = scmp.ne.s32.totalorder %s556, %s559
    %p565 = scmp.eq.s32.totalorder %s38, 0
    %p566 = por %p564, %p565
    %p567 = scmp.ne.s32.totalorder %s556, %s559
    %p568 = scmp.eq.s32.totalorder %s43, 3
    %p569 = por %p567, %p568
    %p570 = scmp.ne.s32.totalorder %s559, %s560
    %p571 = scmp.eq.s32.totalorder %s43, 0
    %p572 = por %p570, %p571
    %p573 = scmp.ne.s32.totalorder %s559, %s560
    %p574 = scmp.eq.s32.totalorder %s44, 3
    %p575 = por %p573, %p574
    %p577 = scmp.ne.s32.totalorder %s560, %s576
    %p578 = scmp.eq.s32.totalorder %s44, 0
    %p579 = por %p577, %p578
    %s580 = ssub.s32 %s45, %s57
    %p581 = scmp.eq.s32.totalorder %s580, 0
    %s583 = sadd.s32 %s582, 1
    %s584 = scalar_select %p581, %s582, %s583
    %p587 = pneg %p581
    %p588 = scmp.eq.s32.totalorder %s38, 3
    %p589 = por %p587, %p588
    %p590 = scmp.ne.s32.totalorder %s582, %s585
    %p591 = scmp.eq.s32.totalorder %s38, 0
    %p592 = por %p590, %p591
    %p593 = scmp.ne.s32.totalorder %s582, %s585
    %p594 = scmp.eq.s32.totalorder %s43, 3
    %p595 = por %p593, %p594
    %p596 = scmp.ne.s32.totalorder %s585, %s586
    %p597 = scmp.eq.s32.totalorder %s43, 0
    %p598 = por %p596, %p597
    %p599 = scmp.ne.s32.totalorder %s585, %s586
    %p600 = scmp.eq.s32.totalorder %s44, 3
    %p601 = por %p599, %p600
    %p603 = scmp.ne.s32.totalorder %s586, %s602
    %p604 = scmp.eq.s32.totalorder %s44, 0
    %p605 = por %p603, %p604
    %s606 = ssub.s32 %s45, %s57
    %p607 = scmp.eq.s32.totalorder %s606, 0
    %s609 = sadd.s32 %s608, 1
    %s610 = scalar_select %p607, %s608, %s609
    %p613 = pneg %p607
    %p614 = scmp.eq.s32.totalorder %s38, 3
    %p615 = por %p613, %p614
    %p616 = scmp.ne.s32.totalorder %s608, %s611
    %p617 = scmp.eq.s32.totalorder %s38, 0
    %p618 = por %p616, %p617
    %p619 = scmp.ne.s32.totalorder %s608, %s611
    %p620 = scmp.eq.s32.totalorder %s43, 3
    %p621 = por %p619, %p620
    %p622 = scmp.ne.s32.totalorder %s611, %s612
    %p623 = scmp.eq.s32.totalorder %s43, 0
    %p624 = por %p622, %p623
    %p625 = scmp.ne.s32.totalorder %s611, %s612
    %p626 = scmp.eq.s32.totalorder %s44, 3
    %p627 = por %p625, %p626
    %p629 = scmp.ne.s32.totalorder %s612, %s628
    %p630 = scmp.eq.s32.totalorder %s44, 0
    %p631 = por %p629, %p630
    %s632 = ssub.s32 %s45, %s57
    %p633 = scmp.eq.s32.totalorder %s632, 0
    %s635 = sadd.s32 %s634, 1
    %s636 = scalar_select %p633, %s634, %s635
    %p639 = pneg %p633
    %p640 = scmp.eq.s32.totalorder %s38, 3
    %p641 = por %p639, %p640
    %p642 = scmp.ne.s32.totalorder %s634, %s637
    %p643 = scmp.eq.s32.totalorder %s38, 0
    %p644 = por %p642, %p643
    %p645 = scmp.ne.s32.totalorder %s634, %s637
    %p646 = scmp.eq.s32.totalorder %s43, 3
    %p647 = por %p645, %p646
    %p648 = scmp.ne.s32.totalorder %s637, %s638
    %p649 = scmp.eq.s32.totalorder %s43, 0
    %p650 = por %p648, %p649
    %p651 = scmp.ne.s32.totalorder %s637, %s638
    %p652 = scmp.eq.s32.totalorder %s44, 3
    %p653 = por %p651, %p652
    %p655 = scmp.ne.s32.totalorder %s638, %s654
    %p656 = scmp.eq.s32.totalorder %s44, 0
    %p657 = por %p655, %p656
    %p658 = scmp.le.s32.totalorder 1, %s38
    %p659 = scmp.lt.s32.totalorder %s38, 5
    %p660 = pnand %p658, %p659
    %p661 = pneg %p660
    // Predicated region
    $region9: #{unet_controlnet_forward.2} parent=5 // pred_check
      _
    $region10: #{unet_controlnet_forward.2} parent=5 // pred_check_branch
      %663 = sbr.rel (%p660) target = $region12
    $region11: #{unet_controlnet_forward.2} parent=5 // pred_region
      %s664 = ssub.s32 %s38, 1
    $region12: #{unet_controlnet_forward.2} parent=5 // pred_fallthru
      _
    %p665 = scmp.lt.s32.totalorder %s38, 4
    // Predicated region
    $region13: #{unet_controlnet_forward.2} parent=5 // pred_check
      %p666 = pneg %p665
    $region14: #{unet_controlnet_forward.2} parent=5 // pred_check_branch
      %668 = sbr.rel (%p666) target = $region16
    $region15: #{unet_controlnet_forward.2} parent=5 // pred_region
      // Predicated region
      $region17: #{unet_controlnet_forward.2} parent=15 // pred_check
        %p669 = pneg %p70
      $region18: #{unet_controlnet_forward.2} parent=15 // pred_check_branch
        %671 = sbr.rel (%p669) target = $region20
      $region19: #{unet_controlnet_forward.2} parent=15 // pred_region
        %p672 = scmp.lt.s32.totalorder %s45, 1
        %s673 = scalar_select %p672, %s45, 1
        %s674 = smul.addr %s673, 32
        %s675 = smul.addr %s674, 4
        %s676 = scalar_lea.vmem %s1, %s675
      $region20: #{unet_controlnet_forward.2} parent=15 // pred_fallthru
        _
      // Predicated region
      $region21: #{unet_controlnet_forward.2} parent=15 // pred_check
        %p677 = pneg %p98
      $region22: #{unet_controlnet_forward.2} parent=15 // pred_check_branch
        %679 = sbr.rel (%p677) target = $region24
      $region23: #{unet_controlnet_forward.2} parent=15 // pred_region
        %p680 = scmp.lt.s32.totalorder %s46, 1
        %s681 = scalar_select %p680, %s46, 1
        %p682 = scmp.lt.s32.totalorder %s45, 1
        %s683 = scalar_select %p682, %s45, 1
        %s684 = smul.addr %s683, 32
        %s685 = smul.addr %s681, 64
        %s686 = sadd.s32 %s684, %s685
        %s687 = smul.addr %s686, 4
        %s688 = scalar_lea.vmem %s2, %s687
      $region24: #{unet_controlnet_forward.2} parent=15 // pred_fallthru
        _
      // Predicated region
      $region25: #{unet_controlnet_forward.2} parent=15 // pred_check
        %p689 = pneg %p124
      $region26: #{unet_controlnet_forward.2} parent=15 // pred_check_branch
        %691 = sbr.rel (%p689) target = $region28
      $region27: #{unet_controlnet_forward.2} parent=15 // pred_region
        %p692 = scmp.lt.s32.totalorder %s45, 1
        %s693 = scalar_select %p692, %s45, 1
        %s694 = scalar_lea.vmem %s3, %s693
      $region28: #{unet_controlnet_forward.2} parent=15 // pred_fallthru
        _
      // Predicated region
      $region29: #{unet_controlnet_forward.2} parent=15 // pred_check
        %p695 = pneg %p150
      $region30: #{unet_controlnet_forward.2} parent=15 // pred_check_branch
        %697 = sbr.rel (%p695) target = $region32
      $region31: #{unet_controlnet_forward.2} parent=15 // pred_region
        %p698 = scmp.lt.s32.totalorder %s45, 1
        %s699 = scalar_select %p698, %s45, 1
        %s700 = scalar_lea.vmem %s4, %s699
      $region32: #{unet_controlnet_forward.2} parent=15 // pred_fallthru
        _
      // Predicated region
      $region33: #{unet_controlnet_forward.2} parent=15 // pred_check
        %p701 = pneg %p176
      $region34: #{unet_controlnet_forward.2} parent=15 // pred_check_branch
        %703 = sbr.rel (%p701) target = $region36
      $region35: #{unet_controlnet_forward.2} parent=15 // pred_region
        %p704 = scmp.lt.s32.totalorder %s46, 1
        %s705 = scalar_select %p704, %s46, 1
        %s706 = smul.addr %s705, 2
        %s707 = scalar_lea.vmem %s5, %s706
      $region36: #{unet_controlnet_forward.2} parent=15 // pred_fallthru
        _
      // Predicated region
      $region37: #{unet_controlnet_forward.2} parent=15 // pred_check
        %p708 = pneg %p202
      $region38: #{unet_controlnet_forward.2} parent=15 // pred_check_branch
        %710 = sbr.rel (%p708) target = $region40
      $region39: #{unet_controlnet_forward.2} parent=15 // pred_region
        %p711 = scmp.lt.s32.totalorder %s46, 1
        %s712 = scalar_select %p711, %s46, 1
        %s713 = smul.addr %s712, 2
        %s714 = scalar_lea.vmem %s6, %s713
      $region40: #{unet_controlnet_forward.2} parent=15 // pred_fallthru
        _
      // Predicated region
      $region41: #{unet_controlnet_forward.2} parent=15 // pred_check
        %p715 = pneg %p228
      $region42: #{unet_controlnet_forward.2} parent=15 // pred_check_branch
        %717 = sbr.rel (%p715) target = $region44
      $region43: #{unet_controlnet_forward.2} parent=15 // pred_region
        %p718 = scmp.lt.s32.totalorder %s46, 1
        %s719 = scalar_select %p718, %s46, 1
        %s720 = scalar_lea.vmem %s7, %s719
      $region44: #{unet_controlnet_forward.2} parent=15 // pred_fallthru
        _
      // Predicated region
      $region45: #{unet_controlnet_forward.2} parent=15 // pred_check
        %p721 = pneg %p254
      $region46: #{unet_controlnet_forward.2} parent=15 // pred_check_branch
        %723 = sbr.rel (%p721) target = $region48
      $region47: #{unet_controlnet_forward.2} parent=15 // pred_region
        %p724 = scmp.lt.s32.totalorder %s46, 1
        %s725 = scalar_select %p724, %s46, 1
        %s726 = smul.addr %s725, 16
        %s727 = smul.addr %s726, 4
        %s728 = scalar_lea.vmem %s8, %s727
      $region48: #{unet_controlnet_forward.2} parent=15 // pred_fallthru
        _
      // Predicated region
      $region49: #{unet_controlnet_forward.2} parent=15 // pred_check
        %p729 = pneg %p280
      $region50: #{unet_controlnet_forward.2} parent=15 // pred_check_branch
        %731 = sbr.rel (%p729) target = $region52
      $region51: #{unet_controlnet_forward.2} parent=15 // pred_region
        %p732 = scmp.lt.s32.totalorder %s46, 1
        %s733 = scalar_select %p732, %s46, 1
        %s734 = smul.addr %s733, 4
        %s735 = smul.addr %s734, 4
        %s736 = scalar_lea.vmem %s9, %s735
      $region52: #{unet_controlnet_forward.2} parent=15 // pred_fallthru
        _
      // Predicated region
      $region53: #{unet_controlnet_forward.2} parent=15 // pred_check
        %p737 = pneg %p306
      $region54: #{unet_controlnet_forward.2} parent=15 // pred_check_branch
        %739 = sbr.rel (%p737) target = $region56
      $region55: #{unet_controlnet_forward.2} parent=15 // pred_region
        %p740 = scmp.lt.s32.totalorder %s46, 1
        %s741 = scalar_select %p740, %s46, 1
        %s742 = scalar_lea.vmem %s10, %s741
      $region56: #{unet_controlnet_forward.2} parent=15 // pred_fallthru
        _
      // Predicated region
      $region57: #{unet_controlnet_forward.2} parent=15 // pred_check
        %p743 = pneg %p332
      $region58: #{unet_controlnet_forward.2} parent=15 // pred_check_branch
        %745 = sbr.rel (%p743) target = $region60
      $region59: #{unet_controlnet_forward.2} parent=15 // pred_region
        %p746 = scmp.lt.s32.totalorder %s46, 1
        %s747 = scalar_select %p746, %s46, 1
        %s748 = smul.addr %s747, 16
        %s749 = smul.addr %s748, 4
        %s750 = scalar_lea.vmem %s11, %s749
      $region60: #{unet_controlnet_forward.2} parent=15 // pred_fallthru
        _
      // Predicated region
      $region61: #{unet_controlnet_forward.2} parent=15 // pred_check
        %p751 = pneg %p358
      $region62: #{unet_controlnet_forward.2} parent=15 // pred_check_branch
        %753 = sbr.rel (%p751) target = $region64
      $region63: #{unet_controlnet_forward.2} parent=15 // pred_region
        %p754 = scmp.lt.s32.totalorder %s46, 1
        %s755 = scalar_select %p754, %s46, 1
        %s756 = scalar_lea.vmem %s12, %s755
      $region64: #{unet_controlnet_forward.2} parent=15 // pred_fallthru
        _
      // Predicated region
      $region65: #{unet_controlnet_forward.2} parent=15 // pred_check
        %p757 = pneg %p384
      $region66: #{unet_controlnet_forward.2} parent=15 // pred_check_branch
        %759 = sbr.rel (%p757) target = $region68
      $region67: #{unet_controlnet_forward.2} parent=15 // pred_region
        %p760 = scmp.lt.s32.totalorder %s46, 1
        %s761 = scalar_select %p760, %s46, 1
        %s762 = smul.addr %s761, 16
        %s763 = smul.addr %s762, 4
        %s764 = scalar_lea.vmem %s13, %s763
      $region68: #{unet_controlnet_forward.2} parent=15 // pred_fallthru
        _
      // Predicated region
      $region69: #{unet_controlnet_forward.2} parent=15 // pred_check
        %p765 = pneg %p410
      $region70: #{unet_controlnet_forward.2} parent=15 // pred_check_branch
        %767 = sbr.rel (%p765) target = $region72
      $region71: #{unet_controlnet_forward.2} parent=15 // pred_region
        %p768 = scmp.lt.s32.totalorder %s46, 1
        %s769 = scalar_select %p768, %s46, 1
        %s770 = scalar_lea.vmem %s14, %s769
      $region72: #{unet_controlnet_forward.2} parent=15 // pred_fallthru
        _
      // Predicated region
      $region73: #{unet_controlnet_forward.2} parent=15 // pred_check
        %p771 = pneg %p436
      $region74: #{unet_controlnet_forward.2} parent=15 // pred_check_branch
        %773 = sbr.rel (%p771) target = $region76
      $region75: #{unet_controlnet_forward.2} parent=15 // pred_region
        %p774 = scmp.lt.s32.totalorder %s46, 1
        %s775 = scalar_select %p774, %s46, 1
        %s776 = smul.addr %s775, 16
        %s777 = smul.addr %s776, 4
        %s778 = scalar_lea.vmem %s15, %s777
      $region76: #{unet_controlnet_forward.2} parent=15 // pred_fallthru
        _
      // Predicated region
      $region77: #{unet_controlnet_forward.2} parent=15 // pred_check
        %p779 = pneg %p462
      $region78: #{unet_controlnet_forward.2} parent=15 // pred_check_branch
        %781 = sbr.rel (%p779) target = $region80
      $region79: #{unet_controlnet_forward.2} parent=15 // pred_region
        %p782 = scmp.lt.s32.totalorder %s46, 1
        %s783 = scalar_select %p782, %s46, 1
        %s784 = scalar_lea.vmem %s16, %s783
      $region80: #{unet_controlnet_forward.2} parent=15 // pred_fallthru
        _
      // Predicated region
      $region81: #{unet_controlnet_forward.2} parent=15 // pred_check
        %p785 = pneg %p488
      $region82: #{unet_controlnet_forward.2} parent=15 // pred_check_branch
        %787 = sbr.rel (%p785) target = $region84
      $region83: #{unet_controlnet_forward.2} parent=15 // pred_region
        %p788 = scmp.lt.s32.totalorder %s46, 1
        %s789 = scalar_select %p788, %s46, 1
        %s790 = smul.addr %s789, 16
        %s791 = smul.addr %s790, 4
        %s792 = scalar_lea.vmem %s17, %s791
      $region84: #{unet_controlnet_forward.2} parent=15 // pred_fallthru
        _
      // Predicated region
      $region85: #{unet_controlnet_forward.2} parent=15 // pred_check
        %p793 = pneg %p514
      $region86: #{unet_controlnet_forward.2} parent=15 // pred_check_branch
        %795 = sbr.rel (%p793) target = $region88
      $region87: #{unet_controlnet_forward.2} parent=15 // pred_region
        %p796 = scmp.lt.s32.totalorder %s46, 1
        %s797 = scalar_select %p796, %s46, 1
        %s798 = scalar_lea.vmem %s18, %s797
      $region88: #{unet_controlnet_forward.2} parent=15 // pred_fallthru
        _
      // Predicated region
      $region89: #{unet_controlnet_forward.2} parent=15 // pred_check
        %p799 = pneg %p540
      $region90: #{unet_controlnet_forward.2} parent=15 // pred_check_branch
        %801 = sbr.rel (%p799) target = $region92
      $region91: #{unet_controlnet_forward.2} parent=15 // pred_region
        %p802 = scmp.lt.s32.totalorder %s46, 1
        %s803 = scalar_select %p802, %s46, 1
        %s804 = smul.addr %s803, 16
        %s805 = smul.addr %s804, 4
        %s806 = scalar_lea.vmem %s19, %s805
      $region92: #{unet_controlnet_forward.2} parent=15 // pred_fallthru
        _
      // Predicated region
      $region93: #{unet_controlnet_forward.2} parent=15 // pred_check
        %p807 = pneg %p566
      $region94: #{unet_controlnet_forward.2} parent=15 // pred_check_branch
        %809 = sbr.rel (%p807) target = $region96
      $region95: #{unet_controlnet_forward.2} parent=15 // pred_region
        %p810 = scmp.lt.s32.totalorder %s46, 1
        %s811 = scalar_select %p810, %s46, 1
        %s812 = scalar_lea.vmem %s20, %s811
      $region96: #{unet_controlnet_forward.2} parent=15 // pred_fallthru
        _
    $region16: #{unet_controlnet_forward.2} parent=5 // pred_fallthru
      _
    %p813 = scmp.le.s32.totalorder 1, %s38
    %p814 = scmp.lt.s32.totalorder %s38, 5
    %p815 = pnand %p813, %p814
    %p816 = pneg %p815
    // Predicated region
    $region97: #{unet_controlnet_forward.2} parent=5 // pred_check
      _
    $region98: #{unet_controlnet_forward.2} parent=5 // pred_check_branch
      %818 = sbr.rel (%p815) target = $region100
    $region99: #{unet_controlnet_forward.2} parent=5 // pred_region
      %s819 = ssub.s32 %s38, 1
      %p820 = scmp.lt.s32.totalorder %s47, 1
      %s821 = scalar_select %p820, %s47, 1
      %s822 = smul.addr %s821, 32
      %s823 = smul.addr %s822, 4
      %s824 = scalar_lea.vmem %s1, %s823
      %p825 = pneg %p76
      %p826 = pneg %p73
      %p827 = scmp.lt.s32.totalorder %s48, 1
      %s828 = scalar_select %p827, %s48, 1
      %p829 = scmp.lt.s32.totalorder %s47, 1
      %s830 = scalar_select %p829, %s47, 1
      %s831 = smul.addr %s830, 32
      %s832 = smul.addr %s828, 64
      %s833 = sadd.s32 %s831, %s832
      %s834 = smul.addr %s833, 4
      %s835 = scalar_lea.vmem %s2, %s834
      %p836 = pneg %p104
      %p837 = pneg %p101
      %p838 = scmp.lt.s32.totalorder %s47, 1
      %s839 = scalar_select %p838, %s47, 1
      %s840 = scalar_lea.vmem %s3, %s839
      %p841 = pneg %p130
      %p842 = pneg %p127
      %p843 = scmp.lt.s32.totalorder %s47, 1
      %s844 = scalar_select %p843, %s47, 1
      %s845 = scalar_lea.vmem %s4, %s844
      %p846 = pneg %p156
      %p847 = pneg %p153
      %p848 = scmp.lt.s32.totalorder %s48, 1
      %s849 = scalar_select %p848, %s48, 1
      %s850 = smul.addr %s849, 2
      %s851 = scalar_lea.vmem %s5, %s850
      %p852 = pneg %p182
      %p853 = pneg %p179
      %p854 = scmp.lt.s32.totalorder %s48, 1
      %s855 = scalar_select %p854, %s48, 1
      %s856 = smul.addr %s855, 2
      %s857 = scalar_lea.vmem %s6, %s856
      %p858 = pneg %p208
      %p859 = pneg %p205
      %p860 = scmp.lt.s32.totalorder %s48, 1
      %s861 = scalar_select %p860, %s48, 1
      %s862 = scalar_lea.vmem %s7, %s861
      %p863 = pneg %p234
      %p864 = pneg %p231
      %p865 = scmp.lt.s32.totalorder %s48, 1
      %s866 = scalar_select %p865, %s48, 1
      %s867 = smul.addr %s866, 16
      %s868 = smul.addr %s867, 4
      %s869 = scalar_lea.vmem %s8, %s868
      %p870 = pneg %p260
      %p871 = pneg %p257
      %p872 = scmp.lt.s32.totalorder %s48, 1
      %s873 = scalar_select %p872, %s48, 1
      %s874 = smul.addr %s873, 4
      %s875 = smul.addr %s874, 4
      %s876 = scalar_lea.vmem %s9, %s875
      %p877 = pneg %p286
      %p878 = pneg %p283
      %p879 = scmp.lt.s32.totalorder %s48, 1
      %s880 = scalar_select %p879, %s48, 1
      %s881 = scalar_lea.vmem %s10, %s880
      %p882 = pneg %p312
      %p883 = pneg %p309
      %p884 = scmp.lt.s32.totalorder %s48, 1
      %s885 = scalar_select %p884, %s48, 1
      %s886 = smul.addr %s885, 16
      %s887 = smul.addr %s886, 4
      %s888 = scalar_lea.vmem %s11, %s887
      %p889 = pneg %p338
      %p890 = pneg %p335
      %p891 = scmp.lt.s32.totalorder %s48, 1
      %s892 = scalar_select %p891, %s48, 1
      %s893 = scalar_lea.vmem %s12, %s892
      %p894 = pneg %p364
      %p895 = pneg %p361
      %p896 = scmp.lt.s32.totalorder %s48, 1
      %s897 = scalar_select %p896, %s48, 1
      %s898 = smul.addr %s897, 16
      %s899 = smul.addr %s898, 4
      %s900 = scalar_lea.vmem %s13, %s899
      %p901 = pneg %p390
      %p902 = pneg %p387
      %p903 = scmp.lt.s32.totalorder %s48, 1
      %s904 = scalar_select %p903, %s48, 1
      %s905 = scalar_lea.vmem %s14, %s904
      %p906 = pneg %p416
      %p907 = pneg %p413
      %p908 = scmp.lt.s32.totalorder %s48, 1
      %s909 = scalar_select %p908, %s48, 1
      %s910 = smul.addr %s909, 16
      %s911 = smul.addr %s910, 4
      %s912 = scalar_lea.vmem %s15, %s911
      %p913 = pneg %p442
      %p914 = pneg %p439
      %p915 = scmp.lt.s32.totalorder %s48, 1
      %s916 = scalar_select %p915, %s48, 1
      %s917 = scalar_lea.vmem %s16, %s916
      %p918 = pneg %p468
      %p919 = pneg %p465
      %p920 = scmp.lt.s32.totalorder %s48, 1
      %s921 = scalar_select %p920, %s48, 1
      %s922 = smul.addr %s921, 16
      %s923 = smul.addr %s922, 4
      %s924 = scalar_lea.vmem %s17, %s923
      %p925 = pneg %p494
      %p926 = pneg %p491
      %p927 = scmp.lt.s32.totalorder %s48, 1
      %s928 = scalar_select %p927, %s48, 1
      %s929 = scalar_lea.vmem %s18, %s928
      %p930 = pneg %p520
      %p931 = pneg %p517
      %p932 = scmp.lt.s32.totalorder %s48, 1
      %s933 = scalar_select %p932, %s48, 1
      %s934 = smul.addr %s933, 16
      %s935 = smul.addr %s934, 4
      %s936 = scalar_lea.vmem %s19, %s935
      %p937 = pneg %p546
      %p938 = pneg %p543
      %p939 = scmp.lt.s32.totalorder %s48, 1
      %s940 = scalar_select %p939, %s48, 1
      %s941 = scalar_lea.vmem %s20, %s940
      %p942 = pneg %p572
      %p943 = pneg %p569
      %p944 = pneg %p598
      %p945 = pneg %p595
      %p946 = scmp.lt.s32.totalorder %s47, 1
      %s947 = scalar_select %p946, %s47, 1
      %s948 = smul.addr %s947, 32
      %s949 = smul.addr %s948, 8
      %s950 = scalar_lea.vmem %s21, %s949
      %p951 = pneg %p624
      %p952 = pneg %p621
      %p953 = scmp.lt.s32.totalorder %s47, 1
      %s954 = scalar_select %p953, %s47, 1
      %s955 = smul.addr %s954, 8
      %s956 = smul.addr %s955, 8
      %s957 = scalar_lea.vmem %s22, %s956
      %p958 = pneg %p650
      %p959 = pneg %p647
      %p960 = scmp.lt.s32.totalorder %s47, 1
      %s961 = scalar_select %p960, %s47, 1
      %s962 = smul.addr %s961, 2
      %s963 = smul.addr %s962, 8
      %s964 = scalar_lea.vmem %s23, %s963
      %p965 = scmp.lt.s32.totalorder %s47, 1
      %s966 = scalar_select %p965, %s47, 1
      %s967 = smul.addr %s966, 32
      %s968 = smul.addr %s967, 4
      %s969 = scalar_lea.vmem %s1, %s968
      %p970 = scmp.lt.s32.totalorder %s48, 1
      %s971 = scalar_select %p970, %s48, 1
      %p972 = scmp.lt.s32.totalorder %s47, 1
      %s973 = scalar_select %p972, %s47, 1
      %s974 = smul.addr %s973, 32
      %s975 = smul.addr %s971, 64
      %s976 = sadd.s32 %s974, %s975
      %s977 = smul.addr %s976, 4
      %s978 = scalar_lea.vmem %s2, %s977
      %p979 = scmp.lt.s32.totalorder %s47, 1
      %s980 = scalar_select %p979, %s47, 1
      %s981 = scalar_lea.vmem %s3, %s980
      %p982 = scmp.lt.s32.totalorder %s47, 1
      %s983 = scalar_select %p982, %s47, 1
      %s984 = scalar_lea.vmem %s4, %s983
      %p985 = scmp.lt.s32.totalorder %s48, 1
      %s986 = scalar_select %p985, %s48, 1
      %s987 = smul.addr %s986, 2
      %s988 = scalar_lea.vmem %s5, %s987
      %p989 = scmp.lt.s32.totalorder %s48, 1
      %s990 = scalar_select %p989, %s48, 1
      %s991 = smul.addr %s990, 2
      %s992 = scalar_lea.vmem %s6, %s991
      %p993 = scmp.lt.s32.totalorder %s48, 1
      %s994 = scalar_select %p993, %s48, 1
      %s995 = scalar_lea.vmem %s7, %s994
      %p996 = scmp.lt.s32.totalorder %s48, 1
      %s997 = scalar_select %p996, %s48, 1
      %s998 = smul.addr %s997, 16
      %s999 = smul.addr %s998, 4
      %s1000 = scalar_lea.vmem %s8, %s999
      %p1001 = scmp.lt.s32.totalorder %s48, 1
      %s1002 = scalar_select %p1001, %s48, 1
      %s1003 = smul.addr %s1002, 4
      %s1004 = smul.addr %s1003, 4
      %s1005 = scalar_lea.vmem %s9, %s1004
      %p1006 = scmp.lt.s32.totalorder %s48, 1
      %s1007 = scalar_select %p1006, %s48, 1
      %s1008 = scalar_lea.vmem %s10, %s1007
      %p1009 = scmp.lt.s32.totalorder %s48, 1
      %s1010 = scalar_select %p1009, %s48, 1
      %s1011 = smul.addr %s1010, 16
      %s1012 = smul.addr %s1011, 4
      %s1013 = scalar_lea.vmem %s11, %s1012
      %p1014 = scmp.lt.s32.totalorder %s48, 1
      %s1015 = scalar_select %p1014, %s48, 1
      %s1016 = scalar_lea.vmem %s12, %s1015
      %p1017 = scmp.lt.s32.totalorder %s48, 1
      %s1018 = scalar_select %p1017, %s48, 1
      %s1019 = smul.addr %s1018, 16
      %s1020 = smul.addr %s1019, 4
      %s1021 = scalar_lea.vmem %s13, %s1020
      %p1022 = scmp.lt.s32.totalorder %s48, 1
      %s1023 = scalar_select %p1022, %s48, 1
      %s1024 = scalar_lea.vmem %s14, %s1023
      %p1025 = scmp.lt.s32.totalorder %s48, 1
      %s1026 = scalar_select %p1025, %s48, 1
      %s1027 = smul.addr %s1026, 16
      %s1028 = smul.addr %s1027, 4
      %s1029 = scalar_lea.vmem %s15, %s1028
      %p1030 = scmp.lt.s32.totalorder %s48, 1
      %s1031 = scalar_select %p1030, %s48, 1
      %s1032 = scalar_lea.vmem %s16, %s1031
      %p1033 = scmp.lt.s32.totalorder %s48, 1
      %s1034 = scalar_select %p1033, %s48, 1
      %s1035 = smul.addr %s1034, 16
      %s1036 = smul.addr %s1035, 4
      %s1037 = scalar_lea.vmem %s17, %s1036
      %p1038 = scmp.lt.s32.totalorder %s48, 1
      %s1039 = scalar_select %p1038, %s48, 1
      %s1040 = scalar_lea.vmem %s18, %s1039
      %p1041 = scmp.lt.s32.totalorder %s48, 1
      %s1042 = scalar_select %p1041, %s48, 1
      %s1043 = smul.addr %s1042, 16
      %s1044 = smul.addr %s1043, 4
      %s1045 = scalar_lea.vmem %s19, %s1044
      %p1046 = scmp.lt.s32.totalorder %s48, 1
      %s1047 = scalar_select %p1046, %s48, 1
      %s1048 = scalar_lea.vmem %s20, %s1047
      %p1049 = scmp.lt.s32.totalorder %s47, 1
      %s1050 = scalar_select %p1049, %s47, 1
      %s1051 = smul.addr %s1050, 32
      %s1052 = smul.addr %s1051, 8
      %s1053 = scalar_lea.vmem %s21, %s1052
      %p1054 = scmp.lt.s32.totalorder %s47, 1
      %s1055 = scalar_select %p1054, %s47, 1
      %s1056 = smul.addr %s1055, 8
      %s1057 = smul.addr %s1056, 8
      %s1058 = scalar_lea.vmem %s22, %s1057
      %p1059 = scmp.lt.s32.totalorder %s47, 1
      %s1060 = scalar_select %p1059, %s47, 1
      %s1061 = smul.addr %s1060, 2
      %s1062 = smul.addr %s1061, 8
      %s1063 = scalar_lea.vmem %s23, %s1062
      %v1065 = vld [vmem:[%s981] sm:$0x1]
      %v1066 = vld [vmem:[%s1000] sm:$0xf]
      %v1067 = vld [vmem:[%s1000 + $0x4] sm:$0xf]
      %v1068 = vld [vmem:[%s1000 + $0x8] sm:$0xf]
      %v1069 = vld [vmem:[%s1000 + $0xc] sm:$0xf]
      %v1070 = vld [vmem:[%s1000 + $0x10] sm:$0xf]
      %v1071 = vld [vmem:[%s1000 + $0x14] sm:$0xf]
      %v1072 = vld [vmem:[%s1000 + $0x18] sm:$0xf]
      %v1073 = vld [vmem:[%s1000 + $0x1c] sm:$0xf]
      %v1074 = vld [vmem:[%s1000 + $0x20] sm:$0xf]
      %v1075 = vld [vmem:[%s1000 + $0x24] sm:$0xf]
      %v1076 = vld [vmem:[%s1000 + $0x28] sm:$0xf]
      %v1077 = vld [vmem:[%s1000 + $0x2c] sm:$0xf]
      %v1078 = vld [vmem:[%s1000 + $0x30] sm:$0xf]
      %v1079 = vld [vmem:[%s1000 + $0x34] sm:$0xf]
      %v1080 = vld [vmem:[%s1000 + $0x38] sm:$0xf]
      %v1081 = vld [vmem:[%s1000 + $0x3c] sm:$0xf]
      %v1082 = vld [vmem:[%s984] sm:$0x1]
      %v1083 = vld [vmem:[%s1005] sm:$0xf]
      %v1084 = vld [vmem:[%s1005 + $0x4] sm:$0xf]
      %v1085 = vld [vmem:[%s1005 + $0x8] sm:$0xf]
      %v1086 = vld [vmem:[%s1005 + $0xc] sm:$0xf]
      %v1091 = vunpack.c.l.b16 %v1083
      %v1092 = vunpack.c.l.b16 %v1084
      %v1093 = vunpack.c.l.b16 %v1085
      %v1094 = vunpack.c.l.b16 %v1086
      %v1095 = vpack.c.b16 %v1092, %v1091
      %v1096 = vpack.c.b16 %v1094, %v1093
      %vm1099 = vcmask 261120
      %v1101 = vsel %vm1099, %v1082, 0
      %1103 = vmatpush.bf16.msra.mxu0 0
      %1104 = vmatpush.bf16.msra.mxu0 0
      %1105 = vmatpush.bf16.msra.mxu0 0
      %1106 = vmatpush.bf16.msra.mxu0 0
      %1107 = vmatpush.bf16.msra.mxu0 0
      %1108 = vmatpush.bf16.msra.mxu0 0
      %1109 = vmatpush.bf16.msra.mxu0 %v1096
      %1110 = vmatpush.bf16.msra.mxu0 %v1095
      %1111 = vmatmul.bf16.gmra.mxu0 %v1101
      %v1112 = vpop.f32.mrf.mxu0
      %v1113 = vadd.f32 0.0, %v1112
      %v1114 = vpop.f32.mrf.mxu0
      %1115 = vdwg.mxu0
      %v1132 = vunpack.c.l.b16 %v1066
      %v1133 = vunpack.c.l.b16 %v1067
      %v1134 = vunpack.c.l.b16 %v1068
      %v1135 = vunpack.c.l.b16 %v1069
      %v1136 = vunpack.c.l.b16 %v1070
      %v1137 = vunpack.c.l.b16 %v1071
      %v1138 = vunpack.c.l.b16 %v1072
      %v1139 = vunpack.c.l.b16 %v1073
      %v1140 = vunpack.c.l.b16 %v1074
      %v1141 = vunpack.c.l.b16 %v1075
      %v1142 = vunpack.c.l.b16 %v1076
      %v1143 = vunpack.c.l.b16 %v1077
      %v1144 = vunpack.c.l.b16 %v1078
      %v1145 = vunpack.c.l.b16 %v1079
      %v1146 = vunpack.c.l.b16 %v1080
      %v1147 = vunpack.c.l.b16 %v1081
      %v1148 = vpack.c.b16 %v1133, %v1132
      %v1149 = vpack.c.b16 %v1135, %v1134
      %v1150 = vpack.c.b16 %v1137, %v1136
      %v1151 = vpack.c.b16 %v1139, %v1138
      %v1152 = vpack.c.b16 %v1141, %v1140
      %v1153 = vpack.c.b16 %v1143, %v1142
      %v1154 = vpack.c.b16 %v1145, %v1144
      %v1155 = vpack.c.b16 %v1147, %v1146
      %1164 = vmatpush.bf16.msra.mxu0 %v1155
      %1165 = vmatpush.bf16.msra.mxu0 %v1154
      %1166 = vmatpush.bf16.msra.mxu0 %v1153
      %1167 = vmatpush.bf16.msra.mxu0 %v1152
      %1168 = vmatpush.bf16.msra.mxu0 %v1151
      %1169 = vmatpush.bf16.msra.mxu0 %v1150
      %1170 = vmatpush.bf16.msra.mxu0 %v1149
      %1171 = vmatpush.bf16.msra.mxu0 %v1148
      %1172 = vmatmul.bf16.gmra.mxu0 %v1065
      %v1173 = vpop.f32.mrf.mxu0
      %v1174 = vadd.f32 %v1113, %v1173
      %v1175 = vpop.f32.mrf.mxu0
      %1176 = vdwg.mxu0
      %v1177 = vld [vmem:[%s1008] sm:$0x1]
      %v1178 = vadd.f32 %v1174, %v1177
      %v1179 = vld [vmem:[%s969] sm:$0xf]
      %v1180 = vld [vmem:[%s969 + $0x4] sm:$0xf]
      %v1181 = vld [vmem:[%s969 + $0x8] sm:$0xf]
      %v1182 = vld [vmem:[%s969 + $0xc] sm:$0xf]
      %v1183 = vld [vmem:[%s969 + $0x10] sm:$0xf]
      %v1184 = vld [vmem:[%s969 + $0x14] sm:$0xf]
      %v1185 = vld [vmem:[%s969 + $0x18] sm:$0xf]
      %v1186 = vld [vmem:[%s969 + $0x1c] sm:$0xf]
      %v1187 = vld [vmem:[%s969 + $0x20] sm:$0xf]
      %v1188 = vld [vmem:[%s969 + $0x24] sm:$0xf]
      %v1189 = vld [vmem:[%s969 + $0x28] sm:$0xf]
      %v1190 = vld [vmem:[%s969 + $0x2c] sm:$0xf]
      %v1191 = vld [vmem:[%s969 + $0x30] sm:$0xf]
      %v1192 = vld [vmem:[%s969 + $0x34] sm:$0xf]
      %v1193 = vld [vmem:[%s969 + $0x38] sm:$0xf]
      %v1194 = vld [vmem:[%s969 + $0x3c] sm:$0xf]
      %v1195 = vld [vmem:[%s969 + $0x40] sm:$0xf]
      %v1196 = vld [vmem:[%s969 + $0x44] sm:$0xf]
      %v1197 = vld [vmem:[%s969 + $0x48] sm:$0xf]
      %v1198 = vld [vmem:[%s969 + $0x4c] sm:$0xf]
      %v1199 = vld [vmem:[%s969 + $0x50] sm:$0xf]
      %v1200 = vld [vmem:[%s969 + $0x54] sm:$0xf]
      %v1201 = vld [vmem:[%s969 + $0x58] sm:$0xf]
      %v1202 = vld [vmem:[%s969 + $0x5c] sm:$0xf]
      %v1203 = vld [vmem:[%s969 + $0x60] sm:$0xf]
      %v1204 = vld [vmem:[%s969 + $0x64] sm:$0xf]
      %v1205 = vld [vmem:[%s969 + $0x68] sm:$0xf]
      %v1206 = vld [vmem:[%s969 + $0x6c] sm:$0xf]
      %v1207 = vld [vmem:[%s969 + $0x70] sm:$0xf]
      %v1208 = vld [vmem:[%s969 + $0x74] sm:$0xf]
      %v1209 = vld [vmem:[%s969 + $0x78] sm:$0xf]
      %v1210 = vld [vmem:[%s969 + $0x7c] sm:$0xf]
      %v1211 = vld [vmem:[%s988] sm:$0x3]
      %v1212 = vld [vmem:[%s978] sm:$0xf]
      %v1213 = vld [vmem:[%s978 + $0x4] sm:$0xf]
      %v1214 = vld [vmem:[%s978 + $0x8] sm:$0xf]
      %v1215 = vld [vmem:[%s978 + $0xc] sm:$0xf]
      %v1216 = vld [vmem:[%s978 + $0x10] sm:$0xf]
      %v1217 = vld [vmem:[%s978 + $0x14] sm:$0xf]
      %v1218 = vld [vmem:[%s978 + $0x18] sm:$0xf]
      %v1219 = vld [vmem:[%s978 + $0x1c] sm:$0xf]
      %v1220 = vld [vmem:[%s978 + $0x20] sm:$0xf]
      %v1221 = vld [vmem:[%s978 + $0x24] sm:$0xf]
      %v1222 = vld [vmem:[%s978 + $0x28] sm:$0xf]
      %v1223 = vld [vmem:[%s978 + $0x2c] sm:$0xf]
      %v1224 = vld [vmem:[%s978 + $0x30] sm:$0xf]
      %v1225 = vld [vmem:[%s978 + $0x34] sm:$0xf]
      %v1226 = vld [vmem:[%s978 + $0x38] sm:$0xf]
      %v1227 = vld [vmem:[%s978 + $0x3c] sm:$0xf]
      %v1228 = vld [vmem:[%s978 + $0x40] sm:$0xf]
      %v1229 = vld [vmem:[%s978 + $0x44] sm:$0xf]
      %v1230 = vld [vmem:[%s978 + $0x48] sm:$0xf]
      %v1231 = vld [vmem:[%s978 + $0x4c] sm:$0xf]
      %v1232 = vld [vmem:[%s978 + $0x50] sm:$0xf]
      %v1233 = vld [vmem:[%s978 + $0x54] sm:$0xf]
      %v1234 = vld [vmem:[%s978 + $0x58] sm:$0xf]
      %v1235 = vld [vmem:[%s978 + $0x5c] sm:$0xf]
      %v1236 = vld [vmem:[%s978 + $0x60] sm:$0xf]
      %v1237 = vld [vmem:[%s978 + $0x64] sm:$0xf]
      %v1238 = vld [vmem:[%s978 + $0x68] sm:$0xf]
      %v1239 = vld [vmem:[%s978 + $0x6c] sm:$0xf]
      %v1240 = vld [vmem:[%s978 + $0x70] sm:$0xf]
      %v1241 = vld [vmem:[%s978 + $0x74] sm:$0xf]
      %v1242 = vld [vmem:[%s978 + $0x78] sm:$0xf]
      %v1243 = vld [vmem:[%s978 + $0x7c] sm:$0xf]
      %v1244 = vld [vmem:[%s992] sm:$0x3]
      %v1277 = vunpack.c.l.b16 %v1212
      %v1278 = vunpack.c.l.b16 %v1213
      %v1279 = vunpack.c.l.b16 %v1214
      %v1280 = vunpack.c.l.b16 %v1215
      %v1281 = vunpack.c.l.b16 %v1216
      %v1282 = vunpack.c.l.b16 %v1217
      %v1283 = vunpack.c.l.b16 %v1218
      %v1284 = vunpack.c.l.b16 %v1219
      %v1285 = vunpack.c.l.b16 %v1220
      %v1286 = vunpack.c.l.b16 %v1221
      %v1287 = vunpack.c.l.b16 %v1222
      %v1288 = vunpack.c.l.b16 %v1223
      %v1289 = vunpack.c.l.b16 %v1224
      %v1290 = vunpack.c.l.b16 %v1225
      %v1291 = vunpack.c.l.b16 %v1226
      %v1292 = vunpack.c.l.b16 %v1227
      %v1293 = vunpack.c.l.b16 %v1228
      %v1294 = vunpack.c.l.b16 %v1229
      %v1295 = vunpack.c.l.b16 %v1230
      %v1296 = vunpack.c.l.b16 %v1231
      %v1297 = vunpack.c.l.b16 %v1232
      %v1298 = vunpack.c.l.b16 %v1233
      %v1299 = vunpack.c.l.b16 %v1234
      %v1300 = vunpack.c.l.b16 %v1235
      %v1301 = vunpack.c.l.b16 %v1236
      %v1302 = vunpack.c.l.b16 %v1237
      %v1303 = vunpack.c.l.b16 %v1238
      %v1304 = vunpack.c.l.b16 %v1239
      %v1305 = vunpack.c.l.b16 %v1240
      %v1306 = vunpack.c.l.b16 %v1241
      %v1307 = vunpack.c.l.b16 %v1242
      %v1308 = vunpack.c.l.b16 %v1243
      %v1309 = vpack.c.b16 %v1278, %v1277
      %v1310 = vpack.c.b16 %v1280, %v1279
      %v1311 = vpack.c.b16 %v1282, %v1281
      %v1312 = vpack.c.b16 %v1284, %v1283
      %v1313 = vpack.c.b16 %v1286, %v1285
      %v1314 = vpack.c.b16 %v1288, %v1287
      %v1315 = vpack.c.b16 %v1290, %v1289
      %v1316 = vpack.c.b16 %v1292, %v1291
      %v1317 = vpack.c.b16 %v1294, %v1293
      %v1318 = vpack.c.b16 %v1296, %v1295
      %v1319 = vpack.c.b16 %v1298, %v1297
      %v1320 = vpack.c.b16 %v1300, %v1299
      %v1321 = vpack.c.b16 %v1302, %v1301
      %v1322 = vpack.c.b16 %v1304, %v1303
      %v1323 = vpack.c.b16 %v1306, %v1305
      %v1324 = vpack.c.b16 %v1308, %v1307
      %vm1325 = vcmask 23552
      %v1327 = vsel %vm1325, %v1309, 0
      %v1330 = vsel %vm1325, %v1310, 0
      %v1333 = vsel %vm1325, %v1311, 0
      %v1336 = vsel %vm1325, %v1312, 0
      %v1339 = vsel %vm1325, %v1313, 0
      %v1342 = vsel %vm1325, %v1314, 0
      %v1345 = vsel %vm1325, %v1315, 0
      %v1348 = vsel %vm1325, %v1316, 0
      %v1351 = vsel %vm1325, %v1317, 0
      %v1354 = vsel %vm1325, %v1318, 0
      %v1357 = vsel %vm1325, %v1319, 0
      %v1360 = vsel %vm1325, %v1320, 0
      %v1363 = vsel %vm1325, %v1321, 0
      %v1366 = vsel %vm1325, %v1322, 0
      %v1369 = vsel %vm1325, %v1323, 0
      %v1372 = vsel %vm1325, %v1324, 0
      %vm1374 = vcmask 1040384
      %vm1375 = vcmask 1041408
      %v1376 = vsel %vm1374, 4294967295, 65535
      %v1377 = vsel %vm1375, %v1376, 0
      %v1379 = vand.u32 %v1244, %v1377
      %1381 = vmatpush.bf16.msra.mxu0 0
      %1382 = vmatpush.bf16.msra.mxu0 0
      %1383 = vmatpush.bf16.msra.mxu0 0
      %1384 = vmatpush.bf16.msra.mxu0 0
      %1385 = vmatpush.bf16.msra.mxu0 0
      %1386 = vmatpush.bf16.msra.mxu0 0
      %1387 = vmatpush.bf16.msra.mxu0 0
      %1388 = vmatpush.bf16.msra.mxu0 %v1379
      %1389 = vmatmul.bf16.gmra.mxu0 %v1327
      %v1390 = vpop.f32.mrf.mxu0
      %v1391 = vadd.f32 0.0, %v1390
      %v1392 = vpop.f32.mrf.mxu0
      %v1393 = vadd.f32 0.0, %v1392
      %1394 = vmatmul.bf16.gmra.mxu0 %v1330
      %v1395 = vpop.f32.mrf.mxu0
      %v1396 = vadd.f32 0.0, %v1395
      %v1397 = vpop.f32.mrf.mxu0
      %v1398 = vadd.f32 0.0, %v1397
      %1399 = vmatmul.bf16.gmra.mxu0 %v1333
      %v1400 = vpop.f32.mrf.mxu0
      %v1401 = vadd.f32 0.0, %v1400
      %v1402 = vpop.f32.mrf.mxu0
      %v1403 = vadd.f32 0.0, %v1402
      %1404 = vmatmul.bf16.gmra.mxu0 %v1336
      %v1405 = vpop.f32.mrf.mxu0
      %v1406 = vadd.f32 0.0, %v1405
      %v1407 = vpop.f32.mrf.mxu0
      %v1408 = vadd.f32 0.0, %v1407
      %1409 = vmatmul.bf16.gmra.mxu0 %v1339
      %v1410 = vpop.f32.mrf.mxu0
      %v1411 = vadd.f32 0.0, %v1410
      %v1412 = vpop.f32.mrf.mxu0
      %v1413 = vadd.f32 0.0, %v1412
      %1414 = vmatmul.bf16.gmra.mxu0 %v1342
      %v1415 = vpop.f32.mrf.mxu0
      %v1416 = vadd.f32 0.0, %v1415
      %v1417 = vpop.f32.mrf.mxu0
      %v1418 = vadd.f32 0.0, %v1417
      %1419 = vmatmul.bf16.gmra.mxu0 %v1345
      %v1420 = vpop.f32.mrf.mxu0
      %v1421 = vadd.f32 0.0, %v1420
      %v1422 = vpop.f32.mrf.mxu0
      %v1423 = vadd.f32 0.0, %v1422
      %1424 = vmatmul.bf16.gmra.mxu0 %v1348
      %v1425 = vpop.f32.mrf.mxu0
      %v1426 = vadd.f32 0.0, %v1425
      %v1427 = vpop.f32.mrf.mxu0
      %v1428 = vadd.f32 0.0, %v1427
      %1429 = vmatmul.bf16.gmra.mxu0 %v1351
      %v1430 = vpop.f32.mrf.mxu0
      %v1431 = vadd.f32 0.0, %v1430
      %v1432 = vpop.f32.mrf.mxu0
      %v1433 = vadd.f32 0.0, %v1432
      %1434 = vmatmul.bf16.gmra.mxu0 %v1354
      %v1435 = vpop.f32.mrf.mxu0
      %v1436 = vadd.f32 0.0, %v1435
      %v1437 = vpop.f32.mrf.mxu0
      %v1438 = vadd.f32 0.0, %v1437
      %1439 = vmatmul.bf16.gmra.mxu0 %v1357
      %v1440 = vpop.f32.mrf.mxu0
      %v1441 = vadd.f32 0.0, %v1440
      %v1442 = vpop.f32.mrf.mxu0
      %v1443 = vadd.f32 0.0, %v1442
      %1444 = vmatmul.bf16.gmra.mxu0 %v1360
      %v1445 = vpop.f32.mrf.mxu0
      %v1446 = vadd.f32 0.0, %v1445
      %v1447 = vpop.f32.mrf.mxu0
      %v1448 = vadd.f32 0.0, %v1447
      %1449 = vmatmul.bf16.gmra.mxu0 %v1363
      %v1450 = vpop.f32.mrf.mxu0
      %v1451 = vadd.f32 0.0, %v1450
      %v1452 = vpop.f32.mrf.mxu0
      %v1453 = vadd.f32 0.0, %v1452
      %1454 = vmatmul.bf16.gmra.mxu0 %v1366
      %v1455 = vpop.f32.mrf.mxu0
      %v1456 = vadd.f32 0.0, %v1455
      %v1457 = vpop.f32.mrf.mxu0
      %v1458 = vadd.f32 0.0, %v1457
      %1459 = vmatmul.bf16.gmra.mxu0 %v1369
      %v1460 = vpop.f32.mrf.mxu0
      %v1461 = vadd.f32 0.0, %v1460
      %v1462 = vpop.f32.mrf.mxu0
      %v1463 = vadd.f32 0.0, %v1462
      %1464 = vmatmul.bf16.gmra.mxu0 %v1372
      %v1465 = vpop.f32.mrf.mxu0
      %v1466 = vadd.f32 0.0, %v1465
      %v1467 = vpop.f32.mrf.mxu0
      %v1468 = vadd.f32 0.0, %v1467
      %1469 = vdwg.mxu0
      %v1502 = vunpack.c.l.b16 %v1179
      %v1503 = vunpack.c.l.b16 %v1180
      %v1504 = vunpack.c.l.b16 %v1181
      %v1505 = vunpack.c.l.b16 %v1182
      %v1506 = vunpack.c.l.b16 %v1183
      %v1507 = vunpack.c.l.b16 %v1184
      %v1508 = vunpack.c.l.b16 %v1185
      %v1509 = vunpack.c.l.b16 %v1186
      %v1510 = vunpack.c.l.b16 %v1187
      %v1511 = vunpack.c.l.b16 %v1188
      %v1512 = vunpack.c.l.b16 %v1189
      %v1513 = vunpack.c.l.b16 %v1190
      %v1514 = vunpack.c.l.b16 %v1191
      %v1515 = vunpack.c.l.b16 %v1192
      %v1516 = vunpack.c.l.b16 %v1193
      %v1517 = vunpack.c.l.b16 %v1194
      %v1518 = vunpack.c.l.b16 %v1195
      %v1519 = vunpack.c.l.b16 %v1196
      %v1520 = vunpack.c.l.b16 %v1197
      %v1521 = vunpack.c.l.b16 %v1198
      %v1522 = vunpack.c.l.b16 %v1199
      %v1523 = vunpack.c.l.b16 %v1200
      %v1524 = vunpack.c.l.b16 %v1201
      %v1525 = vunpack.c.l.b16 %v1202
      %v1526 = vunpack.c.l.b16 %v1203
      %v1527 = vunpack.c.l.b16 %v1204
      %v1528 = vunpack.c.l.b16 %v1205
      %v1529 = vunpack.c.l.b16 %v1206
      %v1530 = vunpack.c.l.b16 %v1207
      %v1531 = vunpack.c.l.b16 %v1208
      %v1532 = vunpack.c.l.b16 %v1209
      %v1533 = vunpack.c.l.b16 %v1210
      %v1534 = vpack.c.b16 %v1503, %v1502
      %v1535 = vpack.c.b16 %v1505, %v1504
      %v1536 = vpack.c.b16 %v1507, %v1506
      %v1537 = vpack.c.b16 %v1509, %v1508
      %v1538 = vpack.c.b16 %v1511, %v1510
      %v1539 = vpack.c.b16 %v1513, %v1512
      %v1540 = vpack.c.b16 %v1515, %v1514
      %v1541 = vpack.c.b16 %v1517, %v1516
      %v1542 = vpack.c.b16 %v1519, %v1518
      %v1543 = vpack.c.b16 %v1521, %v1520
      %v1544 = vpack.c.b16 %v1523, %v1522
      %v1545 = vpack.c.b16 %v1525, %v1524
      %v1546 = vpack.c.b16 %v1527, %v1526
      %v1547 = vpack.c.b16 %v1529, %v1528
      %v1548 = vpack.c.b16 %v1531, %v1530
      %v1549 = vpack.c.b16 %v1533, %v1532
      %vm1550 = vcmask 31744
      %v1552 = vsel %vm1550, %v1534, 0
      %v1555 = vsel %vm1550, %v1535, 0
      %v1558 = vsel %vm1550, %v1536, 0
      %v1561 = vsel %vm1550, %v1537, 0
      %v1564 = vsel %vm1550, %v1538, 0
      %v1567 = vsel %vm1550, %v1539, 0
      %v1570 = vsel %vm1550, %v1540, 0
      %v1573 = vsel %vm1550, %v1541, 0
      %v1576 = vsel %vm1550, %v1542, 0
      %v1579 = vsel %vm1550, %v1543, 0
      %v1582 = vsel %vm1550, %v1544, 0
      %v1585 = vsel %vm1550, %v1545, 0
      %v1588 = vsel %vm1550, %v1546, 0
      %v1591 = vsel %vm1550, %v1547, 0
      %v1594 = vsel %vm1550, %v1548, 0
      %v1597 = vsel %vm1550, %v1549, 0
      %v1600 = vsel %vm1375, %v1211, 0
      %1602 = vmatpush.bf16.msra.mxu0 0
      %1603 = vmatpush.bf16.msra.mxu0 0
      %1604 = vmatpush.bf16.msra.mxu0 0
      %1605 = vmatpush.bf16.msra.mxu0 0
      %1606 = vmatpush.bf16.msra.mxu0 0
      %1607 = vmatpush.bf16.msra.mxu0 0
      %1608 = vmatpush.bf16.msra.mxu0 0
      %1609 = vmatpush.bf16.msra.mxu0 %v1600
      %1610 = vmatmul.bf16.gmra.mxu0 %v1552
      %v1611 = vpop.f32.mrf.mxu0
      %v1612 = vadd.f32 %v1391, %v1611
      %v1613 = vpop.f32.mrf.mxu0
      %v1614 = vadd.f32 %v1393, %v1613
      %1615 = vmatmul.bf16.gmra.mxu0 %v1555
      %v1616 = vpop.f32.mrf.mxu0
      %v1617 = vadd.f32 %v1396, %v1616
      %v1618 = vpop.f32.mrf.mxu0
      %v1619 = vadd.f32 %v1398, %v1618
      %1620 = vmatmul.bf16.gmra.mxu0 %v1558
      %v1621 = vpop.f32.mrf.mxu0
      %v1622 = vadd.f32 %v1401, %v1621
      %v1623 = vpop.f32.mrf.mxu0
      %v1624 = vadd.f32 %v1403, %v1623
      %1625 = vmatmul.bf16.gmra.mxu0 %v1561
      %v1626 = vpop.f32.mrf.mxu0
      %v1627 = vadd.f32 %v1406, %v1626
      %v1628 = vpop.f32.mrf.mxu0
      %v1629 = vadd.f32 %v1408, %v1628
      %1630 = vmatmul.bf16.gmra.mxu0 %v1564
      %v1631 = vpop.f32.mrf.mxu0
      %v1632 = vadd.f32 %v1411, %v1631
      %v1633 = vpop.f32.mrf.mxu0
      %v1634 = vadd.f32 %v1413, %v1633
      %1635 = vmatmul.bf16.gmra.mxu0 %v1567
      %v1636 = vpop.f32.mrf.mxu0
      %v1637 = vadd.f32 %v1416, %v1636
      %v1638 = vpop.f32.mrf.mxu0
      %v1639 = vadd.f32 %v1418, %v1638
      %1640 = vmatmul.bf16.gmra.mxu0 %v1570
      %v1641 = vpop.f32.mrf.mxu0
      %v1642 = vadd.f32 %v1421, %v1641
      %v1643 = vpop.f32.mrf.mxu0
      %v1644 = vadd.f32 %v1423, %v1643
      %1645 = vmatmul.bf16.gmra.mxu0 %v1573
      %v1646 = vpop.f32.mrf.mxu0
      %v1647 = vadd.f32 %v1426, %v1646
      %v1648 = vpop.f32.mrf.mxu0
      %v1649 = vadd.f32 %v1428, %v1648
      %1650 = vmatmul.bf16.gmra.mxu0 %v1576
      %v1651 = vpop.f32.mrf.mxu0
      %v1652 = vadd.f32 %v1431, %v1651
      %v1653 = vpop.f32.mrf.mxu0
      %v1654 = vadd.f32 %v1433, %v1653
      %1655 = vmatmul.bf16.gmra.mxu0 %v1579
      %v1656 = vpop.f32.mrf.mxu0
      %v1657 = vadd.f32 %v1436, %v1656
      %v1658 = vpop.f32.mrf.mxu0
      %v1659 = vadd.f32 %v1438, %v1658
      %1660 = vmatmul.bf16.gmra.mxu0 %v1582
      %v1661 = vpop.f32.mrf.mxu0
      %v1662 = vadd.f32 %v1441, %v1661
      %v1663 = vpop.f32.mrf.mxu0
      %v1664 = vadd.f32 %v1443, %v1663
      %1665 = vmatmul.bf16.gmra.mxu0 %v1585
      %v1666 = vpop.f32.mrf.mxu0
      %v1667 = vadd.f32 %v1446, %v1666
      %v1668 = vpop.f32.mrf.mxu0
      %v1669 = vadd.f32 %v1448, %v1668
      %1670 = vmatmul.bf16.gmra.mxu0 %v1588
      %v1671 = vpop.f32.mrf.mxu0
      %v1672 = vadd.f32 %v1451, %v1671
      %v1673 = vpop.f32.mrf.mxu0
      %v1674 = vadd.f32 %v1453, %v1673
      %1675 = vmatmul.bf16.gmra.mxu0 %v1591
      %v1676 = vpop.f32.mrf.mxu0
      %v1677 = vadd.f32 %v1456, %v1676
      %v1678 = vpop.f32.mrf.mxu0
      %v1679 = vadd.f32 %v1458, %v1678
      %1680 = vmatmul.bf16.gmra.mxu0 %v1594
      %v1681 = vpop.f32.mrf.mxu0
      %v1682 = vadd.f32 %v1461, %v1681
      %v1683 = vpop.f32.mrf.mxu0
      %v1684 = vadd.f32 %v1463, %v1683
      %1685 = vmatmul.bf16.gmra.mxu0 %v1597
      %v1686 = vpop.f32.mrf.mxu0
      %v1687 = vadd.f32 %v1466, %v1686
      %v1688 = vpop.f32.mrf.mxu0
      %v1689 = vadd.f32 %v1468, %v1688
      %1690 = vdwg.mxu0
      %v1691 = vld [vmem:[%s995] sm:$0x1]
      %v1693 = vperm.slane %v1691, 0
      %v1695 = vadd.f32 %v1612, %v1693
      %v1696 = vadd.f32 %v1614, %v1693
      %v1697 = vadd.f32 %v1617, %v1693
      %v1698 = vadd.f32 %v1619, %v1693
      %v1699 = vadd.f32 %v1622, %v1693
      %v1700 = vadd.f32 %v1624, %v1693
      %v1701 = vadd.f32 %v1627, %v1693
      %v1702 = vadd.f32 %v1629, %v1693
      %v1703 = vadd.f32 %v1632, %v1693
      %v1704 = vadd.f32 %v1634, %v1693
      %v1705 = vadd.f32 %v1637, %v1693
      %v1706 = vadd.f32 %v1639, %v1693
      %v1707 = vadd.f32 %v1642, %v1693
      %v1708 = vadd.f32 %v1644, %v1693
      %v1709 = vadd.f32 %v1647, %v1693
      %v1710 = vadd.f32 %v1649, %v1693
      %v1711 = vadd.f32 %v1652, %v1693
      %v1712 = vadd.f32 %v1654, %v1693
      %v1713 = vadd.f32 %v1657, %v1693
      %v1714 = vadd.f32 %v1659, %v1693
      %v1715 = vadd.f32 %v1662, %v1693
      %v1716 = vadd.f32 %v1664, %v1693
      %v1717 = vadd.f32 %v1667, %v1693
      %v1718 = vadd.f32 %v1669, %v1693
      %v1719 = vadd.f32 %v1672, %v1693
      %v1720 = vadd.f32 %v1674, %v1693
      %v1721 = vadd.f32 %v1677, %v1693
      %v1722 = vadd.f32 %v1679, %v1693
      %v1723 = vadd.f32 %v1682, %v1693
      %v1724 = vadd.f32 %v1684, %v1693
      %v1725 = vadd.f32 %v1687, %v1693
      %v1726 = vadd.f32 %v1689, %v1693
      %v1727 = vperm.slane %v1178, 0
      %v1728 = vadd.f32 %v1695, %v1727
      %v1729 = vadd.f32 %v1696, %v1727
      %v1730 = vadd.f32 %v1697, %v1727
      %v1731 = vadd.f32 %v1698, %v1727
      %v1732 = vadd.f32 %v1699, %v1727
      %v1733 = vadd.f32 %v1700, %v1727
      %v1734 = vadd.f32 %v1701, %v1727
      %v1735 = vadd.f32 %v1702, %v1727
      %v1736 = vadd.f32 %v1703, %v1727
      %v1737 = vadd.f32 %v1704, %v1727
      %v1738 = vadd.f32 %v1705, %v1727
      %v1739 = vadd.f32 %v1706, %v1727
      %v1740 = vadd.f32 %v1707, %v1727
      %v1741 = vadd.f32 %v1708, %v1727
      %v1742 = vadd.f32 %v1709, %v1727
      %v1743 = vadd.f32 %v1710, %v1727
      %v1744 = vadd.f32 %v1711, %v1727
      %v1745 = vadd.f32 %v1712, %v1727
      %v1746 = vadd.f32 %v1713, %v1727
      %v1747 = vadd.f32 %v1714, %v1727
      %v1748 = vadd.f32 %v1715, %v1727
      %v1749 = vadd.f32 %v1716, %v1727
      %v1750 = vadd.f32 %v1717, %v1727
      %v1751 = vadd.f32 %v1718, %v1727
      %v1752 = vadd.f32 %v1719, %v1727
      %v1753 = vadd.f32 %v1720, %v1727
      %v1754 = vadd.f32 %v1721, %v1727
      %v1755 = vadd.f32 %v1722, %v1727
      %v1756 = vadd.f32 %v1723, %v1727
      %v1757 = vadd.f32 %v1724, %v1727
      %v1758 = vadd.f32 %v1725, %v1727
      %v1759 = vadd.f32 %v1726, %v1727
      %v1760 = vxor.u32 %v1728, 2147483648
      %v1761 = vxor.u32 %v1729, 2147483648
      %v1762 = vxor.u32 %v1730, 2147483648
      %v1763 = vxor.u32 %v1731, 2147483648
      %v1764 = vxor.u32 %v1732, 2147483648
      %v1765 = vxor.u32 %v1733, 2147483648
      %v1766 = vxor.u32 %v1734, 2147483648
      %v1767 = vxor.u32 %v1735, 2147483648
      %v1768 = vxor.u32 %v1736, 2147483648
      %v1769 = vxor.u32 %v1737, 2147483648
      %v1770 = vxor.u32 %v1738, 2147483648
      %v1771 = vxor.u32 %v1739, 2147483648
      %v1772 = vxor.u32 %v1740, 2147483648
      %v1773 = vxor.u32 %v1741, 2147483648
      %v1774 = vxor.u32 %v1742, 2147483648
      %v1775 = vxor.u32 %v1743, 2147483648
      %v1776 = vxor.u32 %v1744, 2147483648
      %v1777 = vxor.u32 %v1745, 2147483648
      %v1778 = vxor.u32 %v1746, 2147483648
      %v1779 = vxor.u32 %v1747, 2147483648
      %v1780 = vxor.u32 %v1748, 2147483648
      %v1781 = vxor.u32 %v1749, 2147483648
      %v1782 = vxor.u32 %v1750, 2147483648
      %v1783 = vxor.u32 %v1751, 2147483648
      %v1784 = vxor.u32 %v1752, 2147483648
      %v1785 = vxor.u32 %v1753, 2147483648
      %v1786 = vxor.u32 %v1754, 2147483648
      %v1787 = vxor.u32 %v1755, 2147483648
      %v1788 = vxor.u32 %v1756, 2147483648
      %v1789 = vxor.u32 %v1757, 2147483648
      %v1790 = vxor.u32 %v1758, 2147483648
      %v1791 = vxor.u32 %v1759, 2147483648
      %v1792 = vmul.f32 %v1760, 1.442695
      %v1793 = vpow.pop %v1792
      %v1794 = vmul.f32 %v1761, 1.442695
      %v1795 = vpow.pop %v1794
      %v1796 = vmul.f32 %v1762, 1.442695
      %v1797 = vpow.pop %v1796
      %v1798 = vmul.f32 %v1763, 1.442695
      %v1799 = vpow.pop %v1798
      %v1800 = vmul.f32 %v1764, 1.442695
      %v1801 = vpow.pop %v1800
      %v1802 = vmul.f32 %v1765, 1.442695
      %v1803 = vpow.pop %v1802
      %v1804 = vmul.f32 %v1766, 1.442695
      %v1805 = vpow.pop %v1804
      %v1806 = vmul.f32 %v1767, 1.442695
      %v1807 = vpow.pop %v1806
      %v1808 = vmul.f32 %v1768, 1.442695
      %v1809 = vpow.pop %v1808
      %v1810 = vmul.f32 %v1769, 1.442695
      %v1811 = vpow.pop %v1810
      %v1812 = vmul.f32 %v1770, 1.442695
      %v1813 = vpow.pop %v1812
      %v1814 = vmul.f32 %v1771, 1.442695
      %v1815 = vpow.pop %v1814
      %v1816 = vmul.f32 %v1772, 1.442695
      %v1817 = vpow.pop %v1816
      %v1818 = vmul.f32 %v1773, 1.442695
      %v1819 = vpow.pop %v1818
      %v1820 = vmul.f32 %v1774, 1.442695
      %v1821 = vpow.pop %v1820
      %v1822 = vmul.f32 %v1775, 1.442695
      %v1823 = vpow.pop %v1822
      %v1824 = vmul.f32 %v1776, 1.442695
      %v1825 = vpow.pop %v1824
      %v1826 = vmul.f32 %v1777, 1.442695
      %v1827 = vpow.pop %v1826
      %v1828 = vmul.f32 %v1778, 1.442695
      %v1829 = vpow.pop %v1828
      %v1830 = vmul.f32 %v1779, 1.442695
      %v1831 = vpow.pop %v1830
      %v1832 = vmul.f32 %v1780, 1.442695
      %v1833 = vpow.pop %v1832
      %v1834 = vmul.f32 %v1781, 1.442695
      %v1835 = vpow.pop %v1834
      %v1836 = vmul.f32 %v1782, 1.442695
      %v1837 = vpow.pop %v1836
      %v1838 = vmul.f32 %v1783, 1.442695
      %v1839 = vpow.pop %v1838
      %v1840 = vmul.f32 %v1784, 1.442695
      %v1841 = vpow.pop %v1840
      %v1842 = vmul.f32 %v1785, 1.442695
      %v1843 = vpow.pop %v1842
      %v1844 = vmul.f32 %v1786, 1.442695
      %v1845 = vpow.pop %v1844
      %v1846 = vmul.f32 %v1787, 1.442695
      %v1847 = vpow.pop %v1846
      %v1848 = vmul.f32 %v1788, 1.442695
      %v1849 = vpow.pop %v1848
      %v1850 = vmul.f32 %v1789, 1.442695
      %v1851 = vpow.pop %v1850
      %v1852 = vmul.f32 %v1790, 1.442695
      %v1853 = vpow.pop %v1852
      %v1854 = vmul.f32 %v1791, 1.442695
      %v1855 = vpow.pop %v1854
      %v1856 = vadd.f32 %v1793, 1.0
      %v1857 = vadd.f32 %v1795, 1.0
      %v1858 = vadd.f32 %v1797, 1.0
      %v1859 = vadd.f32 %v1799, 1.0
      %v1860 = vadd.f32 %v1801, 1.0
      %v1861 = vadd.f32 %v1803, 1.0
      %v1862 = vadd.f32 %v1805, 1.0
      %v1863 = vadd.f32 %v1807, 1.0
      %v1864 = vadd.f32 %v1809, 1.0
      %v1865 = vadd.f32 %v1811, 1.0
      %v1866 = vadd.f32 %v1813, 1.0
      %v1867 = vadd.f32 %v1815, 1.0
      %v1868 = vadd.f32 %v1817, 1.0
      %v1869 = vadd.f32 %v1819, 1.0
      %v1870 = vadd.f32 %v1821, 1.0
      %v1871 = vadd.f32 %v1823, 1.0
      %v1872 = vadd.f32 %v1825, 1.0
      %v1873 = vadd.f32 %v1827, 1.0
      %v1874 = vadd.f32 %v1829, 1.0
      %v1875 = vadd.f32 %v1831, 1.0
      %v1876 = vadd.f32 %v1833, 1.0
      %v1877 = vadd.f32 %v1835, 1.0
      %v1878 = vadd.f32 %v1837, 1.0
      %v1879 = vadd.f32 %v1839, 1.0
      %v1880 = vadd.f32 %v1841, 1.0
      %v1881 = vadd.f32 %v1843, 1.0
      %v1882 = vadd.f32 %v1845, 1.0
      %v1883 = vadd.f32 %v1847, 1.0
      %v1884 = vadd.f32 %v1849, 1.0
      %v1885 = vadd.f32 %v1851, 1.0
      %v1886 = vadd.f32 %v1853, 1.0
      %v1887 = vadd.f32 %v1855, 1.0
      %v1888 = vrcp.pop %v1856
      %v1889 = vmul.f32 %v1856, %v1888
      %v1890 = vsub.f32 1.0, %v1889
      %v1891 = vmul.f32 %v1888, %v1890
      %v1892 = vadd.f32 %v1888, %v1891
      %vm1893 = vweird.f32 %v1856
      %vm1894 = vweird.f32 %v1888
      %vm1895 = vmor %vm1893, %vm1894
      %v1896 = vsel %vm1895, %v1888, %v1892
      %v1897 = vand.u32 2147483647, %v1856
      %vm1898 = vcmp.eq.f32.partialorder %v1897, 8.507059e+37
      %v1899 = vand.u32 %v1856, 2147483648
      %v1900 = vor.u32 1.1754944e-38, %v1899
      %v1901 = vsel %vm1898, %v1900, %v1896
      %v1902 = vmul.f32 1.0, %v1901
      %v1903 = vrcp.pop %v1857
      %v1904 = vmul.f32 %v1857, %v1903
      %v1905 = vsub.f32 1.0, %v1904
      %v1906 = vmul.f32 %v1903, %v1905
      %v1907 = vadd.f32 %v1903, %v1906
      %vm1908 = vweird.f32 %v1857
      %vm1909 = vweird.f32 %v1903
      %vm1910 = vmor %vm1908, %vm1909
      %v1911 = vsel %vm1910, %v1903, %v1907
      %v1912 = vand.u32 2147483647, %v1857
      %vm1913 = vcmp.eq.f32.partialorder %v1912, 8.507059e+37
      %v1914 = vand.u32 %v1857, 2147483648
      %v1915 = vor.u32 1.1754944e-38, %v1914
      %v1916 = vsel %vm1913, %v1915, %v1911
      %v1917 = vmul.f32 1.0, %v1916
      %v1918 = vrcp.pop %v1858
      %v1919 = vmul.f32 %v1858, %v1918
      %v1920 = vsub.f32 1.0, %v1919
      %v1921 = vmul.f32 %v1918, %v1920
      %v1922 = vadd.f32 %v1918, %v1921
      %vm1923 = vweird.f32 %v1858
      %vm1924 = vweird.f32 %v1918
      %vm1925 = vmor %vm1923, %vm1924
      %v1926 = vsel %vm1925, %v1918, %v1922
      %v1927 = vand.u32 2147483647, %v1858
      %vm1928 = vcmp.eq.f32.partialorder %v1927, 8.507059e+37
      %v1929 = vand.u32 %v1858, 2147483648
      %v1930 = vor.u32 1.1754944e-38, %v1929
      %v1931 = vsel %vm1928, %v1930, %v1926
      %v1932 = vmul.f32 1.0, %v1931
      %v1933 = vrcp.pop %v1859
      %v1934 = vmul.f32 %v1859, %v1933
      %v1935 = vsub.f32 1.0, %v1934
      %v1936 = vmul.f32 %v1933, %v1935
      %v1937 = vadd.f32 %v1933, %v1936
      %vm1938 = vweird.f32 %v1859
      %vm1939 = vweird.f32 %v1933
      %vm1940 = vmor %vm1938, %vm1939
      %v1941 = vsel %vm1940, %v1933, %v1937
      %v1942 = vand.u32 2147483647, %v1859
      %vm1943 = vcmp.eq.f32.partialorder %v1942, 8.507059e+37
      %v1944 = vand.u32 %v1859, 2147483648
      %v1945 = vor.u32 1.1754944e-38, %v1944
      %v1946 = vsel %vm1943, %v1945, %v1941
      %v1947 = vmul.f32 1.0, %v1946
      %v1948 = vrcp.pop %v1860
      %v1949 = vmul.f32 %v1860, %v1948
      %v1950 = vsub.f32 1.0, %v1949
      %v1951 = vmul.f32 %v1948, %v1950
      %v1952 = vadd.f32 %v1948, %v1951
      %vm1953 = vweird.f32 %v1860
      %vm1954 = vweird.f32 %v1948
      %vm1955 = vmor %vm1953, %vm1954
      %v1956 = vsel %vm1955, %v1948, %v1952
      %v1957 = vand.u32 2147483647, %v1860
      %vm1958 = vcmp.eq.f32.partialorder %v1957, 8.507059e+37
      %v1959 = vand.u32 %v1860, 2147483648
      %v1960 = vor.u32 1.1754944e-38, %v1959
      %v1961 = vsel %vm1958, %v1960, %v1956
      %v1962 = vmul.f32 1.0, %v1961
      %v1963 = vrcp.pop %v1861
      %v1964 = vmul.f32 %v1861, %v1963
      %v1965 = vsub.f32 1.0, %v1964
      %v1966 = vmul.f32 %v1963, %v1965
      %v1967 = vadd.f32 %v1963, %v1966
      %vm1968 = vweird.f32 %v1861
      %vm1969 = vweird.f32 %v1963
      %vm1970 = vmor %vm1968, %vm1969
      %v1971 = vsel %vm1970, %v1963, %v1967
      %v1972 = vand.u32 2147483647, %v1861
      %vm1973 = vcmp.eq.f32.partialorder %v1972, 8.507059e+37
      %v1974 = vand.u32 %v1861, 2147483648
      %v1975 = vor.u32 1.1754944e-38, %v1974
      %v1976 = vsel %vm1973, %v1975, %v1971
      %v1977 = vmul.f32 1.0, %v1976
      %v1978 = vrcp.pop %v1862
      %v1979 = vmul.f32 %v1862, %v1978
      %v1980 = vsub.f32 1.0, %v1979
      %v1981 = vmul.f32 %v1978, %v1980
      %v1982 = vadd.f32 %v1978, %v1981
      %vm1983 = vweird.f32 %v1862
      %vm1984 = vweird.f32 %v1978
      %vm1985 = vmor %vm1983, %vm1984
      %v1986 = vsel %vm1985, %v1978, %v1982
      %v1987 = vand.u32 2147483647, %v1862
      %vm1988 = vcmp.eq.f32.partialorder %v1987, 8.507059e+37
      %v1989 = vand.u32 %v1862, 2147483648
      %v1990 = vor.u32 1.1754944e-38, %v1989
      %v1991 = vsel %vm1988, %v1990, %v1986
      %v1992 = vmul.f32 1.0, %v1991
      %v1993 = vrcp.pop %v1863
      %v1994 = vmul.f32 %v1863, %v1993
      %v1995 = vsub.f32 1.0, %v1994
      %v1996 = vmul.f32 %v1993, %v1995
      %v1997 = vadd.f32 %v1993, %v1996
      %vm1998 = vweird.f32 %v1863
      %vm1999 = vweird.f32 %v1993
      %vm2000 = vmor %vm1998, %vm1999
      %v2001 = vsel %vm2000, %v1993, %v1997
      %v2002 = vand.u32 2147483647, %v1863
      %vm2003 = vcmp.eq.f32.partialorder %v2002, 8.507059e+37
      %v2004 = vand.u32 %v1863, 2147483648
      %v2005 = vor.u32 1.1754944e-38, %v2004
      %v2006 = vsel %vm2003, %v2005, %v2001
      %v2007 = vmul.f32 1.0, %v2006
      %v2008 = vrcp.pop %v1864
      %v2009 = vmul.f32 %v1864, %v2008
      %v2010 = vsub.f32 1.0, %v2009
      %v2011 = vmul.f32 %v2008, %v2010
      %v2012 = vadd.f32 %v2008, %v2011
      %vm2013 = vweird.f32 %v1864
      %vm2014 = vweird.f32 %v2008
      %vm2015 = vmor %vm2013, %vm2014
      %v2016 = vsel %vm2015, %v2008, %v2012
      %v2017 = vand.u32 2147483647, %v1864
      %vm2018 = vcmp.eq.f32.partialorder %v2017, 8.507059e+37
      %v2019 = vand.u32 %v1864, 2147483648
      %v2020 = vor.u32 1.1754944e-38, %v2019
      %v2021 = vsel %vm2018, %v2020, %v2016
      %v2022 = vmul.f32 1.0, %v2021
      %v2023 = vrcp.pop %v1865
      %v2024 = vmul.f32 %v1865, %v2023
      %v2025 = vsub.f32 1.0, %v2024
      %v2026 = vmul.f32 %v2023, %v2025
      %v2027 = vadd.f32 %v2023, %v2026
      %vm2028 = vweird.f32 %v1865
      %vm2029 = vweird.f32 %v2023
      %vm2030 = vmor %vm2028, %vm2029
      %v2031 = vsel %vm2030, %v2023, %v2027
      %v2032 = vand.u32 2147483647, %v1865
      %vm2033 = vcmp.eq.f32.partialorder %v2032, 8.507059e+37
      %v2034 = vand.u32 %v1865, 2147483648
      %v2035 = vor.u32 1.1754944e-38, %v2034
      %v2036 = vsel %vm2033, %v2035, %v2031
      %v2037 = vmul.f32 1.0, %v2036
      %v2038 = vrcp.pop %v1866
      %v2039 = vmul.f32 %v1866, %v2038
      %v2040 = vsub.f32 1.0, %v2039
      %v2041 = vmul.f32 %v2038, %v2040
      %v2042 = vadd.f32 %v2038, %v2041
      %vm2043 = vweird.f32 %v1866
      %vm2044 = vweird.f32 %v2038
      %vm2045 = vmor %vm2043, %vm2044
      %v2046 = vsel %vm2045, %v2038, %v2042
      %v2047 = vand.u32 2147483647, %v1866
      %vm2048 = vcmp.eq.f32.partialorder %v2047, 8.507059e+37
      %v2049 = vand.u32 %v1866, 2147483648
      %v2050 = vor.u32 1.1754944e-38, %v2049
      %v2051 = vsel %vm2048, %v2050, %v2046
      %v2052 = vmul.f32 1.0, %v2051
      %v2053 = vrcp.pop %v1867
      %v2054 = vmul.f32 %v1867, %v2053
      %v2055 = vsub.f32 1.0, %v2054
      %v2056 = vmul.f32 %v2053, %v2055
      %v2057 = vadd.f32 %v2053, %v2056
      %vm2058 = vweird.f32 %v1867
      %vm2059 = vweird.f32 %v2053
      %vm2060 = vmor %vm2058, %vm2059
      %v2061 = vsel %vm2060, %v2053, %v2057
      %v2062 = vand.u32 2147483647, %v1867
      %vm2063 = vcmp.eq.f32.partialorder %v2062, 8.507059e+37
      %v2064 = vand.u32 %v1867, 2147483648
      %v2065 = vor.u32 1.1754944e-38, %v2064
      %v2066 = vsel %vm2063, %v2065, %v2061
      %v2067 = vmul.f32 1.0, %v2066
      %v2068 = vrcp.pop %v1868
      %v2069 = vmul.f32 %v1868, %v2068
      %v2070 = vsub.f32 1.0, %v2069
      %v2071 = vmul.f32 %v2068, %v2070
      %v2072 = vadd.f32 %v2068, %v2071
      %vm2073 = vweird.f32 %v1868
      %vm2074 = vweird.f32 %v2068
      %vm2075 = vmor %vm2073, %vm2074
      %v2076 = vsel %vm2075, %v2068, %v2072
      %v2077 = vand.u32 2147483647, %v1868
      %vm2078 = vcmp.eq.f32.partialorder %v2077, 8.507059e+37
      %v2079 = vand.u32 %v1868, 2147483648
      %v2080 = vor.u32 1.1754944e-38, %v2079
      %v2081 = vsel %vm2078, %v2080, %v2076
      %v2082 = vmul.f32 1.0, %v2081
      %v2083 = vrcp.pop %v1869
      %v2084 = vmul.f32 %v1869, %v2083
      %v2085 = vsub.f32 1.0, %v2084
      %v2086 = vmul.f32 %v2083, %v2085
      %v2087 = vadd.f32 %v2083, %v2086
      %vm2088 = vweird.f32 %v1869
      %vm2089 = vweird.f32 %v2083
      %vm2090 = vmor %vm2088, %vm2089
      %v2091 = vsel %vm2090, %v2083, %v2087
      %v2092 = vand.u32 2147483647, %v1869
      %vm2093 = vcmp.eq.f32.partialorder %v2092, 8.507059e+37
      %v2094 = vand.u32 %v1869, 2147483648
      %v2095 = vor.u32 1.1754944e-38, %v2094
      %v2096 = vsel %vm2093, %v2095, %v2091
      %v2097 = vmul.f32 1.0, %v2096
      %v2098 = vrcp.pop %v1870
      %v2099 = vmul.f32 %v1870, %v2098
      %v2100 = vsub.f32 1.0, %v2099
      %v2101 = vmul.f32 %v2098, %v2100
      %v2102 = vadd.f32 %v2098, %v2101
      %vm2103 = vweird.f32 %v1870
      %vm2104 = vweird.f32 %v2098
      %vm2105 = vmor %vm2103, %vm2104
      %v2106 = vsel %vm2105, %v2098, %v2102
      %v2107 = vand.u32 2147483647, %v1870
      %vm2108 = vcmp.eq.f32.partialorder %v2107, 8.507059e+37
      %v2109 = vand.u32 %v1870, 2147483648
      %v2110 = vor.u32 1.1754944e-38, %v2109
      %v2111 = vsel %vm2108, %v2110, %v2106
      %v2112 = vmul.f32 1.0, %v2111
      %v2113 = vrcp.pop %v1871
      %v2114 = vmul.f32 %v1871, %v2113
      %v2115 = vsub.f32 1.0, %v2114
      %v2116 = vmul.f32 %v2113, %v2115
      %v2117 = vadd.f32 %v2113, %v2116
      %vm2118 = vweird.f32 %v1871
      %vm2119 = vweird.f32 %v2113
      %vm2120 = vmor %vm2118, %vm2119
      %v2121 = vsel %vm2120, %v2113, %v2117
      %v2122 = vand.u32 2147483647, %v1871
      %vm2123 = vcmp.eq.f32.partialorder %v2122, 8.507059e+37
      %v2124 = vand.u32 %v1871, 2147483648
      %v2125 = vor.u32 1.1754944e-38, %v2124
      %v2126 = vsel %vm2123, %v2125, %v2121
      %v2127 = vmul.f32 1.0, %v2126
      %v2128 = vrcp.pop %v1872
      %v2129 = vmul.f32 %v1872, %v2128
      %v2130 = vsub.f32 1.0, %v2129
      %v2131 = vmul.f32 %v2128, %v2130
      %v2132 = vadd.f32 %v2128, %v2131
      %vm2133 = vweird.f32 %v1872
      %vm2134 = vweird.f32 %v2128
      %vm2135 = vmor %vm2133, %vm2134
      %v2136 = vsel %vm2135, %v2128, %v2132
      %v2137 = vand.u32 2147483647, %v1872
      %vm2138 = vcmp.eq.f32.partialorder %v2137, 8.507059e+37
      %v2139 = vand.u32 %v1872, 2147483648
      %v2140 = vor.u32 1.1754944e-38, %v2139
      %v2141 = vsel %vm2138, %v2140, %v2136
      %v2142 = vmul.f32 1.0, %v2141
      %v2143 = vrcp.pop %v1873
      %v2144 = vmul.f32 %v1873, %v2143
      %v2145 = vsub.f32 1.0, %v2144
      %v2146 = vmul.f32 %v2143, %v2145
      %v2147 = vadd.f32 %v2143, %v2146
      %vm2148 = vweird.f32 %v1873
      %vm2149 = vweird.f32 %v2143
      %vm2150 = vmor %vm2148, %vm2149
      %v2151 = vsel %vm2150, %v2143, %v2147
      %v2152 = vand.u32 2147483647, %v1873
      %vm2153 = vcmp.eq.f32.partialorder %v2152, 8.507059e+37
      %v2154 = vand.u32 %v1873, 2147483648
      %v2155 = vor.u32 1.1754944e-38, %v2154
      %v2156 = vsel %vm2153, %v2155, %v2151
      %v2157 = vmul.f32 1.0, %v2156
      %v2158 = vrcp.pop %v1874
      %v2159 = vmul.f32 %v1874, %v2158
      %v2160 = vsub.f32 1.0, %v2159
      %v2161 = vmul.f32 %v2158, %v2160
      %v2162 = vadd.f32 %v2158, %v2161
      %vm2163 = vweird.f32 %v1874
      %vm2164 = vweird.f32 %v2158
      %vm2165 = vmor %vm2163, %vm2164
      %v2166 = vsel %vm2165, %v2158, %v2162
      %v2167 = vand.u32 2147483647, %v1874
      %vm2168 = vcmp.eq.f32.partialorder %v2167, 8.507059e+37
      %v2169 = vand.u32 %v1874, 2147483648
      %v2170 = vor.u32 1.1754944e-38, %v2169
      %v2171 = vsel %vm2168, %v2170, %v2166
      %v2172 = vmul.f32 1.0, %v2171
      %v2173 = vrcp.pop %v1875
      %v2174 = vmul.f32 %v1875, %v2173
      %v2175 = vsub.f32 1.0, %v2174
      %v2176 = vmul.f32 %v2173, %v2175
      %v2177 = vadd.f32 %v2173, %v2176
      %vm2178 = vweird.f32 %v1875
      %vm2179 = vweird.f32 %v2173
      %vm2180 = vmor %vm2178, %vm2179
      %v2181 = vsel %vm2180, %v2173, %v2177
      %v2182 = vand.u32 2147483647, %v1875
      %vm2183 = vcmp.eq.f32.partialorder %v2182, 8.507059e+37
      %v2184 = vand.u32 %v1875, 2147483648
      %v2185 = vor.u32 1.1754944e-38, %v2184
      %v2186 = vsel %vm2183, %v2185, %v2181
      %v2187 = vmul.f32 1.0, %v2186
      %v2188 = vrcp.pop %v1876
      %v2189 = vmul.f32 %v1876, %v2188
      %v2190 = vsub.f32 1.0, %v2189
      %v2191 = vmul.f32 %v2188, %v2190
      %v2192 = vadd.f32 %v2188, %v2191
      %vm2193 = vweird.f32 %v1876
      %vm2194 = vweird.f32 %v2188
      %vm2195 = vmor %vm2193, %vm2194
      %v2196 = vsel %vm2195, %v2188, %v2192
      %v2197 = vand.u32 2147483647, %v1876
      %vm2198 = vcmp.eq.f32.partialorder %v2197, 8.507059e+37
      %v2199 = vand.u32 %v1876, 2147483648
      %v2200 = vor.u32 1.1754944e-38, %v2199
      %v2201 = vsel %vm2198, %v2200, %v2196
      %v2202 = vmul.f32 1.0, %v2201
      %v2203 = vrcp.pop %v1877
      %v2204 = vmul.f32 %v1877, %v2203
      %v2205 = vsub.f32 1.0, %v2204
      %v2206 = vmul.f32 %v2203, %v2205
      %v2207 = vadd.f32 %v2203, %v2206
      %vm2208 = vweird.f32 %v1877
      %vm2209 = vweird.f32 %v2203
      %vm2210 = vmor %vm2208, %vm2209
      %v2211 = vsel %vm2210, %v2203, %v2207
      %v2212 = vand.u32 2147483647, %v1877
      %vm2213 = vcmp.eq.f32.partialorder %v2212, 8.507059e+37
      %v2214 = vand.u32 %v1877, 2147483648
      %v2215 = vor.u32 1.1754944e-38, %v2214
      %v2216 = vsel %vm2213, %v2215, %v2211
      %v2217 = vmul.f32 1.0, %v2216
      %v2218 = vrcp.pop %v1878
      %v2219 = vmul.f32 %v1878, %v2218
      %v2220 = vsub.f32 1.0, %v2219
      %v2221 = vmul.f32 %v2218, %v2220
      %v2222 = vadd.f32 %v2218, %v2221
      %vm2223 = vweird.f32 %v1878
      %vm2224 = vweird.f32 %v2218
      %vm2225 = vmor %vm2223, %vm2224
      %v2226 = vsel %vm2225, %v2218, %v2222
      %v2227 = vand.u32 2147483647, %v1878
      %vm2228 = vcmp.eq.f32.partialorder %v2227, 8.507059e+37
      %v2229 = vand.u32 %v1878, 2147483648
      %v2230 = vor.u32 1.1754944e-38, %v2229
      %v2231 = vsel %vm2228, %v2230, %v2226
      %v2232 = vmul.f32 1.0, %v2231
      %v2233 = vrcp.pop %v1879
      %v2234 = vmul.f32 %v1879, %v2233
      %v2235 = vsub.f32 1.0, %v2234
      %v2236 = vmul.f32 %v2233, %v2235
      %v2237 = vadd.f32 %v2233, %v2236
      %vm2238 = vweird.f32 %v1879
      %vm2239 = vweird.f32 %v2233
      %vm2240 = vmor %vm2238, %vm2239
      %v2241 = vsel %vm2240, %v2233, %v2237
      %v2242 = vand.u32 2147483647, %v1879
      %vm2243 = vcmp.eq.f32.partialorder %v2242, 8.507059e+37
      %v2244 = vand.u32 %v1879, 2147483648
      %v2245 = vor.u32 1.1754944e-38, %v2244
      %v2246 = vsel %vm2243, %v2245, %v2241
      %v2247 = vmul.f32 1.0, %v2246
      %v2248 = vrcp.pop %v1880
      %v2249 = vmul.f32 %v1880, %v2248
      %v2250 = vsub.f32 1.0, %v2249
      %v2251 = vmul.f32 %v2248, %v2250
      %v2252 = vadd.f32 %v2248, %v2251
      %vm2253 = vweird.f32 %v1880
      %vm2254 = vweird.f32 %v2248
      %vm2255 = vmor %vm2253, %vm2254
      %v2256 = vsel %vm2255, %v2248, %v2252
      %v2257 = vand.u32 2147483647, %v1880
      %vm2258 = vcmp.eq.f32.partialorder %v2257, 8.507059e+37
      %v2259 = vand.u32 %v1880, 2147483648
      %v2260 = vor.u32 1.1754944e-38, %v2259
      %v2261 = vsel %vm2258, %v2260, %v2256
      %v2262 = vmul.f32 1.0, %v2261
      %v2263 = vrcp.pop %v1881
      %v2264 = vmul.f32 %v1881, %v2263
      %v2265 = vsub.f32 1.0, %v2264
      %v2266 = vmul.f32 %v2263, %v2265
      %v2267 = vadd.f32 %v2263, %v2266
      %vm2268 = vweird.f32 %v1881
      %vm2269 = vweird.f32 %v2263
      %vm2270 = vmor %vm2268, %vm2269
      %v2271 = vsel %vm2270, %v2263, %v2267
      %v2272 = vand.u32 2147483647, %v1881
      %vm2273 = vcmp.eq.f32.partialorder %v2272, 8.507059e+37
      %v2274 = vand.u32 %v1881, 2147483648
      %v2275 = vor.u32 1.1754944e-38, %v2274
      %v2276 = vsel %vm2273, %v2275, %v2271
      %v2277 = vmul.f32 1.0, %v2276
      %v2278 = vrcp.pop %v1882
      %v2279 = vmul.f32 %v1882, %v2278
      %v2280 = vsub.f32 1.0, %v2279
      %v2281 = vmul.f32 %v2278, %v2280
      %v2282 = vadd.f32 %v2278, %v2281
      %vm2283 = vweird.f32 %v1882
      %vm2284 = vweird.f32 %v2278
      %vm2285 = vmor %vm2283, %vm2284
      %v2286 = vsel %vm2285, %v2278, %v2282
      %v2287 = vand.u32 2147483647, %v1882
      %vm2288 = vcmp.eq.f32.partialorder %v2287, 8.507059e+37
      %v2289 = vand.u32 %v1882, 2147483648
      %v2290 = vor.u32 1.1754944e-38, %v2289
      %v2291 = vsel %vm2288, %v2290, %v2286
      %v2292 = vmul.f32 1.0, %v2291
      %v2293 = vrcp.pop %v1883
      %v2294 = vmul.f32 %v1883, %v2293
      %v2295 = vsub.f32 1.0, %v2294
      %v2296 = vmul.f32 %v2293, %v2295
      %v2297 = vadd.f32 %v2293, %v2296
      %vm2298 = vweird.f32 %v1883
      %vm2299 = vweird.f32 %v2293
      %vm2300 = vmor %vm2298, %vm2299
      %v2301 = vsel %vm2300, %v2293, %v2297
      %v2302 = vand.u32 2147483647, %v1883
      %vm2303 = vcmp.eq.f32.partialorder %v2302, 8.507059e+37
      %v2304 = vand.u32 %v1883, 2147483648
      %v2305 = vor.u32 1.1754944e-38, %v2304
      %v2306 = vsel %vm2303, %v2305, %v2301
      %v2307 = vmul.f32 1.0, %v2306
      %v2308 = vrcp.pop %v1884
      %v2309 = vmul.f32 %v1884, %v2308
      %v2310 = vsub.f32 1.0, %v2309
      %v2311 = vmul.f32 %v2308, %v2310
      %v2312 = vadd.f32 %v2308, %v2311
      %vm2313 = vweird.f32 %v1884
      %vm2314 = vweird.f32 %v2308
      %vm2315 = vmor %vm2313, %vm2314
      %v2316 = vsel %vm2315, %v2308, %v2312
      %v2317 = vand.u32 2147483647, %v1884
      %vm2318 = vcmp.eq.f32.partialorder %v2317, 8.507059e+37
      %v2319 = vand.u32 %v1884, 2147483648
      %v2320 = vor.u32 1.1754944e-38, %v2319
      %v2321 = vsel %vm2318, %v2320, %v2316
      %v2322 = vmul.f32 1.0, %v2321
      %v2323 = vrcp.pop %v1885
      %v2324 = vmul.f32 %v1885, %v2323
      %v2325 = vsub.f32 1.0, %v2324
      %v2326 = vmul.f32 %v2323, %v2325
      %v2327 = vadd.f32 %v2323, %v2326
      %vm2328 = vweird.f32 %v1885
      %vm2329 = vweird.f32 %v2323
      %vm2330 = vmor %vm2328, %vm2329
      %v2331 = vsel %vm2330, %v2323, %v2327
      %v2332 = vand.u32 2147483647, %v1885
      %vm2333 = vcmp.eq.f32.partialorder %v2332, 8.507059e+37
      %v2334 = vand.u32 %v1885, 2147483648
      %v2335 = vor.u32 1.1754944e-38, %v2334
      %v2336 = vsel %vm2333, %v2335, %v2331
      %v2337 = vmul.f32 1.0, %v2336
      %v2338 = vrcp.pop %v1886
      %v2339 = vmul.f32 %v1886, %v2338
      %v2340 = vsub.f32 1.0, %v2339
      %v2341 = vmul.f32 %v2338, %v2340
      %v2342 = vadd.f32 %v2338, %v2341
      %vm2343 = vweird.f32 %v1886
      %vm2344 = vweird.f32 %v2338
      %vm2345 = vmor %vm2343, %vm2344
      %v2346 = vsel %vm2345, %v2338, %v2342
      %v2347 = vand.u32 2147483647, %v1886
      %vm2348 = vcmp.eq.f32.partialorder %v2347, 8.507059e+37
      %v2349 = vand.u32 %v1886, 2147483648
      %v2350 = vor.u32 1.1754944e-38, %v2349
      %v2351 = vsel %vm2348, %v2350, %v2346
      %v2352 = vmul.f32 1.0, %v2351
      %v2353 = vrcp.pop %v1887
      %v2354 = vmul.f32 %v1887, %v2353
      %v2355 = vsub.f32 1.0, %v2354
      %v2356 = vmul.f32 %v2353, %v2355
      %v2357 = vadd.f32 %v2353, %v2356
      %vm2358 = vweird.f32 %v1887
      %vm2359 = vweird.f32 %v2353
      %vm2360 = vmor %vm2358, %vm2359
      %v2361 = vsel %vm2360, %v2353, %v2357
      %v2362 = vand.u32 2147483647, %v1887
      %vm2363 = vcmp.eq.f32.partialorder %v2362, 8.507059e+37
      %v2364 = vand.u32 %v1887, 2147483648
      %v2365 = vor.u32 1.1754944e-38, %v2364
      %v2366 = vsel %vm2363, %v2365, %v2361
      %v2367 = vmul.f32 1.0, %v2366
      %v2368 = vmul.f32 %v1728, %v1902
      %v2369 = vmul.f32 %v1729, %v1917
      %v2370 = vmul.f32 %v1730, %v1932
      %v2371 = vmul.f32 %v1731, %v1947
      %v2372 = vmul.f32 %v1732, %v1962
      %v2373 = vmul.f32 %v1733, %v1977
      %v2374 = vmul.f32 %v1734, %v1992
      %v2375 = vmul.f32 %v1735, %v2007
      %v2376 = vmul.f32 %v1736, %v2022
      %v2377 = vmul.f32 %v1737, %v2037
      %v2378 = vmul.f32 %v1738, %v2052
      %v2379 = vmul.f32 %v1739, %v2067
      %v2380 = vmul.f32 %v1740, %v2082
      %v2381 = vmul.f32 %v1741, %v2097
      %v2382 = vmul.f32 %v1742, %v2112
      %v2383 = vmul.f32 %v1743, %v2127
      %v2384 = vmul.f32 %v1744, %v2142
      %v2385 = vmul.f32 %v1745, %v2157
      %v2386 = vmul.f32 %v1746, %v2172
      %v2387 = vmul.f32 %v1747, %v2187
      %v2388 = vmul.f32 %v1748, %v2202
      %v2389 = vmul.f32 %v1749, %v2217
      %v2390 = vmul.f32 %v1750, %v2232
      %v2391 = vmul.f32 %v1751, %v2247
      %v2392 = vmul.f32 %v1752, %v2262
      %v2393 = vmul.f32 %v1753, %v2277
      %v2394 = vmul.f32 %v1754, %v2292
      %v2395 = vmul.f32 %v1755, %v2307
      %v2396 = vmul.f32 %v1756, %v2322
      %v2397 = vmul.f32 %v1757, %v2337
      %v2398 = vmul.f32 %v1758, %v2352
      %v2399 = vmul.f32 %v1759, %v2367
      %v2400 = vpack.c.bf16 %v2369, %v2368
      %v2401 = vpack.c.bf16 %v2371, %v2370
      %v2402 = vpack.c.bf16 %v2373, %v2372
      %v2403 = vpack.c.bf16 %v2375, %v2374
      %v2404 = vpack.c.bf16 %v2377, %v2376
      %v2405 = vpack.c.bf16 %v2379, %v2378
      %v2406 = vpack.c.bf16 %v2381, %v2380
      %v2407 = vpack.c.bf16 %v2383, %v2382
      %v2408 = vpack.c.bf16 %v2385, %v2384
      %v2409 = vpack.c.bf16 %v2387, %v2386
      %v2410 = vpack.c.bf16 %v2389, %v2388
      %v2411 = vpack.c.bf16 %v2391, %v2390
      %v2412 = vpack.c.bf16 %v2393, %v2392
      %v2413 = vpack.c.bf16 %v2395, %v2394
      %v2414 = vpack.c.bf16 %v2397, %v2396
      %v2415 = vpack.c.bf16 %v2399, %v2398
      %v2416 = vld [vmem:[%s1013] sm:$0xf]
      %v2417 = vld [vmem:[%s1013 + $0x4] sm:$0xf]
      %v2418 = vld [vmem:[%s1013 + $0x8] sm:$0xf]
      %v2419 = vld [vmem:[%s1013 + $0xc] sm:$0xf]
      %v2420 = vld [vmem:[%s1013 + $0x10] sm:$0xf]
      %v2421 = vld [vmem:[%s1013 + $0x14] sm:$0xf]
      %v2422 = vld [vmem:[%s1013 + $0x18] sm:$0xf]
      %v2423 = vld [vmem:[%s1013 + $0x1c] sm:$0xf]
      %v2424 = vld [vmem:[%s1013 + $0x20] sm:$0xf]
      %v2425 = vld [vmem:[%s1013 + $0x24] sm:$0xf]
      %v2426 = vld [vmem:[%s1013 + $0x28] sm:$0xf]
      %v2427 = vld [vmem:[%s1013 + $0x2c] sm:$0xf]
      %v2428 = vld [vmem:[%s1013 + $0x30] sm:$0xf]
      %v2429 = vld [vmem:[%s1013 + $0x34] sm:$0xf]
      %v2430 = vld [vmem:[%s1013 + $0x38] sm:$0xf]
      %v2431 = vld [vmem:[%s1013 + $0x3c] sm:$0xf]
      %v2432 = vld [vmem:[%s1016] sm:$0x1]
      %v2434 = vperm.slane %v2432, 0
      %v2452 = vunpack.c.l.b16 %v2416
      %v2453 = vunpack.c.l.b16 %v2417
      %v2454 = vunpack.c.l.b16 %v2418
      %v2455 = vunpack.c.l.b16 %v2419
      %v2456 = vunpack.c.l.b16 %v2420
      %v2457 = vunpack.c.l.b16 %v2421
      %v2458 = vunpack.c.l.b16 %v2422
      %v2459 = vunpack.c.l.b16 %v2423
      %v2460 = vunpack.c.l.b16 %v2424
      %v2461 = vunpack.c.l.b16 %v2425
      %v2462 = vunpack.c.l.b16 %v2426
      %v2463 = vunpack.c.l.b16 %v2427
      %v2464 = vunpack.c.l.b16 %v2428
      %v2465 = vunpack.c.l.b16 %v2429
      %v2466 = vunpack.c.l.b16 %v2430
      %v2467 = vunpack.c.l.b16 %v2431
      %v2468 = vpack.c.b16 %v2453, %v2452
      %v2469 = vpack.c.b16 %v2455, %v2454
      %v2470 = vpack.c.b16 %v2457, %v2456
      %v2471 = vpack.c.b16 %v2459, %v2458
      %v2472 = vpack.c.b16 %v2461, %v2460
      %v2473 = vpack.c.b16 %v2463, %v2462
      %v2474 = vpack.c.b16 %v2465, %v2464
      %v2475 = vpack.c.b16 %v2467, %v2466
      %2484 = vmatpush.bf16.msra.mxu0 %v2475
      %2485 = vmatpush.bf16.msra.mxu0 %v2474
      %2486 = vmatpush.bf16.msra.mxu0 %v2473
      %2487 = vmatpush.bf16.msra.mxu0 %v2472
      %2488 = vmatpush.bf16.msra.mxu0 %v2471
      %2489 = vmatpush.bf16.msra.mxu0 %v2470
      %2490 = vmatpush.bf16.msra.mxu0 %v2469
      %2491 = vmatpush.bf16.msra.mxu0 %v2468
      %2492 = vmatmul.bf16.gmra.mxu0 %v2400
      %v2493 = vpop.f32.mrf.mxu0
      %v2494 = vadd.f32 %v2434, %v2493
      %v2495 = vpop.f32.mrf.mxu0
      %v2496 = vadd.f32 %v2434, %v2495
      %2497 = vmatmul.bf16.gmra.mxu0 %v2401
      %v2498 = vpop.f32.mrf.mxu0
      %v2499 = vadd.f32 %v2434, %v2498
      %v2500 = vpop.f32.mrf.mxu0
      %v2501 = vadd.f32 %v2434, %v2500
      %2502 = vmatmul.bf16.gmra.mxu0 %v2402
      %v2503 = vpop.f32.mrf.mxu0
      %v2504 = vadd.f32 %v2434, %v2503
      %v2505 = vpop.f32.mrf.mxu0
      %v2506 = vadd.f32 %v2434, %v2505
      %2507 = vmatmul.bf16.gmra.mxu0 %v2403
      %v2508 = vpop.f32.mrf.mxu0
      %v2509 = vadd.f32 %v2434, %v2508
      %v2510 = vpop.f32.mrf.mxu0
      %v2511 = vadd.f32 %v2434, %v2510
      %2512 = vmatmul.bf16.gmra.mxu0 %v2404
      %v2513 = vpop.f32.mrf.mxu0
      %v2514 = vadd.f32 %v2434, %v2513
      %v2515 = vpop.f32.mrf.mxu0
      %v2516 = vadd.f32 %v2434, %v2515
      %2517 = vmatmul.bf16.gmra.mxu0 %v2405
      %v2518 = vpop.f32.mrf.mxu0
      %v2519 = vadd.f32 %v2434, %v2518
      %v2520 = vpop.f32.mrf.mxu0
      %v2521 = vadd.f32 %v2434, %v2520
      %2522 = vmatmul.bf16.gmra.mxu0 %v2406
      %v2523 = vpop.f32.mrf.mxu0
      %v2524 = vadd.f32 %v2434, %v2523
      %v2525 = vpop.f32.mrf.mxu0
      %v2526 = vadd.f32 %v2434, %v2525
      %2527 = vmatmul.bf16.gmra.mxu0 %v2407
      %v2528 = vpop.f32.mrf.mxu0
      %v2529 = vadd.f32 %v2434, %v2528
      %v2530 = vpop.f32.mrf.mxu0
      %v2531 = vadd.f32 %v2434, %v2530
      %2532 = vmatmul.bf16.gmra.mxu0 %v2408
      %v2533 = vpop.f32.mrf.mxu0
      %v2534 = vadd.f32 %v2434, %v2533
      %v2535 = vpop.f32.mrf.mxu0
      %v2536 = vadd.f32 %v2434, %v2535
      %2537 = vmatmul.bf16.gmra.mxu0 %v2409
      %v2538 = vpop.f32.mrf.mxu0
      %v2539 = vadd.f32 %v2434, %v2538
      %v2540 = vpop.f32.mrf.mxu0
      %v2541 = vadd.f32 %v2434, %v2540
      %2542 = vmatmul.bf16.gmra.mxu0 %v2410
      %v2543 = vpop.f32.mrf.mxu0
      %v2544 = vadd.f32 %v2434, %v2543
      %v2545 = vpop.f32.mrf.mxu0
      %v2546 = vadd.f32 %v2434, %v2545
      %2547 = vmatmul.bf16.gmra.mxu0 %v2411
      %v2548 = vpop.f32.mrf.mxu0
      %v2549 = vadd.f32 %v2434, %v2548
      %v2550 = vpop.f32.mrf.mxu0
      %v2551 = vadd.f32 %v2434, %v2550
      %2552 = vmatmul.bf16.gmra.mxu0 %v2412
      %v2553 = vpop.f32.mrf.mxu0
      %v2554 = vadd.f32 %v2434, %v2553
      %v2555 = vpop.f32.mrf.mxu0
      %v2556 = vadd.f32 %v2434, %v2555
      %2557 = vmatmul.bf16.gmra.mxu0 %v2413
      %v2558 = vpop.f32.mrf.mxu0
      %v2559 = vadd.f32 %v2434, %v2558
      %v2560 = vpop.f32.mrf.mxu0
      %v2561 = vadd.f32 %v2434, %v2560
      %2562 = vmatmul.bf16.gmra.mxu0 %v2414
      %v2563 = vpop.f32.mrf.mxu0
      %v2564 = vadd.f32 %v2434, %v2563
      %v2565 = vpop.f32.mrf.mxu0
      %v2566 = vadd.f32 %v2434, %v2565
      %2567 = vmatmul.bf16.gmra.mxu0 %v2415
      %v2568 = vpop.f32.mrf.mxu0
      %v2569 = vadd.f32 %v2434, %v2568
      %v2570 = vpop.f32.mrf.mxu0
      %v2571 = vadd.f32 %v2434, %v2570
      %2572 = vdwg.mxu0
      %v2573 = vadd.f32 %v2368, %v2376
      %v2574 = vadd.f32 %v2369, %v2377
      %v2575 = vadd.f32 %v2370, %v2378
      %v2576 = vadd.f32 %v2371, %v2379
      %v2577 = vadd.f32 %v2372, %v2380
      %v2578 = vadd.f32 %v2373, %v2381
      %v2579 = vadd.f32 %v2374, %v2382
      %v2580 = vadd.f32 %v2375, %v2383
      %v2581 = vadd.f32 %v2573, %v2384
      %v2582 = vadd.f32 %v2574, %v2385
      %v2583 = vadd.f32 %v2575, %v2386
      %v2584 = vadd.f32 %v2576, %v2387
      %v2585 = vadd.f32 %v2577, %v2388
      %v2586 = vadd.f32 %v2578, %v2389
      %v2587 = vadd.f32 %v2579, %v2390
      %v2588 = vadd.f32 %v2580, %v2391
      %v2589 = vadd.f32 %v2581, %v2392
      %v2590 = vadd.f32 %v2582, %v2393
      %v2591 = vadd.f32 %v2583, %v2394
      %v2592 = vadd.f32 %v2584, %v2395
      %v2593 = vadd.f32 %v2585, %v2396
      %v2594 = vadd.f32 %v2586, %v2397
      %v2595 = vadd.f32 %v2587, %v2398
      %v2596 = vadd.f32 %v2588, %v2399
      %v2597 = vmul.f32 %v2589, 0.25
      %v2598 = vmul.f32 %v2590, 0.25
      %v2599 = vmul.f32 %v2591, 0.25
      %v2600 = vmul.f32 %v2592, 0.25
      %v2601 = vmul.f32 %v2593, 0.25
      %v2602 = vmul.f32 %v2594, 0.25
      %v2603 = vmul.f32 %v2595, 0.25
      %v2604 = vmul.f32 %v2596, 0.25
      %v2605 = vpack.c.bf16 %v2598, %v2597
      %v2606 = vpack.c.bf16 %v2600, %v2599
      %v2607 = vpack.c.bf16 %v2602, %v2601
      %v2608 = vpack.c.bf16 %v2604, %v2603
      %v2609 = vld [vmem:[%s1021] sm:$0xf]
      %v2610 = vld [vmem:[%s1021 + $0x4] sm:$0xf]
      %v2611 = vld [vmem:[%s1021 + $0x8] sm:$0xf]
      %v2612 = vld [vmem:[%s1021 + $0xc] sm:$0xf]
      %v2613 = vld [vmem:[%s1021 + $0x10] sm:$0xf]
      %v2614 = vld [vmem:[%s1021 + $0x14] sm:$0xf]
      %v2615 = vld [vmem:[%s1021 + $0x18] sm:$0xf]
      %v2616 = vld [vmem:[%s1021 + $0x1c] sm:$0xf]
      %v2617 = vld [vmem:[%s1021 + $0x20] sm:$0xf]
      %v2618 = vld [vmem:[%s1021 + $0x24] sm:$0xf]
      %v2619 = vld [vmem:[%s1021 + $0x28] sm:$0xf]
      %v2620 = vld [vmem:[%s1021 + $0x2c] sm:$0xf]
      %v2621 = vld [vmem:[%s1021 + $0x30] sm:$0xf]
      %v2622 = vld [vmem:[%s1021 + $0x34] sm:$0xf]
      %v2623 = vld [vmem:[%s1021 + $0x38] sm:$0xf]
      %v2624 = vld [vmem:[%s1021 + $0x3c] sm:$0xf]
      %v2625 = vld [vmem:[%s1024] sm:$0x1]
      %v2627 = vperm.slane %v2625, 0
      %v2645 = vunpack.c.l.b16 %v2609
      %v2646 = vunpack.c.l.b16 %v2610
      %v2647 = vunpack.c.l.b16 %v2611
      %v2648 = vunpack.c.l.b16 %v2612
      %v2649 = vunpack.c.l.b16 %v2613
      %v2650 = vunpack.c.l.b16 %v2614
      %v2651 = vunpack.c.l.b16 %v2615
      %v2652 = vunpack.c.l.b16 %v2616
      %v2653 = vunpack.c.l.b16 %v2617
      %v2654 = vunpack.c.l.b16 %v2618
      %v2655 = vunpack.c.l.b16 %v2619
      %v2656 = vunpack.c.l.b16 %v2620
      %v2657 = vunpack.c.l.b16 %v2621
      %v2658 = vunpack.c.l.b16 %v2622
      %v2659 = vunpack.c.l.b16 %v2623
      %v2660 = vunpack.c.l.b16 %v2624
      %v2661 = vpack.c.b16 %v2646, %v2645
      %v2662 = vpack.c.b16 %v2648, %v2647
      %v2663 = vpack.c.b16 %v2650, %v2649
      %v2664 = vpack.c.b16 %v2652, %v2651
      %v2665 = vpack.c.b16 %v2654, %v2653
      %v2666 = vpack.c.b16 %v2656, %v2655
      %v2667 = vpack.c.b16 %v2658, %v2657
      %v2668 = vpack.c.b16 %v2660, %v2659
      %2677 = vmatpush.bf16.msra.mxu0 %v2668
      %2678 = vmatpush.bf16.msra.mxu0 %v2667
      %2679 = vmatpush.bf16.msra.mxu0 %v2666
      %2680 = vmatpush.bf16.msra.mxu0 %v2665
      %2681 = vmatpush.bf16.msra.mxu0 %v2664
      %2682 = vmatpush.bf16.msra.mxu0 %v2663
      %2683 = vmatpush.bf16.msra.mxu0 %v2662
      %2684 = vmatpush.bf16.msra.mxu0 %v2661
      %2685 = vmatmul.bf16.gmra.mxu0 %v2605
      %v2686 = vpop.f32.mrf.mxu0
      %v2687 = vadd.f32 %v2627, %v2686
      %v2688 = vpop.f32.mrf.mxu0
      %v2689 = vadd.f32 %v2627, %v2688
      %2690 = vmatmul.bf16.gmra.mxu0 %v2606
      %v2691 = vpop.f32.mrf.mxu0
      %v2692 = vadd.f32 %v2627, %v2691
      %v2693 = vpop.f32.mrf.mxu0
      %v2694 = vadd.f32 %v2627, %v2693
      %2695 = vmatmul.bf16.gmra.mxu0 %v2607
      %v2696 = vpop.f32.mrf.mxu0
      %v2697 = vadd.f32 %v2627, %v2696
      %v2698 = vpop.f32.mrf.mxu0
      %v2699 = vadd.f32 %v2627, %v2698
      %2700 = vmatmul.bf16.gmra.mxu0 %v2608
      %v2701 = vpop.f32.mrf.mxu0
      %v2702 = vadd.f32 %v2627, %v2701
      %v2703 = vpop.f32.mrf.mxu0
      %v2704 = vadd.f32 %v2627, %v2703
      %2705 = vdwg.mxu0
      %v2706 = vxor.u32 %v2687, 2147483648
      %v2707 = vxor.u32 %v2689, 2147483648
      %v2708 = vxor.u32 %v2692, 2147483648
      %v2709 = vxor.u32 %v2694, 2147483648
      %v2710 = vxor.u32 %v2697, 2147483648
      %v2711 = vxor.u32 %v2699, 2147483648
      %v2712 = vxor.u32 %v2702, 2147483648
      %v2713 = vxor.u32 %v2704, 2147483648
      %v2714 = vmul.f32 %v2706, 1.442695
      %v2715 = vpow.pop %v2714
      %v2716 = vmul.f32 %v2707, 1.442695
      %v2717 = vpow.pop %v2716
      %v2718 = vmul.f32 %v2708, 1.442695
      %v2719 = vpow.pop %v2718
      %v2720 = vmul.f32 %v2709, 1.442695
      %v2721 = vpow.pop %v2720
      %v2722 = vmul.f32 %v2710, 1.442695
      %v2723 = vpow.pop %v2722
      %v2724 = vmul.f32 %v2711, 1.442695
      %v2725 = vpow.pop %v2724
      %v2726 = vmul.f32 %v2712, 1.442695
      %v2727 = vpow.pop %v2726
      %v2728 = vmul.f32 %v2713, 1.442695
      %v2729 = vpow.pop %v2728
      %v2730 = vadd.f32 %v2715, 1.0
      %v2731 = vadd.f32 %v2717, 1.0
      %v2732 = vadd.f32 %v2719, 1.0
      %v2733 = vadd.f32 %v2721, 1.0
      %v2734 = vadd.f32 %v2723, 1.0
      %v2735 = vadd.f32 %v2725, 1.0
      %v2736 = vadd.f32 %v2727, 1.0
      %v2737 = vadd.f32 %v2729, 1.0
      %v2738 = vrcp.pop %v2730
      %v2739 = vmul.f32 %v2730, %v2738
      %v2740 = vsub.f32 1.0, %v2739
      %v2741 = vmul.f32 %v2738, %v2740
      %v2742 = vadd.f32 %v2738, %v2741
      %vm2743 = vweird.f32 %v2730
      %vm2744 = vweird.f32 %v2738
      %vm2745 = vmor %vm2743, %vm2744
      %v2746 = vsel %vm2745, %v2738, %v2742
      %v2747 = vand.u32 2147483647, %v2730
      %vm2748 = vcmp.eq.f32.partialorder %v2747, 8.507059e+37
      %v2749 = vand.u32 %v2730, 2147483648
      %v2750 = vor.u32 1.1754944e-38, %v2749
      %v2751 = vsel %vm2748, %v2750, %v2746
      %v2752 = vmul.f32 1.0, %v2751
      %v2753 = vrcp.pop %v2731
      %v2754 = vmul.f32 %v2731, %v2753
      %v2755 = vsub.f32 1.0, %v2754
      %v2756 = vmul.f32 %v2753, %v2755
      %v2757 = vadd.f32 %v2753, %v2756
      %vm2758 = vweird.f32 %v2731
      %vm2759 = vweird.f32 %v2753
      %vm2760 = vmor %vm2758, %vm2759
      %v2761 = vsel %vm2760, %v2753, %v2757
      %v2762 = vand.u32 2147483647, %v2731
      %vm2763 = vcmp.eq.f32.partialorder %v2762, 8.507059e+37
      %v2764 = vand.u32 %v2731, 2147483648
      %v2765 = vor.u32 1.1754944e-38, %v2764
      %v2766 = vsel %vm2763, %v2765, %v2761
      %v2767 = vmul.f32 1.0, %v2766
      %v2768 = vrcp.pop %v2732
      %v2769 = vmul.f32 %v2732, %v2768
      %v2770 = vsub.f32 1.0, %v2769
      %v2771 = vmul.f32 %v2768, %v2770
      %v2772 = vadd.f32 %v2768, %v2771
      %vm2773 = vweird.f32 %v2732
      %vm2774 = vweird.f32 %v2768
      %vm2775 = vmor %vm2773, %vm2774
      %v2776 = vsel %vm2775, %v2768, %v2772
      %v2777 = vand.u32 2147483647, %v2732
      %vm2778 = vcmp.eq.f32.partialorder %v2777, 8.507059e+37
      %v2779 = vand.u32 %v2732, 2147483648
      %v2780 = vor.u32 1.1754944e-38, %v2779
      %v2781 = vsel %vm2778, %v2780, %v2776
      %v2782 = vmul.f32 1.0, %v2781
      %v2783 = vrcp.pop %v2733
      %v2784 = vmul.f32 %v2733, %v2783
      %v2785 = vsub.f32 1.0, %v2784
      %v2786 = vmul.f32 %v2783, %v2785
      %v2787 = vadd.f32 %v2783, %v2786
      %vm2788 = vweird.f32 %v2733
      %vm2789 = vweird.f32 %v2783
      %vm2790 = vmor %vm2788, %vm2789
      %v2791 = vsel %vm2790, %v2783, %v2787
      %v2792 = vand.u32 2147483647, %v2733
      %vm2793 = vcmp.eq.f32.partialorder %v2792, 8.507059e+37
      %v2794 = vand.u32 %v2733, 2147483648
      %v2795 = vor.u32 1.1754944e-38, %v2794
      %v2796 = vsel %vm2793, %v2795, %v2791
      %v2797 = vmul.f32 1.0, %v2796
      %v2798 = vrcp.pop %v2734
      %v2799 = vmul.f32 %v2734, %v2798
      %v2800 = vsub.f32 1.0, %v2799
      %v2801 = vmul.f32 %v2798, %v2800
      %v2802 = vadd.f32 %v2798, %v2801
      %vm2803 = vweird.f32 %v2734
      %vm2804 = vweird.f32 %v2798
      %vm2805 = vmor %vm2803, %vm2804
      %v2806 = vsel %vm2805, %v2798, %v2802
      %v2807 = vand.u32 2147483647, %v2734
      %vm2808 = vcmp.eq.f32.partialorder %v2807, 8.507059e+37
      %v2809 = vand.u32 %v2734, 2147483648
      %v2810 = vor.u32 1.1754944e-38, %v2809
      %v2811 = vsel %vm2808, %v2810, %v2806
      %v2812 = vmul.f32 1.0, %v2811
      %v2813 = vrcp.pop %v2735
      %v2814 = vmul.f32 %v2735, %v2813
      %v2815 = vsub.f32 1.0, %v2814
      %v2816 = vmul.f32 %v2813, %v2815
      %v2817 = vadd.f32 %v2813, %v2816
      %vm2818 = vweird.f32 %v2735
      %vm2819 = vweird.f32 %v2813
      %vm2820 = vmor %vm2818, %vm2819
      %v2821 = vsel %vm2820, %v2813, %v2817
      %v2822 = vand.u32 2147483647, %v2735
      %vm2823 = vcmp.eq.f32.partialorder %v2822, 8.507059e+37
      %v2824 = vand.u32 %v2735, 2147483648
      %v2825 = vor.u32 1.1754944e-38, %v2824
      %v2826 = vsel %vm2823, %v2825, %v2821
      %v2827 = vmul.f32 1.0, %v2826
      %v2828 = vrcp.pop %v2736
      %v2829 = vmul.f32 %v2736, %v2828
      %v2830 = vsub.f32 1.0, %v2829
      %v2831 = vmul.f32 %v2828, %v2830
      %v2832 = vadd.f32 %v2828, %v2831
      %vm2833 = vweird.f32 %v2736
      %vm2834 = vweird.f32 %v2828
      %vm2835 = vmor %vm2833, %vm2834
      %v2836 = vsel %vm2835, %v2828, %v2832
      %v2837 = vand.u32 2147483647, %v2736
      %vm2838 = vcmp.eq.f32.partialorder %v2837, 8.507059e+37
      %v2839 = vand.u32 %v2736, 2147483648
      %v2840 = vor.u32 1.1754944e-38, %v2839
      %v2841 = vsel %vm2838, %v2840, %v2836
      %v2842 = vmul.f32 1.0, %v2841
      %v2843 = vrcp.pop %v2737
      %v2844 = vmul.f32 %v2737, %v2843
      %v2845 = vsub.f32 1.0, %v2844
      %v2846 = vmul.f32 %v2843, %v2845
      %v2847 = vadd.f32 %v2843, %v2846
      %vm2848 = vweird.f32 %v2737
      %vm2849 = vweird.f32 %v2843
      %vm2850 = vmor %vm2848, %vm2849
      %v2851 = vsel %vm2850, %v2843, %v2847
      %v2852 = vand.u32 2147483647, %v2737
      %vm2853 = vcmp.eq.f32.partialorder %v2852, 8.507059e+37
      %v2854 = vand.u32 %v2737, 2147483648
      %v2855 = vor.u32 1.1754944e-38, %v2854
      %v2856 = vsel %vm2853, %v2855, %v2851
      %v2857 = vmul.f32 1.0, %v2856
      %v2858 = vmul.f32 %v2687, %v2752
      %v2859 = vmul.f32 %v2689, %v2767
      %v2860 = vmul.f32 %v2692, %v2782
      %v2861 = vmul.f32 %v2694, %v2797
      %v2862 = vmul.f32 %v2697, %v2812
      %v2863 = vmul.f32 %v2699, %v2827
      %v2864 = vmul.f32 %v2702, %v2842
      %v2865 = vmul.f32 %v2704, %v2857
      %v2866 = vpack.c.bf16 %v2859, %v2858
      %v2867 = vpack.c.bf16 %v2861, %v2860
      %v2868 = vpack.c.bf16 %v2863, %v2862
      %v2869 = vpack.c.bf16 %v2865, %v2864
      %v2870 = vld [vmem:[%s1029] sm:$0xf]
      %v2871 = vld [vmem:[%s1029 + $0x4] sm:$0xf]
      %v2872 = vld [vmem:[%s1029 + $0x8] sm:$0xf]
      %v2873 = vld [vmem:[%s1029 + $0xc] sm:$0xf]
      %v2874 = vld [vmem:[%s1029 + $0x10] sm:$0xf]
      %v2875 = vld [vmem:[%s1029 + $0x14] sm:$0xf]
      %v2876 = vld [vmem:[%s1029 + $0x18] sm:$0xf]
      %v2877 = vld [vmem:[%s1029 + $0x1c] sm:$0xf]
      %v2878 = vld [vmem:[%s1029 + $0x20] sm:$0xf]
      %v2879 = vld [vmem:[%s1029 + $0x24] sm:$0xf]
      %v2880 = vld [vmem:[%s1029 + $0x28] sm:$0xf]
      %v2881 = vld [vmem:[%s1029 + $0x2c] sm:$0xf]
      %v2882 = vld [vmem:[%s1029 + $0x30] sm:$0xf]
      %v2883 = vld [vmem:[%s1029 + $0x34] sm:$0xf]
      %v2884 = vld [vmem:[%s1029 + $0x38] sm:$0xf]
      %v2885 = vld [vmem:[%s1029 + $0x3c] sm:$0xf]
      %v2886 = vld [vmem:[%s1032] sm:$0x1]
      %v2888 = vperm.slane %v2886, 0
      %v2906 = vunpack.c.l.b16 %v2870
      %v2907 = vunpack.c.l.b16 %v2871
      %v2908 = vunpack.c.l.b16 %v2872
      %v2909 = vunpack.c.l.b16 %v2873
      %v2910 = vunpack.c.l.b16 %v2874
      %v2911 = vunpack.c.l.b16 %v2875
      %v2912 = vunpack.c.l.b16 %v2876
      %v2913 = vunpack.c.l.b16 %v2877
      %v2914 = vunpack.c.l.b16 %v2878
      %v2915 = vunpack.c.l.b16 %v2879
      %v2916 = vunpack.c.l.b16 %v2880
      %v2917 = vunpack.c.l.b16 %v2881
      %v2918 = vunpack.c.l.b16 %v2882
      %v2919 = vunpack.c.l.b16 %v2883
      %v2920 = vunpack.c.l.b16 %v2884
      %v2921 = vunpack.c.l.b16 %v2885
      %v2922 = vpack.c.b16 %v2907, %v2906
      %v2923 = vpack.c.b16 %v2909, %v2908
      %v2924 = vpack.c.b16 %v2911, %v2910
      %v2925 = vpack.c.b16 %v2913, %v2912
      %v2926 = vpack.c.b16 %v2915, %v2914
      %v2927 = vpack.c.b16 %v2917, %v2916
      %v2928 = vpack.c.b16 %v2919, %v2918
      %v2929 = vpack.c.b16 %v2921, %v2920
      %2938 = vmatpush.bf16.msra.mxu0 %v2929
      %2939 = vmatpush.bf16.msra.mxu0 %v2928
      %2940 = vmatpush.bf16.msra.mxu0 %v2927
      %2941 = vmatpush.bf16.msra.mxu0 %v2926
      %2942 = vmatpush.bf16.msra.mxu0 %v2925
      %2943 = vmatpush.bf16.msra.mxu0 %v2924
      %2944 = vmatpush.bf16.msra.mxu0 %v2923
      %2945 = vmatpush.bf16.msra.mxu0 %v2922
      %2946 = vmatmul.bf16.gmra.mxu0 %v2866
      %v2947 = vpop.f32.mrf.mxu0
      %v2948 = vadd.f32 %v2888, %v2947
      %v2949 = vpop.f32.mrf.mxu0
      %v2950 = vadd.f32 %v2888, %v2949
      %2951 = vmatmul.bf16.gmra.mxu0 %v2867
      %v2952 = vpop.f32.mrf.mxu0
      %v2953 = vadd.f32 %v2888, %v2952
      %v2954 = vpop.f32.mrf.mxu0
      %v2955 = vadd.f32 %v2888, %v2954
      %2956 = vmatmul.bf16.gmra.mxu0 %v2868
      %v2957 = vpop.f32.mrf.mxu0
      %v2958 = vadd.f32 %v2888, %v2957
      %v2959 = vpop.f32.mrf.mxu0
      %v2960 = vadd.f32 %v2888, %v2959
      %2961 = vmatmul.bf16.gmra.mxu0 %v2869
      %v2962 = vpop.f32.mrf.mxu0
      %v2963 = vadd.f32 %v2888, %v2962
      %v2964 = vpop.f32.mrf.mxu0
      %v2965 = vadd.f32 %v2888, %v2964
      %2966 = vdwg.mxu0
      %v2967 = vadd.f32 %v2858, %v2860
      %v2968 = vadd.f32 %v2859, %v2861
      %v2969 = vadd.f32 %v2967, %v2862
      %v2970 = vadd.f32 %v2968, %v2863
      %v2971 = vadd.f32 %v2969, %v2864
      %v2972 = vadd.f32 %v2970, %v2865
      %v2973 = vmul.f32 %v2971, 0.25
      %v2974 = vmul.f32 %v2972, 0.25
      %v2975 = vpack.c.bf16 %v2974, %v2973
      %v2976 = vld [vmem:[%s1037] sm:$0xf]
      %v2977 = vld [vmem:[%s1037 + $0x4] sm:$0xf]
      %v2978 = vld [vmem:[%s1037 + $0x8] sm:$0xf]
      %v2979 = vld [vmem:[%s1037 + $0xc] sm:$0xf]
      %v2980 = vld [vmem:[%s1037 + $0x10] sm:$0xf]
      %v2981 = vld [vmem:[%s1037 + $0x14] sm:$0xf]
      %v2982 = vld [vmem:[%s1037 + $0x18] sm:$0xf]
      %v2983 = vld [vmem:[%s1037 + $0x1c] sm:$0xf]
      %v2984 = vld [vmem:[%s1037 + $0x20] sm:$0xf]
      %v2985 = vld [vmem:[%s1037 + $0x24] sm:$0xf]
      %v2986 = vld [vmem:[%s1037 + $0x28] sm:$0xf]
      %v2987 = vld [vmem:[%s1037 + $0x2c] sm:$0xf]
      %v2988 = vld [vmem:[%s1037 + $0x30] sm:$0xf]
      %v2989 = vld [vmem:[%s1037 + $0x34] sm:$0xf]
      %v2990 = vld [vmem:[%s1037 + $0x38] sm:$0xf]
      %v2991 = vld [vmem:[%s1037 + $0x3c] sm:$0xf]
      %v2992 = vld [vmem:[%s1040] sm:$0x1]
      %v2994 = vperm.slane %v2992, 0
      %v3012 = vunpack.c.l.b16 %v2976
      %v3013 = vunpack.c.l.b16 %v2977
      %v3014 = vunpack.c.l.b16 %v2978
      %v3015 = vunpack.c.l.b16 %v2979
      %v3016 = vunpack.c.l.b16 %v2980
      %v3017 = vunpack.c.l.b16 %v2981
      %v3018 = vunpack.c.l.b16 %v2982
      %v3019 = vunpack.c.l.b16 %v2983
      %v3020 = vunpack.c.l.b16 %v2984
      %v3021 = vunpack.c.l.b16 %v2985
      %v3022 = vunpack.c.l.b16 %v2986
      %v3023 = vunpack.c.l.b16 %v2987
      %v3024 = vunpack.c.l.b16 %v2988
      %v3025 = vunpack.c.l.b16 %v2989
      %v3026 = vunpack.c.l.b16 %v2990
      %v3027 = vunpack.c.l.b16 %v2991
      %v3028 = vpack.c.b16 %v3013, %v3012
      %v3029 = vpack.c.b16 %v3015, %v3014
      %v3030 = vpack.c.b16 %v3017, %v3016
      %v3031 = vpack.c.b16 %v3019, %v3018
      %v3032 = vpack.c.b16 %v3021, %v3020
      %v3033 = vpack.c.b16 %v3023, %v3022
      %v3034 = vpack.c.b16 %v3025, %v3024
      %v3035 = vpack.c.b16 %v3027, %v3026
      %3044 = vmatpush.bf16.msra.mxu0 %v3035
      %3045 = vmatpush.bf16.msra.mxu0 %v3034
      %3046 = vmatpush.bf16.msra.mxu0 %v3033
      %3047 = vmatpush.bf16.msra.mxu0 %v3032
      %3048 = vmatpush.bf16.msra.mxu0 %v3031
      %3049 = vmatpush.bf16.msra.mxu0 %v3030
      %3050 = vmatpush.bf16.msra.mxu0 %v3029
      %3051 = vmatpush.bf16.msra.mxu0 %v3028
      %3052 = vmatmul.bf16.gmra.mxu0 %v2975
      %v3053 = vpop.f32.mrf.mxu0
      %v3054 = vadd.f32 %v2994, %v3053
      %v3055 = vpop.f32.mrf.mxu0
      %v3056 = vadd.f32 %v2994, %v3055
      %3057 = vdwg.mxu0
      %v3058 = vxor.u32 %v3054, 2147483648
      %v3059 = vxor.u32 %v3056, 2147483648
      %v3060 = vmul.f32 %v3058, 1.442695
      %v3061 = vpow.pop %v3060
      %v3062 = vmul.f32 %v3059, 1.442695
      %v3063 = vpow.pop %v3062
      %v3064 = vadd.f32 %v3061, 1.0
      %v3065 = vadd.f32 %v3063, 1.0
      %v3066 = vrcp.pop %v3064
      %v3067 = vmul.f32 %v3064, %v3066
      %v3068 = vsub.f32 1.0, %v3067
      %v3069 = vmul.f32 %v3066, %v3068
      %v3070 = vadd.f32 %v3066, %v3069
      %vm3071 = vweird.f32 %v3064
      %vm3072 = vweird.f32 %v3066
      %vm3073 = vmor %vm3071, %vm3072
      %v3074 = vsel %vm3073, %v3066, %v3070
      %v3075 = vand.u32 2147483647, %v3064
      %vm3076 = vcmp.eq.f32.partialorder %v3075, 8.507059e+37
      %v3077 = vand.u32 %v3064, 2147483648
      %v3078 = vor.u32 1.1754944e-38, %v3077
      %v3079 = vsel %vm3076, %v3078, %v3074
      %v3080 = vmul.f32 1.0, %v3079
      %v3081 = vrcp.pop %v3065
      %v3082 = vmul.f32 %v3065, %v3081
      %v3083 = vsub.f32 1.0, %v3082
      %v3084 = vmul.f32 %v3081, %v3083
      %v3085 = vadd.f32 %v3081, %v3084
      %vm3086 = vweird.f32 %v3065
      %vm3087 = vweird.f32 %v3081
      %vm3088 = vmor %vm3086, %vm3087
      %v3089 = vsel %vm3088, %v3081, %v3085
      %v3090 = vand.u32 2147483647, %v3065
      %vm3091 = vcmp.eq.f32.partialorder %v3090, 8.507059e+37
      %v3092 = vand.u32 %v3065, 2147483648
      %v3093 = vor.u32 1.1754944e-38, %v3092
      %v3094 = vsel %vm3091, %v3093, %v3089
      %v3095 = vmul.f32 1.0, %v3094
      %v3096 = vmul.f32 %v3054, %v3080
      %v3097 = vmul.f32 %v3056, %v3095
      %v3098 = vpack.c.bf16 %v3097, %v3096
      %v3099 = vld [vmem:[%s1045] sm:$0xf]
      %v3100 = vld [vmem:[%s1045 + $0x4] sm:$0xf]
      %v3101 = vld [vmem:[%s1045 + $0x8] sm:$0xf]
      %v3102 = vld [vmem:[%s1045 + $0xc] sm:$0xf]
      %v3103 = vld [vmem:[%s1045 + $0x10] sm:$0xf]
      %v3104 = vld [vmem:[%s1045 + $0x14] sm:$0xf]
      %v3105 = vld [vmem:[%s1045 + $0x18] sm:$0xf]
      %v3106 = vld [vmem:[%s1045 + $0x1c] sm:$0xf]
      %v3107 = vld [vmem:[%s1045 + $0x20] sm:$0xf]
      %v3108 = vld [vmem:[%s1045 + $0x24] sm:$0xf]
      %v3109 = vld [vmem:[%s1045 + $0x28] sm:$0xf]
      %v3110 = vld [vmem:[%s1045 + $0x2c] sm:$0xf]
      %v3111 = vld [vmem:[%s1045 + $0x30] sm:$0xf]
      %v3112 = vld [vmem:[%s1045 + $0x34] sm:$0xf]
      %v3113 = vld [vmem:[%s1045 + $0x38] sm:$0xf]
      %v3114 = vld [vmem:[%s1045 + $0x3c] sm:$0xf]
      %v3115 = vld [vmem:[%s1048] sm:$0x1]
      %v3117 = vperm.slane %v3115, 0
      %v3135 = vunpack.c.l.b16 %v3099
      %v3136 = vunpack.c.l.b16 %v3100
      %v3137 = vunpack.c.l.b16 %v3101
      %v3138 = vunpack.c.l.b16 %v3102
      %v3139 = vunpack.c.l.b16 %v3103
      %v3140 = vunpack.c.l.b16 %v3104
      %v3141 = vunpack.c.l.b16 %v3105
      %v3142 = vunpack.c.l.b16 %v3106
      %v3143 = vunpack.c.l.b16 %v3107
      %v3144 = vunpack.c.l.b16 %v3108
      %v3145 = vunpack.c.l.b16 %v3109
      %v3146 = vunpack.c.l.b16 %v3110
      %v3147 = vunpack.c.l.b16 %v3111
      %v3148 = vunpack.c.l.b16 %v3112
      %v3149 = vunpack.c.l.b16 %v3113
      %v3150 = vunpack.c.l.b16 %v3114
      %v3151 = vpack.c.b16 %v3136, %v3135
      %v3152 = vpack.c.b16 %v3138, %v3137
      %v3153 = vpack.c.b16 %v3140, %v3139
      %v3154 = vpack.c.b16 %v3142, %v3141
      %v3155 = vpack.c.b16 %v3144, %v3143
      %v3156 = vpack.c.b16 %v3146, %v3145
      %v3157 = vpack.c.b16 %v3148, %v3147
      %v3158 = vpack.c.b16 %v3150, %v3149
      %3167 = vmatpush.bf16.msra.mxu0 %v3158
      %3168 = vmatpush.bf16.msra.mxu0 %v3157
      %3169 = vmatpush.bf16.msra.mxu0 %v3156
      %3170 = vmatpush.bf16.msra.mxu0 %v3155
      %3171 = vmatpush.bf16.msra.mxu0 %v3154
      %3172 = vmatpush.bf16.msra.mxu0 %v3153
      %3173 = vmatpush.bf16.msra.mxu0 %v3152
      %3174 = vmatpush.bf16.msra.mxu0 %v3151
      %3175 = vmatmul.bf16.gmra.mxu0 %v3098
      %v3176 = vpop.f32.mrf.mxu0
      %v3177 = vadd.f32 %v3117, %v3176
      %v3178 = vpop.f32.mrf.mxu0
      %v3179 = vadd.f32 %v3117, %v3178
      %3180 = vdwg.mxu0
      %s3181 = sld [smem:[#allocation3 + %s48]]
      %p3182 = scmp.eq.s32.totalorder %s48, 0
      // Predicated region
      $region101: #{unet_controlnet_forward.2} parent=99 // pred_check
        %p3183 = pneg %p3182
      $region102: #{unet_controlnet_forward.2} parent=99 // pred_check_branch
        %3185 = sbr.rel (%p3183) target = $region104
      $region103: #{unet_controlnet_forward.2} parent=99 // pred_region
        %v3186 = vstv %s3181
        %v3187 = vmul.f32 %v3186, %v2494
        %v3188 = vmul.f32 %v3186, %v2496
        %v3189 = vmul.f32 %v3186, %v2499
        %v3190 = vmul.f32 %v3186, %v2501
        %v3191 = vmul.f32 %v3186, %v2504
        %v3192 = vmul.f32 %v3186, %v2506
        %v3193 = vmul.f32 %v3186, %v2509
        %v3194 = vmul.f32 %v3186, %v2511
        %v3195 = vmul.f32 %v3186, %v2514
        %v3196 = vmul.f32 %v3186, %v2516
        %v3197 = vmul.f32 %v3186, %v2519
        %v3198 = vmul.f32 %v3186, %v2521
        %v3199 = vmul.f32 %v3186, %v2524
        %v3200 = vmul.f32 %v3186, %v2526
        %v3201 = vmul.f32 %v3186, %v2529
        %v3202 = vmul.f32 %v3186, %v2531
        %v3203 = vmul.f32 %v3186, %v2534
        %v3204 = vmul.f32 %v3186, %v2536
        %v3205 = vmul.f32 %v3186, %v2539
        %v3206 = vmul.f32 %v3186, %v2541
        %v3207 = vmul.f32 %v3186, %v2544
        %v3208 = vmul.f32 %v3186, %v2546
        %v3209 = vmul.f32 %v3186, %v2549
        %v3210 = vmul.f32 %v3186, %v2551
        %v3211 = vmul.f32 %v3186, %v2554
        %v3212 = vmul.f32 %v3186, %v2556
        %v3213 = vmul.f32 %v3186, %v2559
        %v3214 = vmul.f32 %v3186, %v2561
        %v3215 = vmul.f32 %v3186, %v2564
        %v3216 = vmul.f32 %v3186, %v2566
        %v3217 = vmul.f32 %v3186, %v2569
        %v3218 = vmul.f32 %v3186, %v2571
        %3219 = vst [vmem:[%s1053] sm:$0xff] %v3187
        %3220 = vst [vmem:[%s1053 + $0x8] sm:$0xff] %v3188
        %3221 = vst [vmem:[%s1053 + $0x10] sm:$0xff] %v3189
        %3222 = vst [vmem:[%s1053 + $0x18] sm:$0xff] %v3190
        %3223 = vst [vmem:[%s1053 + $0x20] sm:$0xff] %v3191
        %3224 = vst [vmem:[%s1053 + $0x28] sm:$0xff] %v3192
        %3225 = vst [vmem:[%s1053 + $0x30] sm:$0xff] %v3193
        %3226 = vst [vmem:[%s1053 + $0x38] sm:$0xff] %v3194
        %3227 = vst [vmem:[%s1053 + $0x40] sm:$0xff] %v3195
        %3228 = vst [vmem:[%s1053 + $0x48] sm:$0xff] %v3196
        %3229 = vst [vmem:[%s1053 + $0x50] sm:$0xff] %v3197
        %3230 = vst [vmem:[%s1053 + $0x58] sm:$0xff] %v3198
        %3231 = vst [vmem:[%s1053 + $0x60] sm:$0xff] %v3199
        %3232 = vst [vmem:[%s1053 + $0x68] sm:$0xff] %v3200
        %3233 = vst [vmem:[%s1053 + $0x70] sm:$0xff] %v3201
        %3234 = vst [vmem:[%s1053 + $0x78] sm:$0xff] %v3202
        %3235 = vst [vmem:[%s1053 + $0x80] sm:$0xff] %v3203
        %3236 = vst [vmem:[%s1053 + $0x88] sm:$0xff] %v3204
        %3237 = vst [vmem:[%s1053 + $0x90] sm:$0xff] %v3205
        %3238 = vst [vmem:[%s1053 + $0x98] sm:$0xff] %v3206
        %3239 = vst [vmem:[%s1053 + $0xa0] sm:$0xff] %v3207
        %3240 = vst [vmem:[%s1053 + $0xa8] sm:$0xff] %v3208
        %3241 = vst [vmem:[%s1053 + $0xb0] sm:$0xff] %v3209
        %3242 = vst [vmem:[%s1053 + $0xb8] sm:$0xff] %v3210
        %3243 = vst [vmem:[%s1053 + $0xc0] sm:$0xff] %v3211
        %3244 = vst [vmem:[%s1053 + $0xc8] sm:$0xff] %v3212
        %3245 = vst [vmem:[%s1053 + $0xd0] sm:$0xff] %v3213
        %3246 = vst [vmem:[%s1053 + $0xd8] sm:$0xff] %v3214
        %3247 = vst [vmem:[%s1053 + $0xe0] sm:$0xff] %v3215
        %3248 = vst [vmem:[%s1053 + $0xe8] sm:$0xff] %v3216
        %3249 = vst [vmem:[%s1053 + $0xf0] sm:$0xff] %v3217
        %3250 = vst [vmem:[%s1053 + $0xf8] sm:$0xff] %v3218
        %v3251 = vmul.f32 %v3186, %v2948
        %v3252 = vmul.f32 %v3186, %v2950
        %v3253 = vmul.f32 %v3186, %v2953
        %v3254 = vmul.f32 %v3186, %v2955
        %v3255 = vmul.f32 %v3186, %v2958
        %v3256 = vmul.f32 %v3186, %v2960
        %v3257 = vmul.f32 %v3186, %v2963
        %v3258 = vmul.f32 %v3186, %v2965
        %3259 = vst [vmem:[%s1058] sm:$0xff] %v3251
        %3260 = vst [vmem:[%s1058 + $0x8] sm:$0xff] %v3252
        %3261 = vst [vmem:[%s1058 + $0x10] sm:$0xff] %v3253
        %3262 = vst [vmem:[%s1058 + $0x18] sm:$0xff] %v3254
        %3263 = vst [vmem:[%s1058 + $0x20] sm:$0xff] %v3255
        %3264 = vst [vmem:[%s1058 + $0x28] sm:$0xff] %v3256
        %3265 = vst [vmem:[%s1058 + $0x30] sm:$0xff] %v3257
        %3266 = vst [vmem:[%s1058 + $0x38] sm:$0xff] %v3258
        %v3267 = vmul.f32 %v3186, %v3177
        %v3268 = vmul.f32 %v3186, %v3179
        %3269 = vst [vmem:[%s1063] sm:$0xff] %v3267
        %3270 = vst [vmem:[%s1063 + $0x8] sm:$0xff] %v3268
      $region104: #{unet_controlnet_forward.2} parent=99 // pred_fallthru
        _
      %p3271 = scmp.gt.s32.totalorder %s48, 0
      // Predicated region
      $region105: #{unet_controlnet_forward.2} parent=99 // pred_check
        %p3272 = pneg %p3271
      $region106: #{unet_controlnet_forward.2} parent=99 // pred_check_branch
        %3274 = sbr.rel (%p3272) target = $region108
      $region107: #{unet_controlnet_forward.2} parent=99 // pred_region
        %v3275 = vld [vmem:[%s1053] sm:$0xff]
        %v3276 = vld [vmem:[%s1053 + $0x8] sm:$0xff]
        %v3277 = vld [vmem:[%s1053 + $0x10] sm:$0xff]
        %v3278 = vld [vmem:[%s1053 + $0x18] sm:$0xff]
        %v3279 = vld [vmem:[%s1053 + $0x20] sm:$0xff]
        %v3280 = vld [vmem:[%s1053 + $0x28] sm:$0xff]
        %v3281 = vld [vmem:[%s1053 + $0x30] sm:$0xff]
        %v3282 = vld [vmem:[%s1053 + $0x38] sm:$0xff]
        %v3283 = vld [vmem:[%s1053 + $0x40] sm:$0xff]
        %v3284 = vld [vmem:[%s1053 + $0x48] sm:$0xff]
        %v3285 = vld [vmem:[%s1053 + $0x50] sm:$0xff]
        %v3286 = vld [vmem:[%s1053 + $0x58] sm:$0xff]
        %v3287 = vld [vmem:[%s1053 + $0x60] sm:$0xff]
        %v3288 = vld [vmem:[%s1053 + $0x68] sm:$0xff]
        %v3289 = vld [vmem:[%s1053 + $0x70] sm:$0xff]
        %v3290 = vld [vmem:[%s1053 + $0x78] sm:$0xff]
        %v3291 = vld [vmem:[%s1053 + $0x80] sm:$0xff]
        %v3292 = vld [vmem:[%s1053 + $0x88] sm:$0xff]
        %v3293 = vld [vmem:[%s1053 + $0x90] sm:$0xff]
        %v3294 = vld [vmem:[%s1053 + $0x98] sm:$0xff]
        %v3295 = vld [vmem:[%s1053 + $0xa0] sm:$0xff]
        %v3296 = vld [vmem:[%s1053 + $0xa8] sm:$0xff]
        %v3297 = vld [vmem:[%s1053 + $0xb0] sm:$0xff]
        %v3298 = vld [vmem:[%s1053 + $0xb8] sm:$0xff]
        %v3299 = vld [vmem:[%s1053 + $0xc0] sm:$0xff]
        %v3300 = vld [vmem:[%s1053 + $0xc8] sm:$0xff]
        %v3301 = vld [vmem:[%s1053 + $0xd0] sm:$0xff]
        %v3302 = vld [vmem:[%s1053 + $0xd8] sm:$0xff]
        %v3303 = vld [vmem:[%s1053 + $0xe0] sm:$0xff]
        %v3304 = vld [vmem:[%s1053 + $0xe8] sm:$0xff]
        %v3305 = vld [vmem:[%s1053 + $0xf0] sm:$0xff]
        %v3306 = vld [vmem:[%s1053 + $0xf8] sm:$0xff]
        %v3307 = vstv %s3181
        %v3308 = vmul.f32 %v3307, %v2494
        %v3309 = vmul.f32 %v3307, %v2496
        %v3310 = vmul.f32 %v3307, %v2499
        %v3311 = vmul.f32 %v3307, %v2501
        %v3312 = vmul.f32 %v3307, %v2504
        %v3313 = vmul.f32 %v3307, %v2506
        %v3314 = vmul.f32 %v3307, %v2509
        %v3315 = vmul.f32 %v3307, %v2511
        %v3316 = vmul.f32 %v3307, %v2514
        %v3317 = vmul.f32 %v3307, %v2516
        %v3318 = vmul.f32 %v3307, %v2519
        %v3319 = vmul.f32 %v3307, %v2521
        %v3320 = vmul.f32 %v3307, %v2524
        %v3321 = vmul.f32 %v3307, %v2526
        %v3322 = vmul.f32 %v3307, %v2529
        %v3323 = vmul.f32 %v3307, %v2531
        %v3324 = vmul.f32 %v3307, %v2534
        %v3325 = vmul.f32 %v3307, %v2536
        %v3326 = vmul.f32 %v3307, %v2539
        %v3327 = vmul.f32 %v3307, %v2541
        %v3328 = vmul.f32 %v3307, %v2544
        %v3329 = vmul.f32 %v3307, %v2546
        %v3330 = vmul.f32 %v3307, %v2549
        %v3331 = vmul.f32 %v3307, %v2551
        %v3332 = vmul.f32 %v3307, %v2554
        %v3333 = vmul.f32 %v3307, %v2556
        %v3334 = vmul.f32 %v3307, %v2559
        %v3335 = vmul.f32 %v3307, %v2561
        %v3336 = vmul.f32 %v3307, %v2564
        %v3337 = vmul.f32 %v3307, %v2566
        %v3338 = vmul.f32 %v3307, %v2569
        %v3339 = vmul.f32 %v3307, %v2571
        %v3340 = vadd.f32 %v3275, %v3308
        %v3341 = vadd.f32 %v3276, %v3309
        %v3342 = vadd.f32 %v3277, %v3310
        %v3343 = vadd.f32 %v3278, %v3311
        %v3344 = vadd.f32 %v3279, %v3312
        %v3345 = vadd.f32 %v3280, %v3313
        %v3346 = vadd.f32 %v3281, %v3314
        %v3347 = vadd.f32 %v3282, %v3315
        %v3348 = vadd.f32 %v3283, %v3316
        %v3349 = vadd.f32 %v3284, %v3317
        %v3350 = vadd.f32 %v3285, %v3318
        %v3351 = vadd.f32 %v3286, %v3319
        %v3352 = vadd.f32 %v3287, %v3320
        %v3353 = vadd.f32 %v3288, %v3321
        %v3354 = vadd.f32 %v3289, %v3322
        %v3355 = vadd.f32 %v3290, %v3323
        %v3356 = vadd.f32 %v3291, %v3324
        %v3357 = vadd.f32 %v3292, %v3325
        %v3358 = vadd.f32 %v3293, %v3326
        %v3359 = vadd.f32 %v3294, %v3327
        %v3360 = vadd.f32 %v3295, %v3328
        %v3361 = vadd.f32 %v3296, %v3329
        %v3362 = vadd.f32 %v3297, %v3330
        %v3363 = vadd.f32 %v3298, %v3331
        %v3364 = vadd.f32 %v3299, %v3332
        %v3365 = vadd.f32 %v3300, %v3333
        %v3366 = vadd.f32 %v3301, %v3334
        %v3367 = vadd.f32 %v3302, %v3335
        %v3368 = vadd.f32 %v3303, %v3336
        %v3369 = vadd.f32 %v3304, %v3337
        %v3370 = vadd.f32 %v3305, %v3338
        %v3371 = vadd.f32 %v3306, %v3339
        %3372 = vst [vmem:[%s1053] sm:$0xff] %v3340
        %3373 = vst [vmem:[%s1053 + $0x8] sm:$0xff] %v3341
        %3374 = vst [vmem:[%s1053 + $0x10] sm:$0xff] %v3342
        %3375 = vst [vmem:[%s1053 + $0x18] sm:$0xff] %v3343
        %3376 = vst [vmem:[%s1053 + $0x20] sm:$0xff] %v3344
        %3377 = vst [vmem:[%s1053 + $0x28] sm:$0xff] %v3345
        %3378 = vst [vmem:[%s1053 + $0x30] sm:$0xff] %v3346
        %3379 = vst [vmem:[%s1053 + $0x38] sm:$0xff] %v3347
        %3380 = vst [vmem:[%s1053 + $0x40] sm:$0xff] %v3348
        %3381 = vst [vmem:[%s1053 + $0x48] sm:$0xff] %v3349
        %3382 = vst [vmem:[%s1053 + $0x50] sm:$0xff] %v3350
        %3383 = vst [vmem:[%s1053 + $0x58] sm:$0xff] %v3351
        %3384 = vst [vmem:[%s1053 + $0x60] sm:$0xff] %v3352
        %3385 = vst [vmem:[%s1053 + $0x68] sm:$0xff] %v3353
        %3386 = vst [vmem:[%s1053 + $0x70] sm:$0xff] %v3354
        %3387 = vst [vmem:[%s1053 + $0x78] sm:$0xff] %v3355
        %3388 = vst [vmem:[%s1053 + $0x80] sm:$0xff] %v3356
        %3389 = vst [vmem:[%s1053 + $0x88] sm:$0xff] %v3357
        %3390 = vst [vmem:[%s1053 + $0x90] sm:$0xff] %v3358
        %3391 = vst [vmem:[%s1053 + $0x98] sm:$0xff] %v3359
        %3392 = vst [vmem:[%s1053 + $0xa0] sm:$0xff] %v3360
        %3393 = vst [vmem:[%s1053 + $0xa8] sm:$0xff] %v3361
        %3394 = vst [vmem:[%s1053 + $0xb0] sm:$0xff] %v3362
        %3395 = vst [vmem:[%s1053 + $0xb8] sm:$0xff] %v3363
        %3396 = vst [vmem:[%s1053 + $0xc0] sm:$0xff] %v3364
        %3397 = vst [vmem:[%s1053 + $0xc8] sm:$0xff] %v3365
        %3398 = vst [vmem:[%s1053 + $0xd0] sm:$0xff] %v3366
        %3399 = vst [vmem:[%s1053 + $0xd8] sm:$0xff] %v3367
        %3400 = vst [vmem:[%s1053 + $0xe0] sm:$0xff] %v3368
        %3401 = vst [vmem:[%s1053 + $0xe8] sm:$0xff] %v3369
        %3402 = vst [vmem:[%s1053 + $0xf0] sm:$0xff] %v3370
        %3403 = vst [vmem:[%s1053 + $0xf8] sm:$0xff] %v3371
        %v3404 = vld [vmem:[%s1058] sm:$0xff]
        %v3405 = vld [vmem:[%s1058 + $0x8] sm:$0xff]
        %v3406 = vld [vmem:[%s1058 + $0x10] sm:$0xff]
        %v3407 = vld [vmem:[%s1058 + $0x18] sm:$0xff]
        %v3408 = vld [vmem:[%s1058 + $0x20] sm:$0xff]
        %v3409 = vld [vmem:[%s1058 + $0x28] sm:$0xff]
        %v3410 = vld [vmem:[%s1058 + $0x30] sm:$0xff]
        %v3411 = vld [vmem:[%s1058 + $0x38] sm:$0xff]
        %v3412 = vmul.f32 %v3307, %v2948
        %v3413 = vmul.f32 %v3307, %v2950
        %v3414 = vmul.f32 %v3307, %v2953
        %v3415 = vmul.f32 %v3307, %v2955
        %v3416 = vmul.f32 %v3307, %v2958
        %v3417 = vmul.f32 %v3307, %v2960
        %v3418 = vmul.f32 %v3307, %v2963
        %v3419 = vmul.f32 %v3307, %v2965
        %v3420 = vadd.f32 %v3404, %v3412
        %v3421 = vadd.f32 %v3405, %v3413
        %v3422 = vadd.f32 %v3406, %v3414
        %v3423 = vadd.f32 %v3407, %v3415
        %v3424 = vadd.f32 %v3408, %v3416
        %v3425 = vadd.f32 %v3409, %v3417
        %v3426 = vadd.f32 %v3410, %v3418
        %v3427 = vadd.f32 %v3411, %v3419
        %3428 = vst [vmem:[%s1058] sm:$0xff] %v3420
        %3429 = vst [vmem:[%s1058 + $0x8] sm:$0xff] %v3421
        %3430 = vst [vmem:[%s1058 + $0x10] sm:$0xff] %v3422
        %3431 = vst [vmem:[%s1058 + $0x18] sm:$0xff] %v3423
        %3432 = vst [vmem:[%s1058 + $0x20] sm:$0xff] %v3424
        %3433 = vst [vmem:[%s1058 + $0x28] sm:$0xff] %v3425
        %3434 = vst [vmem:[%s1058 + $0x30] sm:$0xff] %v3426
        %3435 = vst [vmem:[%s1058 + $0x38] sm:$0xff] %v3427
        %v3436 = vld [vmem:[%s1063] sm:$0xff]
        %v3437 = vld [vmem:[%s1063 + $0x8] sm:$0xff]
        %v3438 = vmul.f32 %v3307, %v3177
        %v3439 = vmul.f32 %v3307, %v3179
        %v3440 = vadd.f32 %v3436, %v3438
        %v3441 = vadd.f32 %v3437, %v3439
        %3442 = vst [vmem:[%s1063] sm:$0xff] %v3440
        %3443 = vst [vmem:[%s1063 + $0x8] sm:$0xff] %v3441
      $region108: #{unet_controlnet_forward.2} parent=99 // pred_fallthru
        _
      %p3444 = scmp.lt.s32.totalorder %s47, 1
      %s3445 = scalar_select %p3444, %s47, 1
      %s3446 = smul.addr %s3445, 32
      %s3447 = smul.addr %s3446, 8
      %s3448 = scalar_lea.vmem %s21, %s3447
      %p3449 = scmp.lt.s32.totalorder %s47, 1
      %s3450 = scalar_select %p3449, %s47, 1
      %s3451 = smul.addr %s3450, 8
      %s3452 = smul.addr %s3451, 8
      %s3453 = scalar_lea.vmem %s22, %s3452
      %p3454 = scmp.lt.s32.totalorder %s47, 1
      %s3455 = scalar_select %p3454, %s47, 1
      %s3456 = smul.addr %s3455, 2
      %s3457 = smul.addr %s3456, 8
      %s3458 = scalar_lea.vmem %s23, %s3457
      // Predicated region
      $region109: #{unet_controlnet_forward.2} parent=99 // pred_check
        %p3459 = pneg %p595
      $region110: #{unet_controlnet_forward.2} parent=99 // pred_check_branch
        %3461 = sbr.rel (%p3459) target = $region112
      $region111: #{unet_controlnet_forward.2} parent=99 // pred_region
        _
      $region112: #{unet_controlnet_forward.2} parent=99 // pred_fallthru
        _
      // Predicated region
      $region113: #{unet_controlnet_forward.2} parent=99 // pred_check
        %p3462 = pneg %p621
      $region114: #{unet_controlnet_forward.2} parent=99 // pred_check_branch
        %3464 = sbr.rel (%p3462) target = $region116
      $region115: #{unet_controlnet_forward.2} parent=99 // pred_region
        _
      $region116: #{unet_controlnet_forward.2} parent=99 // pred_fallthru
        _
      // Predicated region
      $region117: #{unet_controlnet_forward.2} parent=99 // pred_check
        %p3465 = pneg %p647
      $region118: #{unet_controlnet_forward.2} parent=99 // pred_check_branch
        %3467 = sbr.rel (%p3465) target = $region120
      $region119: #{unet_controlnet_forward.2} parent=99 // pred_region
        _
      $region120: #{unet_controlnet_forward.2} parent=99 // pred_fallthru
        _
    $region100: #{unet_controlnet_forward.2} parent=5 // pred_fallthru
      _
    %p3468 = scmp.le.s32.totalorder 2, %s38
    // Predicated region
    $region121: #{unet_controlnet_forward.2} parent=5 // pred_check
      %p3469 = pneg %p3468
    $region122: #{unet_controlnet_forward.2} parent=5 // pred_check_branch
      %3471 = sbr.rel (%p3469) target = $region124
    $region123: #{unet_controlnet_forward.2} parent=5 // pred_region
      %s3472 = ssub.s32 %s38, 2
      // Predicated region
      $region125: #{unet_controlnet_forward.2} parent=123 // pred_check
        %p3473 = pneg %p601
      $region126: #{unet_controlnet_forward.2} parent=123 // pred_check_branch
        %3475 = sbr.rel (%p3473) target = $region128
      $region127: #{unet_controlnet_forward.2} parent=123 // pred_region
        %p3476 = scmp.lt.s32.totalorder %s49, 1
        %s3477 = scalar_select %p3476, %s49, 1
        %s3478 = smul.addr %s3477, 32
        %s3479 = smul.addr %s3478, 8
        %s3480 = scalar_lea.vmem %s21, %s3479
      $region128: #{unet_controlnet_forward.2} parent=123 // pred_fallthru
        _
      // Predicated region
      $region129: #{unet_controlnet_forward.2} parent=123 // pred_check
        %p3481 = pneg %p627
      $region130: #{unet_controlnet_forward.2} parent=123 // pred_check_branch
        %3483 = sbr.rel (%p3481) target = $region132
      $region131: #{unet_controlnet_forward.2} parent=123 // pred_region
        %p3484 = scmp.lt.s32.totalorder %s49, 1
        %s3485 = scalar_select %p3484, %s49, 1
        %s3486 = smul.addr %s3485, 8
        %s3487 = smul.addr %s3486, 8
        %s3488 = scalar_lea.vmem %s22, %s3487
      $region132: #{unet_controlnet_forward.2} parent=123 // pred_fallthru
        _
      // Predicated region
      $region133: #{unet_controlnet_forward.2} parent=123 // pred_check
        %p3489 = pneg %p653
      $region134: #{unet_controlnet_forward.2} parent=123 // pred_check_branch
        %3491 = sbr.rel (%p3489) target = $region136
      $region135: #{unet_controlnet_forward.2} parent=123 // pred_region
        %p3492 = scmp.lt.s32.totalorder %s49, 1
        %s3493 = scalar_select %p3492, %s49, 1
        %s3494 = smul.addr %s3493, 2
        %s3495 = smul.addr %s3494, 8
        %s3496 = scalar_lea.vmem %s23, %s3495
      $region136: #{unet_controlnet_forward.2} parent=123 // pred_fallthru
        _
    $region124: #{unet_controlnet_forward.2} parent=5 // pred_fallthru
      _
  $region6: #{unet_controlnet_forward.2} parent=0 // loop_footer
    %s42 = sadd.s32 1, %s38
  $region7: #{unet_controlnet_forward.2} parent=0 // loop_footer_branch
    %37 = sbr.rel target = $region3
  $region8: #{unet_controlnet_forward.2} parent=0 // loop_exit
    _

</llo_original>
